<compile_context>
chip_gen: v5e
topology: v5e:2x2
jax: 0.10.0
libtpu: 0.0.40
codegen_flags: <defaults>
</compile_context>

<pallas_src>
import functools

import jax
import jax.numpy as jnp
from jax.experimental import pallas as pl
from jax.experimental.pallas import tpu as pltpu

IN_FEATURES = 8
HIDDEN = 128
OUT_FEATURES = 1
NEG_SLOPE = 0.01          # F.leaky_relu default
BN_EPS = 1e-5             # nn.BatchNorm1d default
P_DROP1 = 0.1
P_DROP2 = 0.4
MAX_TILE = 2048           # batch rows per grid step (lane axis; multiple of 128)

# dropout thresholds on 16-bit uniform fields: drop iff field < threshold
_THRESH1 = int(round(P_DROP1 * 65536))   # 6554
_THRESH2 = int(round(P_DROP2 * 65536))   # 26214


def _leaky_relu(x):
    # max(x, 0.01*x) == leaky_relu(x); one fewer VALU op than where(x>0,...)
    return jnp.maximum(x, NEG_SLOPE * x)


def _hash_bits(shape, seed_u32):
    """Counter-based hash PRNG -> uint32 bits (pure 32-bit vector int ops).

    Called ONCE per tile; the two dropout masks use the low / high 16 bits.
    (Portable across TPU generations and the CPU interpreter, unlike
    pltpu.prng_* which has no interpret-mode lowering.)
    """
    r = jax.lax.broadcasted_iota(jnp.int32, shape, 0).astype(jnp.uint32)
    c = jax.lax.broadcasted_iota(jnp.int32, shape, 1).astype(jnp.uint32)
    h = (r * jnp.uint32(0x9E3779B1)) ^ (c * jnp.uint32(0x85EBCA77))
    h = h + seed_u32 * jnp.uint32(0x27D4EB2F)
    # murmur3-style finalizer so both 16-bit halves are well mixed
    h = h ^ (h >> 16)
    h = h * jnp.uint32(0x7FEB352D)
    h = h ^ (h >> 15)
    h = h * jnp.uint32(0x846CA68B)
    h = h ^ (h >> 16)
    return h


def mlp_kernel(tb, any_padding,
               scalars_ref,                              # SMEM: [seed, B]
               x_ref,                                    # (IN_FEATURES, tb) bf16
               w1_ref, w2_ref, w3_ref, w4_ref, w6_ref,   # bf16 weights, (out, in)
               vec_ref,                                  # (HIDDEN, 8) f32 packed vectors
               out_ref):                                 # (1, tb) f32 (lane-dense)
    pid = pl.program_id(0)
    # mix tile index into the seed so tiles do not reuse dropout masks
    seed_u32 = (scalars_ref[0] + pid).astype(jnp.uint32)

    # packed per-feature vectors: [b1 b2 b3 b4 gamma beta b6 0]
    vec = vec_ref[...]
    b1, b2, b3, b4 = vec[:, 0:1], vec[:, 1:2], vec[:, 2:3], vec[:, 3:4]
    gamma, beta, b6 = vec[:, 4:5], vec[:, 5:6], vec[0:1, 6:7]

    # Batch-reduction vector (length tb) for MXU-based BN statistics.  Padded
    # lanes of a ragged last tile get weight 0, so masking is folded into the
    # reduction itself; the mask build is gated to the ragged tile only.
    if any_padding:
        n_valid = jnp.minimum(jnp.int32(tb), scalars_ref[1] - pid * tb)

        def _masked_v():
            col = jax.lax.broadcasted_iota(jnp.int32, (tb, 1), 0)
            return (col < n_valid).astype(jnp.float32)

        v = jax.lax.cond(n_valid < tb, _masked_v,
                         lambda: jnp.ones((tb, 1), jnp.float32))
        inv_cnt = 1.0 / jnp.maximum(n_valid, 1).astype(jnp.float32)
    else:
        v = jnp.ones((tb, 1), jnp.float32)
        inv_cnt = jnp.float32(1.0 / tb)

    def bn(h):
        # training-mode BatchNorm1d (biased variance); batch sums on the MXU
        mean = jnp.dot(h, v, precision=jax.lax.Precision.HIGHEST,
                       preferred_element_type=jnp.float32) * inv_cnt
        ex2 = jnp.dot(h * h, v, precision=jax.lax.Precision.HIGHEST,
                      preferred_element_type=jnp.float32) * inv_cnt
        var = ex2 - mean * mean
        scale = jax.lax.rsqrt(var + BN_EPS) * gamma
        shift = beta - mean * scale
        return h * scale + shift

    def fc(w_ref, h, b):
        # (out, in) bf16 @ (in, tb) bf16 -> (out, tb) f32
        return jnp.dot(w_ref[...], h.astype(jnp.bfloat16),
                       preferred_element_type=jnp.float32) + b

    x = x_ref[...]                                        # already bf16
    h1 = bn(_leaky_relu(fc(w1_ref, x, b1)))
    h2 = bn(_leaky_relu(fc(w2_ref, h1, b2)))
    h3 = bn(_leaky_relu(fc(w3_ref, h2, b3)))

    # one hash per tile; disjoint 16-bit halves -> two keep masks.
    # 1/(1-p) rescale is folded into w4 / w6 in the wrapper.
    bits = _hash_bits((HIDDEN, tb), seed_u32)
    keep1 = (bits & jnp.uint32(0xFFFF)).astype(jnp.int32) >= _THRESH1
    keep2 = (bits >> 16).astype(jnp.int32) >= _THRESH2

    h3 = jnp.where(keep1, h3, 0.0)
    h4 = bn(_leaky_relu(fc(w4_ref, h3, b4)))
    h4 = jnp.where(keep2, h4, 0.0)

    # fc6: weight padded to 8 output rows in the wrapper (rows 1..7 are zero);
    # take row 0 and add b6.  The (1, tb) store is lane-dense.
    f1 = jnp.dot(w6_ref[...], h4.astype(jnp.bfloat16),
                 preferred_element_type=jnp.float32)      # (8, tb)
    out_ref[...] = f1[0:1, :] + b6


def _resident_spec(shape):
    # constant index_map -> block stays VMEM-resident across grid steps
    return pl.BlockSpec(shape, lambda i, s: (0, 0))


def multivariate_linear_regression(x, params, seed=0, tile=MAX_TILE):
    """x: (B, IN_FEATURES) float32.  Returns torch.squeeze of the (B, 1) output."""
    B = x.shape[0]
    (w1, b1, w2, b2, w3, b3, w4, b4, w6, b6, gamma, beta) = params

    # Fold the dropout 1/(1-p) rescale into the downstream weights (exact,
    # and removes per-element multiplies from the saturated VALU slot).
    w4 = w4 * (1.0 / (1.0 - P_DROP1))
    w6 = w6 * (1.0 / (1.0 - P_DROP2))
    # Pad fc6's weight to 8 output rows (zeros) so the final matmul has M=8.
    w6p = jnp.zeros((8, HIDDEN), jnp.float32).at[0:1, :].set(w6)

    # MXU operands in bf16 (f32 accumulation in-kernel).
    w1b, w2b, w3b, w4b, w6b = (w.astype(jnp.bfloat16)
                               for w in (w1, w2, w3, w4, w6p))

    # Pack the per-feature vectors into one resident (HIDDEN, 8) f32 block.
    vec = jnp.stack(
        [b1, b2, b3, b4, gamma, beta,
         jnp.broadcast_to(b6, (HIDDEN,)).astype(jnp.float32),
         jnp.zeros((HIDDEN,), jnp.float32)], axis=1)

    if B <= tile:
        tb, b_pad = B, B                      # single tile: exact full-batch BN
    else:
        tb = tile
        b_pad = pl.cdiv(B, tile) * tile       # pad batch to a multiple of TILE
    any_padding = b_pad != B

    # Feature-major layout: batch on the lane axis -> lane-dense x / output.
    xt = jnp.pad(x, ((0, b_pad - B), (0, 0))).T.astype(jnp.bfloat16)

    scalars = jnp.array([seed, B], dtype=jnp.int32)

    out = pl.pallas_call(
        functools.partial(mlp_kernel, tb, any_padding),
        out_shape=jax.ShapeDtypeStruct((OUT_FEATURES, b_pad), jnp.float32),
        grid_spec=pltpu.PrefetchScalarGridSpec(
            num_scalar_prefetch=1,
            grid=(b_pad // tb,),
            in_specs=[
                pl.BlockSpec((IN_FEATURES, tb), lambda i, s: (0, i)),
                _resident_spec((HIDDEN, IN_FEATURES)),
                _resident_spec((HIDDEN, HIDDEN)),
                _resident_spec((HIDDEN, HIDDEN)),
                _resident_spec((HIDDEN, HIDDEN)),
                _resident_spec((8, HIDDEN)),
                _resident_spec((HIDDEN, 8)),
            ],
            out_specs=pl.BlockSpec((OUT_FEATURES, tb), lambda i, s: (0, i)),
        ),
        compiler_params=pltpu.CompilerParams(
            dimension_semantics=("parallel",),          # megacore sharding (v7x)
            vmem_limit_bytes=32 * 1024 * 1024,          # safe on v5e/v6e/v7x
        ),
    )(scalars, xt, w1b, w2b, w3b, w4b, w6b, vec)

    # torch.squeeze(f1): (B, 1) -> (B,)
    return jnp.squeeze(out[:, :B])


def init_params(key):
    """PyTorch-layout params: Linear weight (out, in), bias (out,), init
    U(-1/sqrt(fan_in), 1/sqrt(fan_in)); shared BatchNorm1d gamma=1, beta=0."""
    def linear(k, fan_in, fan_out):
        kw, kb = jax.random.split(k)
        bound = float(fan_in) ** -0.5
        w = jax.random.uniform(kw, (fan_out, fan_in), jnp.float32, -bound, bound)
        b = jax.random.uniform(kb, (fan_out,), jnp.float32, -bound, bound)
        return w, b

    k1, k2, k3, k4, k6 = jax.random.split(key, 5)
    w1, b1 = linear(k1, IN_FEATURES, HIDDEN)
    w2, b2 = linear(k2, HIDDEN, HIDDEN)
    w3, b3 = linear(k3, HIDDEN, HIDDEN)
    w4, b4 = linear(k4, HIDDEN, HIDDEN)
    w6, b6 = linear(k6, HIDDEN, OUT_FEATURES)
    gamma = jnp.ones((HIDDEN,), jnp.float32)
    beta = jnp.zeros((HIDDEN,), jnp.float32)
    return (w1, b1, w2, b2, w3, b3, w4, b4, w6, b6, gamma, beta)


if __name__ == "__main__":
    key = jax.random.PRNGKey(0)
    kx, kp = jax.random.split(key)

    B = 64
    x = jax.random.normal(kx, (B, IN_FEATURES), jnp.float32)
    params = init_params(kp)

    fn = jax.jit(functools.partial(multivariate_linear_regression, seed=0))
    out = fn(x, params)
    jax.block_until_ready(out)

    assert out.shape == (B,), out.shape
    assert out.dtype == jnp.float32
    assert bool(jnp.all(jnp.isfinite(out)))
    print("KERNEL_OK")
</pallas_src>

<mosaic_0001>
module attributes {stable_mosaic.version = 11 : i64} {
  func.func @mlp_kernel(%arg0: i32, %arg1: memref<2xi32, #tpu.memory_space<smem>>, %arg2: memref<8x64xbf16, #tpu.memory_space<vmem>>, %arg3: memref<128x8xbf16, #tpu.memory_space<vmem>>, %arg4: memref<128x128xbf16, #tpu.memory_space<vmem>>, %arg5: memref<128x128xbf16, #tpu.memory_space<vmem>>, %arg6: memref<128x128xbf16, #tpu.memory_space<vmem>>, %arg7: memref<8x128xbf16, #tpu.memory_space<vmem>>, %arg8: memref<128x8xf32, #tpu.memory_space<vmem>>, %arg9: memref<1x64xf32, #tpu.memory_space<vmem>>) attributes {dimension_semantics = [#tpu.dimension_semantics<parallel>], iteration_bounds = array<i64: 1>, scalar_prefetch = 1 : i64, scratch_operands = 0 : i64, tpu.core_type = #tpu.core_type<tc>, window_params = [{transform_indices = @transform_0, window_bounds = array<i64: 8, 64>}, {pipeline_mode = #tpu.pipeline_mode<synchronous>, transform_indices = @transform_1, window_bounds = array<i64: 128, 8>}, {pipeline_mode = #tpu.pipeline_mode<synchronous>, transform_indices = @transform_2, window_bounds = array<i64: 128, 128>}, {pipeline_mode = #tpu.pipeline_mode<synchronous>, transform_indices = @transform_3, window_bounds = array<i64: 128, 128>}, {pipeline_mode = #tpu.pipeline_mode<synchronous>, transform_indices = @transform_4, window_bounds = array<i64: 128, 128>}, {pipeline_mode = #tpu.pipeline_mode<synchronous>, transform_indices = @transform_5, window_bounds = array<i64: 8, 128>}, {pipeline_mode = #tpu.pipeline_mode<synchronous>, transform_indices = @transform_6, window_bounds = array<i64: 128, 8>}, {transform_indices = @transform_7, window_bounds = array<i64: 1, 64>}]} {
    %c0 = arith.constant 0 : index
    %0 = memref.load %arg1[%c0] : memref<2xi32, #tpu.memory_space<smem>>
    %1 = arith.addi %0, %arg0 : i32
    %c0_0 = arith.constant 0 : index
    %c0_1 = arith.constant 0 : index
    %2 = vector.load %arg8[%c0_0, %c0_1] : memref<128x8xf32, #tpu.memory_space<vmem>>, vector<128x8xf32>
    %3 = vector.extract_strided_slice %2 {offsets = [0, 0], sizes = [128, 1], strides = [1, 1]} : vector<128x8xf32> to vector<128x1xf32>
    %4 = vector.extract_strided_slice %2 {offsets = [0, 1], sizes = [128, 1], strides = [1, 1]} : vector<128x8xf32> to vector<128x1xf32>
    %5 = vector.extract_strided_slice %2 {offsets = [0, 2], sizes = [128, 1], strides = [1, 1]} : vector<128x8xf32> to vector<128x1xf32>
    %6 = vector.extract_strided_slice %2 {offsets = [0, 3], sizes = [128, 1], strides = [1, 1]} : vector<128x8xf32> to vector<128x1xf32>
    %7 = vector.extract_strided_slice %2 {offsets = [0, 4], sizes = [128, 1], strides = [1, 1]} : vector<128x8xf32> to vector<128x1xf32>
    %8 = vector.extract_strided_slice %2 {offsets = [0, 5], sizes = [128, 1], strides = [1, 1]} : vector<128x8xf32> to vector<128x1xf32>
    %9 = vector.extract_strided_slice %2 {offsets = [0, 6], sizes = [1, 1], strides = [1, 1]} : vector<128x8xf32> to vector<1x1xf32>
    %cst = arith.constant 1.000000e+00 : f32
    %10 = vector.broadcast %cst : f32 to vector<64x1xf32>
    %c0_2 = arith.constant 0 : index
    %c0_3 = arith.constant 0 : index
    %11 = vector.load %arg2[%c0_2, %c0_3] : memref<8x64xbf16, #tpu.memory_space<vmem>>, vector<8x64xbf16>
    %c0_4 = arith.constant 0 : index
    %c0_5 = arith.constant 0 : index
    %12 = vector.load %arg3[%c0_4, %c0_5] : memref<128x8xbf16, #tpu.memory_space<vmem>>, vector<128x8xbf16>
    %cst_6 = arith.constant dense<0.000000e+00> : vector<128x64xf32>
    %13 = tpu.matmul %12, %11, %cst_6 {dimension_numbers = #tpu.dot_dimension_numbers<[1], [0], [0], [1], [0, 0, 1, 1], [], []>} : vector<128x8xbf16>, vector<8x64xbf16>, vector<128x64xf32> -> vector<128x64xf32>
    %14 = vector.broadcast %3 : vector<128x1xf32> to vector<128x64xf32>
    %15 = arith.addf %13, %14 : vector<128x64xf32>
    %cst_7 = arith.constant 0.00999999977 : f32
    %16 = vector.broadcast %cst_7 : f32 to vector<128x64xf32>
    %17 = arith.mulf %16, %15 : vector<128x64xf32>
    %18 = arith.maximumf %15, %17 : vector<128x64xf32>
    %cst_8 = arith.constant dense<0.000000e+00> : vector<128x1xf32>
    %19 = tpu.matmul %18, %10, %cst_8 {dimension_numbers = #tpu.dot_dimension_numbers<[1], [0], [0], [1], [0, 0, 1, 1], [], []>, precision = #tpu.contract_precision<fp32>} : vector<128x64xf32>, vector<64x1xf32>, vector<128x1xf32> -> vector<128x1xf32>
    %cst_9 = arith.constant 1.562500e-02 : f32
    %20 = vector.broadcast %cst_9 : f32 to vector<128x1xf32>
    %21 = arith.mulf %19, %20 : vector<128x1xf32>
    %22 = arith.mulf %18, %18 : vector<128x64xf32>
    %cst_10 = arith.constant dense<0.000000e+00> : vector<128x1xf32>
    %23 = tpu.matmul %22, %10, %cst_10 {dimension_numbers = #tpu.dot_dimension_numbers<[1], [0], [0], [1], [0, 0, 1, 1], [], []>, precision = #tpu.contract_precision<fp32>} : vector<128x64xf32>, vector<64x1xf32>, vector<128x1xf32> -> vector<128x1xf32>
    %cst_11 = arith.constant 1.562500e-02 : f32
    %24 = vector.broadcast %cst_11 : f32 to vector<128x1xf32>
    %25 = arith.mulf %23, %24 : vector<128x1xf32>
    %26 = arith.mulf %21, %21 : vector<128x1xf32>
    %27 = arith.subf %25, %26 : vector<128x1xf32>
    %cst_12 = arith.constant 9.99999974E-6 : f32
    %28 = vector.broadcast %cst_12 : f32 to vector<128x1xf32>
    %29 = arith.addf %27, %28 : vector<128x1xf32>
    %30 = math.rsqrt %29 : vector<128x1xf32>
    %31 = arith.mulf %30, %7 : vector<128x1xf32>
    %32 = arith.mulf %21, %31 : vector<128x1xf32>
    %33 = arith.subf %8, %32 : vector<128x1xf32>
    %34 = vector.broadcast %31 : vector<128x1xf32> to vector<128x64xf32>
    %35 = arith.mulf %18, %34 : vector<128x64xf32>
    %36 = vector.broadcast %33 : vector<128x1xf32> to vector<128x64xf32>
    %37 = arith.addf %35, %36 : vector<128x64xf32>
    %c0_13 = arith.constant 0 : index
    %c0_14 = arith.constant 0 : index
    %38 = vector.load %arg4[%c0_13, %c0_14] : memref<128x128xbf16, #tpu.memory_space<vmem>>, vector<128x128xbf16>
    %39 = arith.truncf %37 : vector<128x64xf32> to vector<128x64xbf16>
    %cst_15 = arith.constant dense<0.000000e+00> : vector<128x64xf32>
    %40 = tpu.matmul %38, %39, %cst_15 {dimension_numbers = #tpu.dot_dimension_numbers<[1], [0], [0], [1], [0, 0, 1, 1], [], []>} : vector<128x128xbf16>, vector<128x64xbf16>, vector<128x64xf32> -> vector<128x64xf32>
    %41 = vector.broadcast %4 : vector<128x1xf32> to vector<128x64xf32>
    %42 = arith.addf %40, %41 : vector<128x64xf32>
    %cst_16 = arith.constant 0.00999999977 : f32
    %43 = vector.broadcast %cst_16 : f32 to vector<128x64xf32>
    %44 = arith.mulf %43, %42 : vector<128x64xf32>
    %45 = arith.maximumf %42, %44 : vector<128x64xf32>
    %cst_17 = arith.constant dense<0.000000e+00> : vector<128x1xf32>
    %46 = tpu.matmul %45, %10, %cst_17 {dimension_numbers = #tpu.dot_dimension_numbers<[1], [0], [0], [1], [0, 0, 1, 1], [], []>, precision = #tpu.contract_precision<fp32>} : vector<128x64xf32>, vector<64x1xf32>, vector<128x1xf32> -> vector<128x1xf32>
    %cst_18 = arith.constant 1.562500e-02 : f32
    %47 = vector.broadcast %cst_18 : f32 to vector<128x1xf32>
    %48 = arith.mulf %46, %47 : vector<128x1xf32>
    %49 = arith.mulf %45, %45 : vector<128x64xf32>
    %cst_19 = arith.constant dense<0.000000e+00> : vector<128x1xf32>
    %50 = tpu.matmul %49, %10, %cst_19 {dimension_numbers = #tpu.dot_dimension_numbers<[1], [0], [0], [1], [0, 0, 1, 1], [], []>, precision = #tpu.contract_precision<fp32>} : vector<128x64xf32>, vector<64x1xf32>, vector<128x1xf32> -> vector<128x1xf32>
    %cst_20 = arith.constant 1.562500e-02 : f32
    %51 = vector.broadcast %cst_20 : f32 to vector<128x1xf32>
    %52 = arith.mulf %50, %51 : vector<128x1xf32>
    %53 = arith.mulf %48, %48 : vector<128x1xf32>
    %54 = arith.subf %52, %53 : vector<128x1xf32>
    %cst_21 = arith.constant 9.99999974E-6 : f32
    %55 = vector.broadcast %cst_21 : f32 to vector<128x1xf32>
    %56 = arith.addf %54, %55 : vector<128x1xf32>
    %57 = math.rsqrt %56 : vector<128x1xf32>
    %58 = arith.mulf %57, %7 : vector<128x1xf32>
    %59 = arith.mulf %48, %58 : vector<128x1xf32>
    %60 = arith.subf %8, %59 : vector<128x1xf32>
    %61 = vector.broadcast %58 : vector<128x1xf32> to vector<128x64xf32>
    %62 = arith.mulf %45, %61 : vector<128x64xf32>
    %63 = vector.broadcast %60 : vector<128x1xf32> to vector<128x64xf32>
    %64 = arith.addf %62, %63 : vector<128x64xf32>
    %c0_22 = arith.constant 0 : index
    %c0_23 = arith.constant 0 : index
    %65 = vector.load %arg5[%c0_22, %c0_23] : memref<128x128xbf16, #tpu.memory_space<vmem>>, vector<128x128xbf16>
    %66 = arith.truncf %64 : vector<128x64xf32> to vector<128x64xbf16>
    %cst_24 = arith.constant dense<0.000000e+00> : vector<128x64xf32>
    %67 = tpu.matmul %65, %66, %cst_24 {dimension_numbers = #tpu.dot_dimension_numbers<[1], [0], [0], [1], [0, 0, 1, 1], [], []>} : vector<128x128xbf16>, vector<128x64xbf16>, vector<128x64xf32> -> vector<128x64xf32>
    %68 = vector.broadcast %5 : vector<128x1xf32> to vector<128x64xf32>
    %69 = arith.addf %67, %68 : vector<128x64xf32>
    %cst_25 = arith.constant 0.00999999977 : f32
    %70 = vector.broadcast %cst_25 : f32 to vector<128x64xf32>
    %71 = arith.mulf %70, %69 : vector<128x64xf32>
    %72 = arith.maximumf %69, %71 : vector<128x64xf32>
    %cst_26 = arith.constant dense<0.000000e+00> : vector<128x1xf32>
    %73 = tpu.matmul %72, %10, %cst_26 {dimension_numbers = #tpu.dot_dimension_numbers<[1], [0], [0], [1], [0, 0, 1, 1], [], []>, precision = #tpu.contract_precision<fp32>} : vector<128x64xf32>, vector<64x1xf32>, vector<128x1xf32> -> vector<128x1xf32>
    %cst_27 = arith.constant 1.562500e-02 : f32
    %74 = vector.broadcast %cst_27 : f32 to vector<128x1xf32>
    %75 = arith.mulf %73, %74 : vector<128x1xf32>
    %76 = arith.mulf %72, %72 : vector<128x64xf32>
    %cst_28 = arith.constant dense<0.000000e+00> : vector<128x1xf32>
    %77 = tpu.matmul %76, %10, %cst_28 {dimension_numbers = #tpu.dot_dimension_numbers<[1], [0], [0], [1], [0, 0, 1, 1], [], []>, precision = #tpu.contract_precision<fp32>} : vector<128x64xf32>, vector<64x1xf32>, vector<128x1xf32> -> vector<128x1xf32>
    %cst_29 = arith.constant 1.562500e-02 : f32
    %78 = vector.broadcast %cst_29 : f32 to vector<128x1xf32>
    %79 = arith.mulf %77, %78 : vector<128x1xf32>
    %80 = arith.mulf %75, %75 : vector<128x1xf32>
    %81 = arith.subf %79, %80 : vector<128x1xf32>
    %cst_30 = arith.constant 9.99999974E-6 : f32
    %82 = vector.broadcast %cst_30 : f32 to vector<128x1xf32>
    %83 = arith.addf %81, %82 : vector<128x1xf32>
    %84 = math.rsqrt %83 : vector<128x1xf32>
    %85 = arith.mulf %84, %7 : vector<128x1xf32>
    %86 = arith.mulf %75, %85 : vector<128x1xf32>
    %87 = arith.subf %8, %86 : vector<128x1xf32>
    %88 = vector.broadcast %85 : vector<128x1xf32> to vector<128x64xf32>
    %89 = arith.mulf %72, %88 : vector<128x64xf32>
    %90 = vector.broadcast %87 : vector<128x1xf32> to vector<128x64xf32>
    %91 = arith.addf %89, %90 : vector<128x64xf32>
    %92 = tpu.iota {dimensions = array<i32: 0>} : vector<128x64xi32>
    %93 = tpu.iota {dimensions = array<i32: 1>} : vector<128x64xi32>
    %c-1640531535_i32 = arith.constant -1640531535 : i32
    %94 = vector.broadcast %c-1640531535_i32 : i32 to vector<128x64xi32>
    %95 = arith.muli %92, %94 : vector<128x64xi32>
    %c-2048144777_i32 = arith.constant -2048144777 : i32
    %96 = vector.broadcast %c-2048144777_i32 : i32 to vector<128x64xi32>
    %97 = arith.muli %93, %96 : vector<128x64xi32>
    %98 = arith.xori %95, %97 : vector<128x64xi32>
    %c668265263_i32 = arith.constant 668265263 : i32
    %99 = arith.muli %1, %c668265263_i32 : i32
    %100 = vector.broadcast %99 : i32 to vector<128x64xi32>
    %101 = arith.addi %98, %100 : vector<128x64xi32>
    %c16_i32 = arith.constant 16 : i32
    %102 = vector.broadcast %c16_i32 : i32 to vector<128x64xi32>
    %103 = arith.shrui %101, %102 : vector<128x64xi32>
    %104 = arith.xori %101, %103 : vector<128x64xi32>
    %c2146121005_i32 = arith.constant 2146121005 : i32
    %105 = vector.broadcast %c2146121005_i32 : i32 to vector<128x64xi32>
    %106 = arith.muli %104, %105 : vector<128x64xi32>
    %c15_i32 = arith.constant 15 : i32
    %107 = vector.broadcast %c15_i32 : i32 to vector<128x64xi32>
    %108 = arith.shrui %106, %107 : vector<128x64xi32>
    %109 = arith.xori %106, %108 : vector<128x64xi32>
    %c-2073254261_i32 = arith.constant -2073254261 : i32
    %110 = vector.broadcast %c-2073254261_i32 : i32 to vector<128x64xi32>
    %111 = arith.muli %109, %110 : vector<128x64xi32>
    %c16_i32_31 = arith.constant 16 : i32
    %112 = vector.broadcast %c16_i32_31 : i32 to vector<128x64xi32>
    %113 = arith.shrui %111, %112 : vector<128x64xi32>
    %114 = arith.xori %111, %113 : vector<128x64xi32>
    %c65535_i32 = arith.constant 65535 : i32
    %115 = vector.broadcast %c65535_i32 : i32 to vector<128x64xi32>
    %116 = arith.andi %114, %115 : vector<128x64xi32>
    %c6554_i32 = arith.constant 6554 : i32
    %117 = vector.broadcast %c6554_i32 : i32 to vector<128x64xi32>
    %118 = arith.cmpi sge, %116, %117 : vector<128x64xi32>
    %c16_i32_32 = arith.constant 16 : i32
    %119 = vector.broadcast %c16_i32_32 : i32 to vector<128x64xi32>
    %120 = arith.shrui %114, %119 : vector<128x64xi32>
    %c26214_i32 = arith.constant 26214 : i32
    %121 = vector.broadcast %c26214_i32 : i32 to vector<128x64xi32>
    %122 = arith.cmpi sge, %120, %121 : vector<128x64xi32>
    %cst_33 = arith.constant 0.000000e+00 : f32
    %123 = vector.broadcast %cst_33 : f32 to vector<128x64xf32>
    %124 = arith.select %118, %91, %123 : vector<128x64xi1>, vector<128x64xf32>
    %c0_34 = arith.constant 0 : index
    %c0_35 = arith.constant 0 : index
    %125 = vector.load %arg6[%c0_34, %c0_35] : memref<128x128xbf16, #tpu.memory_space<vmem>>, vector<128x128xbf16>
    %126 = arith.truncf %124 : vector<128x64xf32> to vector<128x64xbf16>
    %cst_36 = arith.constant dense<0.000000e+00> : vector<128x64xf32>
    %127 = tpu.matmul %125, %126, %cst_36 {dimension_numbers = #tpu.dot_dimension_numbers<[1], [0], [0], [1], [0, 0, 1, 1], [], []>} : vector<128x128xbf16>, vector<128x64xbf16>, vector<128x64xf32> -> vector<128x64xf32>
    %128 = vector.broadcast %6 : vector<128x1xf32> to vector<128x64xf32>
    %129 = arith.addf %127, %128 : vector<128x64xf32>
    %cst_37 = arith.constant 0.00999999977 : f32
    %130 = vector.broadcast %cst_37 : f32 to vector<128x64xf32>
    %131 = arith.mulf %130, %129 : vector<128x64xf32>
    %132 = arith.maximumf %129, %131 : vector<128x64xf32>
    %cst_38 = arith.constant dense<0.000000e+00> : vector<128x1xf32>
    %133 = tpu.matmul %132, %10, %cst_38 {dimension_numbers = #tpu.dot_dimension_numbers<[1], [0], [0], [1], [0, 0, 1, 1], [], []>, precision = #tpu.contract_precision<fp32>} : vector<128x64xf32>, vector<64x1xf32>, vector<128x1xf32> -> vector<128x1xf32>
    %cst_39 = arith.constant 1.562500e-02 : f32
    %134 = vector.broadcast %cst_39 : f32 to vector<128x1xf32>
    %135 = arith.mulf %133, %134 : vector<128x1xf32>
    %136 = arith.mulf %132, %132 : vector<128x64xf32>
    %cst_40 = arith.constant dense<0.000000e+00> : vector<128x1xf32>
    %137 = tpu.matmul %136, %10, %cst_40 {dimension_numbers = #tpu.dot_dimension_numbers<[1], [0], [0], [1], [0, 0, 1, 1], [], []>, precision = #tpu.contract_precision<fp32>} : vector<128x64xf32>, vector<64x1xf32>, vector<128x1xf32> -> vector<128x1xf32>
    %cst_41 = arith.constant 1.562500e-02 : f32
    %138 = vector.broadcast %cst_41 : f32 to vector<128x1xf32>
    %139 = arith.mulf %137, %138 : vector<128x1xf32>
    %140 = arith.mulf %135, %135 : vector<128x1xf32>
    %141 = arith.subf %139, %140 : vector<128x1xf32>
    %cst_42 = arith.constant 9.99999974E-6 : f32
    %142 = vector.broadcast %cst_42 : f32 to vector<128x1xf32>
    %143 = arith.addf %141, %142 : vector<128x1xf32>
    %144 = math.rsqrt %143 : vector<128x1xf32>
    %145 = arith.mulf %144, %7 : vector<128x1xf32>
    %146 = arith.mulf %135, %145 : vector<128x1xf32>
    %147 = arith.subf %8, %146 : vector<128x1xf32>
    %148 = vector.broadcast %145 : vector<128x1xf32> to vector<128x64xf32>
    %149 = arith.mulf %132, %148 : vector<128x64xf32>
    %150 = vector.broadcast %147 : vector<128x1xf32> to vector<128x64xf32>
    %151 = arith.addf %149, %150 : vector<128x64xf32>
    %cst_43 = arith.constant 0.000000e+00 : f32
    %152 = vector.broadcast %cst_43 : f32 to vector<128x64xf32>
    %153 = arith.select %122, %151, %152 : vector<128x64xi1>, vector<128x64xf32>
    %c0_44 = arith.constant 0 : index
    %c0_45 = arith.constant 0 : index
    %154 = vector.load %arg7[%c0_44, %c0_45] : memref<8x128xbf16, #tpu.memory_space<vmem>>, vector<8x128xbf16>
    %155 = arith.truncf %153 : vector<128x64xf32> to vector<128x64xbf16>
    %cst_46 = arith.constant dense<0.000000e+00> : vector<8x64xf32>
    %156 = tpu.matmul %154, %155, %cst_46 {dimension_numbers = #tpu.dot_dimension_numbers<[1], [0], [0], [1], [0, 0, 1, 1], [], []>} : vector<8x128xbf16>, vector<128x64xbf16>, vector<8x64xf32> -> vector<8x64xf32>
    %157 = vector.extract_strided_slice %156 {offsets = [0, 0], sizes = [1, 64], strides = [1, 1]} : vector<8x64xf32> to vector<1x64xf32>
    %158 = vector.broadcast %9 : vector<1x1xf32> to vector<1x64xf32>
    %159 = arith.addf %157, %158 : vector<1x64xf32>
    %c0_47 = arith.constant 0 : index
    %c0_48 = arith.constant 0 : index
    %160 = vector.load %arg9[%c0_47, %c0_48] : memref<1x64xf32, #tpu.memory_space<vmem>>, vector<1x64xf32>
    tpu.vector_store %arg9[%c0_47, %c0_48], %159 {strides = array<i32>} : memref<1x64xf32, #tpu.memory_space<vmem>>, vector<1x64xf32>,
    return
  }
  func.func @transform_0(%arg0: i32, %arg1: memref<2xi32, #tpu.memory_space<smem>>) -> (i32, i32) {
    %c0_i32 = arith.constant 0 : i32
    %c0_i32_0 = arith.constant 0 : i32
    return %c0_i32, %arg0 : i32, i32
  }
  func.func @transform_1(%arg0: i32, %arg1: memref<2xi32, #tpu.memory_space<smem>>) -> (i32, i32) {
    %c0_i32 = arith.constant 0 : i32
    %c0_i32_0 = arith.constant 0 : i32
    %c0_i32_1 = arith.constant 0 : i32
    return %c0_i32, %c0_i32_0 : i32, i32
  }
  func.func @transform_2(%arg0: i32, %arg1: memref<2xi32, #tpu.memory_space<smem>>) -> (i32, i32) {
    %c0_i32 = arith.constant 0 : i32
    %c0_i32_0 = arith.constant 0 : i32
    %c0_i32_1 = arith.constant 0 : i32
    return %c0_i32, %c0_i32_0 : i32, i32
  }
  func.func @transform_3(%arg0: i32, %arg1: memref<2xi32, #tpu.memory_space<smem>>) -> (i32, i32) {
    %c0_i32 = arith.constant 0 : i32
    %c0_i32_0 = arith.constant 0 : i32
    %c0_i32_1 = arith.constant 0 : i32
    return %c0_i32, %c0_i32_0 : i32, i32
  }
  func.func @transform_4(%arg0: i32, %arg1: memref<2xi32, #tpu.memory_space<smem>>) -> (i32, i32) {
    %c0_i32 = arith.constant 0 : i32
    %c0_i32_0 = arith.constant 0 : i32
    %c0_i32_1 = arith.constant 0 : i32
    return %c0_i32, %c0_i32_0 : i32, i32
  }
  func.func @transform_5(%arg0: i32, %arg1: memref<2xi32, #tpu.memory_space<smem>>) -> (i32, i32) {
    %c0_i32 = arith.constant 0 : i32
    %c0_i32_0 = arith.constant 0 : i32
    %c0_i32_1 = arith.constant 0 : i32
    return %c0_i32, %c0_i32_0 : i32, i32
  }
  func.func @transform_6(%arg0: i32, %arg1: memref<2xi32, #tpu.memory_space<smem>>) -> (i32, i32) {
    %c0_i32 = arith.constant 0 : i32
    %c0_i32_0 = arith.constant 0 : i32
    %c0_i32_1 = arith.constant 0 : i32
    return %c0_i32, %c0_i32_0 : i32, i32
  }
  func.func @transform_7(%arg0: i32, %arg1: memref<2xi32, #tpu.memory_space<smem>>) -> (i32, i32) {
    %c0_i32 = arith.constant 0 : i32
    %c0_i32_0 = arith.constant 0 : i32
    return %c0_i32, %arg0 : i32, i32
  }
}

</mosaic_0001>

<llo_original>
// kernel: multivariate_linear_regression.1
$region0: #{multivariate_linear_regression.1}
  #allocation0 [shape = 'u32[]', space=smem, size = 0x4, offset = 0x4, fixed_abs, tag = 'smem constant byte address 0x4 - core index']
  #allocation1 [shape = 'u32[72,128]{1,0:T(1,128)}', space=vmem, size = 0x9000, scoped, tag = 'internal scratch']
  #allocation2 [shape = 's32[1]{0}', space=sflag, size = 0x4, scoped, tag = 'scoped memory for multivariate_linear_regression.1']
  #allocation3 [shape = 'u8[512]{0}', space=smem, size = 0x200, scoped, tag = 'prefetched SMEM operand 0']
  %s0 = inlined_call_operand.vmem [shape: s32[2], index: 0, kind: input, shape index: {}]
  %s1 = inlined_call_operand.vmem [shape: bf16[8,64], index: 1, kind: input, shape index: {}]
  %s2 = inlined_call_operand.vmem [shape: bf16[128,8], index: 2, kind: input, shape index: {}]
  %s3 = inlined_call_operand.vmem [shape: bf16[128,128], index: 3, kind: input, shape index: {}]
  %s4 = inlined_call_operand.vmem [shape: bf16[128,128], index: 4, kind: input, shape index: {}]
  %s5 = inlined_call_operand.vmem [shape: bf16[128,128], index: 5, kind: input, shape index: {}]
  %s6 = inlined_call_operand.vmem [shape: bf16[8,128], index: 6, kind: input, shape index: {}]
  %s7 = inlined_call_operand.vmem [shape: f32[128,8], index: 7, kind: input, shape index: {}]
  %s8 = inlined_call_operand.hbm [shape: f32[1,64], index: 8, kind: output, shape index: {}]
  %s9 = sld [smem:[#allocation0]]
  $region38: #{multivariate_linear_regression.1} parent=0
    _
  %s11 = ssub.s32 1, %s9
  %s12 = scalar_select 0, %s11, %s9
  %s14 = sshll.u32 %s0, 4
  %s15 = int_to_ptr.vmem [resolvable:$true] %s14
  %17 = dma.vmem_to_smem %s15, 16, [#allocation3], [#allocation2]
  %19 = dma.done [#allocation2], 16
  %20 = sfence
  $region1: #{multivariate_linear_regression.1} parent=0
    #allocation4 [shape = 'u8[512]{0}', space=vmem, size = 0x400, scoped, tag = 'output window, operand 0, single buffered']
    #allocation5 [shape = 's32[1]{0}', space=sflag, size = 0x4, scoped, tag = 'scoped memory for multivariate_linear_regression.1']
    %21 = vsyncpa [#allocation5], 0
    // Predicated region
    $region2: #{multivariate_linear_regression.1} parent=1 // pred_check
      _
    $region3: #{multivariate_linear_regression.1} parent=1 // pred_check_branch
      %23 = sbr.rel (0) target = $region5
    $region4: #{multivariate_linear_regression.1} parent=1 // pred_region
      _
    $region5: #{multivariate_linear_regression.1} parent=1 // pred_fallthru
      _
    // Predicated region
    $region6: #{multivariate_linear_regression.1} parent=1 // pred_check
      _
    $region7: #{multivariate_linear_regression.1} parent=1 // pred_check_branch
      %25 = sbr.rel (0) target = $region9
    $region8: #{multivariate_linear_regression.1} parent=1 // pred_region
      _
    $region9: #{multivariate_linear_regression.1} parent=1 // pred_fallthru
      _
    // Predicated region
    $region10: #{multivariate_linear_regression.1} parent=1 // pred_check
      _
    $region11: #{multivariate_linear_regression.1} parent=1 // pred_check_branch
      %27 = sbr.rel (0) target = $region13
    $region12: #{multivariate_linear_regression.1} parent=1 // pred_region
      _
    $region13: #{multivariate_linear_regression.1} parent=1 // pred_fallthru
      _
    // Predicated region
    $region14: #{multivariate_linear_regression.1} parent=1 // pred_check
      _
    $region15: #{multivariate_linear_regression.1} parent=1 // pred_check_branch
      %29 = sbr.rel (0) target = $region17
    $region16: #{multivariate_linear_regression.1} parent=1 // pred_region
      _
    $region17: #{multivariate_linear_regression.1} parent=1 // pred_fallthru
      _
    // Predicated region
    $region18: #{multivariate_linear_regression.1} parent=1 // pred_check
      _
    $region19: #{multivariate_linear_regression.1} parent=1 // pred_check_branch
      %31 = sbr.rel (0) target = $region21
    $region20: #{multivariate_linear_regression.1} parent=1 // pred_region
      _
    $region21: #{multivariate_linear_regression.1} parent=1 // pred_fallthru
      _
    // Predicated region
    $region22: #{multivariate_linear_regression.1} parent=1 // pred_check
      _
    $region23: #{multivariate_linear_regression.1} parent=1 // pred_check_branch
      %33 = sbr.rel (0) target = $region25
    $region24: #{multivariate_linear_regression.1} parent=1 // pred_region
      _
    $region25: #{multivariate_linear_regression.1} parent=1 // pred_fallthru
      _
    // Predicated region
    $region26: #{multivariate_linear_regression.1} parent=1 // pred_check
      _
    $region27: #{multivariate_linear_regression.1} parent=1 // pred_check_branch
      %35 = sbr.rel (0) target = $region29
    $region28: #{multivariate_linear_regression.1} parent=1 // pred_region
      _
    $region29: #{multivariate_linear_regression.1} parent=1 // pred_fallthru
      _
    %s37 = sld [smem:[#allocation3]]
    %s38 = sadd.s32 %s37, 0
    %v39 = vld [vmem:[%s7] sm:$0xff]
    %v40 = vld [vmem:[%s7 + $0x8] sm:$0xff]
    %v41 = vld [vmem:[%s7 + $0x10] sm:$0xff]
    %v42 = vld [vmem:[%s7 + $0x18] sm:$0xff]
    %v43 = vld [vmem:[%s7 + $0x20] sm:$0xff]
    %v44 = vld [vmem:[%s7 + $0x28] sm:$0xff]
    %v45 = vld [vmem:[%s7 + $0x30] sm:$0xff]
    %v46 = vld [vmem:[%s7 + $0x38] sm:$0xff]
    %v47 = vld [vmem:[%s7 + $0x40] sm:$0xff]
    %v48 = vld [vmem:[%s7 + $0x48] sm:$0xff]
    %v49 = vld [vmem:[%s7 + $0x50] sm:$0xff]
    %v50 = vld [vmem:[%s7 + $0x58] sm:$0xff]
    %v51 = vld [vmem:[%s7 + $0x60] sm:$0xff]
    %v52 = vld [vmem:[%s7 + $0x68] sm:$0xff]
    %v53 = vld [vmem:[%s7 + $0x70] sm:$0xff]
    %v54 = vld [vmem:[%s7 + $0x78] sm:$0xff]
    %v55 = vld [vmem:[%s1] sm:$0xf]
    %v56 = vld [vmem:[%s2] sm:$0xf]
    %v57 = vld [vmem:[%s2 + $0x4] sm:$0xf]
    %v58 = vld [vmem:[%s2 + $0x8] sm:$0xf]
    %v59 = vld [vmem:[%s2 + $0xc] sm:$0xf]
    %v60 = vld [vmem:[%s2 + $0x10] sm:$0xf]
    %v61 = vld [vmem:[%s2 + $0x14] sm:$0xf]
    %v62 = vld [vmem:[%s2 + $0x18] sm:$0xf]
    %v63 = vld [vmem:[%s2 + $0x1c] sm:$0xf]
    %v64 = vld [vmem:[%s2 + $0x20] sm:$0xf]
    %v65 = vld [vmem:[%s2 + $0x24] sm:$0xf]
    %v66 = vld [vmem:[%s2 + $0x28] sm:$0xf]
    %v67 = vld [vmem:[%s2 + $0x2c] sm:$0xf]
    %v68 = vld [vmem:[%s2 + $0x30] sm:$0xf]
    %v69 = vld [vmem:[%s2 + $0x34] sm:$0xf]
    %v70 = vld [vmem:[%s2 + $0x38] sm:$0xf]
    %v71 = vld [vmem:[%s2 + $0x3c] sm:$0xf]
    %73 = vset.pattern.permute.xlu0 0
    %74 = vperm.xlu0 %73, %v39
    %v75 = vpop.permute.xlu0 %74
    %78 = vset.pattern.permute.xlu0 0
    %79 = vperm.xlu0 %78, %v40
    %v80 = vpop.permute.xlu0 %79
    %83 = vset.pattern.permute.xlu0 0
    %84 = vperm.xlu0 %83, %v41
    %v85 = vpop.permute.xlu0 %84
    %88 = vset.pattern.permute.xlu0 0
    %89 = vperm.xlu0 %88, %v42
    %v90 = vpop.permute.xlu0 %89
    %93 = vset.pattern.permute.xlu0 0
    %94 = vperm.xlu0 %93, %v43
    %v95 = vpop.permute.xlu0 %94
    %98 = vset.pattern.permute.xlu0 0
    %99 = vperm.xlu0 %98, %v44
    %v100 = vpop.permute.xlu0 %99
    %103 = vset.pattern.permute.xlu0 0
    %104 = vperm.xlu0 %103, %v45
    %v105 = vpop.permute.xlu0 %104
    %108 = vset.pattern.permute.xlu0 0
    %109 = vperm.xlu0 %108, %v46
    %v110 = vpop.permute.xlu0 %109
    %113 = vset.pattern.permute.xlu0 0
    %114 = vperm.xlu0 %113, %v47
    %v115 = vpop.permute.xlu0 %114
    %118 = vset.pattern.permute.xlu0 0
    %119 = vperm.xlu0 %118, %v48
    %v120 = vpop.permute.xlu0 %119
    %123 = vset.pattern.permute.xlu0 0
    %124 = vperm.xlu0 %123, %v49
    %v125 = vpop.permute.xlu0 %124
    %128 = vset.pattern.permute.xlu0 0
    %129 = vperm.xlu0 %128, %v50
    %v130 = vpop.permute.xlu0 %129
    %133 = vset.pattern.permute.xlu0 0
    %134 = vperm.xlu0 %133, %v51
    %v135 = vpop.permute.xlu0 %134
    %138 = vset.pattern.permute.xlu0 0
    %139 = vperm.xlu0 %138, %v52
    %v140 = vpop.permute.xlu0 %139
    %143 = vset.pattern.permute.xlu0 0
    %144 = vperm.xlu0 %143, %v53
    %v145 = vpop.permute.xlu0 %144
    %148 = vset.pattern.permute.xlu0 0
    %149 = vperm.xlu0 %148, %v54
    %v150 = vpop.permute.xlu0 %149
    %v168 = vunpack.c.l.b16 %v56
    %v169 = vunpack.c.l.b16 %v57
    %v170 = vunpack.c.l.b16 %v58
    %v171 = vunpack.c.l.b16 %v59
    %v172 = vunpack.c.l.b16 %v60
    %v173 = vunpack.c.l.b16 %v61
    %v174 = vunpack.c.l.b16 %v62
    %v175 = vunpack.c.l.b16 %v63
    %v176 = vunpack.c.l.b16 %v64
    %v177 = vunpack.c.l.b16 %v65
    %v178 = vunpack.c.l.b16 %v66
    %v179 = vunpack.c.l.b16 %v67
    %v180 = vunpack.c.l.b16 %v68
    %v181 = vunpack.c.l.b16 %v69
    %v182 = vunpack.c.l.b16 %v70
    %v183 = vunpack.c.l.b16 %v71
    %v184 = vpack.c.b16 %v169, %v168
    %v185 = vpack.c.b16 %v171, %v170
    %v186 = vpack.c.b16 %v173, %v172
    %v187 = vpack.c.b16 %v175, %v174
    %v188 = vpack.c.b16 %v177, %v176
    %v189 = vpack.c.b16 %v179, %v178
    %v190 = vpack.c.b16 %v181, %v180
    %v191 = vpack.c.b16 %v183, %v182
    %vm192 = vcmask 64512
    %v194 = vsel %vm192, %v184, 0
    %v197 = vsel %vm192, %v185, 0
    %v200 = vsel %vm192, %v186, 0
    %v203 = vsel %vm192, %v187, 0
    %v206 = vsel %vm192, %v188, 0
    %v209 = vsel %vm192, %v189, 0
    %v212 = vsel %vm192, %v190, 0
    %v215 = vsel %vm192, %v191, 0
    %vm217 = vcmask 1043456
    %v219 = vsel %vm217, %v55, 0
    %221 = vmatpush.bf16.msra.mxu0 0
    %222 = vmatpush.bf16.msra.mxu0 0
    %223 = vmatpush.bf16.msra.mxu0 0
    %224 = vmatpush.bf16.msra.mxu0 0
    %225 = vmatpush.bf16.msra.mxu0 0
    %226 = vmatpush.bf16.msra.mxu0 0
    %227 = vmatpush.bf16.msra.mxu0 0
    %228 = vmatpush.bf16.msra.mxu0 %v219
    %229 = vmatmul.bf16.gmra.mxu0 %v194
    %v230 = vpop.f32.mrf.mxu0
    %v231 = vadd.f32 %v75, %v230
    %v232 = vpop.f32.mrf.mxu0
    %v233 = vadd.f32 %v80, %v232
    %234 = vmatmul.bf16.gmra.mxu0 %v197
    %v235 = vpop.f32.mrf.mxu0
    %v236 = vadd.f32 %v85, %v235
    %v237 = vpop.f32.mrf.mxu0
    %v238 = vadd.f32 %v90, %v237
    %239 = vmatmul.bf16.gmra.mxu0 %v200
    %v240 = vpop.f32.mrf.mxu0
    %v241 = vadd.f32 %v95, %v240
    %v242 = vpop.f32.mrf.mxu0
    %v243 = vadd.f32 %v100, %v242
    %244 = vmatmul.bf16.gmra.mxu0 %v203
    %v245 = vpop.f32.mrf.mxu0
    %v246 = vadd.f32 %v105, %v245
    %v247 = vpop.f32.mrf.mxu0
    %v248 = vadd.f32 %v110, %v247
    %249 = vmatmul.bf16.gmra.mxu0 %v206
    %v250 = vpop.f32.mrf.mxu0
    %v251 = vadd.f32 %v115, %v250
    %v252 = vpop.f32.mrf.mxu0
    %v253 = vadd.f32 %v120, %v252
    %254 = vmatmul.bf16.gmra.mxu0 %v209
    %v255 = vpop.f32.mrf.mxu0
    %v256 = vadd.f32 %v125, %v255
    %v257 = vpop.f32.mrf.mxu0
    %v258 = vadd.f32 %v130, %v257
    %259 = vmatmul.bf16.gmra.mxu0 %v212
    %v260 = vpop.f32.mrf.mxu0
    %v261 = vadd.f32 %v135, %v260
    %v262 = vpop.f32.mrf.mxu0
    %v263 = vadd.f32 %v140, %v262
    %264 = vmatmul.bf16.gmra.mxu0 %v215
    %v265 = vpop.f32.mrf.mxu0
    %v266 = vadd.f32 %v145, %v265
    %v267 = vpop.f32.mrf.mxu0
    %v268 = vadd.f32 %v150, %v267
    %269 = vdwg.mxu0
    %v270 = vmul.f32 %v231, 0.01
    %v271 = vmul.f32 %v233, 0.01
    %v272 = vmul.f32 %v236, 0.01
    %v273 = vmul.f32 %v238, 0.01
    %v274 = vmul.f32 %v241, 0.01
    %v275 = vmul.f32 %v243, 0.01
    %v276 = vmul.f32 %v246, 0.01
    %v277 = vmul.f32 %v248, 0.01
    %v278 = vmul.f32 %v251, 0.01
    %v279 = vmul.f32 %v253, 0.01
    %v280 = vmul.f32 %v256, 0.01
    %v281 = vmul.f32 %v258, 0.01
    %v282 = vmul.f32 %v261, 0.01
    %v283 = vmul.f32 %v263, 0.01
    %v284 = vmul.f32 %v266, 0.01
    %v285 = vmul.f32 %v268, 0.01
    %v286 = vmax.f32 %v231, %v270
    %v287 = vmax.f32 %v233, %v271
    %v288 = vmax.f32 %v236, %v272
    %v289 = vmax.f32 %v238, %v273
    %v290 = vmax.f32 %v241, %v274
    %v291 = vmax.f32 %v243, %v275
    %v292 = vmax.f32 %v246, %v276
    %v293 = vmax.f32 %v248, %v277
    %v294 = vmax.f32 %v251, %v278
    %v295 = vmax.f32 %v253, %v279
    %v296 = vmax.f32 %v256, %v280
    %v297 = vmax.f32 %v258, %v281
    %v298 = vmax.f32 %v261, %v282
    %v299 = vmax.f32 %v263, %v283
    %v300 = vmax.f32 %v266, %v284
    %v301 = vmax.f32 %v268, %v285
    %vm302 = vcmask 523264
    %v304 = vsel %vm302, %v286, 0
    %v307 = vsel %vm302, %v287, 0
    %v310 = vsel %vm302, %v288, 0
    %v313 = vsel %vm302, %v289, 0
    %v316 = vsel %vm302, %v290, 0
    %v319 = vsel %vm302, %v291, 0
    %v322 = vsel %vm302, %v292, 0
    %v325 = vsel %vm302, %v293, 0
    %v328 = vsel %vm302, %v294, 0
    %v331 = vsel %vm302, %v295, 0
    %v334 = vsel %vm302, %v296, 0
    %v337 = vsel %vm302, %v297, 0
    %v340 = vsel %vm302, %v298, 0
    %v343 = vsel %vm302, %v299, 0
    %v346 = vsel %vm302, %v300, 0
    %v349 = vsel %vm302, %v301, 0
    %351 = vmatpush.msra.mxu0 0.0
    %352 = vmatpush.msra.mxu0 0.0
    %353 = vmatpush.msra.mxu0 0.0
    %354 = vmatpush.msra.mxu0 0.0
    %355 = vmatpush.msra.mxu0 0.0
    %356 = vmatpush.msra.mxu0 0.0
    %357 = vmatpush.msra.mxu0 0.0
    %358 = vmatpush.msra.mxu0 0.0
    %359 = vmatpush.msra.mxu0 1.0
    %360 = vmatpush.msra.mxu0 1.0
    %361 = vmatpush.msra.mxu0 1.0
    %362 = vmatpush.msra.mxu0 1.0
    %363 = vmatpush.msra.mxu0 1.0
    %364 = vmatpush.msra.mxu0 1.0
    %365 = vmatpush.msra.mxu0 1.0
    %366 = vmatpush.msra.mxu0 1.0
    %v367 = vand.u32 %v304, 4294901760
    %v368 = vsub.f32 %v304, %v367
    %v369 = vand.u32 %v368, 4294901760
    %v370 = vsub.f32 %v368, %v369
    %v371 = vand.u32 %v370, 4294901760
    %372 = vmatmul.f32.gmra.mxu0 %v371
    %v373 = vpop.f32.mrf.mxu0
    %v374 = vadd.f32 0.0, %v373
    %v375 = vand.u32 %v307, 4294901760
    %v376 = vsub.f32 %v307, %v375
    %v377 = vand.u32 %v376, 4294901760
    %v378 = vsub.f32 %v376, %v377
    %v379 = vand.u32 %v378, 4294901760
    %380 = vmatmul.f32.gmra.mxu0 %v379
    %v381 = vpop.f32.mrf.mxu0
    %v382 = vadd.f32 0.0, %v381
    %v383 = vand.u32 %v310, 4294901760
    %v384 = vsub.f32 %v310, %v383
    %v385 = vand.u32 %v384, 4294901760
    %v386 = vsub.f32 %v384, %v385
    %v387 = vand.u32 %v386, 4294901760
    %388 = vmatmul.f32.gmra.mxu0 %v387
    %v389 = vpop.f32.mrf.mxu0
    %v390 = vadd.f32 0.0, %v389
    %v391 = vand.u32 %v313, 4294901760
    %v392 = vsub.f32 %v313, %v391
    %v393 = vand.u32 %v392, 4294901760
    %v394 = vsub.f32 %v392, %v393
    %v395 = vand.u32 %v394, 4294901760
    %396 = vmatmul.f32.gmra.mxu0 %v395
    %v397 = vpop.f32.mrf.mxu0
    %v398 = vadd.f32 0.0, %v397
    %v399 = vand.u32 %v316, 4294901760
    %v400 = vsub.f32 %v316, %v399
    %v401 = vand.u32 %v400, 4294901760
    %v402 = vsub.f32 %v400, %v401
    %v403 = vand.u32 %v402, 4294901760
    %404 = vmatmul.f32.gmra.mxu0 %v403
    %v405 = vpop.f32.mrf.mxu0
    %v406 = vadd.f32 0.0, %v405
    %v407 = vand.u32 %v319, 4294901760
    %v408 = vsub.f32 %v319, %v407
    %v409 = vand.u32 %v408, 4294901760
    %v410 = vsub.f32 %v408, %v409
    %v411 = vand.u32 %v410, 4294901760
    %412 = vmatmul.f32.gmra.mxu0 %v411
    %v413 = vpop.f32.mrf.mxu0
    %v414 = vadd.f32 0.0, %v413
    %v415 = vand.u32 %v322, 4294901760
    %v416 = vsub.f32 %v322, %v415
    %v417 = vand.u32 %v416, 4294901760
    %v418 = vsub.f32 %v416, %v417
    %v419 = vand.u32 %v418, 4294901760
    %420 = vmatmul.f32.gmra.mxu0 %v419
    %v421 = vpop.f32.mrf.mxu0
    %v422 = vadd.f32 0.0, %v421
    %v423 = vand.u32 %v325, 4294901760
    %v424 = vsub.f32 %v325, %v423
    %v425 = vand.u32 %v424, 4294901760
    %v426 = vsub.f32 %v424, %v425
    %v427 = vand.u32 %v426, 4294901760
    %428 = vmatmul.f32.gmra.mxu0 %v427
    %v429 = vpop.f32.mrf.mxu0
    %v430 = vadd.f32 0.0, %v429
    %v431 = vand.u32 %v328, 4294901760
    %v432 = vsub.f32 %v328, %v431
    %v433 = vand.u32 %v432, 4294901760
    %v434 = vsub.f32 %v432, %v433
    %v435 = vand.u32 %v434, 4294901760
    %436 = vmatmul.f32.gmra.mxu0 %v435
    %v437 = vpop.f32.mrf.mxu0
    %v438 = vadd.f32 0.0, %v437
    %v439 = vand.u32 %v331, 4294901760
    %v440 = vsub.f32 %v331, %v439
    %v441 = vand.u32 %v440, 4294901760
    %v442 = vsub.f32 %v440, %v441
    %v443 = vand.u32 %v442, 4294901760
    %444 = vmatmul.f32.gmra.mxu0 %v443
    %v445 = vpop.f32.mrf.mxu0
    %v446 = vadd.f32 0.0, %v445
    %v447 = vand.u32 %v334, 4294901760
    %v448 = vsub.f32 %v334, %v447
    %v449 = vand.u32 %v448, 4294901760
    %v450 = vsub.f32 %v448, %v449
    %v451 = vand.u32 %v450, 4294901760
    %452 = vmatmul.f32.gmra.mxu0 %v451
    %v453 = vpop.f32.mrf.mxu0
    %v454 = vadd.f32 0.0, %v453
    %v455 = vand.u32 %v337, 4294901760
    %v456 = vsub.f32 %v337, %v455
    %v457 = vand.u32 %v456, 4294901760
    %v458 = vsub.f32 %v456, %v457
    %v459 = vand.u32 %v458, 4294901760
    %460 = vmatmul.f32.gmra.mxu0 %v459
    %v461 = vpop.f32.mrf.mxu0
    %v462 = vadd.f32 0.0, %v461
    %v463 = vand.u32 %v340, 4294901760
    %v464 = vsub.f32 %v340, %v463
    %v465 = vand.u32 %v464, 4294901760
    %v466 = vsub.f32 %v464, %v465
    %v467 = vand.u32 %v466, 4294901760
    %468 = vmatmul.f32.gmra.mxu0 %v467
    %v469 = vpop.f32.mrf.mxu0
    %v470 = vadd.f32 0.0, %v469
    %v471 = vand.u32 %v343, 4294901760
    %v472 = vsub.f32 %v343, %v471
    %v473 = vand.u32 %v472, 4294901760
    %v474 = vsub.f32 %v472, %v473
    %v475 = vand.u32 %v474, 4294901760
    %476 = vmatmul.f32.gmra.mxu0 %v475
    %v477 = vpop.f32.mrf.mxu0
    %v478 = vadd.f32 0.0, %v477
    %v479 = vand.u32 %v346, 4294901760
    %v480 = vsub.f32 %v346, %v479
    %v481 = vand.u32 %v480, 4294901760
    %v482 = vsub.f32 %v480, %v481
    %v483 = vand.u32 %v482, 4294901760
    %484 = vmatmul.f32.gmra.mxu0 %v483
    %v485 = vpop.f32.mrf.mxu0
    %v486 = vadd.f32 0.0, %v485
    %v487 = vand.u32 %v349, 4294901760
    %v488 = vsub.f32 %v349, %v487
    %v489 = vand.u32 %v488, 4294901760
    %v490 = vsub.f32 %v488, %v489
    %v491 = vand.u32 %v490, 4294901760
    %492 = vmatmul.f32.gmra.mxu0 %v491
    %v493 = vpop.f32.mrf.mxu0
    %v494 = vadd.f32 0.0, %v493
    %495 = vdwg.mxu0
    %496 = vmatpush.msra.mxu0 0.0
    %497 = vmatpush.msra.mxu0 0.0
    %498 = vmatpush.msra.mxu0 0.0
    %499 = vmatpush.msra.mxu0 0.0
    %500 = vmatpush.msra.mxu0 0.0
    %501 = vmatpush.msra.mxu0 0.0
    %502 = vmatpush.msra.mxu0 0.0
    %503 = vmatpush.msra.mxu0 0.0
    %504 = vmatpush.msra.mxu0 0.0
    %505 = vmatpush.msra.mxu0 0.0
    %506 = vmatpush.msra.mxu0 0.0
    %507 = vmatpush.msra.mxu0 0.0
    %508 = vmatpush.msra.mxu0 0.0
    %509 = vmatpush.msra.mxu0 0.0
    %510 = vmatpush.msra.mxu0 0.0
    %511 = vmatpush.msra.mxu0 0.0
    %v512 = vand.u32 %v304, 4294901760
    %513 = vmatmul.f32.gmra.mxu0 %v512
    %v514 = vpop.f32.mrf.mxu0
    %v515 = vadd.f32 %v374, %v514
    %v516 = vand.u32 %v307, 4294901760
    %517 = vmatmul.f32.gmra.mxu0 %v516
    %v518 = vpop.f32.mrf.mxu0
    %v519 = vadd.f32 %v382, %v518
    %v520 = vand.u32 %v310, 4294901760
    %521 = vmatmul.f32.gmra.mxu0 %v520
    %v522 = vpop.f32.mrf.mxu0
    %v523 = vadd.f32 %v390, %v522
    %v524 = vand.u32 %v313, 4294901760
    %525 = vmatmul.f32.gmra.mxu0 %v524
    %v526 = vpop.f32.mrf.mxu0
    %v527 = vadd.f32 %v398, %v526
    %v528 = vand.u32 %v316, 4294901760
    %529 = vmatmul.f32.gmra.mxu0 %v528
    %v530 = vpop.f32.mrf.mxu0
    %v531 = vadd.f32 %v406, %v530
    %v532 = vand.u32 %v319, 4294901760
    %533 = vmatmul.f32.gmra.mxu0 %v532
    %v534 = vpop.f32.mrf.mxu0
    %v535 = vadd.f32 %v414, %v534
    %v536 = vand.u32 %v322, 4294901760
    %537 = vmatmul.f32.gmra.mxu0 %v536
    %v538 = vpop.f32.mrf.mxu0
    %v539 = vadd.f32 %v422, %v538
    %v540 = vand.u32 %v325, 4294901760
    %541 = vmatmul.f32.gmra.mxu0 %v540
    %v542 = vpop.f32.mrf.mxu0
    %v543 = vadd.f32 %v430, %v542
    %v544 = vand.u32 %v328, 4294901760
    %545 = vmatmul.f32.gmra.mxu0 %v544
    %v546 = vpop.f32.mrf.mxu0
    %v547 = vadd.f32 %v438, %v546
    %v548 = vand.u32 %v331, 4294901760
    %549 = vmatmul.f32.gmra.mxu0 %v548
    %v550 = vpop.f32.mrf.mxu0
    %v551 = vadd.f32 %v446, %v550
    %v552 = vand.u32 %v334, 4294901760
    %553 = vmatmul.f32.gmra.mxu0 %v552
    %v554 = vpop.f32.mrf.mxu0
    %v555 = vadd.f32 %v454, %v554
    %v556 = vand.u32 %v337, 4294901760
    %557 = vmatmul.f32.gmra.mxu0 %v556
    %v558 = vpop.f32.mrf.mxu0
    %v559 = vadd.f32 %v462, %v558
    %v560 = vand.u32 %v340, 4294901760
    %561 = vmatmul.f32.gmra.mxu0 %v560
    %v562 = vpop.f32.mrf.mxu0
    %v563 = vadd.f32 %v470, %v562
    %v564 = vand.u32 %v343, 4294901760
    %565 = vmatmul.f32.gmra.mxu0 %v564
    %v566 = vpop.f32.mrf.mxu0
    %v567 = vadd.f32 %v478, %v566
    %v568 = vand.u32 %v346, 4294901760
    %569 = vmatmul.f32.gmra.mxu0 %v568
    %v570 = vpop.f32.mrf.mxu0
    %v571 = vadd.f32 %v486, %v570
    %v572 = vand.u32 %v349, 4294901760
    %573 = vmatmul.f32.gmra.mxu0 %v572
    %v574 = vpop.f32.mrf.mxu0
    %v575 = vadd.f32 %v494, %v574
    %576 = vdwg.mxu0
    %577 = vmatpush.msra.mxu0 0.0
    %578 = vmatpush.msra.mxu0 0.0
    %579 = vmatpush.msra.mxu0 0.0
    %580 = vmatpush.msra.mxu0 0.0
    %581 = vmatpush.msra.mxu0 0.0
    %582 = vmatpush.msra.mxu0 0.0
    %583 = vmatpush.msra.mxu0 0.0
    %584 = vmatpush.msra.mxu0 0.0
    %585 = vmatpush.msra.mxu0 0.0
    %586 = vmatpush.msra.mxu0 0.0
    %587 = vmatpush.msra.mxu0 0.0
    %588 = vmatpush.msra.mxu0 0.0
    %589 = vmatpush.msra.mxu0 0.0
    %590 = vmatpush.msra.mxu0 0.0
    %591 = vmatpush.msra.mxu0 0.0
    %592 = vmatpush.msra.mxu0 0.0
    %v593 = vand.u32 %v304, 4294901760
    %v594 = vsub.f32 %v304, %v593
    %595 = vmatmul.f32.gmra.mxu0 %v594
    %v596 = vpop.f32.mrf.mxu0
    %v597 = vadd.f32 %v515, %v596
    %v598 = vand.u32 %v307, 4294901760
    %v599 = vsub.f32 %v307, %v598
    %600 = vmatmul.f32.gmra.mxu0 %v599
    %v601 = vpop.f32.mrf.mxu0
    %v602 = vadd.f32 %v519, %v601
    %v603 = vand.u32 %v310, 4294901760
    %v604 = vsub.f32 %v310, %v603
    %605 = vmatmul.f32.gmra.mxu0 %v604
    %v606 = vpop.f32.mrf.mxu0
    %v607 = vadd.f32 %v523, %v606
    %v608 = vand.u32 %v313, 4294901760
    %v609 = vsub.f32 %v313, %v608
    %610 = vmatmul.f32.gmra.mxu0 %v609
    %v611 = vpop.f32.mrf.mxu0
    %v612 = vadd.f32 %v527, %v611
    %v613 = vand.u32 %v316, 4294901760
    %v614 = vsub.f32 %v316, %v613
    %615 = vmatmul.f32.gmra.mxu0 %v614
    %v616 = vpop.f32.mrf.mxu0
    %v617 = vadd.f32 %v531, %v616
    %v618 = vand.u32 %v319, 4294901760
    %v619 = vsub.f32 %v319, %v618
    %620 = vmatmul.f32.gmra.mxu0 %v619
    %v621 = vpop.f32.mrf.mxu0
    %v622 = vadd.f32 %v535, %v621
    %v623 = vand.u32 %v322, 4294901760
    %v624 = vsub.f32 %v322, %v623
    %625 = vmatmul.f32.gmra.mxu0 %v624
    %v626 = vpop.f32.mrf.mxu0
    %v627 = vadd.f32 %v539, %v626
    %v628 = vand.u32 %v325, 4294901760
    %v629 = vsub.f32 %v325, %v628
    %630 = vmatmul.f32.gmra.mxu0 %v629
    %v631 = vpop.f32.mrf.mxu0
    %v632 = vadd.f32 %v543, %v631
    %v633 = vand.u32 %v328, 4294901760
    %v634 = vsub.f32 %v328, %v633
    %635 = vmatmul.f32.gmra.mxu0 %v634
    %v636 = vpop.f32.mrf.mxu0
    %v637 = vadd.f32 %v547, %v636
    %v638 = vand.u32 %v331, 4294901760
    %v639 = vsub.f32 %v331, %v638
    %640 = vmatmul.f32.gmra.mxu0 %v639
    %v641 = vpop.f32.mrf.mxu0
    %v642 = vadd.f32 %v551, %v641
    %v643 = vand.u32 %v334, 4294901760
    %v644 = vsub.f32 %v334, %v643
    %645 = vmatmul.f32.gmra.mxu0 %v644
    %v646 = vpop.f32.mrf.mxu0
    %v647 = vadd.f32 %v555, %v646
    %v648 = vand.u32 %v337, 4294901760
    %v649 = vsub.f32 %v337, %v648
    %650 = vmatmul.f32.gmra.mxu0 %v649
    %v651 = vpop.f32.mrf.mxu0
    %v652 = vadd.f32 %v559, %v651
    %v653 = vand.u32 %v340, 4294901760
    %v654 = vsub.f32 %v340, %v653
    %655 = vmatmul.f32.gmra.mxu0 %v654
    %v656 = vpop.f32.mrf.mxu0
    %v657 = vadd.f32 %v563, %v656
    %v658 = vand.u32 %v343, 4294901760
    %v659 = vsub.f32 %v343, %v658
    %660 = vmatmul.f32.gmra.mxu0 %v659
    %v661 = vpop.f32.mrf.mxu0
    %v662 = vadd.f32 %v567, %v661
    %v663 = vand.u32 %v346, 4294901760
    %v664 = vsub.f32 %v346, %v663
    %665 = vmatmul.f32.gmra.mxu0 %v664
    %v666 = vpop.f32.mrf.mxu0
    %v667 = vadd.f32 %v571, %v666
    %v668 = vand.u32 %v349, 4294901760
    %v669 = vsub.f32 %v349, %v668
    %670 = vmatmul.f32.gmra.mxu0 %v669
    %v671 = vpop.f32.mrf.mxu0
    %v672 = vadd.f32 %v575, %v671
    %673 = vdwg.mxu0
    %674 = vmatpush.msra.mxu0 0.0
    %675 = vmatpush.msra.mxu0 0.0
    %676 = vmatpush.msra.mxu0 0.0
    %677 = vmatpush.msra.mxu0 0.0
    %678 = vmatpush.msra.mxu0 0.0
    %679 = vmatpush.msra.mxu0 0.0
    %680 = vmatpush.msra.mxu0 0.0
    %681 = vmatpush.msra.mxu0 0.0
    %682 = vmatpush.msra.mxu0 1.0
    %683 = vmatpush.msra.mxu0 1.0
    %684 = vmatpush.msra.mxu0 1.0
    %685 = vmatpush.msra.mxu0 1.0
    %686 = vmatpush.msra.mxu0 1.0
    %687 = vmatpush.msra.mxu0 1.0
    %688 = vmatpush.msra.mxu0 1.0
    %689 = vmatpush.msra.mxu0 1.0
    %v690 = vand.u32 %v304, 4294901760
    %v691 = vsub.f32 %v304, %v690
    %v692 = vand.u32 %v691, 4294901760
    %693 = vmatmul.f32.gmra.mxu0 %v692
    %v694 = vpop.f32.mrf.mxu0
    %v695 = vadd.f32 %v597, %v694
    %v696 = vand.u32 %v307, 4294901760
    %v697 = vsub.f32 %v307, %v696
    %v698 = vand.u32 %v697, 4294901760
    %699 = vmatmul.f32.gmra.mxu0 %v698
    %v700 = vpop.f32.mrf.mxu0
    %v701 = vadd.f32 %v602, %v700
    %v702 = vand.u32 %v310, 4294901760
    %v703 = vsub.f32 %v310, %v702
    %v704 = vand.u32 %v703, 4294901760
    %705 = vmatmul.f32.gmra.mxu0 %v704
    %v706 = vpop.f32.mrf.mxu0
    %v707 = vadd.f32 %v607, %v706
    %v708 = vand.u32 %v313, 4294901760
    %v709 = vsub.f32 %v313, %v708
    %v710 = vand.u32 %v709, 4294901760
    %711 = vmatmul.f32.gmra.mxu0 %v710
    %v712 = vpop.f32.mrf.mxu0
    %v713 = vadd.f32 %v612, %v712
    %v714 = vand.u32 %v316, 4294901760
    %v715 = vsub.f32 %v316, %v714
    %v716 = vand.u32 %v715, 4294901760
    %717 = vmatmul.f32.gmra.mxu0 %v716
    %v718 = vpop.f32.mrf.mxu0
    %v719 = vadd.f32 %v617, %v718
    %v720 = vand.u32 %v319, 4294901760
    %v721 = vsub.f32 %v319, %v720
    %v722 = vand.u32 %v721, 4294901760
    %723 = vmatmul.f32.gmra.mxu0 %v722
    %v724 = vpop.f32.mrf.mxu0
    %v725 = vadd.f32 %v622, %v724
    %v726 = vand.u32 %v322, 4294901760
    %v727 = vsub.f32 %v322, %v726
    %v728 = vand.u32 %v727, 4294901760
    %729 = vmatmul.f32.gmra.mxu0 %v728
    %v730 = vpop.f32.mrf.mxu0
    %v731 = vadd.f32 %v627, %v730
    %v732 = vand.u32 %v325, 4294901760
    %v733 = vsub.f32 %v325, %v732
    %v734 = vand.u32 %v733, 4294901760
    %735 = vmatmul.f32.gmra.mxu0 %v734
    %v736 = vpop.f32.mrf.mxu0
    %v737 = vadd.f32 %v632, %v736
    %v738 = vand.u32 %v328, 4294901760
    %v739 = vsub.f32 %v328, %v738
    %v740 = vand.u32 %v739, 4294901760
    %741 = vmatmul.f32.gmra.mxu0 %v740
    %v742 = vpop.f32.mrf.mxu0
    %v743 = vadd.f32 %v637, %v742
    %v744 = vand.u32 %v331, 4294901760
    %v745 = vsub.f32 %v331, %v744
    %v746 = vand.u32 %v745, 4294901760
    %747 = vmatmul.f32.gmra.mxu0 %v746
    %v748 = vpop.f32.mrf.mxu0
    %v749 = vadd.f32 %v642, %v748
    %v750 = vand.u32 %v334, 4294901760
    %v751 = vsub.f32 %v334, %v750
    %v752 = vand.u32 %v751, 4294901760
    %753 = vmatmul.f32.gmra.mxu0 %v752
    %v754 = vpop.f32.mrf.mxu0
    %v755 = vadd.f32 %v647, %v754
    %v756 = vand.u32 %v337, 4294901760
    %v757 = vsub.f32 %v337, %v756
    %v758 = vand.u32 %v757, 4294901760
    %759 = vmatmul.f32.gmra.mxu0 %v758
    %v760 = vpop.f32.mrf.mxu0
    %v761 = vadd.f32 %v652, %v760
    %v762 = vand.u32 %v340, 4294901760
    %v763 = vsub.f32 %v340, %v762
    %v764 = vand.u32 %v763, 4294901760
    %765 = vmatmul.f32.gmra.mxu0 %v764
    %v766 = vpop.f32.mrf.mxu0
    %v767 = vadd.f32 %v657, %v766
    %v768 = vand.u32 %v343, 4294901760
    %v769 = vsub.f32 %v343, %v768
    %v770 = vand.u32 %v769, 4294901760
    %771 = vmatmul.f32.gmra.mxu0 %v770
    %v772 = vpop.f32.mrf.mxu0
    %v773 = vadd.f32 %v662, %v772
    %v774 = vand.u32 %v346, 4294901760
    %v775 = vsub.f32 %v346, %v774
    %v776 = vand.u32 %v775, 4294901760
    %777 = vmatmul.f32.gmra.mxu0 %v776
    %v778 = vpop.f32.mrf.mxu0
    %v779 = vadd.f32 %v667, %v778
    %v780 = vand.u32 %v349, 4294901760
    %v781 = vsub.f32 %v349, %v780
    %v782 = vand.u32 %v781, 4294901760
    %783 = vmatmul.f32.gmra.mxu0 %v782
    %v784 = vpop.f32.mrf.mxu0
    %v785 = vadd.f32 %v672, %v784
    %786 = vdwg.mxu0
    %787 = vmatpush.msra.mxu0 0.0
    %788 = vmatpush.msra.mxu0 0.0
    %789 = vmatpush.msra.mxu0 0.0
    %790 = vmatpush.msra.mxu0 0.0
    %791 = vmatpush.msra.mxu0 0.0
    %792 = vmatpush.msra.mxu0 0.0
    %793 = vmatpush.msra.mxu0 0.0
    %794 = vmatpush.msra.mxu0 0.0
    %795 = vmatpush.msra.mxu0 0.0
    %796 = vmatpush.msra.mxu0 0.0
    %797 = vmatpush.msra.mxu0 0.0
    %798 = vmatpush.msra.mxu0 0.0
    %799 = vmatpush.msra.mxu0 0.0
    %800 = vmatpush.msra.mxu0 0.0
    %801 = vmatpush.msra.mxu0 0.0
    %802 = vmatpush.msra.mxu0 0.0
    %v803 = vand.u32 %v304, 4294901760
    %804 = vmatmul.f32.gmra.mxu0 %v803
    %v805 = vpop.f32.mrf.mxu0
    %v806 = vadd.f32 %v695, %v805
    %v807 = vand.u32 %v307, 4294901760
    %808 = vmatmul.f32.gmra.mxu0 %v807
    %v809 = vpop.f32.mrf.mxu0
    %v810 = vadd.f32 %v701, %v809
    %v811 = vand.u32 %v310, 4294901760
    %812 = vmatmul.f32.gmra.mxu0 %v811
    %v813 = vpop.f32.mrf.mxu0
    %v814 = vadd.f32 %v707, %v813
    %v815 = vand.u32 %v313, 4294901760
    %816 = vmatmul.f32.gmra.mxu0 %v815
    %v817 = vpop.f32.mrf.mxu0
    %v818 = vadd.f32 %v713, %v817
    %v819 = vand.u32 %v316, 4294901760
    %820 = vmatmul.f32.gmra.mxu0 %v819
    %v821 = vpop.f32.mrf.mxu0
    %v822 = vadd.f32 %v719, %v821
    %v823 = vand.u32 %v319, 4294901760
    %824 = vmatmul.f32.gmra.mxu0 %v823
    %v825 = vpop.f32.mrf.mxu0
    %v826 = vadd.f32 %v725, %v825
    %v827 = vand.u32 %v322, 4294901760
    %828 = vmatmul.f32.gmra.mxu0 %v827
    %v829 = vpop.f32.mrf.mxu0
    %v830 = vadd.f32 %v731, %v829
    %v831 = vand.u32 %v325, 4294901760
    %832 = vmatmul.f32.gmra.mxu0 %v831
    %v833 = vpop.f32.mrf.mxu0
    %v834 = vadd.f32 %v737, %v833
    %v835 = vand.u32 %v328, 4294901760
    %836 = vmatmul.f32.gmra.mxu0 %v835
    %v837 = vpop.f32.mrf.mxu0
    %v838 = vadd.f32 %v743, %v837
    %v839 = vand.u32 %v331, 4294901760
    %840 = vmatmul.f32.gmra.mxu0 %v839
    %v841 = vpop.f32.mrf.mxu0
    %v842 = vadd.f32 %v749, %v841
    %v843 = vand.u32 %v334, 4294901760
    %844 = vmatmul.f32.gmra.mxu0 %v843
    %v845 = vpop.f32.mrf.mxu0
    %v846 = vadd.f32 %v755, %v845
    %v847 = vand.u32 %v337, 4294901760
    %848 = vmatmul.f32.gmra.mxu0 %v847
    %v849 = vpop.f32.mrf.mxu0
    %v850 = vadd.f32 %v761, %v849
    %v851 = vand.u32 %v340, 4294901760
    %852 = vmatmul.f32.gmra.mxu0 %v851
    %v853 = vpop.f32.mrf.mxu0
    %v854 = vadd.f32 %v767, %v853
    %v855 = vand.u32 %v343, 4294901760
    %856 = vmatmul.f32.gmra.mxu0 %v855
    %v857 = vpop.f32.mrf.mxu0
    %v858 = vadd.f32 %v773, %v857
    %v859 = vand.u32 %v346, 4294901760
    %860 = vmatmul.f32.gmra.mxu0 %v859
    %v861 = vpop.f32.mrf.mxu0
    %v862 = vadd.f32 %v779, %v861
    %v863 = vand.u32 %v349, 4294901760
    %864 = vmatmul.f32.gmra.mxu0 %v863
    %v865 = vpop.f32.mrf.mxu0
    %v866 = vadd.f32 %v785, %v865
    %867 = vdwg.mxu0
    %868 = vmatpush.msra.mxu0 0.0
    %869 = vmatpush.msra.mxu0 0.0
    %870 = vmatpush.msra.mxu0 0.0
    %871 = vmatpush.msra.mxu0 0.0
    %872 = vmatpush.msra.mxu0 0.0
    %873 = vmatpush.msra.mxu0 0.0
    %874 = vmatpush.msra.mxu0 0.0
    %875 = vmatpush.msra.mxu0 0.0
    %876 = vmatpush.msra.mxu0 1.0
    %877 = vmatpush.msra.mxu0 1.0
    %878 = vmatpush.msra.mxu0 1.0
    %879 = vmatpush.msra.mxu0 1.0
    %880 = vmatpush.msra.mxu0 1.0
    %881 = vmatpush.msra.mxu0 1.0
    %882 = vmatpush.msra.mxu0 1.0
    %883 = vmatpush.msra.mxu0 1.0
    %v884 = vand.u32 %v304, 4294901760
    %885 = vmatmul.f32.gmra.mxu0 %v884
    %v886 = vpop.f32.mrf.mxu0
    %v887 = vadd.f32 %v806, %v886
    %v888 = vand.u32 %v307, 4294901760
    %889 = vmatmul.f32.gmra.mxu0 %v888
    %v890 = vpop.f32.mrf.mxu0
    %v891 = vadd.f32 %v810, %v890
    %v892 = vand.u32 %v310, 4294901760
    %893 = vmatmul.f32.gmra.mxu0 %v892
    %v894 = vpop.f32.mrf.mxu0
    %v895 = vadd.f32 %v814, %v894
    %v896 = vand.u32 %v313, 4294901760
    %897 = vmatmul.f32.gmra.mxu0 %v896
    %v898 = vpop.f32.mrf.mxu0
    %v899 = vadd.f32 %v818, %v898
    %v900 = vand.u32 %v316, 4294901760
    %901 = vmatmul.f32.gmra.mxu0 %v900
    %v902 = vpop.f32.mrf.mxu0
    %v903 = vadd.f32 %v822, %v902
    %v904 = vand.u32 %v319, 4294901760
    %905 = vmatmul.f32.gmra.mxu0 %v904
    %v906 = vpop.f32.mrf.mxu0
    %v907 = vadd.f32 %v826, %v906
    %v908 = vand.u32 %v322, 4294901760
    %909 = vmatmul.f32.gmra.mxu0 %v908
    %v910 = vpop.f32.mrf.mxu0
    %v911 = vadd.f32 %v830, %v910
    %v912 = vand.u32 %v325, 4294901760
    %913 = vmatmul.f32.gmra.mxu0 %v912
    %v914 = vpop.f32.mrf.mxu0
    %v915 = vadd.f32 %v834, %v914
    %v916 = vand.u32 %v328, 4294901760
    %917 = vmatmul.f32.gmra.mxu0 %v916
    %v918 = vpop.f32.mrf.mxu0
    %v919 = vadd.f32 %v838, %v918
    %v920 = vand.u32 %v331, 4294901760
    %921 = vmatmul.f32.gmra.mxu0 %v920
    %v922 = vpop.f32.mrf.mxu0
    %v923 = vadd.f32 %v842, %v922
    %v924 = vand.u32 %v334, 4294901760
    %925 = vmatmul.f32.gmra.mxu0 %v924
    %v926 = vpop.f32.mrf.mxu0
    %v927 = vadd.f32 %v846, %v926
    %v928 = vand.u32 %v337, 4294901760
    %929 = vmatmul.f32.gmra.mxu0 %v928
    %v930 = vpop.f32.mrf.mxu0
    %v931 = vadd.f32 %v850, %v930
    %v932 = vand.u32 %v340, 4294901760
    %933 = vmatmul.f32.gmra.mxu0 %v932
    %v934 = vpop.f32.mrf.mxu0
    %v935 = vadd.f32 %v854, %v934
    %v936 = vand.u32 %v343, 4294901760
    %937 = vmatmul.f32.gmra.mxu0 %v936
    %v938 = vpop.f32.mrf.mxu0
    %v939 = vadd.f32 %v858, %v938
    %v940 = vand.u32 %v346, 4294901760
    %941 = vmatmul.f32.gmra.mxu0 %v940
    %v942 = vpop.f32.mrf.mxu0
    %v943 = vadd.f32 %v862, %v942
    %v944 = vand.u32 %v349, 4294901760
    %945 = vmatmul.f32.gmra.mxu0 %v944
    %v946 = vpop.f32.mrf.mxu0
    %v947 = vadd.f32 %v866, %v946
    %948 = vdwg.mxu0
    %v949 = vmul.f32 %v887, 0.015625
    %v950 = vmul.f32 %v891, 0.015625
    %v951 = vmul.f32 %v895, 0.015625
    %v952 = vmul.f32 %v899, 0.015625
    %v953 = vmul.f32 %v903, 0.015625
    %v954 = vmul.f32 %v907, 0.015625
    %v955 = vmul.f32 %v911, 0.015625
    %v956 = vmul.f32 %v915, 0.015625
    %v957 = vmul.f32 %v919, 0.015625
    %v958 = vmul.f32 %v923, 0.015625
    %v959 = vmul.f32 %v927, 0.015625
    %v960 = vmul.f32 %v931, 0.015625
    %v961 = vmul.f32 %v935, 0.015625
    %v962 = vmul.f32 %v939, 0.015625
    %v963 = vmul.f32 %v943, 0.015625
    %v964 = vmul.f32 %v947, 0.015625
    %v965 = vmul.f32 %v286, %v286
    %v966 = vmul.f32 %v287, %v287
    %v967 = vmul.f32 %v288, %v288
    %v968 = vmul.f32 %v289, %v289
    %v969 = vmul.f32 %v290, %v290
    %v970 = vmul.f32 %v291, %v291
    %v971 = vmul.f32 %v292, %v292
    %v972 = vmul.f32 %v293, %v293
    %v973 = vmul.f32 %v294, %v294
    %v974 = vmul.f32 %v295, %v295
    %v975 = vmul.f32 %v296, %v296
    %v976 = vmul.f32 %v297, %v297
    %v977 = vmul.f32 %v298, %v298
    %v978 = vmul.f32 %v299, %v299
    %v979 = vmul.f32 %v300, %v300
    %v980 = vmul.f32 %v301, %v301
    %v982 = vsel %vm302, %v965, 0
    %v985 = vsel %vm302, %v966, 0
    %v988 = vsel %vm302, %v967, 0
    %v991 = vsel %vm302, %v968, 0
    %v994 = vsel %vm302, %v969, 0
    %v997 = vsel %vm302, %v970, 0
    %v1000 = vsel %vm302, %v971, 0
    %v1003 = vsel %vm302, %v972, 0
    %v1006 = vsel %vm302, %v973, 0
    %v1009 = vsel %vm302, %v974, 0
    %v1012 = vsel %vm302, %v975, 0
    %v1015 = vsel %vm302, %v976, 0
    %v1018 = vsel %vm302, %v977, 0
    %v1021 = vsel %vm302, %v978, 0
    %v1024 = vsel %vm302, %v979, 0
    %v1027 = vsel %vm302, %v980, 0
    %1029 = vmatpush.msra.mxu0 0.0
    %1030 = vmatpush.msra.mxu0 0.0
    %1031 = vmatpush.msra.mxu0 0.0
    %1032 = vmatpush.msra.mxu0 0.0
    %1033 = vmatpush.msra.mxu0 0.0
    %1034 = vmatpush.msra.mxu0 0.0
    %1035 = vmatpush.msra.mxu0 0.0
    %1036 = vmatpush.msra.mxu0 0.0
    %1037 = vmatpush.msra.mxu0 1.0
    %1038 = vmatpush.msra.mxu0 1.0
    %1039 = vmatpush.msra.mxu0 1.0
    %1040 = vmatpush.msra.mxu0 1.0
    %1041 = vmatpush.msra.mxu0 1.0
    %1042 = vmatpush.msra.mxu0 1.0
    %1043 = vmatpush.msra.mxu0 1.0
    %1044 = vmatpush.msra.mxu0 1.0
    %v1045 = vand.u32 %v982, 4294901760
    %v1046 = vsub.f32 %v982, %v1045
    %v1047 = vand.u32 %v1046, 4294901760
    %v1048 = vsub.f32 %v1046, %v1047
    %v1049 = vand.u32 %v1048, 4294901760
    %1050 = vmatmul.f32.gmra.mxu0 %v1049
    %v1051 = vpop.f32.mrf.mxu0
    %v1052 = vadd.f32 0.0, %v1051
    %v1053 = vand.u32 %v985, 4294901760
    %v1054 = vsub.f32 %v985, %v1053
    %v1055 = vand.u32 %v1054, 4294901760
    %v1056 = vsub.f32 %v1054, %v1055
    %v1057 = vand.u32 %v1056, 4294901760
    %1058 = vmatmul.f32.gmra.mxu0 %v1057
    %v1059 = vpop.f32.mrf.mxu0
    %v1060 = vadd.f32 0.0, %v1059
    %v1061 = vand.u32 %v988, 4294901760
    %v1062 = vsub.f32 %v988, %v1061
    %v1063 = vand.u32 %v1062, 4294901760
    %v1064 = vsub.f32 %v1062, %v1063
    %v1065 = vand.u32 %v1064, 4294901760
    %1066 = vmatmul.f32.gmra.mxu0 %v1065
    %v1067 = vpop.f32.mrf.mxu0
    %v1068 = vadd.f32 0.0, %v1067
    %v1069 = vand.u32 %v991, 4294901760
    %v1070 = vsub.f32 %v991, %v1069
    %v1071 = vand.u32 %v1070, 4294901760
    %v1072 = vsub.f32 %v1070, %v1071
    %v1073 = vand.u32 %v1072, 4294901760
    %1074 = vmatmul.f32.gmra.mxu0 %v1073
    %v1075 = vpop.f32.mrf.mxu0
    %v1076 = vadd.f32 0.0, %v1075
    %v1077 = vand.u32 %v994, 4294901760
    %v1078 = vsub.f32 %v994, %v1077
    %v1079 = vand.u32 %v1078, 4294901760
    %v1080 = vsub.f32 %v1078, %v1079
    %v1081 = vand.u32 %v1080, 4294901760
    %1082 = vmatmul.f32.gmra.mxu0 %v1081
    %v1083 = vpop.f32.mrf.mxu0
    %v1084 = vadd.f32 0.0, %v1083
    %v1085 = vand.u32 %v997, 4294901760
    %v1086 = vsub.f32 %v997, %v1085
    %v1087 = vand.u32 %v1086, 4294901760
    %v1088 = vsub.f32 %v1086, %v1087
    %v1089 = vand.u32 %v1088, 4294901760
    %1090 = vmatmul.f32.gmra.mxu0 %v1089
    %v1091 = vpop.f32.mrf.mxu0
    %v1092 = vadd.f32 0.0, %v1091
    %v1093 = vand.u32 %v1000, 4294901760
    %v1094 = vsub.f32 %v1000, %v1093
    %v1095 = vand.u32 %v1094, 4294901760
    %v1096 = vsub.f32 %v1094, %v1095
    %v1097 = vand.u32 %v1096, 4294901760
    %1098 = vmatmul.f32.gmra.mxu0 %v1097
    %v1099 = vpop.f32.mrf.mxu0
    %v1100 = vadd.f32 0.0, %v1099
    %v1101 = vand.u32 %v1003, 4294901760
    %v1102 = vsub.f32 %v1003, %v1101
    %v1103 = vand.u32 %v1102, 4294901760
    %v1104 = vsub.f32 %v1102, %v1103
    %v1105 = vand.u32 %v1104, 4294901760
    %1106 = vmatmul.f32.gmra.mxu0 %v1105
    %v1107 = vpop.f32.mrf.mxu0
    %v1108 = vadd.f32 0.0, %v1107
    %v1109 = vand.u32 %v1006, 4294901760
    %v1110 = vsub.f32 %v1006, %v1109
    %v1111 = vand.u32 %v1110, 4294901760
    %v1112 = vsub.f32 %v1110, %v1111
    %v1113 = vand.u32 %v1112, 4294901760
    %1114 = vmatmul.f32.gmra.mxu0 %v1113
    %v1115 = vpop.f32.mrf.mxu0
    %v1116 = vadd.f32 0.0, %v1115
    %v1117 = vand.u32 %v1009, 4294901760
    %v1118 = vsub.f32 %v1009, %v1117
    %v1119 = vand.u32 %v1118, 4294901760
    %v1120 = vsub.f32 %v1118, %v1119
    %v1121 = vand.u32 %v1120, 4294901760
    %1122 = vmatmul.f32.gmra.mxu0 %v1121
    %v1123 = vpop.f32.mrf.mxu0
    %v1124 = vadd.f32 0.0, %v1123
    %v1125 = vand.u32 %v1012, 4294901760
    %v1126 = vsub.f32 %v1012, %v1125
    %v1127 = vand.u32 %v1126, 4294901760
    %v1128 = vsub.f32 %v1126, %v1127
    %v1129 = vand.u32 %v1128, 4294901760
    %1130 = vmatmul.f32.gmra.mxu0 %v1129
    %v1131 = vpop.f32.mrf.mxu0
    %v1132 = vadd.f32 0.0, %v1131
    %v1133 = vand.u32 %v1015, 4294901760
    %v1134 = vsub.f32 %v1015, %v1133
    %v1135 = vand.u32 %v1134, 4294901760
    %v1136 = vsub.f32 %v1134, %v1135
    %v1137 = vand.u32 %v1136, 4294901760
    %1138 = vmatmul.f32.gmra.mxu0 %v1137
    %v1139 = vpop.f32.mrf.mxu0
    %v1140 = vadd.f32 0.0, %v1139
    %v1141 = vand.u32 %v1018, 4294901760
    %v1142 = vsub.f32 %v1018, %v1141
    %v1143 = vand.u32 %v1142, 4294901760
    %v1144 = vsub.f32 %v1142, %v1143
    %v1145 = vand.u32 %v1144, 4294901760
    %1146 = vmatmul.f32.gmra.mxu0 %v1145
    %v1147 = vpop.f32.mrf.mxu0
    %v1148 = vadd.f32 0.0, %v1147
    %v1149 = vand.u32 %v1021, 4294901760
    %v1150 = vsub.f32 %v1021, %v1149
    %v1151 = vand.u32 %v1150, 4294901760
    %v1152 = vsub.f32 %v1150, %v1151
    %v1153 = vand.u32 %v1152, 4294901760
    %1154 = vmatmul.f32.gmra.mxu0 %v1153
    %v1155 = vpop.f32.mrf.mxu0
    %v1156 = vadd.f32 0.0, %v1155
    %v1157 = vand.u32 %v1024, 4294901760
    %v1158 = vsub.f32 %v1024, %v1157
    %v1159 = vand.u32 %v1158, 4294901760
    %v1160 = vsub.f32 %v1158, %v1159
    %v1161 = vand.u32 %v1160, 4294901760
    %1162 = vmatmul.f32.gmra.mxu0 %v1161
    %v1163 = vpop.f32.mrf.mxu0
    %v1164 = vadd.f32 0.0, %v1163
    %v1165 = vand.u32 %v1027, 4294901760
    %v1166 = vsub.f32 %v1027, %v1165
    %v1167 = vand.u32 %v1166, 4294901760
    %v1168 = vsub.f32 %v1166, %v1167
    %v1169 = vand.u32 %v1168, 4294901760
    %1170 = vmatmul.f32.gmra.mxu0 %v1169
    %v1171 = vpop.f32.mrf.mxu0
    %v1172 = vadd.f32 0.0, %v1171
    %1173 = vdwg.mxu0
    %1174 = vmatpush.msra.mxu0 0.0
    %1175 = vmatpush.msra.mxu0 0.0
    %1176 = vmatpush.msra.mxu0 0.0
    %1177 = vmatpush.msra.mxu0 0.0
    %1178 = vmatpush.msra.mxu0 0.0
    %1179 = vmatpush.msra.mxu0 0.0
    %1180 = vmatpush.msra.mxu0 0.0
    %1181 = vmatpush.msra.mxu0 0.0
    %1182 = vmatpush.msra.mxu0 0.0
    %1183 = vmatpush.msra.mxu0 0.0
    %1184 = vmatpush.msra.mxu0 0.0
    %1185 = vmatpush.msra.mxu0 0.0
    %1186 = vmatpush.msra.mxu0 0.0
    %1187 = vmatpush.msra.mxu0 0.0
    %1188 = vmatpush.msra.mxu0 0.0
    %1189 = vmatpush.msra.mxu0 0.0
    %v1190 = vand.u32 %v982, 4294901760
    %1191 = vmatmul.f32.gmra.mxu0 %v1190
    %v1192 = vpop.f32.mrf.mxu0
    %v1193 = vadd.f32 %v1052, %v1192
    %v1194 = vand.u32 %v985, 4294901760
    %1195 = vmatmul.f32.gmra.mxu0 %v1194
    %v1196 = vpop.f32.mrf.mxu0
    %v1197 = vadd.f32 %v1060, %v1196
    %v1198 = vand.u32 %v988, 4294901760
    %1199 = vmatmul.f32.gmra.mxu0 %v1198
    %v1200 = vpop.f32.mrf.mxu0
    %v1201 = vadd.f32 %v1068, %v1200
    %v1202 = vand.u32 %v991, 4294901760
    %1203 = vmatmul.f32.gmra.mxu0 %v1202
    %v1204 = vpop.f32.mrf.mxu0
    %v1205 = vadd.f32 %v1076, %v1204
    %v1206 = vand.u32 %v994, 4294901760
    %1207 = vmatmul.f32.gmra.mxu0 %v1206
    %v1208 = vpop.f32.mrf.mxu0
    %v1209 = vadd.f32 %v1084, %v1208
    %v1210 = vand.u32 %v997, 4294901760
    %1211 = vmatmul.f32.gmra.mxu0 %v1210
    %v1212 = vpop.f32.mrf.mxu0
    %v1213 = vadd.f32 %v1092, %v1212
    %v1214 = vand.u32 %v1000, 4294901760
    %1215 = vmatmul.f32.gmra.mxu0 %v1214
    %v1216 = vpop.f32.mrf.mxu0
    %v1217 = vadd.f32 %v1100, %v1216
    %v1218 = vand.u32 %v1003, 4294901760
    %1219 = vmatmul.f32.gmra.mxu0 %v1218
    %v1220 = vpop.f32.mrf.mxu0
    %v1221 = vadd.f32 %v1108, %v1220
    %v1222 = vand.u32 %v1006, 4294901760
    %1223 = vmatmul.f32.gmra.mxu0 %v1222
    %v1224 = vpop.f32.mrf.mxu0
    %v1225 = vadd.f32 %v1116, %v1224
    %v1226 = vand.u32 %v1009, 4294901760
    %1227 = vmatmul.f32.gmra.mxu0 %v1226
    %v1228 = vpop.f32.mrf.mxu0
    %v1229 = vadd.f32 %v1124, %v1228
    %v1230 = vand.u32 %v1012, 4294901760
    %1231 = vmatmul.f32.gmra.mxu0 %v1230
    %v1232 = vpop.f32.mrf.mxu0
    %v1233 = vadd.f32 %v1132, %v1232
    %v1234 = vand.u32 %v1015, 4294901760
    %1235 = vmatmul.f32.gmra.mxu0 %v1234
    %v1236 = vpop.f32.mrf.mxu0
    %v1237 = vadd.f32 %v1140, %v1236
    %v1238 = vand.u32 %v1018, 4294901760
    %1239 = vmatmul.f32.gmra.mxu0 %v1238
    %v1240 = vpop.f32.mrf.mxu0
    %v1241 = vadd.f32 %v1148, %v1240
    %v1242 = vand.u32 %v1021, 4294901760
    %1243 = vmatmul.f32.gmra.mxu0 %v1242
    %v1244 = vpop.f32.mrf.mxu0
    %v1245 = vadd.f32 %v1156, %v1244
    %v1246 = vand.u32 %v1024, 4294901760
    %1247 = vmatmul.f32.gmra.mxu0 %v1246
    %v1248 = vpop.f32.mrf.mxu0
    %v1249 = vadd.f32 %v1164, %v1248
    %v1250 = vand.u32 %v1027, 4294901760
    %1251 = vmatmul.f32.gmra.mxu0 %v1250
    %v1252 = vpop.f32.mrf.mxu0
    %v1253 = vadd.f32 %v1172, %v1252
    %1254 = vdwg.mxu0
    %1255 = vmatpush.msra.mxu0 0.0
    %1256 = vmatpush.msra.mxu0 0.0
    %1257 = vmatpush.msra.mxu0 0.0
    %1258 = vmatpush.msra.mxu0 0.0
    %1259 = vmatpush.msra.mxu0 0.0
    %1260 = vmatpush.msra.mxu0 0.0
    %1261 = vmatpush.msra.mxu0 0.0
    %1262 = vmatpush.msra.mxu0 0.0
    %1263 = vmatpush.msra.mxu0 0.0
    %1264 = vmatpush.msra.mxu0 0.0
    %1265 = vmatpush.msra.mxu0 0.0
    %1266 = vmatpush.msra.mxu0 0.0
    %1267 = vmatpush.msra.mxu0 0.0
    %1268 = vmatpush.msra.mxu0 0.0
    %1269 = vmatpush.msra.mxu0 0.0
    %1270 = vmatpush.msra.mxu0 0.0
    %v1271 = vand.u32 %v982, 4294901760
    %v1272 = vsub.f32 %v982, %v1271
    %1273 = vmatmul.f32.gmra.mxu0 %v1272
    %v1274 = vpop.f32.mrf.mxu0
    %v1275 = vadd.f32 %v1193, %v1274
    %v1276 = vand.u32 %v985, 4294901760
    %v1277 = vsub.f32 %v985, %v1276
    %1278 = vmatmul.f32.gmra.mxu0 %v1277
    %v1279 = vpop.f32.mrf.mxu0
    %v1280 = vadd.f32 %v1197, %v1279
    %v1281 = vand.u32 %v988, 4294901760
    %v1282 = vsub.f32 %v988, %v1281
    %1283 = vmatmul.f32.gmra.mxu0 %v1282
    %v1284 = vpop.f32.mrf.mxu0
    %v1285 = vadd.f32 %v1201, %v1284
    %v1286 = vand.u32 %v991, 4294901760
    %v1287 = vsub.f32 %v991, %v1286
    %1288 = vmatmul.f32.gmra.mxu0 %v1287
    %v1289 = vpop.f32.mrf.mxu0
    %v1290 = vadd.f32 %v1205, %v1289
    %v1291 = vand.u32 %v994, 4294901760
    %v1292 = vsub.f32 %v994, %v1291
    %1293 = vmatmul.f32.gmra.mxu0 %v1292
    %v1294 = vpop.f32.mrf.mxu0
    %v1295 = vadd.f32 %v1209, %v1294
    %v1296 = vand.u32 %v997, 4294901760
    %v1297 = vsub.f32 %v997, %v1296
    %1298 = vmatmul.f32.gmra.mxu0 %v1297
    %v1299 = vpop.f32.mrf.mxu0
    %v1300 = vadd.f32 %v1213, %v1299
    %v1301 = vand.u32 %v1000, 4294901760
    %v1302 = vsub.f32 %v1000, %v1301
    %1303 = vmatmul.f32.gmra.mxu0 %v1302
    %v1304 = vpop.f32.mrf.mxu0
    %v1305 = vadd.f32 %v1217, %v1304
    %v1306 = vand.u32 %v1003, 4294901760
    %v1307 = vsub.f32 %v1003, %v1306
    %1308 = vmatmul.f32.gmra.mxu0 %v1307
    %v1309 = vpop.f32.mrf.mxu0
    %v1310 = vadd.f32 %v1221, %v1309
    %v1311 = vand.u32 %v1006, 4294901760
    %v1312 = vsub.f32 %v1006, %v1311
    %1313 = vmatmul.f32.gmra.mxu0 %v1312
    %v1314 = vpop.f32.mrf.mxu0
    %v1315 = vadd.f32 %v1225, %v1314
    %v1316 = vand.u32 %v1009, 4294901760
    %v1317 = vsub.f32 %v1009, %v1316
    %1318 = vmatmul.f32.gmra.mxu0 %v1317
    %v1319 = vpop.f32.mrf.mxu0
    %v1320 = vadd.f32 %v1229, %v1319
    %v1321 = vand.u32 %v1012, 4294901760
    %v1322 = vsub.f32 %v1012, %v1321
    %1323 = vmatmul.f32.gmra.mxu0 %v1322
    %v1324 = vpop.f32.mrf.mxu0
    %v1325 = vadd.f32 %v1233, %v1324
    %v1326 = vand.u32 %v1015, 4294901760
    %v1327 = vsub.f32 %v1015, %v1326
    %1328 = vmatmul.f32.gmra.mxu0 %v1327
    %v1329 = vpop.f32.mrf.mxu0
    %v1330 = vadd.f32 %v1237, %v1329
    %v1331 = vand.u32 %v1018, 4294901760
    %v1332 = vsub.f32 %v1018, %v1331
    %1333 = vmatmul.f32.gmra.mxu0 %v1332
    %v1334 = vpop.f32.mrf.mxu0
    %v1335 = vadd.f32 %v1241, %v1334
    %v1336 = vand.u32 %v1021, 4294901760
    %v1337 = vsub.f32 %v1021, %v1336
    %1338 = vmatmul.f32.gmra.mxu0 %v1337
    %v1339 = vpop.f32.mrf.mxu0
    %v1340 = vadd.f32 %v1245, %v1339
    %v1341 = vand.u32 %v1024, 4294901760
    %v1342 = vsub.f32 %v1024, %v1341
    %1343 = vmatmul.f32.gmra.mxu0 %v1342
    %v1344 = vpop.f32.mrf.mxu0
    %v1345 = vadd.f32 %v1249, %v1344
    %v1346 = vand.u32 %v1027, 4294901760
    %v1347 = vsub.f32 %v1027, %v1346
    %1348 = vmatmul.f32.gmra.mxu0 %v1347
    %v1349 = vpop.f32.mrf.mxu0
    %v1350 = vadd.f32 %v1253, %v1349
    %1351 = vdwg.mxu0
    %1352 = vmatpush.msra.mxu0 0.0
    %1353 = vmatpush.msra.mxu0 0.0
    %1354 = vmatpush.msra.mxu0 0.0
    %1355 = vmatpush.msra.mxu0 0.0
    %1356 = vmatpush.msra.mxu0 0.0
    %1357 = vmatpush.msra.mxu0 0.0
    %1358 = vmatpush.msra.mxu0 0.0
    %1359 = vmatpush.msra.mxu0 0.0
    %1360 = vmatpush.msra.mxu0 1.0
    %1361 = vmatpush.msra.mxu0 1.0
    %1362 = vmatpush.msra.mxu0 1.0
    %1363 = vmatpush.msra.mxu0 1.0
    %1364 = vmatpush.msra.mxu0 1.0
    %1365 = vmatpush.msra.mxu0 1.0
    %1366 = vmatpush.msra.mxu0 1.0
    %1367 = vmatpush.msra.mxu0 1.0
    %v1368 = vand.u32 %v982, 4294901760
    %v1369 = vsub.f32 %v982, %v1368
    %v1370 = vand.u32 %v1369, 4294901760
    %1371 = vmatmul.f32.gmra.mxu0 %v1370
    %v1372 = vpop.f32.mrf.mxu0
    %v1373 = vadd.f32 %v1275, %v1372
    %v1374 = vand.u32 %v985, 4294901760
    %v1375 = vsub.f32 %v985, %v1374
    %v1376 = vand.u32 %v1375, 4294901760
    %1377 = vmatmul.f32.gmra.mxu0 %v1376
    %v1378 = vpop.f32.mrf.mxu0
    %v1379 = vadd.f32 %v1280, %v1378
    %v1380 = vand.u32 %v988, 4294901760
    %v1381 = vsub.f32 %v988, %v1380
    %v1382 = vand.u32 %v1381, 4294901760
    %1383 = vmatmul.f32.gmra.mxu0 %v1382
    %v1384 = vpop.f32.mrf.mxu0
    %v1385 = vadd.f32 %v1285, %v1384
    %v1386 = vand.u32 %v991, 4294901760
    %v1387 = vsub.f32 %v991, %v1386
    %v1388 = vand.u32 %v1387, 4294901760
    %1389 = vmatmul.f32.gmra.mxu0 %v1388
    %v1390 = vpop.f32.mrf.mxu0
    %v1391 = vadd.f32 %v1290, %v1390
    %v1392 = vand.u32 %v994, 4294901760
    %v1393 = vsub.f32 %v994, %v1392
    %v1394 = vand.u32 %v1393, 4294901760
    %1395 = vmatmul.f32.gmra.mxu0 %v1394
    %v1396 = vpop.f32.mrf.mxu0
    %v1397 = vadd.f32 %v1295, %v1396
    %v1398 = vand.u32 %v997, 4294901760
    %v1399 = vsub.f32 %v997, %v1398
    %v1400 = vand.u32 %v1399, 4294901760
    %1401 = vmatmul.f32.gmra.mxu0 %v1400
    %v1402 = vpop.f32.mrf.mxu0
    %v1403 = vadd.f32 %v1300, %v1402
    %v1404 = vand.u32 %v1000, 4294901760
    %v1405 = vsub.f32 %v1000, %v1404
    %v1406 = vand.u32 %v1405, 4294901760
    %1407 = vmatmul.f32.gmra.mxu0 %v1406
    %v1408 = vpop.f32.mrf.mxu0
    %v1409 = vadd.f32 %v1305, %v1408
    %v1410 = vand.u32 %v1003, 4294901760
    %v1411 = vsub.f32 %v1003, %v1410
    %v1412 = vand.u32 %v1411, 4294901760
    %1413 = vmatmul.f32.gmra.mxu0 %v1412
    %v1414 = vpop.f32.mrf.mxu0
    %v1415 = vadd.f32 %v1310, %v1414
    %v1416 = vand.u32 %v1006, 4294901760
    %v1417 = vsub.f32 %v1006, %v1416
    %v1418 = vand.u32 %v1417, 4294901760
    %1419 = vmatmul.f32.gmra.mxu0 %v1418
    %v1420 = vpop.f32.mrf.mxu0
    %v1421 = vadd.f32 %v1315, %v1420
    %v1422 = vand.u32 %v1009, 4294901760
    %v1423 = vsub.f32 %v1009, %v1422
    %v1424 = vand.u32 %v1423, 4294901760
    %1425 = vmatmul.f32.gmra.mxu0 %v1424
    %v1426 = vpop.f32.mrf.mxu0
    %v1427 = vadd.f32 %v1320, %v1426
    %v1428 = vand.u32 %v1012, 4294901760
    %v1429 = vsub.f32 %v1012, %v1428
    %v1430 = vand.u32 %v1429, 4294901760
    %1431 = vmatmul.f32.gmra.mxu0 %v1430
    %v1432 = vpop.f32.mrf.mxu0
    %v1433 = vadd.f32 %v1325, %v1432
    %v1434 = vand.u32 %v1015, 4294901760
    %v1435 = vsub.f32 %v1015, %v1434
    %v1436 = vand.u32 %v1435, 4294901760
    %1437 = vmatmul.f32.gmra.mxu0 %v1436
    %v1438 = vpop.f32.mrf.mxu0
    %v1439 = vadd.f32 %v1330, %v1438
    %v1440 = vand.u32 %v1018, 4294901760
    %v1441 = vsub.f32 %v1018, %v1440
    %v1442 = vand.u32 %v1441, 4294901760
    %1443 = vmatmul.f32.gmra.mxu0 %v1442
    %v1444 = vpop.f32.mrf.mxu0
    %v1445 = vadd.f32 %v1335, %v1444
    %v1446 = vand.u32 %v1021, 4294901760
    %v1447 = vsub.f32 %v1021, %v1446
    %v1448 = vand.u32 %v1447, 4294901760
    %1449 = vmatmul.f32.gmra.mxu0 %v1448
    %v1450 = vpop.f32.mrf.mxu0
    %v1451 = vadd.f32 %v1340, %v1450
    %v1452 = vand.u32 %v1024, 4294901760
    %v1453 = vsub.f32 %v1024, %v1452
    %v1454 = vand.u32 %v1453, 4294901760
    %1455 = vmatmul.f32.gmra.mxu0 %v1454
    %v1456 = vpop.f32.mrf.mxu0
    %v1457 = vadd.f32 %v1345, %v1456
    %v1458 = vand.u32 %v1027, 4294901760
    %v1459 = vsub.f32 %v1027, %v1458
    %v1460 = vand.u32 %v1459, 4294901760
    %1461 = vmatmul.f32.gmra.mxu0 %v1460
    %v1462 = vpop.f32.mrf.mxu0
    %v1463 = vadd.f32 %v1350, %v1462
    %1464 = vdwg.mxu0
    %1465 = vmatpush.msra.mxu0 0.0
    %1466 = vmatpush.msra.mxu0 0.0
    %1467 = vmatpush.msra.mxu0 0.0
    %1468 = vmatpush.msra.mxu0 0.0
    %1469 = vmatpush.msra.mxu0 0.0
    %1470 = vmatpush.msra.mxu0 0.0
    %1471 = vmatpush.msra.mxu0 0.0
    %1472 = vmatpush.msra.mxu0 0.0
    %1473 = vmatpush.msra.mxu0 0.0
    %1474 = vmatpush.msra.mxu0 0.0
    %1475 = vmatpush.msra.mxu0 0.0
    %1476 = vmatpush.msra.mxu0 0.0
    %1477 = vmatpush.msra.mxu0 0.0
    %1478 = vmatpush.msra.mxu0 0.0
    %1479 = vmatpush.msra.mxu0 0.0
    %1480 = vmatpush.msra.mxu0 0.0
    %v1481 = vand.u32 %v982, 4294901760
    %1482 = vmatmul.f32.gmra.mxu0 %v1481
    %v1483 = vpop.f32.mrf.mxu0
    %v1484 = vadd.f32 %v1373, %v1483
    %v1485 = vand.u32 %v985, 4294901760
    %1486 = vmatmul.f32.gmra.mxu0 %v1485
    %v1487 = vpop.f32.mrf.mxu0
    %v1488 = vadd.f32 %v1379, %v1487
    %v1489 = vand.u32 %v988, 4294901760
    %1490 = vmatmul.f32.gmra.mxu0 %v1489
    %v1491 = vpop.f32.mrf.mxu0
    %v1492 = vadd.f32 %v1385, %v1491
    %v1493 = vand.u32 %v991, 4294901760
    %1494 = vmatmul.f32.gmra.mxu0 %v1493
    %v1495 = vpop.f32.mrf.mxu0
    %v1496 = vadd.f32 %v1391, %v1495
    %v1497 = vand.u32 %v994, 4294901760
    %1498 = vmatmul.f32.gmra.mxu0 %v1497
    %v1499 = vpop.f32.mrf.mxu0
    %v1500 = vadd.f32 %v1397, %v1499
    %v1501 = vand.u32 %v997, 4294901760
    %1502 = vmatmul.f32.gmra.mxu0 %v1501
    %v1503 = vpop.f32.mrf.mxu0
    %v1504 = vadd.f32 %v1403, %v1503
    %v1505 = vand.u32 %v1000, 4294901760
    %1506 = vmatmul.f32.gmra.mxu0 %v1505
    %v1507 = vpop.f32.mrf.mxu0
    %v1508 = vadd.f32 %v1409, %v1507
    %v1509 = vand.u32 %v1003, 4294901760
    %1510 = vmatmul.f32.gmra.mxu0 %v1509
    %v1511 = vpop.f32.mrf.mxu0
    %v1512 = vadd.f32 %v1415, %v1511
    %v1513 = vand.u32 %v1006, 4294901760
    %1514 = vmatmul.f32.gmra.mxu0 %v1513
    %v1515 = vpop.f32.mrf.mxu0
    %v1516 = vadd.f32 %v1421, %v1515
    %v1517 = vand.u32 %v1009, 4294901760
    %1518 = vmatmul.f32.gmra.mxu0 %v1517
    %v1519 = vpop.f32.mrf.mxu0
    %v1520 = vadd.f32 %v1427, %v1519
    %v1521 = vand.u32 %v1012, 4294901760
    %1522 = vmatmul.f32.gmra.mxu0 %v1521
    %v1523 = vpop.f32.mrf.mxu0
    %v1524 = vadd.f32 %v1433, %v1523
    %v1525 = vand.u32 %v1015, 4294901760
    %1526 = vmatmul.f32.gmra.mxu0 %v1525
    %v1527 = vpop.f32.mrf.mxu0
    %v1528 = vadd.f32 %v1439, %v1527
    %v1529 = vand.u32 %v1018, 4294901760
    %1530 = vmatmul.f32.gmra.mxu0 %v1529
    %v1531 = vpop.f32.mrf.mxu0
    %v1532 = vadd.f32 %v1445, %v1531
    %v1533 = vand.u32 %v1021, 4294901760
    %1534 = vmatmul.f32.gmra.mxu0 %v1533
    %v1535 = vpop.f32.mrf.mxu0
    %v1536 = vadd.f32 %v1451, %v1535
    %v1537 = vand.u32 %v1024, 4294901760
    %1538 = vmatmul.f32.gmra.mxu0 %v1537
    %v1539 = vpop.f32.mrf.mxu0
    %v1540 = vadd.f32 %v1457, %v1539
    %v1541 = vand.u32 %v1027, 4294901760
    %1542 = vmatmul.f32.gmra.mxu0 %v1541
    %v1543 = vpop.f32.mrf.mxu0
    %v1544 = vadd.f32 %v1463, %v1543
    %1545 = vdwg.mxu0
    %1546 = vmatpush.msra.mxu0 0.0
    %1547 = vmatpush.msra.mxu0 0.0
    %1548 = vmatpush.msra.mxu0 0.0
    %1549 = vmatpush.msra.mxu0 0.0
    %1550 = vmatpush.msra.mxu0 0.0
    %1551 = vmatpush.msra.mxu0 0.0
    %1552 = vmatpush.msra.mxu0 0.0
    %1553 = vmatpush.msra.mxu0 0.0
    %1554 = vmatpush.msra.mxu0 1.0
    %1555 = vmatpush.msra.mxu0 1.0
    %1556 = vmatpush.msra.mxu0 1.0
    %1557 = vmatpush.msra.mxu0 1.0
    %1558 = vmatpush.msra.mxu0 1.0
    %1559 = vmatpush.msra.mxu0 1.0
    %1560 = vmatpush.msra.mxu0 1.0
    %1561 = vmatpush.msra.mxu0 1.0
    %v1562 = vand.u32 %v982, 4294901760
    %1563 = vmatmul.f32.gmra.mxu0 %v1562
    %v1564 = vpop.f32.mrf.mxu0
    %v1565 = vadd.f32 %v1484, %v1564
    %v1566 = vand.u32 %v985, 4294901760
    %1567 = vmatmul.f32.gmra.mxu0 %v1566
    %v1568 = vpop.f32.mrf.mxu0
    %v1569 = vadd.f32 %v1488, %v1568
    %v1570 = vand.u32 %v988, 4294901760
    %1571 = vmatmul.f32.gmra.mxu0 %v1570
    %v1572 = vpop.f32.mrf.mxu0
    %v1573 = vadd.f32 %v1492, %v1572
    %v1574 = vand.u32 %v991, 4294901760
    %1575 = vmatmul.f32.gmra.mxu0 %v1574
    %v1576 = vpop.f32.mrf.mxu0
    %v1577 = vadd.f32 %v1496, %v1576
    %v1578 = vand.u32 %v994, 4294901760
    %1579 = vmatmul.f32.gmra.mxu0 %v1578
    %v1580 = vpop.f32.mrf.mxu0
    %v1581 = vadd.f32 %v1500, %v1580
    %v1582 = vand.u32 %v997, 4294901760
    %1583 = vmatmul.f32.gmra.mxu0 %v1582
    %v1584 = vpop.f32.mrf.mxu0
    %v1585 = vadd.f32 %v1504, %v1584
    %v1586 = vand.u32 %v1000, 4294901760
    %1587 = vmatmul.f32.gmra.mxu0 %v1586
    %v1588 = vpop.f32.mrf.mxu0
    %v1589 = vadd.f32 %v1508, %v1588
    %v1590 = vand.u32 %v1003, 4294901760
    %1591 = vmatmul.f32.gmra.mxu0 %v1590
    %v1592 = vpop.f32.mrf.mxu0
    %v1593 = vadd.f32 %v1512, %v1592
    %v1594 = vand.u32 %v1006, 4294901760
    %1595 = vmatmul.f32.gmra.mxu0 %v1594
    %v1596 = vpop.f32.mrf.mxu0
    %v1597 = vadd.f32 %v1516, %v1596
    %v1598 = vand.u32 %v1009, 4294901760
    %1599 = vmatmul.f32.gmra.mxu0 %v1598
    %v1600 = vpop.f32.mrf.mxu0
    %v1601 = vadd.f32 %v1520, %v1600
    %v1602 = vand.u32 %v1012, 4294901760
    %1603 = vmatmul.f32.gmra.mxu0 %v1602
    %v1604 = vpop.f32.mrf.mxu0
    %v1605 = vadd.f32 %v1524, %v1604
    %v1606 = vand.u32 %v1015, 4294901760
    %1607 = vmatmul.f32.gmra.mxu0 %v1606
    %v1608 = vpop.f32.mrf.mxu0
    %v1609 = vadd.f32 %v1528, %v1608
    %v1610 = vand.u32 %v1018, 4294901760
    %1611 = vmatmul.f32.gmra.mxu0 %v1610
    %v1612 = vpop.f32.mrf.mxu0
    %v1613 = vadd.f32 %v1532, %v1612
    %v1614 = vand.u32 %v1021, 4294901760
    %1615 = vmatmul.f32.gmra.mxu0 %v1614
    %v1616 = vpop.f32.mrf.mxu0
    %v1617 = vadd.f32 %v1536, %v1616
    %v1618 = vand.u32 %v1024, 4294901760
    %1619 = vmatmul.f32.gmra.mxu0 %v1618
    %v1620 = vpop.f32.mrf.mxu0
    %v1621 = vadd.f32 %v1540, %v1620
    %v1622 = vand.u32 %v1027, 4294901760
    %1623 = vmatmul.f32.gmra.mxu0 %v1622
    %v1624 = vpop.f32.mrf.mxu0
    %v1625 = vadd.f32 %v1544, %v1624
    %1626 = vdwg.mxu0
    %v1627 = vmul.f32 %v1565, 0.015625
    %v1628 = vmul.f32 %v1569, 0.015625
    %v1629 = vmul.f32 %v1573, 0.015625
    %v1630 = vmul.f32 %v1577, 0.015625
    %v1631 = vmul.f32 %v1581, 0.015625
    %v1632 = vmul.f32 %v1585, 0.015625
    %v1633 = vmul.f32 %v1589, 0.015625
    %v1634 = vmul.f32 %v1593, 0.015625
    %v1635 = vmul.f32 %v1597, 0.015625
    %v1636 = vmul.f32 %v1601, 0.015625
    %v1637 = vmul.f32 %v1605, 0.015625
    %v1638 = vmul.f32 %v1609, 0.015625
    %v1639 = vmul.f32 %v1613, 0.015625
    %v1640 = vmul.f32 %v1617, 0.015625
    %v1641 = vmul.f32 %v1621, 0.015625
    %v1642 = vmul.f32 %v1625, 0.015625
    %v1643 = vmul.f32 %v949, %v949
    %v1644 = vmul.f32 %v950, %v950
    %v1645 = vmul.f32 %v951, %v951
    %v1646 = vmul.f32 %v952, %v952
    %v1647 = vmul.f32 %v953, %v953
    %v1648 = vmul.f32 %v954, %v954
    %v1649 = vmul.f32 %v955, %v955
    %v1650 = vmul.f32 %v956, %v956
    %v1651 = vmul.f32 %v957, %v957
    %v1652 = vmul.f32 %v958, %v958
    %v1653 = vmul.f32 %v959, %v959
    %v1654 = vmul.f32 %v960, %v960
    %v1655 = vmul.f32 %v961, %v961
    %v1656 = vmul.f32 %v962, %v962
    %v1657 = vmul.f32 %v963, %v963
    %v1658 = vmul.f32 %v964, %v964
    %v1659 = vsub.f32 %v1627, %v1643
    %v1660 = vsub.f32 %v1628, %v1644
    %v1661 = vsub.f32 %v1629, %v1645
    %v1662 = vsub.f32 %v1630, %v1646
    %v1663 = vsub.f32 %v1631, %v1647
    %v1664 = vsub.f32 %v1632, %v1648
    %v1665 = vsub.f32 %v1633, %v1649
    %v1666 = vsub.f32 %v1634, %v1650
    %v1667 = vsub.f32 %v1635, %v1651
    %v1668 = vsub.f32 %v1636, %v1652
    %v1669 = vsub.f32 %v1637, %v1653
    %v1670 = vsub.f32 %v1638, %v1654
    %v1671 = vsub.f32 %v1639, %v1655
    %v1672 = vsub.f32 %v1640, %v1656
    %v1673 = vsub.f32 %v1641, %v1657
    %v1674 = vsub.f32 %v1642, %v1658
    %v1675 = vadd.f32 %v1659, 1e-05
    %v1676 = vadd.f32 %v1660, 1e-05
    %v1677 = vadd.f32 %v1661, 1e-05
    %v1678 = vadd.f32 %v1662, 1e-05
    %v1679 = vadd.f32 %v1663, 1e-05
    %v1680 = vadd.f32 %v1664, 1e-05
    %v1681 = vadd.f32 %v1665, 1e-05
    %v1682 = vadd.f32 %v1666, 1e-05
    %v1683 = vadd.f32 %v1667, 1e-05
    %v1684 = vadd.f32 %v1668, 1e-05
    %v1685 = vadd.f32 %v1669, 1e-05
    %v1686 = vadd.f32 %v1670, 1e-05
    %v1687 = vadd.f32 %v1671, 1e-05
    %v1688 = vadd.f32 %v1672, 1e-05
    %v1689 = vadd.f32 %v1673, 1e-05
    %v1690 = vadd.f32 %v1674, 1e-05
    %v1691 = vrsqrt.pop %v1675
    %v1692 = vmul.f32 %v1691, %v1675
    %v1693 = vmul.f32 %v1692, %v1691
    %v1694 = vmul.f32 0.5, %v1693
    %v1695 = vsub.f32 1.5, %v1694
    %v1696 = vmul.f32 %v1691, %v1695
    %vm1697 = vweird.f32 %v1675
    %vm1698 = vweird.f32 %v1691
    %vm1699 = vmor %vm1697, %vm1698
    %v1700 = vsel %vm1699, %v1691, %v1696
    %v1701 = vrsqrt.pop %v1676
    %v1702 = vmul.f32 %v1701, %v1676
    %v1703 = vmul.f32 %v1702, %v1701
    %v1704 = vmul.f32 0.5, %v1703
    %v1705 = vsub.f32 1.5, %v1704
    %v1706 = vmul.f32 %v1701, %v1705
    %vm1707 = vweird.f32 %v1676
    %vm1708 = vweird.f32 %v1701
    %vm1709 = vmor %vm1707, %vm1708
    %v1710 = vsel %vm1709, %v1701, %v1706
    %v1711 = vrsqrt.pop %v1677
    %v1712 = vmul.f32 %v1711, %v1677
    %v1713 = vmul.f32 %v1712, %v1711
    %v1714 = vmul.f32 0.5, %v1713
    %v1715 = vsub.f32 1.5, %v1714
    %v1716 = vmul.f32 %v1711, %v1715
    %vm1717 = vweird.f32 %v1677
    %vm1718 = vweird.f32 %v1711
    %vm1719 = vmor %vm1717, %vm1718
    %v1720 = vsel %vm1719, %v1711, %v1716
    %v1721 = vrsqrt.pop %v1678
    %v1722 = vmul.f32 %v1721, %v1678
    %v1723 = vmul.f32 %v1722, %v1721
    %v1724 = vmul.f32 0.5, %v1723
    %v1725 = vsub.f32 1.5, %v1724
    %v1726 = vmul.f32 %v1721, %v1725
    %vm1727 = vweird.f32 %v1678
    %vm1728 = vweird.f32 %v1721
    %vm1729 = vmor %vm1727, %vm1728
    %v1730 = vsel %vm1729, %v1721, %v1726
    %v1731 = vrsqrt.pop %v1679
    %v1732 = vmul.f32 %v1731, %v1679
    %v1733 = vmul.f32 %v1732, %v1731
    %v1734 = vmul.f32 0.5, %v1733
    %v1735 = vsub.f32 1.5, %v1734
    %v1736 = vmul.f32 %v1731, %v1735
    %vm1737 = vweird.f32 %v1679
    %vm1738 = vweird.f32 %v1731
    %vm1739 = vmor %vm1737, %vm1738
    %v1740 = vsel %vm1739, %v1731, %v1736
    %v1741 = vrsqrt.pop %v1680
    %v1742 = vmul.f32 %v1741, %v1680
    %v1743 = vmul.f32 %v1742, %v1741
    %v1744 = vmul.f32 0.5, %v1743
    %v1745 = vsub.f32 1.5, %v1744
    %v1746 = vmul.f32 %v1741, %v1745
    %vm1747 = vweird.f32 %v1680
    %vm1748 = vweird.f32 %v1741
    %vm1749 = vmor %vm1747, %vm1748
    %v1750 = vsel %vm1749, %v1741, %v1746
    %v1751 = vrsqrt.pop %v1681
    %v1752 = vmul.f32 %v1751, %v1681
    %v1753 = vmul.f32 %v1752, %v1751
    %v1754 = vmul.f32 0.5, %v1753
    %v1755 = vsub.f32 1.5, %v1754
    %v1756 = vmul.f32 %v1751, %v1755
    %vm1757 = vweird.f32 %v1681
    %vm1758 = vweird.f32 %v1751
    %vm1759 = vmor %vm1757, %vm1758
    %v1760 = vsel %vm1759, %v1751, %v1756
    %v1761 = vrsqrt.pop %v1682
    %v1762 = vmul.f32 %v1761, %v1682
    %v1763 = vmul.f32 %v1762, %v1761
    %v1764 = vmul.f32 0.5, %v1763
    %v1765 = vsub.f32 1.5, %v1764
    %v1766 = vmul.f32 %v1761, %v1765
    %vm1767 = vweird.f32 %v1682
    %vm1768 = vweird.f32 %v1761
    %vm1769 = vmor %vm1767, %vm1768
    %v1770 = vsel %vm1769, %v1761, %v1766
    %v1771 = vrsqrt.pop %v1683
    %v1772 = vmul.f32 %v1771, %v1683
    %v1773 = vmul.f32 %v1772, %v1771
    %v1774 = vmul.f32 0.5, %v1773
    %v1775 = vsub.f32 1.5, %v1774
    %v1776 = vmul.f32 %v1771, %v1775
    %vm1777 = vweird.f32 %v1683
    %vm1778 = vweird.f32 %v1771
    %vm1779 = vmor %vm1777, %vm1778
    %v1780 = vsel %vm1779, %v1771, %v1776
    %v1781 = vrsqrt.pop %v1684
    %v1782 = vmul.f32 %v1781, %v1684
    %v1783 = vmul.f32 %v1782, %v1781
    %v1784 = vmul.f32 0.5, %v1783
    %v1785 = vsub.f32 1.5, %v1784
    %v1786 = vmul.f32 %v1781, %v1785
    %vm1787 = vweird.f32 %v1684
    %vm1788 = vweird.f32 %v1781
    %vm1789 = vmor %vm1787, %vm1788
    %v1790 = vsel %vm1789, %v1781, %v1786
    %v1791 = vrsqrt.pop %v1685
    %v1792 = vmul.f32 %v1791, %v1685
    %v1793 = vmul.f32 %v1792, %v1791
    %v1794 = vmul.f32 0.5, %v1793
    %v1795 = vsub.f32 1.5, %v1794
    %v1796 = vmul.f32 %v1791, %v1795
    %vm1797 = vweird.f32 %v1685
    %vm1798 = vweird.f32 %v1791
    %vm1799 = vmor %vm1797, %vm1798
    %v1800 = vsel %vm1799, %v1791, %v1796
    %v1801 = vrsqrt.pop %v1686
    %v1802 = vmul.f32 %v1801, %v1686
    %v1803 = vmul.f32 %v1802, %v1801
    %v1804 = vmul.f32 0.5, %v1803
    %v1805 = vsub.f32 1.5, %v1804
    %v1806 = vmul.f32 %v1801, %v1805
    %vm1807 = vweird.f32 %v1686
    %vm1808 = vweird.f32 %v1801
    %vm1809 = vmor %vm1807, %vm1808
    %v1810 = vsel %vm1809, %v1801, %v1806
    %v1811 = vrsqrt.pop %v1687
    %v1812 = vmul.f32 %v1811, %v1687
    %v1813 = vmul.f32 %v1812, %v1811
    %v1814 = vmul.f32 0.5, %v1813
    %v1815 = vsub.f32 1.5, %v1814
    %v1816 = vmul.f32 %v1811, %v1815
    %vm1817 = vweird.f32 %v1687
    %vm1818 = vweird.f32 %v1811
    %vm1819 = vmor %vm1817, %vm1818
    %v1820 = vsel %vm1819, %v1811, %v1816
    %v1821 = vrsqrt.pop %v1688
    %v1822 = vmul.f32 %v1821, %v1688
    %v1823 = vmul.f32 %v1822, %v1821
    %v1824 = vmul.f32 0.5, %v1823
    %v1825 = vsub.f32 1.5, %v1824
    %v1826 = vmul.f32 %v1821, %v1825
    %vm1827 = vweird.f32 %v1688
    %vm1828 = vweird.f32 %v1821
    %vm1829 = vmor %vm1827, %vm1828
    %v1830 = vsel %vm1829, %v1821, %v1826
    %v1831 = vrsqrt.pop %v1689
    %v1832 = vmul.f32 %v1831, %v1689
    %v1833 = vmul.f32 %v1832, %v1831
    %v1834 = vmul.f32 0.5, %v1833
    %v1835 = vsub.f32 1.5, %v1834
    %v1836 = vmul.f32 %v1831, %v1835
    %vm1837 = vweird.f32 %v1689
    %vm1838 = vweird.f32 %v1831
    %vm1839 = vmor %vm1837, %vm1838
    %v1840 = vsel %vm1839, %v1831, %v1836
    %v1841 = vrsqrt.pop %v1690
    %v1842 = vmul.f32 %v1841, %v1690
    %v1843 = vmul.f32 %v1842, %v1841
    %v1844 = vmul.f32 0.5, %v1843
    %v1845 = vsub.f32 1.5, %v1844
    %v1846 = vmul.f32 %v1841, %v1845
    %vm1847 = vweird.f32 %v1690
    %vm1848 = vweird.f32 %v1841
    %vm1849 = vmor %vm1847, %vm1848
    %v1850 = vsel %vm1849, %v1841, %v1846
    %1851 = vrot.lane.b32.xlu0 %v39, 124
    %v1852 = vpop.permute.xlu0 %1851
    %1853 = vrot.lane.b32.xlu0 %v40, 124
    %v1854 = vpop.permute.xlu0 %1853
    %1855 = vrot.lane.b32.xlu0 %v41, 124
    %v1856 = vpop.permute.xlu0 %1855
    %1857 = vrot.lane.b32.xlu0 %v42, 124
    %v1858 = vpop.permute.xlu0 %1857
    %1859 = vrot.lane.b32.xlu0 %v43, 124
    %v1860 = vpop.permute.xlu0 %1859
    %1861 = vrot.lane.b32.xlu0 %v44, 124
    %v1862 = vpop.permute.xlu0 %1861
    %1863 = vrot.lane.b32.xlu0 %v45, 124
    %v1864 = vpop.permute.xlu0 %1863
    %1865 = vrot.lane.b32.xlu0 %v46, 124
    %v1866 = vpop.permute.xlu0 %1865
    %1867 = vrot.lane.b32.xlu0 %v47, 124
    %v1868 = vpop.permute.xlu0 %1867
    %1869 = vrot.lane.b32.xlu0 %v48, 124
    %v1870 = vpop.permute.xlu0 %1869
    %1871 = vrot.lane.b32.xlu0 %v49, 124
    %v1872 = vpop.permute.xlu0 %1871
    %1873 = vrot.lane.b32.xlu0 %v50, 124
    %v1874 = vpop.permute.xlu0 %1873
    %1875 = vrot.lane.b32.xlu0 %v51, 124
    %v1876 = vpop.permute.xlu0 %1875
    %1877 = vrot.lane.b32.xlu0 %v52, 124
    %v1878 = vpop.permute.xlu0 %1877
    %1879 = vrot.lane.b32.xlu0 %v53, 124
    %v1880 = vpop.permute.xlu0 %1879
    %1881 = vrot.lane.b32.xlu0 %v54, 124
    %v1882 = vpop.permute.xlu0 %1881
    %v1899 = vmul.f32 %v1700, %v1852
    %v1900 = vmul.f32 %v1710, %v1854
    %v1901 = vmul.f32 %v1720, %v1856
    %v1902 = vmul.f32 %v1730, %v1858
    %v1903 = vmul.f32 %v1740, %v1860
    %v1904 = vmul.f32 %v1750, %v1862
    %v1905 = vmul.f32 %v1760, %v1864
    %v1906 = vmul.f32 %v1770, %v1866
    %v1907 = vmul.f32 %v1780, %v1868
    %v1908 = vmul.f32 %v1790, %v1870
    %v1909 = vmul.f32 %v1800, %v1872
    %v1910 = vmul.f32 %v1810, %v1874
    %v1911 = vmul.f32 %v1820, %v1876
    %v1912 = vmul.f32 %v1830, %v1878
    %v1913 = vmul.f32 %v1840, %v1880
    %v1914 = vmul.f32 %v1850, %v1882
    %v1915 = vmul.f32 %v949, %v1899
    %v1916 = vmul.f32 %v950, %v1900
    %v1917 = vmul.f32 %v951, %v1901
    %v1918 = vmul.f32 %v952, %v1902
    %v1919 = vmul.f32 %v953, %v1903
    %v1920 = vmul.f32 %v954, %v1904
    %v1921 = vmul.f32 %v955, %v1905
    %v1922 = vmul.f32 %v956, %v1906
    %v1923 = vmul.f32 %v957, %v1907
    %v1924 = vmul.f32 %v958, %v1908
    %v1925 = vmul.f32 %v959, %v1909
    %v1926 = vmul.f32 %v960, %v1910
    %v1927 = vmul.f32 %v961, %v1911
    %v1928 = vmul.f32 %v962, %v1912
    %v1929 = vmul.f32 %v963, %v1913
    %v1930 = vmul.f32 %v964, %v1914
    %1947 = vrot.lane.b32.xlu0 %v1915, 5
    %v1948 = vpop.permute.xlu0 %1947
    %1949 = vrot.lane.b32.xlu0 %v1916, 5
    %v1950 = vpop.permute.xlu0 %1949
    %1951 = vrot.lane.b32.xlu0 %v1917, 5
    %v1952 = vpop.permute.xlu0 %1951
    %1953 = vrot.lane.b32.xlu0 %v1918, 5
    %v1954 = vpop.permute.xlu0 %1953
    %1955 = vrot.lane.b32.xlu0 %v1919, 5
    %v1956 = vpop.permute.xlu0 %1955
    %1957 = vrot.lane.b32.xlu0 %v1920, 5
    %v1958 = vpop.permute.xlu0 %1957
    %1959 = vrot.lane.b32.xlu0 %v1921, 5
    %v1960 = vpop.permute.xlu0 %1959
    %1961 = vrot.lane.b32.xlu0 %v1922, 5
    %v1962 = vpop.permute.xlu0 %1961
    %1963 = vrot.lane.b32.xlu0 %v1923, 5
    %v1964 = vpop.permute.xlu0 %1963
    %1965 = vrot.lane.b32.xlu0 %v1924, 5
    %v1966 = vpop.permute.xlu0 %1965
    %1967 = vrot.lane.b32.xlu0 %v1925, 5
    %v1968 = vpop.permute.xlu0 %1967
    %1969 = vrot.lane.b32.xlu0 %v1926, 5
    %v1970 = vpop.permute.xlu0 %1969
    %1971 = vrot.lane.b32.xlu0 %v1927, 5
    %v1972 = vpop.permute.xlu0 %1971
    %1973 = vrot.lane.b32.xlu0 %v1928, 5
    %v1974 = vpop.permute.xlu0 %1973
    %1975 = vrot.lane.b32.xlu0 %v1929, 5
    %v1976 = vpop.permute.xlu0 %1975
    %1977 = vrot.lane.b32.xlu0 %v1930, 5
    %v1978 = vpop.permute.xlu0 %1977
    %v1995 = vsub.f32 %v39, %v1948
    %v1996 = vsub.f32 %v40, %v1950
    %v1997 = vsub.f32 %v41, %v1952
    %v1998 = vsub.f32 %v42, %v1954
    %v1999 = vsub.f32 %v43, %v1956
    %v2000 = vsub.f32 %v44, %v1958
    %v2001 = vsub.f32 %v45, %v1960
    %v2002 = vsub.f32 %v46, %v1962
    %v2003 = vsub.f32 %v47, %v1964
    %v2004 = vsub.f32 %v48, %v1966
    %v2005 = vsub.f32 %v49, %v1968
    %v2006 = vsub.f32 %v50, %v1970
    %v2007 = vsub.f32 %v51, %v1972
    %v2008 = vsub.f32 %v52, %v1974
    %v2009 = vsub.f32 %v53, %v1976
    %v2010 = vsub.f32 %v54, %v1978
    %2012 = vset.pattern.permute.xlu0 0
    %2013 = vperm.xlu0 %2012, %v1899
    %v2014 = vpop.permute.xlu0 %2013
    %2017 = vset.pattern.permute.xlu0 0
    %2018 = vperm.xlu0 %2017, %v1900
    %v2019 = vpop.permute.xlu0 %2018
    %2022 = vset.pattern.permute.xlu0 0
    %2023 = vperm.xlu0 %2022, %v1901
    %v2024 = vpop.permute.xlu0 %2023
    %2027 = vset.pattern.permute.xlu0 0
    %2028 = vperm.xlu0 %2027, %v1902
    %v2029 = vpop.permute.xlu0 %2028
    %2032 = vset.pattern.permute.xlu0 0
    %2033 = vperm.xlu0 %2032, %v1903
    %v2034 = vpop.permute.xlu0 %2033
    %2037 = vset.pattern.permute.xlu0 0
    %2038 = vperm.xlu0 %2037, %v1904
    %v2039 = vpop.permute.xlu0 %2038
    %2042 = vset.pattern.permute.xlu0 0
    %2043 = vperm.xlu0 %2042, %v1905
    %v2044 = vpop.permute.xlu0 %2043
    %2047 = vset.pattern.permute.xlu0 0
    %2048 = vperm.xlu0 %2047, %v1906
    %v2049 = vpop.permute.xlu0 %2048
    %2052 = vset.pattern.permute.xlu0 0
    %2053 = vperm.xlu0 %2052, %v1907
    %v2054 = vpop.permute.xlu0 %2053
    %2057 = vset.pattern.permute.xlu0 0
    %2058 = vperm.xlu0 %2057, %v1908
    %v2059 = vpop.permute.xlu0 %2058
    %2062 = vset.pattern.permute.xlu0 0
    %2063 = vperm.xlu0 %2062, %v1909
    %v2064 = vpop.permute.xlu0 %2063
    %2067 = vset.pattern.permute.xlu0 0
    %2068 = vperm.xlu0 %2067, %v1910
    %v2069 = vpop.permute.xlu0 %2068
    %2072 = vset.pattern.permute.xlu0 0
    %2073 = vperm.xlu0 %2072, %v1911
    %v2074 = vpop.permute.xlu0 %2073
    %2077 = vset.pattern.permute.xlu0 0
    %2078 = vperm.xlu0 %2077, %v1912
    %v2079 = vpop.permute.xlu0 %2078
    %2082 = vset.pattern.permute.xlu0 0
    %2083 = vperm.xlu0 %2082, %v1913
    %v2084 = vpop.permute.xlu0 %2083
    %2087 = vset.pattern.permute.xlu0 0
    %2088 = vperm.xlu0 %2087, %v1914
    %v2089 = vpop.permute.xlu0 %2088
    %v2091 = vmul.f32 %v286, %v2014
    %v2092 = vmul.f32 %v287, %v2019
    %v2093 = vmul.f32 %v288, %v2024
    %v2094 = vmul.f32 %v289, %v2029
    %v2095 = vmul.f32 %v290, %v2034
    %v2096 = vmul.f32 %v291, %v2039
    %v2097 = vmul.f32 %v292, %v2044
    %v2098 = vmul.f32 %v293, %v2049
    %v2099 = vmul.f32 %v294, %v2054
    %v2100 = vmul.f32 %v295, %v2059
    %v2101 = vmul.f32 %v296, %v2064
    %v2102 = vmul.f32 %v297, %v2069
    %v2103 = vmul.f32 %v298, %v2074
    %v2104 = vmul.f32 %v299, %v2079
    %v2105 = vmul.f32 %v300, %v2084
    %v2106 = vmul.f32 %v301, %v2089
    %2108 = vset.pattern.permute.xlu0 5
    %2109 = vperm.xlu0 %2108, %v1995
    %v2110 = vpop.permute.xlu0 %2109
    %2113 = vset.pattern.permute.xlu0 5
    %2114 = vperm.xlu0 %2113, %v1996
    %v2115 = vpop.permute.xlu0 %2114
    %2118 = vset.pattern.permute.xlu0 5
    %2119 = vperm.xlu0 %2118, %v1997
    %v2120 = vpop.permute.xlu0 %2119
    %2123 = vset.pattern.permute.xlu0 5
    %2124 = vperm.xlu0 %2123, %v1998
    %v2125 = vpop.permute.xlu0 %2124
    %2128 = vset.pattern.permute.xlu0 5
    %2129 = vperm.xlu0 %2128, %v1999
    %v2130 = vpop.permute.xlu0 %2129
    %2133 = vset.pattern.permute.xlu0 5
    %2134 = vperm.xlu0 %2133, %v2000
    %v2135 = vpop.permute.xlu0 %2134
    %2138 = vset.pattern.permute.xlu0 5
    %2139 = vperm.xlu0 %2138, %v2001
    %v2140 = vpop.permute.xlu0 %2139
    %2143 = vset.pattern.permute.xlu0 5
    %2144 = vperm.xlu0 %2143, %v2002
    %v2145 = vpop.permute.xlu0 %2144
    %2148 = vset.pattern.permute.xlu0 5
    %2149 = vperm.xlu0 %2148, %v2003
    %v2150 = vpop.permute.xlu0 %2149
    %2153 = vset.pattern.permute.xlu0 5
    %2154 = vperm.xlu0 %2153, %v2004
    %v2155 = vpop.permute.xlu0 %2154
    %2158 = vset.pattern.permute.xlu0 5
    %2159 = vperm.xlu0 %2158, %v2005
    %v2160 = vpop.permute.xlu0 %2159
    %2163 = vset.pattern.permute.xlu0 5
    %2164 = vperm.xlu0 %2163, %v2006
    %v2165 = vpop.permute.xlu0 %2164
    %2168 = vset.pattern.permute.xlu0 5
    %2169 = vperm.xlu0 %2168, %v2007
    %v2170 = vpop.permute.xlu0 %2169
    %2173 = vset.pattern.permute.xlu0 5
    %2174 = vperm.xlu0 %2173, %v2008
    %v2175 = vpop.permute.xlu0 %2174
    %2178 = vset.pattern.permute.xlu0 5
    %2179 = vperm.xlu0 %2178, %v2009
    %v2180 = vpop.permute.xlu0 %2179
    %2183 = vset.pattern.permute.xlu0 5
    %2184 = vperm.xlu0 %2183, %v2010
    %v2185 = vpop.permute.xlu0 %2184
    %v2187 = vadd.f32 %v2091, %v2110
    %v2188 = vadd.f32 %v2092, %v2115
    %v2189 = vadd.f32 %v2093, %v2120
    %v2190 = vadd.f32 %v2094, %v2125
    %v2191 = vadd.f32 %v2095, %v2130
    %v2192 = vadd.f32 %v2096, %v2135
    %v2193 = vadd.f32 %v2097, %v2140
    %v2194 = vadd.f32 %v2098, %v2145
    %v2195 = vadd.f32 %v2099, %v2150
    %v2196 = vadd.f32 %v2100, %v2155
    %v2197 = vadd.f32 %v2101, %v2160
    %v2198 = vadd.f32 %v2102, %v2165
    %v2199 = vadd.f32 %v2103, %v2170
    %v2200 = vadd.f32 %v2104, %v2175
    %v2201 = vadd.f32 %v2105, %v2180
    %v2202 = vadd.f32 %v2106, %v2185
    %v2203 = vld [vmem:[%s3] sm:$0xf]
    %v2204 = vld [vmem:[%s3 + $0x4] sm:$0xf]
    %v2205 = vld [vmem:[%s3 + $0x8] sm:$0xf]
    %v2206 = vld [vmem:[%s3 + $0xc] sm:$0xf]
    %v2207 = vld [vmem:[%s3 + $0x10] sm:$0xf]
    %v2208 = vld [vmem:[%s3 + $0x14] sm:$0xf]
    %v2209 = vld [vmem:[%s3 + $0x18] sm:$0xf]
    %v2210 = vld [vmem:[%s3 + $0x1c] sm:$0xf]
    %v2211 = vld [vmem:[%s3 + $0x20] sm:$0xf]
    %v2212 = vld [vmem:[%s3 + $0x24] sm:$0xf]
    %v2213 = vld [vmem:[%s3 + $0x28] sm:$0xf]
    %v2214 = vld [vmem:[%s3 + $0x2c] sm:$0xf]
    %v2215 = vld [vmem:[%s3 + $0x30] sm:$0xf]
    %v2216 = vld [vmem:[%s3 + $0x34] sm:$0xf]
    %v2217 = vld [vmem:[%s3 + $0x38] sm:$0xf]
    %v2218 = vld [vmem:[%s3 + $0x3c] sm:$0xf]
    %v2219 = vpack.c.bf16 %v2188, %v2187
    %v2220 = vpack.c.bf16 %v2190, %v2189
    %v2221 = vpack.c.bf16 %v2192, %v2191
    %v2222 = vpack.c.bf16 %v2194, %v2193
    %v2223 = vpack.c.bf16 %v2196, %v2195
    %v2224 = vpack.c.bf16 %v2198, %v2197
    %v2225 = vpack.c.bf16 %v2200, %v2199
    %v2226 = vpack.c.bf16 %v2202, %v2201
    %2227 = vset.pattern.permute.xlu0 1
    %2228 = vperm.xlu0 %2227, %v39
    %v2229 = vpop.permute.xlu0 %2228
    %2231 = vset.pattern.permute.xlu0 1
    %2232 = vperm.xlu0 %2231, %v40
    %v2233 = vpop.permute.xlu0 %2232
    %2235 = vset.pattern.permute.xlu0 1
    %2236 = vperm.xlu0 %2235, %v41
    %v2237 = vpop.permute.xlu0 %2236
    %2239 = vset.pattern.permute.xlu0 1
    %2240 = vperm.xlu0 %2239, %v42
    %v2241 = vpop.permute.xlu0 %2240
    %2243 = vset.pattern.permute.xlu0 1
    %2244 = vperm.xlu0 %2243, %v43
    %v2245 = vpop.permute.xlu0 %2244
    %2247 = vset.pattern.permute.xlu0 1
    %2248 = vperm.xlu0 %2247, %v44
    %v2249 = vpop.permute.xlu0 %2248
    %2251 = vset.pattern.permute.xlu0 1
    %2252 = vperm.xlu0 %2251, %v45
    %v2253 = vpop.permute.xlu0 %2252
    %2255 = vset.pattern.permute.xlu0 1
    %2256 = vperm.xlu0 %2255, %v46
    %v2257 = vpop.permute.xlu0 %2256
    %2259 = vset.pattern.permute.xlu0 1
    %2260 = vperm.xlu0 %2259, %v47
    %v2261 = vpop.permute.xlu0 %2260
    %2263 = vset.pattern.permute.xlu0 1
    %2264 = vperm.xlu0 %2263, %v48
    %v2265 = vpop.permute.xlu0 %2264
    %2267 = vset.pattern.permute.xlu0 1
    %2268 = vperm.xlu0 %2267, %v49
    %v2269 = vpop.permute.xlu0 %2268
    %2271 = vset.pattern.permute.xlu0 1
    %2272 = vperm.xlu0 %2271, %v50
    %v2273 = vpop.permute.xlu0 %2272
    %2275 = vset.pattern.permute.xlu0 1
    %2276 = vperm.xlu0 %2275, %v51
    %v2277 = vpop.permute.xlu0 %2276
    %2279 = vset.pattern.permute.xlu0 1
    %2280 = vperm.xlu0 %2279, %v52
    %v2281 = vpop.permute.xlu0 %2280
    %2283 = vset.pattern.permute.xlu0 1
    %2284 = vperm.xlu0 %2283, %v53
    %v2285 = vpop.permute.xlu0 %2284
    %2287 = vset.pattern.permute.xlu0 1
    %2288 = vperm.xlu0 %2287, %v54
    %v2289 = vpop.permute.xlu0 %2288
    %v2307 = vunpack.c.l.b16 %v2203
    %v2308 = vunpack.c.l.b16 %v2204
    %v2309 = vunpack.c.l.b16 %v2205
    %v2310 = vunpack.c.l.b16 %v2206
    %v2311 = vunpack.c.l.b16 %v2207
    %v2312 = vunpack.c.l.b16 %v2208
    %v2313 = vunpack.c.l.b16 %v2209
    %v2314 = vunpack.c.l.b16 %v2210
    %v2315 = vunpack.c.l.b16 %v2211
    %v2316 = vunpack.c.l.b16 %v2212
    %v2317 = vunpack.c.l.b16 %v2213
    %v2318 = vunpack.c.l.b16 %v2214
    %v2319 = vunpack.c.l.b16 %v2215
    %v2320 = vunpack.c.l.b16 %v2216
    %v2321 = vunpack.c.l.b16 %v2217
    %v2322 = vunpack.c.l.b16 %v2218
    %v2323 = vpack.c.b16 %v2308, %v2307
    %v2324 = vpack.c.b16 %v2310, %v2309
    %v2325 = vpack.c.b16 %v2312, %v2311
    %v2326 = vpack.c.b16 %v2314, %v2313
    %v2327 = vpack.c.b16 %v2316, %v2315
    %v2328 = vpack.c.b16 %v2318, %v2317
    %v2329 = vpack.c.b16 %v2320, %v2319
    %v2330 = vpack.c.b16 %v2322, %v2321
    %2339 = vmatpush.bf16.msra.mxu0 %v2226
    %2340 = vmatpush.bf16.msra.mxu0 %v2225
    %2341 = vmatpush.bf16.msra.mxu0 %v2224
    %2342 = vmatpush.bf16.msra.mxu0 %v2223
    %2343 = vmatpush.bf16.msra.mxu0 %v2222
    %2344 = vmatpush.bf16.msra.mxu0 %v2221
    %2345 = vmatpush.bf16.msra.mxu0 %v2220
    %2346 = vmatpush.bf16.msra.mxu0 %v2219
    %2347 = vmatmul.bf16.gmra.mxu0 %v2323
    %v2348 = vpop.f32.mrf.mxu0
    %v2349 = vadd.f32 %v2229, %v2348
    %v2350 = vpop.f32.mrf.mxu0
    %v2351 = vadd.f32 %v2233, %v2350
    %2352 = vmatmul.bf16.gmra.mxu0 %v2324
    %v2353 = vpop.f32.mrf.mxu0
    %v2354 = vadd.f32 %v2237, %v2353
    %v2355 = vpop.f32.mrf.mxu0
    %v2356 = vadd.f32 %v2241, %v2355
    %2357 = vmatmul.bf16.gmra.mxu0 %v2325
    %v2358 = vpop.f32.mrf.mxu0
    %v2359 = vadd.f32 %v2245, %v2358
    %v2360 = vpop.f32.mrf.mxu0
    %v2361 = vadd.f32 %v2249, %v2360
    %2362 = vmatmul.bf16.gmra.mxu0 %v2326
    %v2363 = vpop.f32.mrf.mxu0
    %v2364 = vadd.f32 %v2253, %v2363
    %v2365 = vpop.f32.mrf.mxu0
    %v2366 = vadd.f32 %v2257, %v2365
    %2367 = vmatmul.bf16.gmra.mxu0 %v2327
    %v2368 = vpop.f32.mrf.mxu0
    %v2369 = vadd.f32 %v2261, %v2368
    %v2370 = vpop.f32.mrf.mxu0
    %v2371 = vadd.f32 %v2265, %v2370
    %2372 = vmatmul.bf16.gmra.mxu0 %v2328
    %v2373 = vpop.f32.mrf.mxu0
    %v2374 = vadd.f32 %v2269, %v2373
    %v2375 = vpop.f32.mrf.mxu0
    %v2376 = vadd.f32 %v2273, %v2375
    %2377 = vmatmul.bf16.gmra.mxu0 %v2329
    %v2378 = vpop.f32.mrf.mxu0
    %v2379 = vadd.f32 %v2277, %v2378
    %v2380 = vpop.f32.mrf.mxu0
    %v2381 = vadd.f32 %v2281, %v2380
    %2382 = vmatmul.bf16.gmra.mxu0 %v2330
    %v2383 = vpop.f32.mrf.mxu0
    %v2384 = vadd.f32 %v2285, %v2383
    %v2385 = vpop.f32.mrf.mxu0
    %v2386 = vadd.f32 %v2289, %v2385
    %2387 = vdwg.mxu0
    %v2388 = vmul.f32 %v2349, 0.01
    %v2389 = vmul.f32 %v2351, 0.01
    %v2390 = vmul.f32 %v2354, 0.01
    %v2391 = vmul.f32 %v2356, 0.01
    %v2392 = vmul.f32 %v2359, 0.01
    %v2393 = vmul.f32 %v2361, 0.01
    %v2394 = vmul.f32 %v2364, 0.01
    %v2395 = vmul.f32 %v2366, 0.01
    %v2396 = vmul.f32 %v2369, 0.01
    %v2397 = vmul.f32 %v2371, 0.01
    %v2398 = vmul.f32 %v2374, 0.01
    %v2399 = vmul.f32 %v2376, 0.01
    %v2400 = vmul.f32 %v2379, 0.01
    %v2401 = vmul.f32 %v2381, 0.01
    %v2402 = vmul.f32 %v2384, 0.01
    %v2403 = vmul.f32 %v2386, 0.01
    %v2404 = vmax.f32 %v2349, %v2388
    %v2405 = vmax.f32 %v2351, %v2389
    %v2406 = vmax.f32 %v2354, %v2390
    %v2407 = vmax.f32 %v2356, %v2391
    %v2408 = vmax.f32 %v2359, %v2392
    %v2409 = vmax.f32 %v2361, %v2393
    %v2410 = vmax.f32 %v2364, %v2394
    %v2411 = vmax.f32 %v2366, %v2395
    %v2412 = vmax.f32 %v2369, %v2396
    %v2413 = vmax.f32 %v2371, %v2397
    %v2414 = vmax.f32 %v2374, %v2398
    %v2415 = vmax.f32 %v2376, %v2399
    %v2416 = vmax.f32 %v2379, %v2400
    %v2417 = vmax.f32 %v2381, %v2401
    %v2418 = vmax.f32 %v2384, %v2402
    %v2419 = vmax.f32 %v2386, %v2403
    %v2421 = vsel %vm302, %v2404, 0
    %v2424 = vsel %vm302, %v2405, 0
    %v2427 = vsel %vm302, %v2406, 0
    %v2430 = vsel %vm302, %v2407, 0
    %v2433 = vsel %vm302, %v2408, 0
    %v2436 = vsel %vm302, %v2409, 0
    %v2439 = vsel %vm302, %v2410, 0
    %v2442 = vsel %vm302, %v2411, 0
    %v2445 = vsel %vm302, %v2412, 0
    %v2448 = vsel %vm302, %v2413, 0
    %v2451 = vsel %vm302, %v2414, 0
    %v2454 = vsel %vm302, %v2415, 0
    %v2457 = vsel %vm302, %v2416, 0
    %v2460 = vsel %vm302, %v2417, 0
    %v2463 = vsel %vm302, %v2418, 0
    %v2466 = vsel %vm302, %v2419, 0
    %2468 = vmatpush.msra.mxu0 0.0
    %2469 = vmatpush.msra.mxu0 0.0
    %2470 = vmatpush.msra.mxu0 0.0
    %2471 = vmatpush.msra.mxu0 0.0
    %2472 = vmatpush.msra.mxu0 0.0
    %2473 = vmatpush.msra.mxu0 0.0
    %2474 = vmatpush.msra.mxu0 0.0
    %2475 = vmatpush.msra.mxu0 0.0
    %2476 = vmatpush.msra.mxu0 1.0
    %2477 = vmatpush.msra.mxu0 1.0
    %2478 = vmatpush.msra.mxu0 1.0
    %2479 = vmatpush.msra.mxu0 1.0
    %2480 = vmatpush.msra.mxu0 1.0
    %2481 = vmatpush.msra.mxu0 1.0
    %2482 = vmatpush.msra.mxu0 1.0
    %2483 = vmatpush.msra.mxu0 1.0
    %v2484 = vand.u32 %v2421, 4294901760
    %v2485 = vsub.f32 %v2421, %v2484
    %v2486 = vand.u32 %v2485, 4294901760
    %v2487 = vsub.f32 %v2485, %v2486
    %v2488 = vand.u32 %v2487, 4294901760
    %2489 = vmatmul.f32.gmra.mxu0 %v2488
    %v2490 = vpop.f32.mrf.mxu0
    %v2491 = vadd.f32 0.0, %v2490
    %v2492 = vand.u32 %v2424, 4294901760
    %v2493 = vsub.f32 %v2424, %v2492
    %v2494 = vand.u32 %v2493, 4294901760
    %v2495 = vsub.f32 %v2493, %v2494
    %v2496 = vand.u32 %v2495, 4294901760
    %2497 = vmatmul.f32.gmra.mxu0 %v2496
    %v2498 = vpop.f32.mrf.mxu0
    %v2499 = vadd.f32 0.0, %v2498
    %v2500 = vand.u32 %v2427, 4294901760
    %v2501 = vsub.f32 %v2427, %v2500
    %v2502 = vand.u32 %v2501, 4294901760
    %v2503 = vsub.f32 %v2501, %v2502
    %v2504 = vand.u32 %v2503, 4294901760
    %2505 = vmatmul.f32.gmra.mxu0 %v2504
    %v2506 = vpop.f32.mrf.mxu0
    %v2507 = vadd.f32 0.0, %v2506
    %v2508 = vand.u32 %v2430, 4294901760
    %v2509 = vsub.f32 %v2430, %v2508
    %v2510 = vand.u32 %v2509, 4294901760
    %v2511 = vsub.f32 %v2509, %v2510
    %v2512 = vand.u32 %v2511, 4294901760
    %2513 = vmatmul.f32.gmra.mxu0 %v2512
    %v2514 = vpop.f32.mrf.mxu0
    %v2515 = vadd.f32 0.0, %v2514
    %v2516 = vand.u32 %v2433, 4294901760
    %v2517 = vsub.f32 %v2433, %v2516
    %v2518 = vand.u32 %v2517, 4294901760
    %v2519 = vsub.f32 %v2517, %v2518
    %v2520 = vand.u32 %v2519, 4294901760
    %2521 = vmatmul.f32.gmra.mxu0 %v2520
    %v2522 = vpop.f32.mrf.mxu0
    %v2523 = vadd.f32 0.0, %v2522
    %v2524 = vand.u32 %v2436, 4294901760
    %v2525 = vsub.f32 %v2436, %v2524
    %v2526 = vand.u32 %v2525, 4294901760
    %v2527 = vsub.f32 %v2525, %v2526
    %v2528 = vand.u32 %v2527, 4294901760
    %2529 = vmatmul.f32.gmra.mxu0 %v2528
    %v2530 = vpop.f32.mrf.mxu0
    %v2531 = vadd.f32 0.0, %v2530
    %v2532 = vand.u32 %v2439, 4294901760
    %v2533 = vsub.f32 %v2439, %v2532
    %v2534 = vand.u32 %v2533, 4294901760
    %v2535 = vsub.f32 %v2533, %v2534
    %v2536 = vand.u32 %v2535, 4294901760
    %2537 = vmatmul.f32.gmra.mxu0 %v2536
    %v2538 = vpop.f32.mrf.mxu0
    %v2539 = vadd.f32 0.0, %v2538
    %v2540 = vand.u32 %v2442, 4294901760
    %v2541 = vsub.f32 %v2442, %v2540
    %v2542 = vand.u32 %v2541, 4294901760
    %v2543 = vsub.f32 %v2541, %v2542
    %v2544 = vand.u32 %v2543, 4294901760
    %2545 = vmatmul.f32.gmra.mxu0 %v2544
    %v2546 = vpop.f32.mrf.mxu0
    %v2547 = vadd.f32 0.0, %v2546
    %v2548 = vand.u32 %v2445, 4294901760
    %v2549 = vsub.f32 %v2445, %v2548
    %v2550 = vand.u32 %v2549, 4294901760
    %v2551 = vsub.f32 %v2549, %v2550
    %v2552 = vand.u32 %v2551, 4294901760
    %2553 = vmatmul.f32.gmra.mxu0 %v2552
    %v2554 = vpop.f32.mrf.mxu0
    %v2555 = vadd.f32 0.0, %v2554
    %v2556 = vand.u32 %v2448, 4294901760
    %v2557 = vsub.f32 %v2448, %v2556
    %v2558 = vand.u32 %v2557, 4294901760
    %v2559 = vsub.f32 %v2557, %v2558
    %v2560 = vand.u32 %v2559, 4294901760
    %2561 = vmatmul.f32.gmra.mxu0 %v2560
    %v2562 = vpop.f32.mrf.mxu0
    %v2563 = vadd.f32 0.0, %v2562
    %v2564 = vand.u32 %v2451, 4294901760
    %v2565 = vsub.f32 %v2451, %v2564
    %v2566 = vand.u32 %v2565, 4294901760
    %v2567 = vsub.f32 %v2565, %v2566
    %v2568 = vand.u32 %v2567, 4294901760
    %2569 = vmatmul.f32.gmra.mxu0 %v2568
    %v2570 = vpop.f32.mrf.mxu0
    %v2571 = vadd.f32 0.0, %v2570
    %v2572 = vand.u32 %v2454, 4294901760
    %v2573 = vsub.f32 %v2454, %v2572
    %v2574 = vand.u32 %v2573, 4294901760
    %v2575 = vsub.f32 %v2573, %v2574
    %v2576 = vand.u32 %v2575, 4294901760
    %2577 = vmatmul.f32.gmra.mxu0 %v2576
    %v2578 = vpop.f32.mrf.mxu0
    %v2579 = vadd.f32 0.0, %v2578
    %v2580 = vand.u32 %v2457, 4294901760
    %v2581 = vsub.f32 %v2457, %v2580
    %v2582 = vand.u32 %v2581, 4294901760
    %v2583 = vsub.f32 %v2581, %v2582
    %v2584 = vand.u32 %v2583, 4294901760
    %2585 = vmatmul.f32.gmra.mxu0 %v2584
    %v2586 = vpop.f32.mrf.mxu0
    %v2587 = vadd.f32 0.0, %v2586
    %v2588 = vand.u32 %v2460, 4294901760
    %v2589 = vsub.f32 %v2460, %v2588
    %v2590 = vand.u32 %v2589, 4294901760
    %v2591 = vsub.f32 %v2589, %v2590
    %v2592 = vand.u32 %v2591, 4294901760
    %2593 = vmatmul.f32.gmra.mxu0 %v2592
    %v2594 = vpop.f32.mrf.mxu0
    %v2595 = vadd.f32 0.0, %v2594
    %v2596 = vand.u32 %v2463, 4294901760
    %v2597 = vsub.f32 %v2463, %v2596
    %v2598 = vand.u32 %v2597, 4294901760
    %v2599 = vsub.f32 %v2597, %v2598
    %v2600 = vand.u32 %v2599, 4294901760
    %2601 = vmatmul.f32.gmra.mxu0 %v2600
    %v2602 = vpop.f32.mrf.mxu0
    %v2603 = vadd.f32 0.0, %v2602
    %v2604 = vand.u32 %v2466, 4294901760
    %v2605 = vsub.f32 %v2466, %v2604
    %v2606 = vand.u32 %v2605, 4294901760
    %v2607 = vsub.f32 %v2605, %v2606
    %v2608 = vand.u32 %v2607, 4294901760
    %2609 = vmatmul.f32.gmra.mxu0 %v2608
    %v2610 = vpop.f32.mrf.mxu0
    %v2611 = vadd.f32 0.0, %v2610
    %2612 = vdwg.mxu0
    %2613 = vmatpush.msra.mxu0 0.0
    %2614 = vmatpush.msra.mxu0 0.0
    %2615 = vmatpush.msra.mxu0 0.0
    %2616 = vmatpush.msra.mxu0 0.0
    %2617 = vmatpush.msra.mxu0 0.0
    %2618 = vmatpush.msra.mxu0 0.0
    %2619 = vmatpush.msra.mxu0 0.0
    %2620 = vmatpush.msra.mxu0 0.0
    %2621 = vmatpush.msra.mxu0 0.0
    %2622 = vmatpush.msra.mxu0 0.0
    %2623 = vmatpush.msra.mxu0 0.0
    %2624 = vmatpush.msra.mxu0 0.0
    %2625 = vmatpush.msra.mxu0 0.0
    %2626 = vmatpush.msra.mxu0 0.0
    %2627 = vmatpush.msra.mxu0 0.0
    %2628 = vmatpush.msra.mxu0 0.0
    %v2629 = vand.u32 %v2421, 4294901760
    %2630 = vmatmul.f32.gmra.mxu0 %v2629
    %v2631 = vpop.f32.mrf.mxu0
    %v2632 = vadd.f32 %v2491, %v2631
    %v2633 = vand.u32 %v2424, 4294901760
    %2634 = vmatmul.f32.gmra.mxu0 %v2633
    %v2635 = vpop.f32.mrf.mxu0
    %v2636 = vadd.f32 %v2499, %v2635
    %v2637 = vand.u32 %v2427, 4294901760
    %2638 = vmatmul.f32.gmra.mxu0 %v2637
    %v2639 = vpop.f32.mrf.mxu0
    %v2640 = vadd.f32 %v2507, %v2639
    %v2641 = vand.u32 %v2430, 4294901760
    %2642 = vmatmul.f32.gmra.mxu0 %v2641
    %v2643 = vpop.f32.mrf.mxu0
    %v2644 = vadd.f32 %v2515, %v2643
    %v2645 = vand.u32 %v2433, 4294901760
    %2646 = vmatmul.f32.gmra.mxu0 %v2645
    %v2647 = vpop.f32.mrf.mxu0
    %v2648 = vadd.f32 %v2523, %v2647
    %v2649 = vand.u32 %v2436, 4294901760
    %2650 = vmatmul.f32.gmra.mxu0 %v2649
    %v2651 = vpop.f32.mrf.mxu0
    %v2652 = vadd.f32 %v2531, %v2651
    %v2653 = vand.u32 %v2439, 4294901760
    %2654 = vmatmul.f32.gmra.mxu0 %v2653
    %v2655 = vpop.f32.mrf.mxu0
    %v2656 = vadd.f32 %v2539, %v2655
    %v2657 = vand.u32 %v2442, 4294901760
    %2658 = vmatmul.f32.gmra.mxu0 %v2657
    %v2659 = vpop.f32.mrf.mxu0
    %v2660 = vadd.f32 %v2547, %v2659
    %v2661 = vand.u32 %v2445, 4294901760
    %2662 = vmatmul.f32.gmra.mxu0 %v2661
    %v2663 = vpop.f32.mrf.mxu0
    %v2664 = vadd.f32 %v2555, %v2663
    %v2665 = vand.u32 %v2448, 4294901760
    %2666 = vmatmul.f32.gmra.mxu0 %v2665
    %v2667 = vpop.f32.mrf.mxu0
    %v2668 = vadd.f32 %v2563, %v2667
    %v2669 = vand.u32 %v2451, 4294901760
    %2670 = vmatmul.f32.gmra.mxu0 %v2669
    %v2671 = vpop.f32.mrf.mxu0
    %v2672 = vadd.f32 %v2571, %v2671
    %v2673 = vand.u32 %v2454, 4294901760
    %2674 = vmatmul.f32.gmra.mxu0 %v2673
    %v2675 = vpop.f32.mrf.mxu0
    %v2676 = vadd.f32 %v2579, %v2675
    %v2677 = vand.u32 %v2457, 4294901760
    %2678 = vmatmul.f32.gmra.mxu0 %v2677
    %v2679 = vpop.f32.mrf.mxu0
    %v2680 = vadd.f32 %v2587, %v2679
    %v2681 = vand.u32 %v2460, 4294901760
    %2682 = vmatmul.f32.gmra.mxu0 %v2681
    %v2683 = vpop.f32.mrf.mxu0
    %v2684 = vadd.f32 %v2595, %v2683
    %v2685 = vand.u32 %v2463, 4294901760
    %2686 = vmatmul.f32.gmra.mxu0 %v2685
    %v2687 = vpop.f32.mrf.mxu0
    %v2688 = vadd.f32 %v2603, %v2687
    %v2689 = vand.u32 %v2466, 4294901760
    %2690 = vmatmul.f32.gmra.mxu0 %v2689
    %v2691 = vpop.f32.mrf.mxu0
    %v2692 = vadd.f32 %v2611, %v2691
    %2693 = vdwg.mxu0
    %2694 = vmatpush.msra.mxu0 0.0
    %2695 = vmatpush.msra.mxu0 0.0
    %2696 = vmatpush.msra.mxu0 0.0
    %2697 = vmatpush.msra.mxu0 0.0
    %2698 = vmatpush.msra.mxu0 0.0
    %2699 = vmatpush.msra.mxu0 0.0
    %2700 = vmatpush.msra.mxu0 0.0
    %2701 = vmatpush.msra.mxu0 0.0
    %2702 = vmatpush.msra.mxu0 0.0
    %2703 = vmatpush.msra.mxu0 0.0
    %2704 = vmatpush.msra.mxu0 0.0
    %2705 = vmatpush.msra.mxu0 0.0
    %2706 = vmatpush.msra.mxu0 0.0
    %2707 = vmatpush.msra.mxu0 0.0
    %2708 = vmatpush.msra.mxu0 0.0
    %2709 = vmatpush.msra.mxu0 0.0
    %v2710 = vand.u32 %v2421, 4294901760
    %v2711 = vsub.f32 %v2421, %v2710
    %2712 = vmatmul.f32.gmra.mxu0 %v2711
    %v2713 = vpop.f32.mrf.mxu0
    %v2714 = vadd.f32 %v2632, %v2713
    %v2715 = vand.u32 %v2424, 4294901760
    %v2716 = vsub.f32 %v2424, %v2715
    %2717 = vmatmul.f32.gmra.mxu0 %v2716
    %v2718 = vpop.f32.mrf.mxu0
    %v2719 = vadd.f32 %v2636, %v2718
    %v2720 = vand.u32 %v2427, 4294901760
    %v2721 = vsub.f32 %v2427, %v2720
    %2722 = vmatmul.f32.gmra.mxu0 %v2721
    %v2723 = vpop.f32.mrf.mxu0
    %v2724 = vadd.f32 %v2640, %v2723
    %v2725 = vand.u32 %v2430, 4294901760
    %v2726 = vsub.f32 %v2430, %v2725
    %2727 = vmatmul.f32.gmra.mxu0 %v2726
    %v2728 = vpop.f32.mrf.mxu0
    %v2729 = vadd.f32 %v2644, %v2728
    %v2730 = vand.u32 %v2433, 4294901760
    %v2731 = vsub.f32 %v2433, %v2730
    %2732 = vmatmul.f32.gmra.mxu0 %v2731
    %v2733 = vpop.f32.mrf.mxu0
    %v2734 = vadd.f32 %v2648, %v2733
    %v2735 = vand.u32 %v2436, 4294901760
    %v2736 = vsub.f32 %v2436, %v2735
    %2737 = vmatmul.f32.gmra.mxu0 %v2736
    %v2738 = vpop.f32.mrf.mxu0
    %v2739 = vadd.f32 %v2652, %v2738
    %v2740 = vand.u32 %v2439, 4294901760
    %v2741 = vsub.f32 %v2439, %v2740
    %2742 = vmatmul.f32.gmra.mxu0 %v2741
    %v2743 = vpop.f32.mrf.mxu0
    %v2744 = vadd.f32 %v2656, %v2743
    %v2745 = vand.u32 %v2442, 4294901760
    %v2746 = vsub.f32 %v2442, %v2745
    %2747 = vmatmul.f32.gmra.mxu0 %v2746
    %v2748 = vpop.f32.mrf.mxu0
    %v2749 = vadd.f32 %v2660, %v2748
    %v2750 = vand.u32 %v2445, 4294901760
    %v2751 = vsub.f32 %v2445, %v2750
    %2752 = vmatmul.f32.gmra.mxu0 %v2751
    %v2753 = vpop.f32.mrf.mxu0
    %v2754 = vadd.f32 %v2664, %v2753
    %v2755 = vand.u32 %v2448, 4294901760
    %v2756 = vsub.f32 %v2448, %v2755
    %2757 = vmatmul.f32.gmra.mxu0 %v2756
    %v2758 = vpop.f32.mrf.mxu0
    %v2759 = vadd.f32 %v2668, %v2758
    %v2760 = vand.u32 %v2451, 4294901760
    %v2761 = vsub.f32 %v2451, %v2760
    %2762 = vmatmul.f32.gmra.mxu0 %v2761
    %v2763 = vpop.f32.mrf.mxu0
    %v2764 = vadd.f32 %v2672, %v2763
    %v2765 = vand.u32 %v2454, 4294901760
    %v2766 = vsub.f32 %v2454, %v2765
    %2767 = vmatmul.f32.gmra.mxu0 %v2766
    %v2768 = vpop.f32.mrf.mxu0
    %v2769 = vadd.f32 %v2676, %v2768
    %v2770 = vand.u32 %v2457, 4294901760
    %v2771 = vsub.f32 %v2457, %v2770
    %2772 = vmatmul.f32.gmra.mxu0 %v2771
    %v2773 = vpop.f32.mrf.mxu0
    %v2774 = vadd.f32 %v2680, %v2773
    %v2775 = vand.u32 %v2460, 4294901760
    %v2776 = vsub.f32 %v2460, %v2775
    %2777 = vmatmul.f32.gmra.mxu0 %v2776
    %v2778 = vpop.f32.mrf.mxu0
    %v2779 = vadd.f32 %v2684, %v2778
    %v2780 = vand.u32 %v2463, 4294901760
    %v2781 = vsub.f32 %v2463, %v2780
    %2782 = vmatmul.f32.gmra.mxu0 %v2781
    %v2783 = vpop.f32.mrf.mxu0
    %v2784 = vadd.f32 %v2688, %v2783
    %v2785 = vand.u32 %v2466, 4294901760
    %v2786 = vsub.f32 %v2466, %v2785
    %2787 = vmatmul.f32.gmra.mxu0 %v2786
    %v2788 = vpop.f32.mrf.mxu0
    %v2789 = vadd.f32 %v2692, %v2788
    %2790 = vdwg.mxu0
    %2791 = vmatpush.msra.mxu0 0.0
    %2792 = vmatpush.msra.mxu0 0.0
    %2793 = vmatpush.msra.mxu0 0.0
    %2794 = vmatpush.msra.mxu0 0.0
    %2795 = vmatpush.msra.mxu0 0.0
    %2796 = vmatpush.msra.mxu0 0.0
    %2797 = vmatpush.msra.mxu0 0.0
    %2798 = vmatpush.msra.mxu0 0.0
    %2799 = vmatpush.msra.mxu0 1.0
    %2800 = vmatpush.msra.mxu0 1.0
    %2801 = vmatpush.msra.mxu0 1.0
    %2802 = vmatpush.msra.mxu0 1.0
    %2803 = vmatpush.msra.mxu0 1.0
    %2804 = vmatpush.msra.mxu0 1.0
    %2805 = vmatpush.msra.mxu0 1.0
    %2806 = vmatpush.msra.mxu0 1.0
    %v2807 = vand.u32 %v2421, 4294901760
    %v2808 = vsub.f32 %v2421, %v2807
    %v2809 = vand.u32 %v2808, 4294901760
    %2810 = vmatmul.f32.gmra.mxu0 %v2809
    %v2811 = vpop.f32.mrf.mxu0
    %v2812 = vadd.f32 %v2714, %v2811
    %v2813 = vand.u32 %v2424, 4294901760
    %v2814 = vsub.f32 %v2424, %v2813
    %v2815 = vand.u32 %v2814, 4294901760
    %2816 = vmatmul.f32.gmra.mxu0 %v2815
    %v2817 = vpop.f32.mrf.mxu0
    %v2818 = vadd.f32 %v2719, %v2817
    %v2819 = vand.u32 %v2427, 4294901760
    %v2820 = vsub.f32 %v2427, %v2819
    %v2821 = vand.u32 %v2820, 4294901760
    %2822 = vmatmul.f32.gmra.mxu0 %v2821
    %v2823 = vpop.f32.mrf.mxu0
    %v2824 = vadd.f32 %v2724, %v2823
    %v2825 = vand.u32 %v2430, 4294901760
    %v2826 = vsub.f32 %v2430, %v2825
    %v2827 = vand.u32 %v2826, 4294901760
    %2828 = vmatmul.f32.gmra.mxu0 %v2827
    %v2829 = vpop.f32.mrf.mxu0
    %v2830 = vadd.f32 %v2729, %v2829
    %v2831 = vand.u32 %v2433, 4294901760
    %v2832 = vsub.f32 %v2433, %v2831
    %v2833 = vand.u32 %v2832, 4294901760
    %2834 = vmatmul.f32.gmra.mxu0 %v2833
    %v2835 = vpop.f32.mrf.mxu0
    %v2836 = vadd.f32 %v2734, %v2835
    %v2837 = vand.u32 %v2436, 4294901760
    %v2838 = vsub.f32 %v2436, %v2837
    %v2839 = vand.u32 %v2838, 4294901760
    %2840 = vmatmul.f32.gmra.mxu0 %v2839
    %v2841 = vpop.f32.mrf.mxu0
    %v2842 = vadd.f32 %v2739, %v2841
    %v2843 = vand.u32 %v2439, 4294901760
    %v2844 = vsub.f32 %v2439, %v2843
    %v2845 = vand.u32 %v2844, 4294901760
    %2846 = vmatmul.f32.gmra.mxu0 %v2845
    %v2847 = vpop.f32.mrf.mxu0
    %v2848 = vadd.f32 %v2744, %v2847
    %v2849 = vand.u32 %v2442, 4294901760
    %v2850 = vsub.f32 %v2442, %v2849
    %v2851 = vand.u32 %v2850, 4294901760
    %2852 = vmatmul.f32.gmra.mxu0 %v2851
    %v2853 = vpop.f32.mrf.mxu0
    %v2854 = vadd.f32 %v2749, %v2853
    %v2855 = vand.u32 %v2445, 4294901760
    %v2856 = vsub.f32 %v2445, %v2855
    %v2857 = vand.u32 %v2856, 4294901760
    %2858 = vmatmul.f32.gmra.mxu0 %v2857
    %v2859 = vpop.f32.mrf.mxu0
    %v2860 = vadd.f32 %v2754, %v2859
    %v2861 = vand.u32 %v2448, 4294901760
    %v2862 = vsub.f32 %v2448, %v2861
    %v2863 = vand.u32 %v2862, 4294901760
    %2864 = vmatmul.f32.gmra.mxu0 %v2863
    %v2865 = vpop.f32.mrf.mxu0
    %v2866 = vadd.f32 %v2759, %v2865
    %v2867 = vand.u32 %v2451, 4294901760
    %v2868 = vsub.f32 %v2451, %v2867
    %v2869 = vand.u32 %v2868, 4294901760
    %2870 = vmatmul.f32.gmra.mxu0 %v2869
    %v2871 = vpop.f32.mrf.mxu0
    %v2872 = vadd.f32 %v2764, %v2871
    %v2873 = vand.u32 %v2454, 4294901760
    %v2874 = vsub.f32 %v2454, %v2873
    %v2875 = vand.u32 %v2874, 4294901760
    %2876 = vmatmul.f32.gmra.mxu0 %v2875
    %v2877 = vpop.f32.mrf.mxu0
    %v2878 = vadd.f32 %v2769, %v2877
    %v2879 = vand.u32 %v2457, 4294901760
    %v2880 = vsub.f32 %v2457, %v2879
    %v2881 = vand.u32 %v2880, 4294901760
    %2882 = vmatmul.f32.gmra.mxu0 %v2881
    %v2883 = vpop.f32.mrf.mxu0
    %v2884 = vadd.f32 %v2774, %v2883
    %v2885 = vand.u32 %v2460, 4294901760
    %v2886 = vsub.f32 %v2460, %v2885
    %v2887 = vand.u32 %v2886, 4294901760
    %2888 = vmatmul.f32.gmra.mxu0 %v2887
    %v2889 = vpop.f32.mrf.mxu0
    %v2890 = vadd.f32 %v2779, %v2889
    %v2891 = vand.u32 %v2463, 4294901760
    %v2892 = vsub.f32 %v2463, %v2891
    %v2893 = vand.u32 %v2892, 4294901760
    %2894 = vmatmul.f32.gmra.mxu0 %v2893
    %v2895 = vpop.f32.mrf.mxu0
    %v2896 = vadd.f32 %v2784, %v2895
    %v2897 = vand.u32 %v2466, 4294901760
    %v2898 = vsub.f32 %v2466, %v2897
    %v2899 = vand.u32 %v2898, 4294901760
    %2900 = vmatmul.f32.gmra.mxu0 %v2899
    %v2901 = vpop.f32.mrf.mxu0
    %v2902 = vadd.f32 %v2789, %v2901
    %2903 = vdwg.mxu0
    %2904 = vmatpush.msra.mxu0 0.0
    %2905 = vmatpush.msra.mxu0 0.0
    %2906 = vmatpush.msra.mxu0 0.0
    %2907 = vmatpush.msra.mxu0 0.0
    %2908 = vmatpush.msra.mxu0 0.0
    %2909 = vmatpush.msra.mxu0 0.0
    %2910 = vmatpush.msra.mxu0 0.0
    %2911 = vmatpush.msra.mxu0 0.0
    %2912 = vmatpush.msra.mxu0 0.0
    %2913 = vmatpush.msra.mxu0 0.0
    %2914 = vmatpush.msra.mxu0 0.0
    %2915 = vmatpush.msra.mxu0 0.0
    %2916 = vmatpush.msra.mxu0 0.0
    %2917 = vmatpush.msra.mxu0 0.0
    %2918 = vmatpush.msra.mxu0 0.0
    %2919 = vmatpush.msra.mxu0 0.0
    %v2920 = vand.u32 %v2421, 4294901760
    %2921 = vmatmul.f32.gmra.mxu0 %v2920
    %v2922 = vpop.f32.mrf.mxu0
    %v2923 = vadd.f32 %v2812, %v2922
    %v2924 = vand.u32 %v2424, 4294901760
    %2925 = vmatmul.f32.gmra.mxu0 %v2924
    %v2926 = vpop.f32.mrf.mxu0
    %v2927 = vadd.f32 %v2818, %v2926
    %v2928 = vand.u32 %v2427, 4294901760
    %2929 = vmatmul.f32.gmra.mxu0 %v2928
    %v2930 = vpop.f32.mrf.mxu0
    %v2931 = vadd.f32 %v2824, %v2930
    %v2932 = vand.u32 %v2430, 4294901760
    %2933 = vmatmul.f32.gmra.mxu0 %v2932
    %v2934 = vpop.f32.mrf.mxu0
    %v2935 = vadd.f32 %v2830, %v2934
    %v2936 = vand.u32 %v2433, 4294901760
    %2937 = vmatmul.f32.gmra.mxu0 %v2936
    %v2938 = vpop.f32.mrf.mxu0
    %v2939 = vadd.f32 %v2836, %v2938
    %v2940 = vand.u32 %v2436, 4294901760
    %2941 = vmatmul.f32.gmra.mxu0 %v2940
    %v2942 = vpop.f32.mrf.mxu0
    %v2943 = vadd.f32 %v2842, %v2942
    %v2944 = vand.u32 %v2439, 4294901760
    %2945 = vmatmul.f32.gmra.mxu0 %v2944
    %v2946 = vpop.f32.mrf.mxu0
    %v2947 = vadd.f32 %v2848, %v2946
    %v2948 = vand.u32 %v2442, 4294901760
    %2949 = vmatmul.f32.gmra.mxu0 %v2948
    %v2950 = vpop.f32.mrf.mxu0
    %v2951 = vadd.f32 %v2854, %v2950
    %v2952 = vand.u32 %v2445, 4294901760
    %2953 = vmatmul.f32.gmra.mxu0 %v2952
    %v2954 = vpop.f32.mrf.mxu0
    %v2955 = vadd.f32 %v2860, %v2954
    %v2956 = vand.u32 %v2448, 4294901760
    %2957 = vmatmul.f32.gmra.mxu0 %v2956
    %v2958 = vpop.f32.mrf.mxu0
    %v2959 = vadd.f32 %v2866, %v2958
    %v2960 = vand.u32 %v2451, 4294901760
    %2961 = vmatmul.f32.gmra.mxu0 %v2960
    %v2962 = vpop.f32.mrf.mxu0
    %v2963 = vadd.f32 %v2872, %v2962
    %v2964 = vand.u32 %v2454, 4294901760
    %2965 = vmatmul.f32.gmra.mxu0 %v2964
    %v2966 = vpop.f32.mrf.mxu0
    %v2967 = vadd.f32 %v2878, %v2966
    %v2968 = vand.u32 %v2457, 4294901760
    %2969 = vmatmul.f32.gmra.mxu0 %v2968
    %v2970 = vpop.f32.mrf.mxu0
    %v2971 = vadd.f32 %v2884, %v2970
    %v2972 = vand.u32 %v2460, 4294901760
    %2973 = vmatmul.f32.gmra.mxu0 %v2972
    %v2974 = vpop.f32.mrf.mxu0
    %v2975 = vadd.f32 %v2890, %v2974
    %v2976 = vand.u32 %v2463, 4294901760
    %2977 = vmatmul.f32.gmra.mxu0 %v2976
    %v2978 = vpop.f32.mrf.mxu0
    %v2979 = vadd.f32 %v2896, %v2978
    %v2980 = vand.u32 %v2466, 4294901760
    %2981 = vmatmul.f32.gmra.mxu0 %v2980
    %v2982 = vpop.f32.mrf.mxu0
    %v2983 = vadd.f32 %v2902, %v2982
    %2984 = vdwg.mxu0
    %2985 = vmatpush.msra.mxu0 0.0
    %2986 = vmatpush.msra.mxu0 0.0
    %2987 = vmatpush.msra.mxu0 0.0
    %2988 = vmatpush.msra.mxu0 0.0
    %2989 = vmatpush.msra.mxu0 0.0
    %2990 = vmatpush.msra.mxu0 0.0
    %2991 = vmatpush.msra.mxu0 0.0
    %2992 = vmatpush.msra.mxu0 0.0
    %2993 = vmatpush.msra.mxu0 1.0
    %2994 = vmatpush.msra.mxu0 1.0
    %2995 = vmatpush.msra.mxu0 1.0
    %2996 = vmatpush.msra.mxu0 1.0
    %2997 = vmatpush.msra.mxu0 1.0
    %2998 = vmatpush.msra.mxu0 1.0
    %2999 = vmatpush.msra.mxu0 1.0
    %3000 = vmatpush.msra.mxu0 1.0
    %v3001 = vand.u32 %v2421, 4294901760
    %3002 = vmatmul.f32.gmra.mxu0 %v3001
    %v3003 = vpop.f32.mrf.mxu0
    %v3004 = vadd.f32 %v2923, %v3003
    %v3005 = vand.u32 %v2424, 4294901760
    %3006 = vmatmul.f32.gmra.mxu0 %v3005
    %v3007 = vpop.f32.mrf.mxu0
    %v3008 = vadd.f32 %v2927, %v3007
    %v3009 = vand.u32 %v2427, 4294901760
    %3010 = vmatmul.f32.gmra.mxu0 %v3009
    %v3011 = vpop.f32.mrf.mxu0
    %v3012 = vadd.f32 %v2931, %v3011
    %v3013 = vand.u32 %v2430, 4294901760
    %3014 = vmatmul.f32.gmra.mxu0 %v3013
    %v3015 = vpop.f32.mrf.mxu0
    %v3016 = vadd.f32 %v2935, %v3015
    %v3017 = vand.u32 %v2433, 4294901760
    %3018 = vmatmul.f32.gmra.mxu0 %v3017
    %v3019 = vpop.f32.mrf.mxu0
    %v3020 = vadd.f32 %v2939, %v3019
    %v3021 = vand.u32 %v2436, 4294901760
    %3022 = vmatmul.f32.gmra.mxu0 %v3021
    %v3023 = vpop.f32.mrf.mxu0
    %v3024 = vadd.f32 %v2943, %v3023
    %v3025 = vand.u32 %v2439, 4294901760
    %3026 = vmatmul.f32.gmra.mxu0 %v3025
    %v3027 = vpop.f32.mrf.mxu0
    %v3028 = vadd.f32 %v2947, %v3027
    %v3029 = vand.u32 %v2442, 4294901760
    %3030 = vmatmul.f32.gmra.mxu0 %v3029
    %v3031 = vpop.f32.mrf.mxu0
    %v3032 = vadd.f32 %v2951, %v3031
    %v3033 = vand.u32 %v2445, 4294901760
    %3034 = vmatmul.f32.gmra.mxu0 %v3033
    %v3035 = vpop.f32.mrf.mxu0
    %v3036 = vadd.f32 %v2955, %v3035
    %v3037 = vand.u32 %v2448, 4294901760
    %3038 = vmatmul.f32.gmra.mxu0 %v3037
    %v3039 = vpop.f32.mrf.mxu0
    %v3040 = vadd.f32 %v2959, %v3039
    %v3041 = vand.u32 %v2451, 4294901760
    %3042 = vmatmul.f32.gmra.mxu0 %v3041
    %v3043 = vpop.f32.mrf.mxu0
    %v3044 = vadd.f32 %v2963, %v3043
    %v3045 = vand.u32 %v2454, 4294901760
    %3046 = vmatmul.f32.gmra.mxu0 %v3045
    %v3047 = vpop.f32.mrf.mxu0
    %v3048 = vadd.f32 %v2967, %v3047
    %v3049 = vand.u32 %v2457, 4294901760
    %3050 = vmatmul.f32.gmra.mxu0 %v3049
    %v3051 = vpop.f32.mrf.mxu0
    %v3052 = vadd.f32 %v2971, %v3051
    %v3053 = vand.u32 %v2460, 4294901760
    %3054 = vmatmul.f32.gmra.mxu0 %v3053
    %v3055 = vpop.f32.mrf.mxu0
    %v3056 = vadd.f32 %v2975, %v3055
    %v3057 = vand.u32 %v2463, 4294901760
    %3058 = vmatmul.f32.gmra.mxu0 %v3057
    %v3059 = vpop.f32.mrf.mxu0
    %v3060 = vadd.f32 %v2979, %v3059
    %v3061 = vand.u32 %v2466, 4294901760
    %3062 = vmatmul.f32.gmra.mxu0 %v3061
    %v3063 = vpop.f32.mrf.mxu0
    %v3064 = vadd.f32 %v2983, %v3063
    %3065 = vdwg.mxu0
    %v3066 = vmul.f32 %v3004, 0.015625
    %v3067 = vmul.f32 %v3008, 0.015625
    %v3068 = vmul.f32 %v3012, 0.015625
    %v3069 = vmul.f32 %v3016, 0.015625
    %v3070 = vmul.f32 %v3020, 0.015625
    %v3071 = vmul.f32 %v3024, 0.015625
    %v3072 = vmul.f32 %v3028, 0.015625
    %v3073 = vmul.f32 %v3032, 0.015625
    %v3074 = vmul.f32 %v3036, 0.015625
    %v3075 = vmul.f32 %v3040, 0.015625
    %v3076 = vmul.f32 %v3044, 0.015625
    %v3077 = vmul.f32 %v3048, 0.015625
    %v3078 = vmul.f32 %v3052, 0.015625
    %v3079 = vmul.f32 %v3056, 0.015625
    %v3080 = vmul.f32 %v3060, 0.015625
    %v3081 = vmul.f32 %v3064, 0.015625
    %v3082 = vmul.f32 %v2404, %v2404
    %v3083 = vmul.f32 %v2405, %v2405
    %v3084 = vmul.f32 %v2406, %v2406
    %v3085 = vmul.f32 %v2407, %v2407
    %v3086 = vmul.f32 %v2408, %v2408
    %v3087 = vmul.f32 %v2409, %v2409
    %v3088 = vmul.f32 %v2410, %v2410
    %v3089 = vmul.f32 %v2411, %v2411
    %v3090 = vmul.f32 %v2412, %v2412
    %v3091 = vmul.f32 %v2413, %v2413
    %v3092 = vmul.f32 %v2414, %v2414
    %v3093 = vmul.f32 %v2415, %v2415
    %v3094 = vmul.f32 %v2416, %v2416
    %v3095 = vmul.f32 %v2417, %v2417
    %v3096 = vmul.f32 %v2418, %v2418
    %v3097 = vmul.f32 %v2419, %v2419
    %v3099 = vsel %vm302, %v3082, 0
    %v3102 = vsel %vm302, %v3083, 0
    %v3105 = vsel %vm302, %v3084, 0
    %v3108 = vsel %vm302, %v3085, 0
    %v3111 = vsel %vm302, %v3086, 0
    %v3114 = vsel %vm302, %v3087, 0
    %v3117 = vsel %vm302, %v3088, 0
    %v3120 = vsel %vm302, %v3089, 0
    %v3123 = vsel %vm302, %v3090, 0
    %v3126 = vsel %vm302, %v3091, 0
    %v3129 = vsel %vm302, %v3092, 0
    %v3132 = vsel %vm302, %v3093, 0
    %v3135 = vsel %vm302, %v3094, 0
    %v3138 = vsel %vm302, %v3095, 0
    %v3141 = vsel %vm302, %v3096, 0
    %v3144 = vsel %vm302, %v3097, 0
    %3146 = vmatpush.msra.mxu0 0.0
    %3147 = vmatpush.msra.mxu0 0.0
    %3148 = vmatpush.msra.mxu0 0.0
    %3149 = vmatpush.msra.mxu0 0.0
    %3150 = vmatpush.msra.mxu0 0.0
    %3151 = vmatpush.msra.mxu0 0.0
    %3152 = vmatpush.msra.mxu0 0.0
    %3153 = vmatpush.msra.mxu0 0.0
    %3154 = vmatpush.msra.mxu0 1.0
    %3155 = vmatpush.msra.mxu0 1.0
    %3156 = vmatpush.msra.mxu0 1.0
    %3157 = vmatpush.msra.mxu0 1.0
    %3158 = vmatpush.msra.mxu0 1.0
    %3159 = vmatpush.msra.mxu0 1.0
    %3160 = vmatpush.msra.mxu0 1.0
    %3161 = vmatpush.msra.mxu0 1.0
    %v3162 = vand.u32 %v3099, 4294901760
    %v3163 = vsub.f32 %v3099, %v3162
    %v3164 = vand.u32 %v3163, 4294901760
    %v3165 = vsub.f32 %v3163, %v3164
    %v3166 = vand.u32 %v3165, 4294901760
    %3167 = vmatmul.f32.gmra.mxu0 %v3166
    %v3168 = vpop.f32.mrf.mxu0
    %v3169 = vadd.f32 0.0, %v3168
    %v3170 = vand.u32 %v3102, 4294901760
    %v3171 = vsub.f32 %v3102, %v3170
    %v3172 = vand.u32 %v3171, 4294901760
    %v3173 = vsub.f32 %v3171, %v3172
    %v3174 = vand.u32 %v3173, 4294901760
    %3175 = vmatmul.f32.gmra.mxu0 %v3174
    %v3176 = vpop.f32.mrf.mxu0
    %v3177 = vadd.f32 0.0, %v3176
    %v3178 = vand.u32 %v3105, 4294901760
    %v3179 = vsub.f32 %v3105, %v3178
    %v3180 = vand.u32 %v3179, 4294901760
    %v3181 = vsub.f32 %v3179, %v3180
    %v3182 = vand.u32 %v3181, 4294901760
    %3183 = vmatmul.f32.gmra.mxu0 %v3182
    %v3184 = vpop.f32.mrf.mxu0
    %v3185 = vadd.f32 0.0, %v3184
    %v3186 = vand.u32 %v3108, 4294901760
    %v3187 = vsub.f32 %v3108, %v3186
    %v3188 = vand.u32 %v3187, 4294901760
    %v3189 = vsub.f32 %v3187, %v3188
    %v3190 = vand.u32 %v3189, 4294901760
    %3191 = vmatmul.f32.gmra.mxu0 %v3190
    %v3192 = vpop.f32.mrf.mxu0
    %v3193 = vadd.f32 0.0, %v3192
    %v3194 = vand.u32 %v3111, 4294901760
    %v3195 = vsub.f32 %v3111, %v3194
    %v3196 = vand.u32 %v3195, 4294901760
    %v3197 = vsub.f32 %v3195, %v3196
    %v3198 = vand.u32 %v3197, 4294901760
    %3199 = vmatmul.f32.gmra.mxu0 %v3198
    %v3200 = vpop.f32.mrf.mxu0
    %v3201 = vadd.f32 0.0, %v3200
    %v3202 = vand.u32 %v3114, 4294901760
    %v3203 = vsub.f32 %v3114, %v3202
    %v3204 = vand.u32 %v3203, 4294901760
    %v3205 = vsub.f32 %v3203, %v3204
    %v3206 = vand.u32 %v3205, 4294901760
    %3207 = vmatmul.f32.gmra.mxu0 %v3206
    %v3208 = vpop.f32.mrf.mxu0
    %v3209 = vadd.f32 0.0, %v3208
    %v3210 = vand.u32 %v3117, 4294901760
    %v3211 = vsub.f32 %v3117, %v3210
    %v3212 = vand.u32 %v3211, 4294901760
    %v3213 = vsub.f32 %v3211, %v3212
    %v3214 = vand.u32 %v3213, 4294901760
    %3215 = vmatmul.f32.gmra.mxu0 %v3214
    %v3216 = vpop.f32.mrf.mxu0
    %v3217 = vadd.f32 0.0, %v3216
    %v3218 = vand.u32 %v3120, 4294901760
    %v3219 = vsub.f32 %v3120, %v3218
    %v3220 = vand.u32 %v3219, 4294901760
    %v3221 = vsub.f32 %v3219, %v3220
    %v3222 = vand.u32 %v3221, 4294901760
    %3223 = vmatmul.f32.gmra.mxu0 %v3222
    %v3224 = vpop.f32.mrf.mxu0
    %v3225 = vadd.f32 0.0, %v3224
    %v3226 = vand.u32 %v3123, 4294901760
    %v3227 = vsub.f32 %v3123, %v3226
    %v3228 = vand.u32 %v3227, 4294901760
    %v3229 = vsub.f32 %v3227, %v3228
    %v3230 = vand.u32 %v3229, 4294901760
    %3231 = vmatmul.f32.gmra.mxu0 %v3230
    %v3232 = vpop.f32.mrf.mxu0
    %v3233 = vadd.f32 0.0, %v3232
    %v3234 = vand.u32 %v3126, 4294901760
    %v3235 = vsub.f32 %v3126, %v3234
    %v3236 = vand.u32 %v3235, 4294901760
    %v3237 = vsub.f32 %v3235, %v3236
    %v3238 = vand.u32 %v3237, 4294901760
    %3239 = vmatmul.f32.gmra.mxu0 %v3238
    %v3240 = vpop.f32.mrf.mxu0
    %v3241 = vadd.f32 0.0, %v3240
    %v3242 = vand.u32 %v3129, 4294901760
    %v3243 = vsub.f32 %v3129, %v3242
    %v3244 = vand.u32 %v3243, 4294901760
    %v3245 = vsub.f32 %v3243, %v3244
    %v3246 = vand.u32 %v3245, 4294901760
    %3247 = vmatmul.f32.gmra.mxu0 %v3246
    %v3248 = vpop.f32.mrf.mxu0
    %v3249 = vadd.f32 0.0, %v3248
    %v3250 = vand.u32 %v3132, 4294901760
    %v3251 = vsub.f32 %v3132, %v3250
    %v3252 = vand.u32 %v3251, 4294901760
    %v3253 = vsub.f32 %v3251, %v3252
    %v3254 = vand.u32 %v3253, 4294901760
    %3255 = vmatmul.f32.gmra.mxu0 %v3254
    %v3256 = vpop.f32.mrf.mxu0
    %v3257 = vadd.f32 0.0, %v3256
    %v3258 = vand.u32 %v3135, 4294901760
    %v3259 = vsub.f32 %v3135, %v3258
    %v3260 = vand.u32 %v3259, 4294901760
    %v3261 = vsub.f32 %v3259, %v3260
    %v3262 = vand.u32 %v3261, 4294901760
    %3263 = vmatmul.f32.gmra.mxu0 %v3262
    %v3264 = vpop.f32.mrf.mxu0
    %v3265 = vadd.f32 0.0, %v3264
    %v3266 = vand.u32 %v3138, 4294901760
    %v3267 = vsub.f32 %v3138, %v3266
    %v3268 = vand.u32 %v3267, 4294901760
    %v3269 = vsub.f32 %v3267, %v3268
    %v3270 = vand.u32 %v3269, 4294901760
    %3271 = vmatmul.f32.gmra.mxu0 %v3270
    %v3272 = vpop.f32.mrf.mxu0
    %v3273 = vadd.f32 0.0, %v3272
    %v3274 = vand.u32 %v3141, 4294901760
    %v3275 = vsub.f32 %v3141, %v3274
    %v3276 = vand.u32 %v3275, 4294901760
    %v3277 = vsub.f32 %v3275, %v3276
    %v3278 = vand.u32 %v3277, 4294901760
    %3279 = vmatmul.f32.gmra.mxu0 %v3278
    %v3280 = vpop.f32.mrf.mxu0
    %v3281 = vadd.f32 0.0, %v3280
    %v3282 = vand.u32 %v3144, 4294901760
    %v3283 = vsub.f32 %v3144, %v3282
    %v3284 = vand.u32 %v3283, 4294901760
    %v3285 = vsub.f32 %v3283, %v3284
    %v3286 = vand.u32 %v3285, 4294901760
    %3287 = vmatmul.f32.gmra.mxu0 %v3286
    %v3288 = vpop.f32.mrf.mxu0
    %v3289 = vadd.f32 0.0, %v3288
    %3290 = vdwg.mxu0
    %3291 = vmatpush.msra.mxu0 0.0
    %3292 = vmatpush.msra.mxu0 0.0
    %3293 = vmatpush.msra.mxu0 0.0
    %3294 = vmatpush.msra.mxu0 0.0
    %3295 = vmatpush.msra.mxu0 0.0
    %3296 = vmatpush.msra.mxu0 0.0
    %3297 = vmatpush.msra.mxu0 0.0
    %3298 = vmatpush.msra.mxu0 0.0
    %3299 = vmatpush.msra.mxu0 0.0
    %3300 = vmatpush.msra.mxu0 0.0
    %3301 = vmatpush.msra.mxu0 0.0
    %3302 = vmatpush.msra.mxu0 0.0
    %3303 = vmatpush.msra.mxu0 0.0
    %3304 = vmatpush.msra.mxu0 0.0
    %3305 = vmatpush.msra.mxu0 0.0
    %3306 = vmatpush.msra.mxu0 0.0
    %v3307 = vand.u32 %v3099, 4294901760
    %3308 = vmatmul.f32.gmra.mxu0 %v3307
    %v3309 = vpop.f32.mrf.mxu0
    %v3310 = vadd.f32 %v3169, %v3309
    %v3311 = vand.u32 %v3102, 4294901760
    %3312 = vmatmul.f32.gmra.mxu0 %v3311
    %v3313 = vpop.f32.mrf.mxu0
    %v3314 = vadd.f32 %v3177, %v3313
    %v3315 = vand.u32 %v3105, 4294901760
    %3316 = vmatmul.f32.gmra.mxu0 %v3315
    %v3317 = vpop.f32.mrf.mxu0
    %v3318 = vadd.f32 %v3185, %v3317
    %v3319 = vand.u32 %v3108, 4294901760
    %3320 = vmatmul.f32.gmra.mxu0 %v3319
    %v3321 = vpop.f32.mrf.mxu0
    %v3322 = vadd.f32 %v3193, %v3321
    %v3323 = vand.u32 %v3111, 4294901760
    %3324 = vmatmul.f32.gmra.mxu0 %v3323
    %v3325 = vpop.f32.mrf.mxu0
    %v3326 = vadd.f32 %v3201, %v3325
    %v3327 = vand.u32 %v3114, 4294901760
    %3328 = vmatmul.f32.gmra.mxu0 %v3327
    %v3329 = vpop.f32.mrf.mxu0
    %v3330 = vadd.f32 %v3209, %v3329
    %v3331 = vand.u32 %v3117, 4294901760
    %3332 = vmatmul.f32.gmra.mxu0 %v3331
    %v3333 = vpop.f32.mrf.mxu0
    %v3334 = vadd.f32 %v3217, %v3333
    %v3335 = vand.u32 %v3120, 4294901760
    %3336 = vmatmul.f32.gmra.mxu0 %v3335
    %v3337 = vpop.f32.mrf.mxu0
    %v3338 = vadd.f32 %v3225, %v3337
    %v3339 = vand.u32 %v3123, 4294901760
    %3340 = vmatmul.f32.gmra.mxu0 %v3339
    %v3341 = vpop.f32.mrf.mxu0
    %v3342 = vadd.f32 %v3233, %v3341
    %v3343 = vand.u32 %v3126, 4294901760
    %3344 = vmatmul.f32.gmra.mxu0 %v3343
    %v3345 = vpop.f32.mrf.mxu0
    %v3346 = vadd.f32 %v3241, %v3345
    %v3347 = vand.u32 %v3129, 4294901760
    %3348 = vmatmul.f32.gmra.mxu0 %v3347
    %v3349 = vpop.f32.mrf.mxu0
    %v3350 = vadd.f32 %v3249, %v3349
    %v3351 = vand.u32 %v3132, 4294901760
    %3352 = vmatmul.f32.gmra.mxu0 %v3351
    %v3353 = vpop.f32.mrf.mxu0
    %v3354 = vadd.f32 %v3257, %v3353
    %v3355 = vand.u32 %v3135, 4294901760
    %3356 = vmatmul.f32.gmra.mxu0 %v3355
    %v3357 = vpop.f32.mrf.mxu0
    %v3358 = vadd.f32 %v3265, %v3357
    %v3359 = vand.u32 %v3138, 4294901760
    %3360 = vmatmul.f32.gmra.mxu0 %v3359
    %v3361 = vpop.f32.mrf.mxu0
    %v3362 = vadd.f32 %v3273, %v3361
    %v3363 = vand.u32 %v3141, 4294901760
    %3364 = vmatmul.f32.gmra.mxu0 %v3363
    %v3365 = vpop.f32.mrf.mxu0
    %v3366 = vadd.f32 %v3281, %v3365
    %v3367 = vand.u32 %v3144, 4294901760
    %3368 = vmatmul.f32.gmra.mxu0 %v3367
    %v3369 = vpop.f32.mrf.mxu0
    %v3370 = vadd.f32 %v3289, %v3369
    %3371 = vdwg.mxu0
    %3372 = vmatpush.msra.mxu0 0.0
    %3373 = vmatpush.msra.mxu0 0.0
    %3374 = vmatpush.msra.mxu0 0.0
    %3375 = vmatpush.msra.mxu0 0.0
    %3376 = vmatpush.msra.mxu0 0.0
    %3377 = vmatpush.msra.mxu0 0.0
    %3378 = vmatpush.msra.mxu0 0.0
    %3379 = vmatpush.msra.mxu0 0.0
    %3380 = vmatpush.msra.mxu0 0.0
    %3381 = vmatpush.msra.mxu0 0.0
    %3382 = vmatpush.msra.mxu0 0.0
    %3383 = vmatpush.msra.mxu0 0.0
    %3384 = vmatpush.msra.mxu0 0.0
    %3385 = vmatpush.msra.mxu0 0.0
    %3386 = vmatpush.msra.mxu0 0.0
    %3387 = vmatpush.msra.mxu0 0.0
    %v3388 = vand.u32 %v3099, 4294901760
    %v3389 = vsub.f32 %v3099, %v3388
    %3390 = vmatmul.f32.gmra.mxu0 %v3389
    %v3391 = vpop.f32.mrf.mxu0
    %v3392 = vadd.f32 %v3310, %v3391
    %v3393 = vand.u32 %v3102, 4294901760
    %v3394 = vsub.f32 %v3102, %v3393
    %3395 = vmatmul.f32.gmra.mxu0 %v3394
    %v3396 = vpop.f32.mrf.mxu0
    %v3397 = vadd.f32 %v3314, %v3396
    %v3398 = vand.u32 %v3105, 4294901760
    %v3399 = vsub.f32 %v3105, %v3398
    %3400 = vmatmul.f32.gmra.mxu0 %v3399
    %v3401 = vpop.f32.mrf.mxu0
    %v3402 = vadd.f32 %v3318, %v3401
    %v3403 = vand.u32 %v3108, 4294901760
    %v3404 = vsub.f32 %v3108, %v3403
    %3405 = vmatmul.f32.gmra.mxu0 %v3404
    %v3406 = vpop.f32.mrf.mxu0
    %v3407 = vadd.f32 %v3322, %v3406
    %v3408 = vand.u32 %v3111, 4294901760
    %v3409 = vsub.f32 %v3111, %v3408
    %3410 = vmatmul.f32.gmra.mxu0 %v3409
    %v3411 = vpop.f32.mrf.mxu0
    %v3412 = vadd.f32 %v3326, %v3411
    %v3413 = vand.u32 %v3114, 4294901760
    %v3414 = vsub.f32 %v3114, %v3413
    %3415 = vmatmul.f32.gmra.mxu0 %v3414
    %v3416 = vpop.f32.mrf.mxu0
    %v3417 = vadd.f32 %v3330, %v3416
    %v3418 = vand.u32 %v3117, 4294901760
    %v3419 = vsub.f32 %v3117, %v3418
    %3420 = vmatmul.f32.gmra.mxu0 %v3419
    %v3421 = vpop.f32.mrf.mxu0
    %v3422 = vadd.f32 %v3334, %v3421
    %v3423 = vand.u32 %v3120, 4294901760
    %v3424 = vsub.f32 %v3120, %v3423
    %3425 = vmatmul.f32.gmra.mxu0 %v3424
    %v3426 = vpop.f32.mrf.mxu0
    %v3427 = vadd.f32 %v3338, %v3426
    %v3428 = vand.u32 %v3123, 4294901760
    %v3429 = vsub.f32 %v3123, %v3428
    %3430 = vmatmul.f32.gmra.mxu0 %v3429
    %v3431 = vpop.f32.mrf.mxu0
    %v3432 = vadd.f32 %v3342, %v3431
    %v3433 = vand.u32 %v3126, 4294901760
    %v3434 = vsub.f32 %v3126, %v3433
    %3435 = vmatmul.f32.gmra.mxu0 %v3434
    %v3436 = vpop.f32.mrf.mxu0
    %v3437 = vadd.f32 %v3346, %v3436
    %v3438 = vand.u32 %v3129, 4294901760
    %v3439 = vsub.f32 %v3129, %v3438
    %3440 = vmatmul.f32.gmra.mxu0 %v3439
    %v3441 = vpop.f32.mrf.mxu0
    %v3442 = vadd.f32 %v3350, %v3441
    %v3443 = vand.u32 %v3132, 4294901760
    %v3444 = vsub.f32 %v3132, %v3443
    %3445 = vmatmul.f32.gmra.mxu0 %v3444
    %v3446 = vpop.f32.mrf.mxu0
    %v3447 = vadd.f32 %v3354, %v3446
    %v3448 = vand.u32 %v3135, 4294901760
    %v3449 = vsub.f32 %v3135, %v3448
    %3450 = vmatmul.f32.gmra.mxu0 %v3449
    %v3451 = vpop.f32.mrf.mxu0
    %v3452 = vadd.f32 %v3358, %v3451
    %v3453 = vand.u32 %v3138, 4294901760
    %v3454 = vsub.f32 %v3138, %v3453
    %3455 = vmatmul.f32.gmra.mxu0 %v3454
    %v3456 = vpop.f32.mrf.mxu0
    %v3457 = vadd.f32 %v3362, %v3456
    %v3458 = vand.u32 %v3141, 4294901760
    %v3459 = vsub.f32 %v3141, %v3458
    %3460 = vmatmul.f32.gmra.mxu0 %v3459
    %v3461 = vpop.f32.mrf.mxu0
    %v3462 = vadd.f32 %v3366, %v3461
    %v3463 = vand.u32 %v3144, 4294901760
    %v3464 = vsub.f32 %v3144, %v3463
    %3465 = vmatmul.f32.gmra.mxu0 %v3464
    %v3466 = vpop.f32.mrf.mxu0
    %v3467 = vadd.f32 %v3370, %v3466
    %3468 = vdwg.mxu0
    %3469 = vmatpush.msra.mxu0 0.0
    %3470 = vmatpush.msra.mxu0 0.0
    %3471 = vmatpush.msra.mxu0 0.0
    %3472 = vmatpush.msra.mxu0 0.0
    %3473 = vmatpush.msra.mxu0 0.0
    %3474 = vmatpush.msra.mxu0 0.0
    %3475 = vmatpush.msra.mxu0 0.0
    %3476 = vmatpush.msra.mxu0 0.0
    %3477 = vmatpush.msra.mxu0 1.0
    %3478 = vmatpush.msra.mxu0 1.0
    %3479 = vmatpush.msra.mxu0 1.0
    %3480 = vmatpush.msra.mxu0 1.0
    %3481 = vmatpush.msra.mxu0 1.0
    %3482 = vmatpush.msra.mxu0 1.0
    %3483 = vmatpush.msra.mxu0 1.0
    %3484 = vmatpush.msra.mxu0 1.0
    %v3485 = vand.u32 %v3099, 4294901760
    %v3486 = vsub.f32 %v3099, %v3485
    %v3487 = vand.u32 %v3486, 4294901760
    %3488 = vmatmul.f32.gmra.mxu0 %v3487
    %v3489 = vpop.f32.mrf.mxu0
    %v3490 = vadd.f32 %v3392, %v3489
    %v3491 = vand.u32 %v3102, 4294901760
    %v3492 = vsub.f32 %v3102, %v3491
    %v3493 = vand.u32 %v3492, 4294901760
    %3494 = vmatmul.f32.gmra.mxu0 %v3493
    %v3495 = vpop.f32.mrf.mxu0
    %v3496 = vadd.f32 %v3397, %v3495
    %v3497 = vand.u32 %v3105, 4294901760
    %v3498 = vsub.f32 %v3105, %v3497
    %v3499 = vand.u32 %v3498, 4294901760
    %3500 = vmatmul.f32.gmra.mxu0 %v3499
    %v3501 = vpop.f32.mrf.mxu0
    %v3502 = vadd.f32 %v3402, %v3501
    %v3503 = vand.u32 %v3108, 4294901760
    %v3504 = vsub.f32 %v3108, %v3503
    %v3505 = vand.u32 %v3504, 4294901760
    %3506 = vmatmul.f32.gmra.mxu0 %v3505
    %v3507 = vpop.f32.mrf.mxu0
    %v3508 = vadd.f32 %v3407, %v3507
    %v3509 = vand.u32 %v3111, 4294901760
    %v3510 = vsub.f32 %v3111, %v3509
    %v3511 = vand.u32 %v3510, 4294901760
    %3512 = vmatmul.f32.gmra.mxu0 %v3511
    %v3513 = vpop.f32.mrf.mxu0
    %v3514 = vadd.f32 %v3412, %v3513
    %v3515 = vand.u32 %v3114, 4294901760
    %v3516 = vsub.f32 %v3114, %v3515
    %v3517 = vand.u32 %v3516, 4294901760
    %3518 = vmatmul.f32.gmra.mxu0 %v3517
    %v3519 = vpop.f32.mrf.mxu0
    %v3520 = vadd.f32 %v3417, %v3519
    %v3521 = vand.u32 %v3117, 4294901760
    %v3522 = vsub.f32 %v3117, %v3521
    %v3523 = vand.u32 %v3522, 4294901760
    %3524 = vmatmul.f32.gmra.mxu0 %v3523
    %v3525 = vpop.f32.mrf.mxu0
    %v3526 = vadd.f32 %v3422, %v3525
    %v3527 = vand.u32 %v3120, 4294901760
    %v3528 = vsub.f32 %v3120, %v3527
    %v3529 = vand.u32 %v3528, 4294901760
    %3530 = vmatmul.f32.gmra.mxu0 %v3529
    %v3531 = vpop.f32.mrf.mxu0
    %v3532 = vadd.f32 %v3427, %v3531
    %v3533 = vand.u32 %v3123, 4294901760
    %v3534 = vsub.f32 %v3123, %v3533
    %v3535 = vand.u32 %v3534, 4294901760
    %3536 = vmatmul.f32.gmra.mxu0 %v3535
    %v3537 = vpop.f32.mrf.mxu0
    %v3538 = vadd.f32 %v3432, %v3537
    %v3539 = vand.u32 %v3126, 4294901760
    %v3540 = vsub.f32 %v3126, %v3539
    %v3541 = vand.u32 %v3540, 4294901760
    %3542 = vmatmul.f32.gmra.mxu0 %v3541
    %v3543 = vpop.f32.mrf.mxu0
    %v3544 = vadd.f32 %v3437, %v3543
    %v3545 = vand.u32 %v3129, 4294901760
    %v3546 = vsub.f32 %v3129, %v3545
    %v3547 = vand.u32 %v3546, 4294901760
    %3548 = vmatmul.f32.gmra.mxu0 %v3547
    %v3549 = vpop.f32.mrf.mxu0
    %v3550 = vadd.f32 %v3442, %v3549
    %v3551 = vand.u32 %v3132, 4294901760
    %v3552 = vsub.f32 %v3132, %v3551
    %v3553 = vand.u32 %v3552, 4294901760
    %3554 = vmatmul.f32.gmra.mxu0 %v3553
    %v3555 = vpop.f32.mrf.mxu0
    %v3556 = vadd.f32 %v3447, %v3555
    %v3557 = vand.u32 %v3135, 4294901760
    %v3558 = vsub.f32 %v3135, %v3557
    %v3559 = vand.u32 %v3558, 4294901760
    %3560 = vmatmul.f32.gmra.mxu0 %v3559
    %v3561 = vpop.f32.mrf.mxu0
    %v3562 = vadd.f32 %v3452, %v3561
    %v3563 = vand.u32 %v3138, 4294901760
    %v3564 = vsub.f32 %v3138, %v3563
    %v3565 = vand.u32 %v3564, 4294901760
    %3566 = vmatmul.f32.gmra.mxu0 %v3565
    %v3567 = vpop.f32.mrf.mxu0
    %v3568 = vadd.f32 %v3457, %v3567
    %v3569 = vand.u32 %v3141, 4294901760
    %v3570 = vsub.f32 %v3141, %v3569
    %v3571 = vand.u32 %v3570, 4294901760
    %3572 = vmatmul.f32.gmra.mxu0 %v3571
    %v3573 = vpop.f32.mrf.mxu0
    %v3574 = vadd.f32 %v3462, %v3573
    %v3575 = vand.u32 %v3144, 4294901760
    %v3576 = vsub.f32 %v3144, %v3575
    %v3577 = vand.u32 %v3576, 4294901760
    %3578 = vmatmul.f32.gmra.mxu0 %v3577
    %v3579 = vpop.f32.mrf.mxu0
    %v3580 = vadd.f32 %v3467, %v3579
    %3581 = vdwg.mxu0
    %3582 = vmatpush.msra.mxu0 0.0
    %3583 = vmatpush.msra.mxu0 0.0
    %3584 = vmatpush.msra.mxu0 0.0
    %3585 = vmatpush.msra.mxu0 0.0
    %3586 = vmatpush.msra.mxu0 0.0
    %3587 = vmatpush.msra.mxu0 0.0
    %3588 = vmatpush.msra.mxu0 0.0
    %3589 = vmatpush.msra.mxu0 0.0
    %3590 = vmatpush.msra.mxu0 0.0
    %3591 = vmatpush.msra.mxu0 0.0
    %3592 = vmatpush.msra.mxu0 0.0
    %3593 = vmatpush.msra.mxu0 0.0
    %3594 = vmatpush.msra.mxu0 0.0
    %3595 = vmatpush.msra.mxu0 0.0
    %3596 = vmatpush.msra.mxu0 0.0
    %3597 = vmatpush.msra.mxu0 0.0
    %v3598 = vand.u32 %v3099, 4294901760
    %3599 = vmatmul.f32.gmra.mxu0 %v3598
    %v3600 = vpop.f32.mrf.mxu0
    %v3601 = vadd.f32 %v3490, %v3600
    %v3602 = vand.u32 %v3102, 4294901760
    %3603 = vmatmul.f32.gmra.mxu0 %v3602
    %v3604 = vpop.f32.mrf.mxu0
    %v3605 = vadd.f32 %v3496, %v3604
    %v3606 = vand.u32 %v3105, 4294901760
    %3607 = vmatmul.f32.gmra.mxu0 %v3606
    %v3608 = vpop.f32.mrf.mxu0
    %v3609 = vadd.f32 %v3502, %v3608
    %v3610 = vand.u32 %v3108, 4294901760
    %3611 = vmatmul.f32.gmra.mxu0 %v3610
    %v3612 = vpop.f32.mrf.mxu0
    %v3613 = vadd.f32 %v3508, %v3612
    %v3614 = vand.u32 %v3111, 4294901760
    %3615 = vmatmul.f32.gmra.mxu0 %v3614
    %v3616 = vpop.f32.mrf.mxu0
    %v3617 = vadd.f32 %v3514, %v3616
    %v3618 = vand.u32 %v3114, 4294901760
    %3619 = vmatmul.f32.gmra.mxu0 %v3618
    %v3620 = vpop.f32.mrf.mxu0
    %v3621 = vadd.f32 %v3520, %v3620
    %v3622 = vand.u32 %v3117, 4294901760
    %3623 = vmatmul.f32.gmra.mxu0 %v3622
    %v3624 = vpop.f32.mrf.mxu0
    %v3625 = vadd.f32 %v3526, %v3624
    %v3626 = vand.u32 %v3120, 4294901760
    %3627 = vmatmul.f32.gmra.mxu0 %v3626
    %v3628 = vpop.f32.mrf.mxu0
    %v3629 = vadd.f32 %v3532, %v3628
    %v3630 = vand.u32 %v3123, 4294901760
    %3631 = vmatmul.f32.gmra.mxu0 %v3630
    %v3632 = vpop.f32.mrf.mxu0
    %v3633 = vadd.f32 %v3538, %v3632
    %v3634 = vand.u32 %v3126, 4294901760
    %3635 = vmatmul.f32.gmra.mxu0 %v3634
    %v3636 = vpop.f32.mrf.mxu0
    %v3637 = vadd.f32 %v3544, %v3636
    %v3638 = vand.u32 %v3129, 4294901760
    %3639 = vmatmul.f32.gmra.mxu0 %v3638
    %v3640 = vpop.f32.mrf.mxu0
    %v3641 = vadd.f32 %v3550, %v3640
    %v3642 = vand.u32 %v3132, 4294901760
    %3643 = vmatmul.f32.gmra.mxu0 %v3642
    %v3644 = vpop.f32.mrf.mxu0
    %v3645 = vadd.f32 %v3556, %v3644
    %v3646 = vand.u32 %v3135, 4294901760
    %3647 = vmatmul.f32.gmra.mxu0 %v3646
    %v3648 = vpop.f32.mrf.mxu0
    %v3649 = vadd.f32 %v3562, %v3648
    %v3650 = vand.u32 %v3138, 4294901760
    %3651 = vmatmul.f32.gmra.mxu0 %v3650
    %v3652 = vpop.f32.mrf.mxu0
    %v3653 = vadd.f32 %v3568, %v3652
    %v3654 = vand.u32 %v3141, 4294901760
    %3655 = vmatmul.f32.gmra.mxu0 %v3654
    %v3656 = vpop.f32.mrf.mxu0
    %v3657 = vadd.f32 %v3574, %v3656
    %v3658 = vand.u32 %v3144, 4294901760
    %3659 = vmatmul.f32.gmra.mxu0 %v3658
    %v3660 = vpop.f32.mrf.mxu0
    %v3661 = vadd.f32 %v3580, %v3660
    %3662 = vdwg.mxu0
    %3663 = vmatpush.msra.mxu0 0.0
    %3664 = vmatpush.msra.mxu0 0.0
    %3665 = vmatpush.msra.mxu0 0.0
    %3666 = vmatpush.msra.mxu0 0.0
    %3667 = vmatpush.msra.mxu0 0.0
    %3668 = vmatpush.msra.mxu0 0.0
    %3669 = vmatpush.msra.mxu0 0.0
    %3670 = vmatpush.msra.mxu0 0.0
    %3671 = vmatpush.msra.mxu0 1.0
    %3672 = vmatpush.msra.mxu0 1.0
    %3673 = vmatpush.msra.mxu0 1.0
    %3674 = vmatpush.msra.mxu0 1.0
    %3675 = vmatpush.msra.mxu0 1.0
    %3676 = vmatpush.msra.mxu0 1.0
    %3677 = vmatpush.msra.mxu0 1.0
    %3678 = vmatpush.msra.mxu0 1.0
    %v3679 = vand.u32 %v3099, 4294901760
    %3680 = vmatmul.f32.gmra.mxu0 %v3679
    %v3681 = vpop.f32.mrf.mxu0
    %v3682 = vadd.f32 %v3601, %v3681
    %v3683 = vand.u32 %v3102, 4294901760
    %3684 = vmatmul.f32.gmra.mxu0 %v3683
    %v3685 = vpop.f32.mrf.mxu0
    %v3686 = vadd.f32 %v3605, %v3685
    %v3687 = vand.u32 %v3105, 4294901760
    %3688 = vmatmul.f32.gmra.mxu0 %v3687
    %v3689 = vpop.f32.mrf.mxu0
    %v3690 = vadd.f32 %v3609, %v3689
    %v3691 = vand.u32 %v3108, 4294901760
    %3692 = vmatmul.f32.gmra.mxu0 %v3691
    %v3693 = vpop.f32.mrf.mxu0
    %v3694 = vadd.f32 %v3613, %v3693
    %v3695 = vand.u32 %v3111, 4294901760
    %3696 = vmatmul.f32.gmra.mxu0 %v3695
    %v3697 = vpop.f32.mrf.mxu0
    %v3698 = vadd.f32 %v3617, %v3697
    %v3699 = vand.u32 %v3114, 4294901760
    %3700 = vmatmul.f32.gmra.mxu0 %v3699
    %v3701 = vpop.f32.mrf.mxu0
    %v3702 = vadd.f32 %v3621, %v3701
    %v3703 = vand.u32 %v3117, 4294901760
    %3704 = vmatmul.f32.gmra.mxu0 %v3703
    %v3705 = vpop.f32.mrf.mxu0
    %v3706 = vadd.f32 %v3625, %v3705
    %v3707 = vand.u32 %v3120, 4294901760
    %3708 = vmatmul.f32.gmra.mxu0 %v3707
    %v3709 = vpop.f32.mrf.mxu0
    %v3710 = vadd.f32 %v3629, %v3709
    %v3711 = vand.u32 %v3123, 4294901760
    %3712 = vmatmul.f32.gmra.mxu0 %v3711
    %v3713 = vpop.f32.mrf.mxu0
    %v3714 = vadd.f32 %v3633, %v3713
    %v3715 = vand.u32 %v3126, 4294901760
    %3716 = vmatmul.f32.gmra.mxu0 %v3715
    %v3717 = vpop.f32.mrf.mxu0
    %v3718 = vadd.f32 %v3637, %v3717
    %v3719 = vand.u32 %v3129, 4294901760
    %3720 = vmatmul.f32.gmra.mxu0 %v3719
    %v3721 = vpop.f32.mrf.mxu0
    %v3722 = vadd.f32 %v3641, %v3721
    %v3723 = vand.u32 %v3132, 4294901760
    %3724 = vmatmul.f32.gmra.mxu0 %v3723
    %v3725 = vpop.f32.mrf.mxu0
    %v3726 = vadd.f32 %v3645, %v3725
    %v3727 = vand.u32 %v3135, 4294901760
    %3728 = vmatmul.f32.gmra.mxu0 %v3727
    %v3729 = vpop.f32.mrf.mxu0
    %v3730 = vadd.f32 %v3649, %v3729
    %v3731 = vand.u32 %v3138, 4294901760
    %3732 = vmatmul.f32.gmra.mxu0 %v3731
    %v3733 = vpop.f32.mrf.mxu0
    %v3734 = vadd.f32 %v3653, %v3733
    %v3735 = vand.u32 %v3141, 4294901760
    %3736 = vmatmul.f32.gmra.mxu0 %v3735
    %v3737 = vpop.f32.mrf.mxu0
    %v3738 = vadd.f32 %v3657, %v3737
    %v3739 = vand.u32 %v3144, 4294901760
    %3740 = vmatmul.f32.gmra.mxu0 %v3739
    %v3741 = vpop.f32.mrf.mxu0
    %v3742 = vadd.f32 %v3661, %v3741
    %3743 = vdwg.mxu0
    %v3744 = vmul.f32 %v3682, 0.015625
    %v3745 = vmul.f32 %v3686, 0.015625
    %v3746 = vmul.f32 %v3690, 0.015625
    %v3747 = vmul.f32 %v3694, 0.015625
    %v3748 = vmul.f32 %v3698, 0.015625
    %v3749 = vmul.f32 %v3702, 0.015625
    %v3750 = vmul.f32 %v3706, 0.015625
    %v3751 = vmul.f32 %v3710, 0.015625
    %v3752 = vmul.f32 %v3714, 0.015625
    %v3753 = vmul.f32 %v3718, 0.015625
    %v3754 = vmul.f32 %v3722, 0.015625
    %v3755 = vmul.f32 %v3726, 0.015625
    %v3756 = vmul.f32 %v3730, 0.015625
    %v3757 = vmul.f32 %v3734, 0.015625
    %v3758 = vmul.f32 %v3738, 0.015625
    %v3759 = vmul.f32 %v3742, 0.015625
    %v3760 = vmul.f32 %v3066, %v3066
    %v3761 = vmul.f32 %v3067, %v3067
    %v3762 = vmul.f32 %v3068, %v3068
    %v3763 = vmul.f32 %v3069, %v3069
    %v3764 = vmul.f32 %v3070, %v3070
    %v3765 = vmul.f32 %v3071, %v3071
    %v3766 = vmul.f32 %v3072, %v3072
    %v3767 = vmul.f32 %v3073, %v3073
    %v3768 = vmul.f32 %v3074, %v3074
    %v3769 = vmul.f32 %v3075, %v3075
    %v3770 = vmul.f32 %v3076, %v3076
    %v3771 = vmul.f32 %v3077, %v3077
    %v3772 = vmul.f32 %v3078, %v3078
    %v3773 = vmul.f32 %v3079, %v3079
    %v3774 = vmul.f32 %v3080, %v3080
    %v3775 = vmul.f32 %v3081, %v3081
    %v3776 = vsub.f32 %v3744, %v3760
    %v3777 = vsub.f32 %v3745, %v3761
    %v3778 = vsub.f32 %v3746, %v3762
    %v3779 = vsub.f32 %v3747, %v3763
    %v3780 = vsub.f32 %v3748, %v3764
    %v3781 = vsub.f32 %v3749, %v3765
    %v3782 = vsub.f32 %v3750, %v3766
    %v3783 = vsub.f32 %v3751, %v3767
    %v3784 = vsub.f32 %v3752, %v3768
    %v3785 = vsub.f32 %v3753, %v3769
    %v3786 = vsub.f32 %v3754, %v3770
    %v3787 = vsub.f32 %v3755, %v3771
    %v3788 = vsub.f32 %v3756, %v3772
    %v3789 = vsub.f32 %v3757, %v3773
    %v3790 = vsub.f32 %v3758, %v3774
    %v3791 = vsub.f32 %v3759, %v3775
    %v3792 = vadd.f32 %v3776, 1e-05
    %v3793 = vadd.f32 %v3777, 1e-05
    %v3794 = vadd.f32 %v3778, 1e-05
    %v3795 = vadd.f32 %v3779, 1e-05
    %v3796 = vadd.f32 %v3780, 1e-05
    %v3797 = vadd.f32 %v3781, 1e-05
    %v3798 = vadd.f32 %v3782, 1e-05
    %v3799 = vadd.f32 %v3783, 1e-05
    %v3800 = vadd.f32 %v3784, 1e-05
    %v3801 = vadd.f32 %v3785, 1e-05
    %v3802 = vadd.f32 %v3786, 1e-05
    %v3803 = vadd.f32 %v3787, 1e-05
    %v3804 = vadd.f32 %v3788, 1e-05
    %v3805 = vadd.f32 %v3789, 1e-05
    %v3806 = vadd.f32 %v3790, 1e-05
    %v3807 = vadd.f32 %v3791, 1e-05
    %v3808 = vrsqrt.pop %v3792
    %v3809 = vmul.f32 %v3808, %v3792
    %v3810 = vmul.f32 %v3809, %v3808
    %v3811 = vmul.f32 0.5, %v3810
    %v3812 = vsub.f32 1.5, %v3811
    %v3813 = vmul.f32 %v3808, %v3812
    %vm3814 = vweird.f32 %v3792
    %vm3815 = vweird.f32 %v3808
    %vm3816 = vmor %vm3814, %vm3815
    %v3817 = vsel %vm3816, %v3808, %v3813
    %v3818 = vrsqrt.pop %v3793
    %v3819 = vmul.f32 %v3818, %v3793
    %v3820 = vmul.f32 %v3819, %v3818
    %v3821 = vmul.f32 0.5, %v3820
    %v3822 = vsub.f32 1.5, %v3821
    %v3823 = vmul.f32 %v3818, %v3822
    %vm3824 = vweird.f32 %v3793
    %vm3825 = vweird.f32 %v3818
    %vm3826 = vmor %vm3824, %vm3825
    %v3827 = vsel %vm3826, %v3818, %v3823
    %v3828 = vrsqrt.pop %v3794
    %v3829 = vmul.f32 %v3828, %v3794
    %v3830 = vmul.f32 %v3829, %v3828
    %v3831 = vmul.f32 0.5, %v3830
    %v3832 = vsub.f32 1.5, %v3831
    %v3833 = vmul.f32 %v3828, %v3832
    %vm3834 = vweird.f32 %v3794
    %vm3835 = vweird.f32 %v3828
    %vm3836 = vmor %vm3834, %vm3835
    %v3837 = vsel %vm3836, %v3828, %v3833
    %v3838 = vrsqrt.pop %v3795
    %v3839 = vmul.f32 %v3838, %v3795
    %v3840 = vmul.f32 %v3839, %v3838
    %v3841 = vmul.f32 0.5, %v3840
    %v3842 = vsub.f32 1.5, %v3841
    %v3843 = vmul.f32 %v3838, %v3842
    %vm3844 = vweird.f32 %v3795
    %vm3845 = vweird.f32 %v3838
    %vm3846 = vmor %vm3844, %vm3845
    %v3847 = vsel %vm3846, %v3838, %v3843
    %v3848 = vrsqrt.pop %v3796
    %v3849 = vmul.f32 %v3848, %v3796
    %v3850 = vmul.f32 %v3849, %v3848
    %v3851 = vmul.f32 0.5, %v3850
    %v3852 = vsub.f32 1.5, %v3851
    %v3853 = vmul.f32 %v3848, %v3852
    %vm3854 = vweird.f32 %v3796
    %vm3855 = vweird.f32 %v3848
    %vm3856 = vmor %vm3854, %vm3855
    %v3857 = vsel %vm3856, %v3848, %v3853
    %v3858 = vrsqrt.pop %v3797
    %v3859 = vmul.f32 %v3858, %v3797
    %v3860 = vmul.f32 %v3859, %v3858
    %v3861 = vmul.f32 0.5, %v3860
    %v3862 = vsub.f32 1.5, %v3861
    %v3863 = vmul.f32 %v3858, %v3862
    %vm3864 = vweird.f32 %v3797
    %vm3865 = vweird.f32 %v3858
    %vm3866 = vmor %vm3864, %vm3865
    %v3867 = vsel %vm3866, %v3858, %v3863
    %v3868 = vrsqrt.pop %v3798
    %v3869 = vmul.f32 %v3868, %v3798
    %v3870 = vmul.f32 %v3869, %v3868
    %v3871 = vmul.f32 0.5, %v3870
    %v3872 = vsub.f32 1.5, %v3871
    %v3873 = vmul.f32 %v3868, %v3872
    %vm3874 = vweird.f32 %v3798
    %vm3875 = vweird.f32 %v3868
    %vm3876 = vmor %vm3874, %vm3875
    %v3877 = vsel %vm3876, %v3868, %v3873
    %v3878 = vrsqrt.pop %v3799
    %v3879 = vmul.f32 %v3878, %v3799
    %v3880 = vmul.f32 %v3879, %v3878
    %v3881 = vmul.f32 0.5, %v3880
    %v3882 = vsub.f32 1.5, %v3881
    %v3883 = vmul.f32 %v3878, %v3882
    %vm3884 = vweird.f32 %v3799
    %vm3885 = vweird.f32 %v3878
    %vm3886 = vmor %vm3884, %vm3885
    %v3887 = vsel %vm3886, %v3878, %v3883
    %v3888 = vrsqrt.pop %v3800
    %v3889 = vmul.f32 %v3888, %v3800
    %v3890 = vmul.f32 %v3889, %v3888
    %v3891 = vmul.f32 0.5, %v3890
    %v3892 = vsub.f32 1.5, %v3891
    %v3893 = vmul.f32 %v3888, %v3892
    %vm3894 = vweird.f32 %v3800
    %vm3895 = vweird.f32 %v3888
    %vm3896 = vmor %vm3894, %vm3895
    %v3897 = vsel %vm3896, %v3888, %v3893
    %v3898 = vrsqrt.pop %v3801
    %v3899 = vmul.f32 %v3898, %v3801
    %v3900 = vmul.f32 %v3899, %v3898
    %v3901 = vmul.f32 0.5, %v3900
    %v3902 = vsub.f32 1.5, %v3901
    %v3903 = vmul.f32 %v3898, %v3902
    %vm3904 = vweird.f32 %v3801
    %vm3905 = vweird.f32 %v3898
    %vm3906 = vmor %vm3904, %vm3905
    %v3907 = vsel %vm3906, %v3898, %v3903
    %v3908 = vrsqrt.pop %v3802
    %v3909 = vmul.f32 %v3908, %v3802
    %v3910 = vmul.f32 %v3909, %v3908
    %v3911 = vmul.f32 0.5, %v3910
    %v3912 = vsub.f32 1.5, %v3911
    %v3913 = vmul.f32 %v3908, %v3912
    %vm3914 = vweird.f32 %v3802
    %vm3915 = vweird.f32 %v3908
    %vm3916 = vmor %vm3914, %vm3915
    %v3917 = vsel %vm3916, %v3908, %v3913
    %v3918 = vrsqrt.pop %v3803
    %v3919 = vmul.f32 %v3918, %v3803
    %v3920 = vmul.f32 %v3919, %v3918
    %v3921 = vmul.f32 0.5, %v3920
    %v3922 = vsub.f32 1.5, %v3921
    %v3923 = vmul.f32 %v3918, %v3922
    %vm3924 = vweird.f32 %v3803
    %vm3925 = vweird.f32 %v3918
    %vm3926 = vmor %vm3924, %vm3925
    %v3927 = vsel %vm3926, %v3918, %v3923
    %v3928 = vrsqrt.pop %v3804
    %v3929 = vmul.f32 %v3928, %v3804
    %v3930 = vmul.f32 %v3929, %v3928
    %v3931 = vmul.f32 0.5, %v3930
    %v3932 = vsub.f32 1.5, %v3931
    %v3933 = vmul.f32 %v3928, %v3932
    %vm3934 = vweird.f32 %v3804
    %vm3935 = vweird.f32 %v3928
    %vm3936 = vmor %vm3934, %vm3935
    %v3937 = vsel %vm3936, %v3928, %v3933
    %v3938 = vrsqrt.pop %v3805
    %v3939 = vmul.f32 %v3938, %v3805
    %v3940 = vmul.f32 %v3939, %v3938
    %v3941 = vmul.f32 0.5, %v3940
    %v3942 = vsub.f32 1.5, %v3941
    %v3943 = vmul.f32 %v3938, %v3942
    %vm3944 = vweird.f32 %v3805
    %vm3945 = vweird.f32 %v3938
    %vm3946 = vmor %vm3944, %vm3945
    %v3947 = vsel %vm3946, %v3938, %v3943
    %v3948 = vrsqrt.pop %v3806
    %v3949 = vmul.f32 %v3948, %v3806
    %v3950 = vmul.f32 %v3949, %v3948
    %v3951 = vmul.f32 0.5, %v3950
    %v3952 = vsub.f32 1.5, %v3951
    %v3953 = vmul.f32 %v3948, %v3952
    %vm3954 = vweird.f32 %v3806
    %vm3955 = vweird.f32 %v3948
    %vm3956 = vmor %vm3954, %vm3955
    %v3957 = vsel %vm3956, %v3948, %v3953
    %v3958 = vrsqrt.pop %v3807
    %v3959 = vmul.f32 %v3958, %v3807
    %v3960 = vmul.f32 %v3959, %v3958
    %v3961 = vmul.f32 0.5, %v3960
    %v3962 = vsub.f32 1.5, %v3961
    %v3963 = vmul.f32 %v3958, %v3962
    %vm3964 = vweird.f32 %v3807
    %vm3965 = vweird.f32 %v3958
    %vm3966 = vmor %vm3964, %vm3965
    %v3967 = vsel %vm3966, %v3958, %v3963
    %v3968 = vmul.f32 %v3817, %v1852
    %v3969 = vmul.f32 %v3827, %v1854
    %v3970 = vmul.f32 %v3837, %v1856
    %v3971 = vmul.f32 %v3847, %v1858
    %v3972 = vmul.f32 %v3857, %v1860
    %v3973 = vmul.f32 %v3867, %v1862
    %v3974 = vmul.f32 %v3877, %v1864
    %v3975 = vmul.f32 %v3887, %v1866
    %v3976 = vmul.f32 %v3897, %v1868
    %v3977 = vmul.f32 %v3907, %v1870
    %v3978 = vmul.f32 %v3917, %v1872
    %v3979 = vmul.f32 %v3927, %v1874
    %v3980 = vmul.f32 %v3937, %v1876
    %v3981 = vmul.f32 %v3947, %v1878
    %v3982 = vmul.f32 %v3957, %v1880
    %v3983 = vmul.f32 %v3967, %v1882
    %v3984 = vmul.f32 %v3066, %v3968
    %v3985 = vmul.f32 %v3067, %v3969
    %v3986 = vmul.f32 %v3068, %v3970
    %v3987 = vmul.f32 %v3069, %v3971
    %v3988 = vmul.f32 %v3070, %v3972
    %v3989 = vmul.f32 %v3071, %v3973
    %v3990 = vmul.f32 %v3072, %v3974
    %v3991 = vmul.f32 %v3073, %v3975
    %v3992 = vmul.f32 %v3074, %v3976
    %v3993 = vmul.f32 %v3075, %v3977
    %v3994 = vmul.f32 %v3076, %v3978
    %v3995 = vmul.f32 %v3077, %v3979
    %v3996 = vmul.f32 %v3078, %v3980
    %v3997 = vmul.f32 %v3079, %v3981
    %v3998 = vmul.f32 %v3080, %v3982
    %v3999 = vmul.f32 %v3081, %v3983
    %4016 = vrot.lane.b32.xlu0 %v3984, 5
    %v4017 = vpop.permute.xlu0 %4016
    %4018 = vrot.lane.b32.xlu0 %v3985, 5
    %v4019 = vpop.permute.xlu0 %4018
    %4020 = vrot.lane.b32.xlu0 %v3986, 5
    %v4021 = vpop.permute.xlu0 %4020
    %4022 = vrot.lane.b32.xlu0 %v3987, 5
    %v4023 = vpop.permute.xlu0 %4022
    %4024 = vrot.lane.b32.xlu0 %v3988, 5
    %v4025 = vpop.permute.xlu0 %4024
    %4026 = vrot.lane.b32.xlu0 %v3989, 5
    %v4027 = vpop.permute.xlu0 %4026
    %4028 = vrot.lane.b32.xlu0 %v3990, 5
    %v4029 = vpop.permute.xlu0 %4028
    %4030 = vrot.lane.b32.xlu0 %v3991, 5
    %v4031 = vpop.permute.xlu0 %4030
    %4032 = vrot.lane.b32.xlu0 %v3992, 5
    %v4033 = vpop.permute.xlu0 %4032
    %4034 = vrot.lane.b32.xlu0 %v3993, 5
    %v4035 = vpop.permute.xlu0 %4034
    %4036 = vrot.lane.b32.xlu0 %v3994, 5
    %v4037 = vpop.permute.xlu0 %4036
    %4038 = vrot.lane.b32.xlu0 %v3995, 5
    %v4039 = vpop.permute.xlu0 %4038
    %4040 = vrot.lane.b32.xlu0 %v3996, 5
    %v4041 = vpop.permute.xlu0 %4040
    %4042 = vrot.lane.b32.xlu0 %v3997, 5
    %v4043 = vpop.permute.xlu0 %4042
    %4044 = vrot.lane.b32.xlu0 %v3998, 5
    %v4045 = vpop.permute.xlu0 %4044
    %4046 = vrot.lane.b32.xlu0 %v3999, 5
    %v4047 = vpop.permute.xlu0 %4046
    %v4064 = vsub.f32 %v39, %v4017
    %v4065 = vsub.f32 %v40, %v4019
    %v4066 = vsub.f32 %v41, %v4021
    %v4067 = vsub.f32 %v42, %v4023
    %v4068 = vsub.f32 %v43, %v4025
    %v4069 = vsub.f32 %v44, %v4027
    %v4070 = vsub.f32 %v45, %v4029
    %v4071 = vsub.f32 %v46, %v4031
    %v4072 = vsub.f32 %v47, %v4033
    %v4073 = vsub.f32 %v48, %v4035
    %v4074 = vsub.f32 %v49, %v4037
    %v4075 = vsub.f32 %v50, %v4039
    %v4076 = vsub.f32 %v51, %v4041
    %v4077 = vsub.f32 %v52, %v4043
    %v4078 = vsub.f32 %v53, %v4045
    %v4079 = vsub.f32 %v54, %v4047
    %4081 = vset.pattern.permute.xlu0 0
    %4082 = vperm.xlu0 %4081, %v3968
    %v4083 = vpop.permute.xlu0 %4082
    %4086 = vset.pattern.permute.xlu0 0
    %4087 = vperm.xlu0 %4086, %v3969
    %v4088 = vpop.permute.xlu0 %4087
    %4091 = vset.pattern.permute.xlu0 0
    %4092 = vperm.xlu0 %4091, %v3970
    %v4093 = vpop.permute.xlu0 %4092
    %4096 = vset.pattern.permute.xlu0 0
    %4097 = vperm.xlu0 %4096, %v3971
    %v4098 = vpop.permute.xlu0 %4097
    %4101 = vset.pattern.permute.xlu0 0
    %4102 = vperm.xlu0 %4101, %v3972
    %v4103 = vpop.permute.xlu0 %4102
    %4106 = vset.pattern.permute.xlu0 0
    %4107 = vperm.xlu0 %4106, %v3973
    %v4108 = vpop.permute.xlu0 %4107
    %4111 = vset.pattern.permute.xlu0 0
    %4112 = vperm.xlu0 %4111, %v3974
    %v4113 = vpop.permute.xlu0 %4112
    %4116 = vset.pattern.permute.xlu0 0
    %4117 = vperm.xlu0 %4116, %v3975
    %v4118 = vpop.permute.xlu0 %4117
    %4121 = vset.pattern.permute.xlu0 0
    %4122 = vperm.xlu0 %4121, %v3976
    %v4123 = vpop.permute.xlu0 %4122
    %4126 = vset.pattern.permute.xlu0 0
    %4127 = vperm.xlu0 %4126, %v3977
    %v4128 = vpop.permute.xlu0 %4127
    %4131 = vset.pattern.permute.xlu0 0
    %4132 = vperm.xlu0 %4131, %v3978
    %v4133 = vpop.permute.xlu0 %4132
    %4136 = vset.pattern.permute.xlu0 0
    %4137 = vperm.xlu0 %4136, %v3979
    %v4138 = vpop.permute.xlu0 %4137
    %4141 = vset.pattern.permute.xlu0 0
    %4142 = vperm.xlu0 %4141, %v3980
    %v4143 = vpop.permute.xlu0 %4142
    %4146 = vset.pattern.permute.xlu0 0
    %4147 = vperm.xlu0 %4146, %v3981
    %v4148 = vpop.permute.xlu0 %4147
    %4151 = vset.pattern.permute.xlu0 0
    %4152 = vperm.xlu0 %4151, %v3982
    %v4153 = vpop.permute.xlu0 %4152
    %4156 = vset.pattern.permute.xlu0 0
    %4157 = vperm.xlu0 %4156, %v3983
    %v4158 = vpop.permute.xlu0 %4157
    %v4160 = vmul.f32 %v2404, %v4083
    %v4161 = vmul.f32 %v2405, %v4088
    %v4162 = vmul.f32 %v2406, %v4093
    %v4163 = vmul.f32 %v2407, %v4098
    %v4164 = vmul.f32 %v2408, %v4103
    %v4165 = vmul.f32 %v2409, %v4108
    %v4166 = vmul.f32 %v2410, %v4113
    %v4167 = vmul.f32 %v2411, %v4118
    %v4168 = vmul.f32 %v2412, %v4123
    %v4169 = vmul.f32 %v2413, %v4128
    %v4170 = vmul.f32 %v2414, %v4133
    %v4171 = vmul.f32 %v2415, %v4138
    %v4172 = vmul.f32 %v2416, %v4143
    %v4173 = vmul.f32 %v2417, %v4148
    %v4174 = vmul.f32 %v2418, %v4153
    %v4175 = vmul.f32 %v2419, %v4158
    %4177 = vset.pattern.permute.xlu0 5
    %4178 = vperm.xlu0 %4177, %v4064
    %v4179 = vpop.permute.xlu0 %4178
    %4182 = vset.pattern.permute.xlu0 5
    %4183 = vperm.xlu0 %4182, %v4065
    %v4184 = vpop.permute.xlu0 %4183
    %4187 = vset.pattern.permute.xlu0 5
    %4188 = vperm.xlu0 %4187, %v4066
    %v4189 = vpop.permute.xlu0 %4188
    %4192 = vset.pattern.permute.xlu0 5
    %4193 = vperm.xlu0 %4192, %v4067
    %v4194 = vpop.permute.xlu0 %4193
    %4197 = vset.pattern.permute.xlu0 5
    %4198 = vperm.xlu0 %4197, %v4068
    %v4199 = vpop.permute.xlu0 %4198
    %4202 = vset.pattern.permute.xlu0 5
    %4203 = vperm.xlu0 %4202, %v4069
    %v4204 = vpop.permute.xlu0 %4203
    %4207 = vset.pattern.permute.xlu0 5
    %4208 = vperm.xlu0 %4207, %v4070
    %v4209 = vpop.permute.xlu0 %4208
    %4212 = vset.pattern.permute.xlu0 5
    %4213 = vperm.xlu0 %4212, %v4071
    %v4214 = vpop.permute.xlu0 %4213
    %4217 = vset.pattern.permute.xlu0 5
    %4218 = vperm.xlu0 %4217, %v4072
    %v4219 = vpop.permute.xlu0 %4218
    %4222 = vset.pattern.permute.xlu0 5
    %4223 = vperm.xlu0 %4222, %v4073
    %v4224 = vpop.permute.xlu0 %4223
    %4227 = vset.pattern.permute.xlu0 5
    %4228 = vperm.xlu0 %4227, %v4074
    %v4229 = vpop.permute.xlu0 %4228
    %4232 = vset.pattern.permute.xlu0 5
    %4233 = vperm.xlu0 %4232, %v4075
    %v4234 = vpop.permute.xlu0 %4233
    %4237 = vset.pattern.permute.xlu0 5
    %4238 = vperm.xlu0 %4237, %v4076
    %v4239 = vpop.permute.xlu0 %4238
    %4242 = vset.pattern.permute.xlu0 5
    %4243 = vperm.xlu0 %4242, %v4077
    %v4244 = vpop.permute.xlu0 %4243
    %4247 = vset.pattern.permute.xlu0 5
    %4248 = vperm.xlu0 %4247, %v4078
    %v4249 = vpop.permute.xlu0 %4248
    %4252 = vset.pattern.permute.xlu0 5
    %4253 = vperm.xlu0 %4252, %v4079
    %v4254 = vpop.permute.xlu0 %4253
    %v4256 = vadd.f32 %v4160, %v4179
    %v4257 = vadd.f32 %v4161, %v4184
    %v4258 = vadd.f32 %v4162, %v4189
    %v4259 = vadd.f32 %v4163, %v4194
    %v4260 = vadd.f32 %v4164, %v4199
    %v4261 = vadd.f32 %v4165, %v4204
    %v4262 = vadd.f32 %v4166, %v4209
    %v4263 = vadd.f32 %v4167, %v4214
    %v4264 = vadd.f32 %v4168, %v4219
    %v4265 = vadd.f32 %v4169, %v4224
    %v4266 = vadd.f32 %v4170, %v4229
    %v4267 = vadd.f32 %v4171, %v4234
    %v4268 = vadd.f32 %v4172, %v4239
    %v4269 = vadd.f32 %v4173, %v4244
    %v4270 = vadd.f32 %v4174, %v4249
    %v4271 = vadd.f32 %v4175, %v4254
    %v4272 = vld [vmem:[%s4] sm:$0xf]
    %v4273 = vld [vmem:[%s4 + $0x4] sm:$0xf]
    %v4274 = vld [vmem:[%s4 + $0x8] sm:$0xf]
    %v4275 = vld [vmem:[%s4 + $0xc] sm:$0xf]
    %v4276 = vld [vmem:[%s4 + $0x10] sm:$0xf]
    %v4277 = vld [vmem:[%s4 + $0x14] sm:$0xf]
    %v4278 = vld [vmem:[%s4 + $0x18] sm:$0xf]
    %v4279 = vld [vmem:[%s4 + $0x1c] sm:$0xf]
    %v4280 = vld [vmem:[%s4 + $0x20] sm:$0xf]
    %v4281 = vld [vmem:[%s4 + $0x24] sm:$0xf]
    %v4282 = vld [vmem:[%s4 + $0x28] sm:$0xf]
    %v4283 = vld [vmem:[%s4 + $0x2c] sm:$0xf]
    %v4284 = vld [vmem:[%s4 + $0x30] sm:$0xf]
    %v4285 = vld [vmem:[%s4 + $0x34] sm:$0xf]
    %v4286 = vld [vmem:[%s4 + $0x38] sm:$0xf]
    %v4287 = vld [vmem:[%s4 + $0x3c] sm:$0xf]
    %v4288 = vpack.c.bf16 %v4257, %v4256
    %v4289 = vpack.c.bf16 %v4259, %v4258
    %v4290 = vpack.c.bf16 %v4261, %v4260
    %v4291 = vpack.c.bf16 %v4263, %v4262
    %v4292 = vpack.c.bf16 %v4265, %v4264
    %v4293 = vpack.c.bf16 %v4267, %v4266
    %v4294 = vpack.c.bf16 %v4269, %v4268
    %v4295 = vpack.c.bf16 %v4271, %v4270
    %4296 = vset.pattern.permute.xlu0 2
    %4297 = vperm.xlu0 %4296, %v39
    %v4298 = vpop.permute.xlu0 %4297
    %4300 = vset.pattern.permute.xlu0 2
    %4301 = vperm.xlu0 %4300, %v40
    %v4302 = vpop.permute.xlu0 %4301
    %4304 = vset.pattern.permute.xlu0 2
    %4305 = vperm.xlu0 %4304, %v41
    %v4306 = vpop.permute.xlu0 %4305
    %4308 = vset.pattern.permute.xlu0 2
    %4309 = vperm.xlu0 %4308, %v42
    %v4310 = vpop.permute.xlu0 %4309
    %4312 = vset.pattern.permute.xlu0 2
    %4313 = vperm.xlu0 %4312, %v43
    %v4314 = vpop.permute.xlu0 %4313
    %4316 = vset.pattern.permute.xlu0 2
    %4317 = vperm.xlu0 %4316, %v44
    %v4318 = vpop.permute.xlu0 %4317
    %4320 = vset.pattern.permute.xlu0 2
    %4321 = vperm.xlu0 %4320, %v45
    %v4322 = vpop.permute.xlu0 %4321
    %4324 = vset.pattern.permute.xlu0 2
    %4325 = vperm.xlu0 %4324, %v46
    %v4326 = vpop.permute.xlu0 %4325
    %4328 = vset.pattern.permute.xlu0 2
    %4329 = vperm.xlu0 %4328, %v47
    %v4330 = vpop.permute.xlu0 %4329
    %4332 = vset.pattern.permute.xlu0 2
    %4333 = vperm.xlu0 %4332, %v48
    %v4334 = vpop.permute.xlu0 %4333
    %4336 = vset.pattern.permute.xlu0 2
    %4337 = vperm.xlu0 %4336, %v49
    %v4338 = vpop.permute.xlu0 %4337
    %4340 = vset.pattern.permute.xlu0 2
    %4341 = vperm.xlu0 %4340, %v50
    %v4342 = vpop.permute.xlu0 %4341
    %4344 = vset.pattern.permute.xlu0 2
    %4345 = vperm.xlu0 %4344, %v51
    %v4346 = vpop.permute.xlu0 %4345
    %4348 = vset.pattern.permute.xlu0 2
    %4349 = vperm.xlu0 %4348, %v52
    %v4350 = vpop.permute.xlu0 %4349
    %4352 = vset.pattern.permute.xlu0 2
    %4353 = vperm.xlu0 %4352, %v53
    %v4354 = vpop.permute.xlu0 %4353
    %4356 = vset.pattern.permute.xlu0 2
    %4357 = vperm.xlu0 %4356, %v54
    %v4358 = vpop.permute.xlu0 %4357
    %v4376 = vunpack.c.l.b16 %v4272
    %v4377 = vunpack.c.l.b16 %v4273
    %v4378 = vunpack.c.l.b16 %v4274
    %v4379 = vunpack.c.l.b16 %v4275
    %v4380 = vunpack.c.l.b16 %v4276
    %v4381 = vunpack.c.l.b16 %v4277
    %v4382 = vunpack.c.l.b16 %v4278
    %v4383 = vunpack.c.l.b16 %v4279
    %v4384 = vunpack.c.l.b16 %v4280
    %v4385 = vunpack.c.l.b16 %v4281
    %v4386 = vunpack.c.l.b16 %v4282
    %v4387 = vunpack.c.l.b16 %v4283
    %v4388 = vunpack.c.l.b16 %v4284
    %v4389 = vunpack.c.l.b16 %v4285
    %v4390 = vunpack.c.l.b16 %v4286
    %v4391 = vunpack.c.l.b16 %v4287
    %v4392 = vpack.c.b16 %v4377, %v4376
    %v4393 = vpack.c.b16 %v4379, %v4378
    %v4394 = vpack.c.b16 %v4381, %v4380
    %v4395 = vpack.c.b16 %v4383, %v4382
    %v4396 = vpack.c.b16 %v4385, %v4384
    %v4397 = vpack.c.b16 %v4387, %v4386
    %v4398 = vpack.c.b16 %v4389, %v4388
    %v4399 = vpack.c.b16 %v4391, %v4390
    %4408 = vmatpush.bf16.msra.mxu0 %v4295
    %4409 = vmatpush.bf16.msra.mxu0 %v4294
    %4410 = vmatpush.bf16.msra.mxu0 %v4293
    %4411 = vmatpush.bf16.msra.mxu0 %v4292
    %4412 = vmatpush.bf16.msra.mxu0 %v4291
    %4413 = vmatpush.bf16.msra.mxu0 %v4290
    %4414 = vmatpush.bf16.msra.mxu0 %v4289
    %4415 = vmatpush.bf16.msra.mxu0 %v4288
    %4416 = vmatmul.bf16.gmra.mxu0 %v4392
    %v4417 = vpop.f32.mrf.mxu0
    %v4418 = vadd.f32 %v4298, %v4417
    %v4419 = vpop.f32.mrf.mxu0
    %v4420 = vadd.f32 %v4302, %v4419
    %4421 = vmatmul.bf16.gmra.mxu0 %v4393
    %v4422 = vpop.f32.mrf.mxu0
    %v4423 = vadd.f32 %v4306, %v4422
    %v4424 = vpop.f32.mrf.mxu0
    %v4425 = vadd.f32 %v4310, %v4424
    %4426 = vmatmul.bf16.gmra.mxu0 %v4394
    %v4427 = vpop.f32.mrf.mxu0
    %v4428 = vadd.f32 %v4314, %v4427
    %v4429 = vpop.f32.mrf.mxu0
    %v4430 = vadd.f32 %v4318, %v4429
    %4431 = vmatmul.bf16.gmra.mxu0 %v4395
    %v4432 = vpop.f32.mrf.mxu0
    %v4433 = vadd.f32 %v4322, %v4432
    %v4434 = vpop.f32.mrf.mxu0
    %v4435 = vadd.f32 %v4326, %v4434
    %4436 = vmatmul.bf16.gmra.mxu0 %v4396
    %v4437 = vpop.f32.mrf.mxu0
    %v4438 = vadd.f32 %v4330, %v4437
    %v4439 = vpop.f32.mrf.mxu0
    %v4440 = vadd.f32 %v4334, %v4439
    %4441 = vmatmul.bf16.gmra.mxu0 %v4397
    %v4442 = vpop.f32.mrf.mxu0
    %v4443 = vadd.f32 %v4338, %v4442
    %v4444 = vpop.f32.mrf.mxu0
    %v4445 = vadd.f32 %v4342, %v4444
    %4446 = vmatmul.bf16.gmra.mxu0 %v4398
    %v4447 = vpop.f32.mrf.mxu0
    %v4448 = vadd.f32 %v4346, %v4447
    %v4449 = vpop.f32.mrf.mxu0
    %v4450 = vadd.f32 %v4350, %v4449
    %4451 = vmatmul.bf16.gmra.mxu0 %v4399
    %v4452 = vpop.f32.mrf.mxu0
    %v4453 = vadd.f32 %v4354, %v4452
    %v4454 = vpop.f32.mrf.mxu0
    %v4455 = vadd.f32 %v4358, %v4454
    %4456 = vdwg.mxu0
    %v4457 = vmul.f32 %v4418, 0.01
    %v4458 = vmul.f32 %v4420, 0.01
    %v4459 = vmul.f32 %v4423, 0.01
    %v4460 = vmul.f32 %v4425, 0.01
    %v4461 = vmul.f32 %v4428, 0.01
    %v4462 = vmul.f32 %v4430, 0.01
    %v4463 = vmul.f32 %v4433, 0.01
    %v4464 = vmul.f32 %v4435, 0.01
    %v4465 = vmul.f32 %v4438, 0.01
    %v4466 = vmul.f32 %v4440, 0.01
    %v4467 = vmul.f32 %v4443, 0.01
    %v4468 = vmul.f32 %v4445, 0.01
    %v4469 = vmul.f32 %v4448, 0.01
    %v4470 = vmul.f32 %v4450, 0.01
    %v4471 = vmul.f32 %v4453, 0.01
    %v4472 = vmul.f32 %v4455, 0.01
    %v4473 = vmax.f32 %v4418, %v4457
    %v4474 = vmax.f32 %v4420, %v4458
    %v4475 = vmax.f32 %v4423, %v4459
    %v4476 = vmax.f32 %v4425, %v4460
    %v4477 = vmax.f32 %v4428, %v4461
    %v4478 = vmax.f32 %v4430, %v4462
    %v4479 = vmax.f32 %v4433, %v4463
    %v4480 = vmax.f32 %v4435, %v4464
    %v4481 = vmax.f32 %v4438, %v4465
    %v4482 = vmax.f32 %v4440, %v4466
    %v4483 = vmax.f32 %v4443, %v4467
    %v4484 = vmax.f32 %v4445, %v4468
    %v4485 = vmax.f32 %v4448, %v4469
    %v4486 = vmax.f32 %v4450, %v4470
    %v4487 = vmax.f32 %v4453, %v4471
    %v4488 = vmax.f32 %v4455, %v4472
    %v4490 = vsel %vm302, %v4473, 0
    %v4493 = vsel %vm302, %v4474, 0
    %v4496 = vsel %vm302, %v4475, 0
    %v4499 = vsel %vm302, %v4476, 0
    %v4502 = vsel %vm302, %v4477, 0
    %v4505 = vsel %vm302, %v4478, 0
    %v4508 = vsel %vm302, %v4479, 0
    %v4511 = vsel %vm302, %v4480, 0
    %v4514 = vsel %vm302, %v4481, 0
    %v4517 = vsel %vm302, %v4482, 0
    %v4520 = vsel %vm302, %v4483, 0
    %v4523 = vsel %vm302, %v4484, 0
    %v4526 = vsel %vm302, %v4485, 0
    %v4529 = vsel %vm302, %v4486, 0
    %v4532 = vsel %vm302, %v4487, 0
    %v4535 = vsel %vm302, %v4488, 0
    %4537 = vmatpush.msra.mxu0 0.0
    %4538 = vmatpush.msra.mxu0 0.0
    %4539 = vmatpush.msra.mxu0 0.0
    %4540 = vmatpush.msra.mxu0 0.0
    %4541 = vmatpush.msra.mxu0 0.0
    %4542 = vmatpush.msra.mxu0 0.0
    %4543 = vmatpush.msra.mxu0 0.0
    %4544 = vmatpush.msra.mxu0 0.0
    %4545 = vmatpush.msra.mxu0 1.0
    %4546 = vmatpush.msra.mxu0 1.0
    %4547 = vmatpush.msra.mxu0 1.0
    %4548 = vmatpush.msra.mxu0 1.0
    %4549 = vmatpush.msra.mxu0 1.0
    %4550 = vmatpush.msra.mxu0 1.0
    %4551 = vmatpush.msra.mxu0 1.0
    %4552 = vmatpush.msra.mxu0 1.0
    %v4553 = vand.u32 %v4490, 4294901760
    %v4554 = vsub.f32 %v4490, %v4553
    %v4555 = vand.u32 %v4554, 4294901760
    %v4556 = vsub.f32 %v4554, %v4555
    %v4557 = vand.u32 %v4556, 4294901760
    %4558 = vmatmul.f32.gmra.mxu0 %v4557
    %v4559 = vpop.f32.mrf.mxu0
    %v4560 = vadd.f32 0.0, %v4559
    %v4561 = vand.u32 %v4493, 4294901760
    %v4562 = vsub.f32 %v4493, %v4561
    %v4563 = vand.u32 %v4562, 4294901760
    %v4564 = vsub.f32 %v4562, %v4563
    %v4565 = vand.u32 %v4564, 4294901760
    %4566 = vmatmul.f32.gmra.mxu0 %v4565
    %v4567 = vpop.f32.mrf.mxu0
    %v4568 = vadd.f32 0.0, %v4567
    %v4569 = vand.u32 %v4496, 4294901760
    %v4570 = vsub.f32 %v4496, %v4569
    %v4571 = vand.u32 %v4570, 4294901760
    %v4572 = vsub.f32 %v4570, %v4571
    %v4573 = vand.u32 %v4572, 4294901760
    %4574 = vmatmul.f32.gmra.mxu0 %v4573
    %v4575 = vpop.f32.mrf.mxu0
    %v4576 = vadd.f32 0.0, %v4575
    %v4577 = vand.u32 %v4499, 4294901760
    %v4578 = vsub.f32 %v4499, %v4577
    %v4579 = vand.u32 %v4578, 4294901760
    %v4580 = vsub.f32 %v4578, %v4579
    %v4581 = vand.u32 %v4580, 4294901760
    %4582 = vmatmul.f32.gmra.mxu0 %v4581
    %v4583 = vpop.f32.mrf.mxu0
    %v4584 = vadd.f32 0.0, %v4583
    %v4585 = vand.u32 %v4502, 4294901760
    %v4586 = vsub.f32 %v4502, %v4585
    %v4587 = vand.u32 %v4586, 4294901760
    %v4588 = vsub.f32 %v4586, %v4587
    %v4589 = vand.u32 %v4588, 4294901760
    %4590 = vmatmul.f32.gmra.mxu0 %v4589
    %v4591 = vpop.f32.mrf.mxu0
    %v4592 = vadd.f32 0.0, %v4591
    %v4593 = vand.u32 %v4505, 4294901760
    %v4594 = vsub.f32 %v4505, %v4593
    %v4595 = vand.u32 %v4594, 4294901760
    %v4596 = vsub.f32 %v4594, %v4595
    %v4597 = vand.u32 %v4596, 4294901760
    %4598 = vmatmul.f32.gmra.mxu0 %v4597
    %v4599 = vpop.f32.mrf.mxu0
    %v4600 = vadd.f32 0.0, %v4599
    %v4601 = vand.u32 %v4508, 4294901760
    %v4602 = vsub.f32 %v4508, %v4601
    %v4603 = vand.u32 %v4602, 4294901760
    %v4604 = vsub.f32 %v4602, %v4603
    %v4605 = vand.u32 %v4604, 4294901760
    %4606 = vmatmul.f32.gmra.mxu0 %v4605
    %v4607 = vpop.f32.mrf.mxu0
    %v4608 = vadd.f32 0.0, %v4607
    %v4609 = vand.u32 %v4511, 4294901760
    %v4610 = vsub.f32 %v4511, %v4609
    %v4611 = vand.u32 %v4610, 4294901760
    %v4612 = vsub.f32 %v4610, %v4611
    %v4613 = vand.u32 %v4612, 4294901760
    %4614 = vmatmul.f32.gmra.mxu0 %v4613
    %v4615 = vpop.f32.mrf.mxu0
    %v4616 = vadd.f32 0.0, %v4615
    %v4617 = vand.u32 %v4514, 4294901760
    %v4618 = vsub.f32 %v4514, %v4617
    %v4619 = vand.u32 %v4618, 4294901760
    %v4620 = vsub.f32 %v4618, %v4619
    %v4621 = vand.u32 %v4620, 4294901760
    %4622 = vmatmul.f32.gmra.mxu0 %v4621
    %v4623 = vpop.f32.mrf.mxu0
    %v4624 = vadd.f32 0.0, %v4623
    %v4625 = vand.u32 %v4517, 4294901760
    %v4626 = vsub.f32 %v4517, %v4625
    %v4627 = vand.u32 %v4626, 4294901760
    %v4628 = vsub.f32 %v4626, %v4627
    %v4629 = vand.u32 %v4628, 4294901760
    %4630 = vmatmul.f32.gmra.mxu0 %v4629
    %v4631 = vpop.f32.mrf.mxu0
    %v4632 = vadd.f32 0.0, %v4631
    %v4633 = vand.u32 %v4520, 4294901760
    %v4634 = vsub.f32 %v4520, %v4633
    %v4635 = vand.u32 %v4634, 4294901760
    %v4636 = vsub.f32 %v4634, %v4635
    %v4637 = vand.u32 %v4636, 4294901760
    %4638 = vmatmul.f32.gmra.mxu0 %v4637
    %v4639 = vpop.f32.mrf.mxu0
    %v4640 = vadd.f32 0.0, %v4639
    %v4641 = vand.u32 %v4523, 4294901760
    %v4642 = vsub.f32 %v4523, %v4641
    %v4643 = vand.u32 %v4642, 4294901760
    %v4644 = vsub.f32 %v4642, %v4643
    %v4645 = vand.u32 %v4644, 4294901760
    %4646 = vmatmul.f32.gmra.mxu0 %v4645
    %v4647 = vpop.f32.mrf.mxu0
    %v4648 = vadd.f32 0.0, %v4647
    %v4649 = vand.u32 %v4526, 4294901760
    %v4650 = vsub.f32 %v4526, %v4649
    %v4651 = vand.u32 %v4650, 4294901760
    %v4652 = vsub.f32 %v4650, %v4651
    %v4653 = vand.u32 %v4652, 4294901760
    %4654 = vmatmul.f32.gmra.mxu0 %v4653
    %v4655 = vpop.f32.mrf.mxu0
    %v4656 = vadd.f32 0.0, %v4655
    %v4657 = vand.u32 %v4529, 4294901760
    %v4658 = vsub.f32 %v4529, %v4657
    %v4659 = vand.u32 %v4658, 4294901760
    %v4660 = vsub.f32 %v4658, %v4659
    %v4661 = vand.u32 %v4660, 4294901760
    %4662 = vmatmul.f32.gmra.mxu0 %v4661
    %v4663 = vpop.f32.mrf.mxu0
    %v4664 = vadd.f32 0.0, %v4663
    %v4665 = vand.u32 %v4532, 4294901760
    %v4666 = vsub.f32 %v4532, %v4665
    %v4667 = vand.u32 %v4666, 4294901760
    %v4668 = vsub.f32 %v4666, %v4667
    %v4669 = vand.u32 %v4668, 4294901760
    %4670 = vmatmul.f32.gmra.mxu0 %v4669
    %v4671 = vpop.f32.mrf.mxu0
    %v4672 = vadd.f32 0.0, %v4671
    %v4673 = vand.u32 %v4535, 4294901760
    %v4674 = vsub.f32 %v4535, %v4673
    %v4675 = vand.u32 %v4674, 4294901760
    %v4676 = vsub.f32 %v4674, %v4675
    %v4677 = vand.u32 %v4676, 4294901760
    %4678 = vmatmul.f32.gmra.mxu0 %v4677
    %v4679 = vpop.f32.mrf.mxu0
    %v4680 = vadd.f32 0.0, %v4679
    %4681 = vdwg.mxu0
    %4682 = vmatpush.msra.mxu0 0.0
    %4683 = vmatpush.msra.mxu0 0.0
    %4684 = vmatpush.msra.mxu0 0.0
    %4685 = vmatpush.msra.mxu0 0.0
    %4686 = vmatpush.msra.mxu0 0.0
    %4687 = vmatpush.msra.mxu0 0.0
    %4688 = vmatpush.msra.mxu0 0.0
    %4689 = vmatpush.msra.mxu0 0.0
    %4690 = vmatpush.msra.mxu0 0.0
    %4691 = vmatpush.msra.mxu0 0.0
    %4692 = vmatpush.msra.mxu0 0.0
    %4693 = vmatpush.msra.mxu0 0.0
    %4694 = vmatpush.msra.mxu0 0.0
    %4695 = vmatpush.msra.mxu0 0.0
    %4696 = vmatpush.msra.mxu0 0.0
    %4697 = vmatpush.msra.mxu0 0.0
    %v4698 = vand.u32 %v4490, 4294901760
    %4699 = vmatmul.f32.gmra.mxu0 %v4698
    %v4700 = vpop.f32.mrf.mxu0
    %v4701 = vadd.f32 %v4560, %v4700
    %v4702 = vand.u32 %v4493, 4294901760
    %4703 = vmatmul.f32.gmra.mxu0 %v4702
    %v4704 = vpop.f32.mrf.mxu0
    %v4705 = vadd.f32 %v4568, %v4704
    %v4706 = vand.u32 %v4496, 4294901760
    %4707 = vmatmul.f32.gmra.mxu0 %v4706
    %v4708 = vpop.f32.mrf.mxu0
    %v4709 = vadd.f32 %v4576, %v4708
    %v4710 = vand.u32 %v4499, 4294901760
    %4711 = vmatmul.f32.gmra.mxu0 %v4710
    %v4712 = vpop.f32.mrf.mxu0
    %v4713 = vadd.f32 %v4584, %v4712
    %v4714 = vand.u32 %v4502, 4294901760
    %4715 = vmatmul.f32.gmra.mxu0 %v4714
    %v4716 = vpop.f32.mrf.mxu0
    %v4717 = vadd.f32 %v4592, %v4716
    %v4718 = vand.u32 %v4505, 4294901760
    %4719 = vmatmul.f32.gmra.mxu0 %v4718
    %v4720 = vpop.f32.mrf.mxu0
    %v4721 = vadd.f32 %v4600, %v4720
    %v4722 = vand.u32 %v4508, 4294901760
    %4723 = vmatmul.f32.gmra.mxu0 %v4722
    %v4724 = vpop.f32.mrf.mxu0
    %v4725 = vadd.f32 %v4608, %v4724
    %v4726 = vand.u32 %v4511, 4294901760
    %4727 = vmatmul.f32.gmra.mxu0 %v4726
    %v4728 = vpop.f32.mrf.mxu0
    %v4729 = vadd.f32 %v4616, %v4728
    %v4730 = vand.u32 %v4514, 4294901760
    %4731 = vmatmul.f32.gmra.mxu0 %v4730
    %v4732 = vpop.f32.mrf.mxu0
    %v4733 = vadd.f32 %v4624, %v4732
    %v4734 = vand.u32 %v4517, 4294901760
    %4735 = vmatmul.f32.gmra.mxu0 %v4734
    %v4736 = vpop.f32.mrf.mxu0
    %v4737 = vadd.f32 %v4632, %v4736
    %v4738 = vand.u32 %v4520, 4294901760
    %4739 = vmatmul.f32.gmra.mxu0 %v4738
    %v4740 = vpop.f32.mrf.mxu0
    %v4741 = vadd.f32 %v4640, %v4740
    %v4742 = vand.u32 %v4523, 4294901760
    %4743 = vmatmul.f32.gmra.mxu0 %v4742
    %v4744 = vpop.f32.mrf.mxu0
    %v4745 = vadd.f32 %v4648, %v4744
    %v4746 = vand.u32 %v4526, 4294901760
    %4747 = vmatmul.f32.gmra.mxu0 %v4746
    %v4748 = vpop.f32.mrf.mxu0
    %v4749 = vadd.f32 %v4656, %v4748
    %v4750 = vand.u32 %v4529, 4294901760
    %4751 = vmatmul.f32.gmra.mxu0 %v4750
    %v4752 = vpop.f32.mrf.mxu0
    %v4753 = vadd.f32 %v4664, %v4752
    %v4754 = vand.u32 %v4532, 4294901760
    %4755 = vmatmul.f32.gmra.mxu0 %v4754
    %v4756 = vpop.f32.mrf.mxu0
    %v4757 = vadd.f32 %v4672, %v4756
    %v4758 = vand.u32 %v4535, 4294901760
    %4759 = vmatmul.f32.gmra.mxu0 %v4758
    %v4760 = vpop.f32.mrf.mxu0
    %v4761 = vadd.f32 %v4680, %v4760
    %4762 = vdwg.mxu0
    %4763 = vmatpush.msra.mxu0 0.0
    %4764 = vmatpush.msra.mxu0 0.0
    %4765 = vmatpush.msra.mxu0 0.0
    %4766 = vmatpush.msra.mxu0 0.0
    %4767 = vmatpush.msra.mxu0 0.0
    %4768 = vmatpush.msra.mxu0 0.0
    %4769 = vmatpush.msra.mxu0 0.0
    %4770 = vmatpush.msra.mxu0 0.0
    %4771 = vmatpush.msra.mxu0 0.0
    %4772 = vmatpush.msra.mxu0 0.0
    %4773 = vmatpush.msra.mxu0 0.0
    %4774 = vmatpush.msra.mxu0 0.0
    %4775 = vmatpush.msra.mxu0 0.0
    %4776 = vmatpush.msra.mxu0 0.0
    %4777 = vmatpush.msra.mxu0 0.0
    %4778 = vmatpush.msra.mxu0 0.0
    %v4779 = vand.u32 %v4490, 4294901760
    %v4780 = vsub.f32 %v4490, %v4779
    %4781 = vmatmul.f32.gmra.mxu0 %v4780
    %v4782 = vpop.f32.mrf.mxu0
    %v4783 = vadd.f32 %v4701, %v4782
    %v4784 = vand.u32 %v4493, 4294901760
    %v4785 = vsub.f32 %v4493, %v4784
    %4786 = vmatmul.f32.gmra.mxu0 %v4785
    %v4787 = vpop.f32.mrf.mxu0
    %v4788 = vadd.f32 %v4705, %v4787
    %v4789 = vand.u32 %v4496, 4294901760
    %v4790 = vsub.f32 %v4496, %v4789
    %4791 = vmatmul.f32.gmra.mxu0 %v4790
    %v4792 = vpop.f32.mrf.mxu0
    %v4793 = vadd.f32 %v4709, %v4792
    %v4794 = vand.u32 %v4499, 4294901760
    %v4795 = vsub.f32 %v4499, %v4794
    %4796 = vmatmul.f32.gmra.mxu0 %v4795
    %v4797 = vpop.f32.mrf.mxu0
    %v4798 = vadd.f32 %v4713, %v4797
    %v4799 = vand.u32 %v4502, 4294901760
    %v4800 = vsub.f32 %v4502, %v4799
    %4801 = vmatmul.f32.gmra.mxu0 %v4800
    %v4802 = vpop.f32.mrf.mxu0
    %v4803 = vadd.f32 %v4717, %v4802
    %v4804 = vand.u32 %v4505, 4294901760
    %v4805 = vsub.f32 %v4505, %v4804
    %4806 = vmatmul.f32.gmra.mxu0 %v4805
    %v4807 = vpop.f32.mrf.mxu0
    %v4808 = vadd.f32 %v4721, %v4807
    %v4809 = vand.u32 %v4508, 4294901760
    %v4810 = vsub.f32 %v4508, %v4809
    %4811 = vmatmul.f32.gmra.mxu0 %v4810
    %v4812 = vpop.f32.mrf.mxu0
    %v4813 = vadd.f32 %v4725, %v4812
    %v4814 = vand.u32 %v4511, 4294901760
    %v4815 = vsub.f32 %v4511, %v4814
    %4816 = vmatmul.f32.gmra.mxu0 %v4815
    %v4817 = vpop.f32.mrf.mxu0
    %v4818 = vadd.f32 %v4729, %v4817
    %v4819 = vand.u32 %v4514, 4294901760
    %v4820 = vsub.f32 %v4514, %v4819
    %4821 = vmatmul.f32.gmra.mxu0 %v4820
    %v4822 = vpop.f32.mrf.mxu0
    %v4823 = vadd.f32 %v4733, %v4822
    %v4824 = vand.u32 %v4517, 4294901760
    %v4825 = vsub.f32 %v4517, %v4824
    %4826 = vmatmul.f32.gmra.mxu0 %v4825
    %v4827 = vpop.f32.mrf.mxu0
    %v4828 = vadd.f32 %v4737, %v4827
    %v4829 = vand.u32 %v4520, 4294901760
    %v4830 = vsub.f32 %v4520, %v4829
    %4831 = vmatmul.f32.gmra.mxu0 %v4830
    %v4832 = vpop.f32.mrf.mxu0
    %v4833 = vadd.f32 %v4741, %v4832
    %v4834 = vand.u32 %v4523, 4294901760
    %v4835 = vsub.f32 %v4523, %v4834
    %4836 = vmatmul.f32.gmra.mxu0 %v4835
    %v4837 = vpop.f32.mrf.mxu0
    %v4838 = vadd.f32 %v4745, %v4837
    %v4839 = vand.u32 %v4526, 4294901760
    %v4840 = vsub.f32 %v4526, %v4839
    %4841 = vmatmul.f32.gmra.mxu0 %v4840
    %v4842 = vpop.f32.mrf.mxu0
    %v4843 = vadd.f32 %v4749, %v4842
    %v4844 = vand.u32 %v4529, 4294901760
    %v4845 = vsub.f32 %v4529, %v4844
    %4846 = vmatmul.f32.gmra.mxu0 %v4845
    %v4847 = vpop.f32.mrf.mxu0
    %v4848 = vadd.f32 %v4753, %v4847
    %v4849 = vand.u32 %v4532, 4294901760
    %v4850 = vsub.f32 %v4532, %v4849
    %4851 = vmatmul.f32.gmra.mxu0 %v4850
    %v4852 = vpop.f32.mrf.mxu0
    %v4853 = vadd.f32 %v4757, %v4852
    %v4854 = vand.u32 %v4535, 4294901760
    %v4855 = vsub.f32 %v4535, %v4854
    %4856 = vmatmul.f32.gmra.mxu0 %v4855
    %v4857 = vpop.f32.mrf.mxu0
    %v4858 = vadd.f32 %v4761, %v4857
    %4859 = vdwg.mxu0
    %4860 = vmatpush.msra.mxu0 0.0
    %4861 = vmatpush.msra.mxu0 0.0
    %4862 = vmatpush.msra.mxu0 0.0
    %4863 = vmatpush.msra.mxu0 0.0
    %4864 = vmatpush.msra.mxu0 0.0
    %4865 = vmatpush.msra.mxu0 0.0
    %4866 = vmatpush.msra.mxu0 0.0
    %4867 = vmatpush.msra.mxu0 0.0
    %4868 = vmatpush.msra.mxu0 1.0
    %4869 = vmatpush.msra.mxu0 1.0
    %4870 = vmatpush.msra.mxu0 1.0
    %4871 = vmatpush.msra.mxu0 1.0
    %4872 = vmatpush.msra.mxu0 1.0
    %4873 = vmatpush.msra.mxu0 1.0
    %4874 = vmatpush.msra.mxu0 1.0
    %4875 = vmatpush.msra.mxu0 1.0
    %v4876 = vand.u32 %v4490, 4294901760
    %v4877 = vsub.f32 %v4490, %v4876
    %v4878 = vand.u32 %v4877, 4294901760
    %4879 = vmatmul.f32.gmra.mxu0 %v4878
    %v4880 = vpop.f32.mrf.mxu0
    %v4881 = vadd.f32 %v4783, %v4880
    %v4882 = vand.u32 %v4493, 4294901760
    %v4883 = vsub.f32 %v4493, %v4882
    %v4884 = vand.u32 %v4883, 4294901760
    %4885 = vmatmul.f32.gmra.mxu0 %v4884
    %v4886 = vpop.f32.mrf.mxu0
    %v4887 = vadd.f32 %v4788, %v4886
    %v4888 = vand.u32 %v4496, 4294901760
    %v4889 = vsub.f32 %v4496, %v4888
    %v4890 = vand.u32 %v4889, 4294901760
    %4891 = vmatmul.f32.gmra.mxu0 %v4890
    %v4892 = vpop.f32.mrf.mxu0
    %v4893 = vadd.f32 %v4793, %v4892
    %v4894 = vand.u32 %v4499, 4294901760
    %v4895 = vsub.f32 %v4499, %v4894
    %v4896 = vand.u32 %v4895, 4294901760
    %4897 = vmatmul.f32.gmra.mxu0 %v4896
    %v4898 = vpop.f32.mrf.mxu0
    %v4899 = vadd.f32 %v4798, %v4898
    %v4900 = vand.u32 %v4502, 4294901760
    %v4901 = vsub.f32 %v4502, %v4900
    %v4902 = vand.u32 %v4901, 4294901760
    %4903 = vmatmul.f32.gmra.mxu0 %v4902
    %v4904 = vpop.f32.mrf.mxu0
    %v4905 = vadd.f32 %v4803, %v4904
    %v4906 = vand.u32 %v4505, 4294901760
    %v4907 = vsub.f32 %v4505, %v4906
    %v4908 = vand.u32 %v4907, 4294901760
    %4909 = vmatmul.f32.gmra.mxu0 %v4908
    %v4910 = vpop.f32.mrf.mxu0
    %v4911 = vadd.f32 %v4808, %v4910
    %v4912 = vand.u32 %v4508, 4294901760
    %v4913 = vsub.f32 %v4508, %v4912
    %v4914 = vand.u32 %v4913, 4294901760
    %4915 = vmatmul.f32.gmra.mxu0 %v4914
    %v4916 = vpop.f32.mrf.mxu0
    %v4917 = vadd.f32 %v4813, %v4916
    %v4918 = vand.u32 %v4511, 4294901760
    %v4919 = vsub.f32 %v4511, %v4918
    %v4920 = vand.u32 %v4919, 4294901760
    %4921 = vmatmul.f32.gmra.mxu0 %v4920
    %v4922 = vpop.f32.mrf.mxu0
    %v4923 = vadd.f32 %v4818, %v4922
    %v4924 = vand.u32 %v4514, 4294901760
    %v4925 = vsub.f32 %v4514, %v4924
    %v4926 = vand.u32 %v4925, 4294901760
    %4927 = vmatmul.f32.gmra.mxu0 %v4926
    %v4928 = vpop.f32.mrf.mxu0
    %v4929 = vadd.f32 %v4823, %v4928
    %v4930 = vand.u32 %v4517, 4294901760
    %v4931 = vsub.f32 %v4517, %v4930
    %v4932 = vand.u32 %v4931, 4294901760
    %4933 = vmatmul.f32.gmra.mxu0 %v4932
    %v4934 = vpop.f32.mrf.mxu0
    %v4935 = vadd.f32 %v4828, %v4934
    %v4936 = vand.u32 %v4520, 4294901760
    %v4937 = vsub.f32 %v4520, %v4936
    %v4938 = vand.u32 %v4937, 4294901760
    %4939 = vmatmul.f32.gmra.mxu0 %v4938
    %v4940 = vpop.f32.mrf.mxu0
    %v4941 = vadd.f32 %v4833, %v4940
    %v4942 = vand.u32 %v4523, 4294901760
    %v4943 = vsub.f32 %v4523, %v4942
    %v4944 = vand.u32 %v4943, 4294901760
    %4945 = vmatmul.f32.gmra.mxu0 %v4944
    %v4946 = vpop.f32.mrf.mxu0
    %v4947 = vadd.f32 %v4838, %v4946
    %v4948 = vand.u32 %v4526, 4294901760
    %v4949 = vsub.f32 %v4526, %v4948
    %v4950 = vand.u32 %v4949, 4294901760
    %4951 = vmatmul.f32.gmra.mxu0 %v4950
    %v4952 = vpop.f32.mrf.mxu0
    %v4953 = vadd.f32 %v4843, %v4952
    %v4954 = vand.u32 %v4529, 4294901760
    %v4955 = vsub.f32 %v4529, %v4954
    %v4956 = vand.u32 %v4955, 4294901760
    %4957 = vmatmul.f32.gmra.mxu0 %v4956
    %v4958 = vpop.f32.mrf.mxu0
    %v4959 = vadd.f32 %v4848, %v4958
    %v4960 = vand.u32 %v4532, 4294901760
    %v4961 = vsub.f32 %v4532, %v4960
    %v4962 = vand.u32 %v4961, 4294901760
    %4963 = vmatmul.f32.gmra.mxu0 %v4962
    %v4964 = vpop.f32.mrf.mxu0
    %v4965 = vadd.f32 %v4853, %v4964
    %v4966 = vand.u32 %v4535, 4294901760
    %v4967 = vsub.f32 %v4535, %v4966
    %v4968 = vand.u32 %v4967, 4294901760
    %4969 = vmatmul.f32.gmra.mxu0 %v4968
    %v4970 = vpop.f32.mrf.mxu0
    %v4971 = vadd.f32 %v4858, %v4970
    %4972 = vdwg.mxu0
    %4973 = vmatpush.msra.mxu0 0.0
    %4974 = vmatpush.msra.mxu0 0.0
    %4975 = vmatpush.msra.mxu0 0.0
    %4976 = vmatpush.msra.mxu0 0.0
    %4977 = vmatpush.msra.mxu0 0.0
    %4978 = vmatpush.msra.mxu0 0.0
    %4979 = vmatpush.msra.mxu0 0.0
    %4980 = vmatpush.msra.mxu0 0.0
    %4981 = vmatpush.msra.mxu0 0.0
    %4982 = vmatpush.msra.mxu0 0.0
    %4983 = vmatpush.msra.mxu0 0.0
    %4984 = vmatpush.msra.mxu0 0.0
    %4985 = vmatpush.msra.mxu0 0.0
    %4986 = vmatpush.msra.mxu0 0.0
    %4987 = vmatpush.msra.mxu0 0.0
    %4988 = vmatpush.msra.mxu0 0.0
    %v4989 = vand.u32 %v4490, 4294901760
    %4990 = vmatmul.f32.gmra.mxu0 %v4989
    %v4991 = vpop.f32.mrf.mxu0
    %v4992 = vadd.f32 %v4881, %v4991
    %v4993 = vand.u32 %v4493, 4294901760
    %4994 = vmatmul.f32.gmra.mxu0 %v4993
    %v4995 = vpop.f32.mrf.mxu0
    %v4996 = vadd.f32 %v4887, %v4995
    %v4997 = vand.u32 %v4496, 4294901760
    %4998 = vmatmul.f32.gmra.mxu0 %v4997
    %v4999 = vpop.f32.mrf.mxu0
    %v5000 = vadd.f32 %v4893, %v4999
    %v5001 = vand.u32 %v4499, 4294901760
    %5002 = vmatmul.f32.gmra.mxu0 %v5001
    %v5003 = vpop.f32.mrf.mxu0
    %v5004 = vadd.f32 %v4899, %v5003
    %v5005 = vand.u32 %v4502, 4294901760
    %5006 = vmatmul.f32.gmra.mxu0 %v5005
    %v5007 = vpop.f32.mrf.mxu0
    %v5008 = vadd.f32 %v4905, %v5007
    %v5009 = vand.u32 %v4505, 4294901760
    %5010 = vmatmul.f32.gmra.mxu0 %v5009
    %v5011 = vpop.f32.mrf.mxu0
    %v5012 = vadd.f32 %v4911, %v5011
    %v5013 = vand.u32 %v4508, 4294901760
    %5014 = vmatmul.f32.gmra.mxu0 %v5013
    %v5015 = vpop.f32.mrf.mxu0
    %v5016 = vadd.f32 %v4917, %v5015
    %v5017 = vand.u32 %v4511, 4294901760
    %5018 = vmatmul.f32.gmra.mxu0 %v5017
    %v5019 = vpop.f32.mrf.mxu0
    %v5020 = vadd.f32 %v4923, %v5019
    %v5021 = vand.u32 %v4514, 4294901760
    %5022 = vmatmul.f32.gmra.mxu0 %v5021
    %v5023 = vpop.f32.mrf.mxu0
    %v5024 = vadd.f32 %v4929, %v5023
    %v5025 = vand.u32 %v4517, 4294901760
    %5026 = vmatmul.f32.gmra.mxu0 %v5025
    %v5027 = vpop.f32.mrf.mxu0
    %v5028 = vadd.f32 %v4935, %v5027
    %v5029 = vand.u32 %v4520, 4294901760
    %5030 = vmatmul.f32.gmra.mxu0 %v5029
    %v5031 = vpop.f32.mrf.mxu0
    %v5032 = vadd.f32 %v4941, %v5031
    %v5033 = vand.u32 %v4523, 4294901760
    %5034 = vmatmul.f32.gmra.mxu0 %v5033
    %v5035 = vpop.f32.mrf.mxu0
    %v5036 = vadd.f32 %v4947, %v5035
    %v5037 = vand.u32 %v4526, 4294901760
    %5038 = vmatmul.f32.gmra.mxu0 %v5037
    %v5039 = vpop.f32.mrf.mxu0
    %v5040 = vadd.f32 %v4953, %v5039
    %v5041 = vand.u32 %v4529, 4294901760
    %5042 = vmatmul.f32.gmra.mxu0 %v5041
    %v5043 = vpop.f32.mrf.mxu0
    %v5044 = vadd.f32 %v4959, %v5043
    %v5045 = vand.u32 %v4532, 4294901760
    %5046 = vmatmul.f32.gmra.mxu0 %v5045
    %v5047 = vpop.f32.mrf.mxu0
    %v5048 = vadd.f32 %v4965, %v5047
    %v5049 = vand.u32 %v4535, 4294901760
    %5050 = vmatmul.f32.gmra.mxu0 %v5049
    %v5051 = vpop.f32.mrf.mxu0
    %v5052 = vadd.f32 %v4971, %v5051
    %5053 = vdwg.mxu0
    %5054 = vmatpush.msra.mxu0 0.0
    %5055 = vmatpush.msra.mxu0 0.0
    %5056 = vmatpush.msra.mxu0 0.0
    %5057 = vmatpush.msra.mxu0 0.0
    %5058 = vmatpush.msra.mxu0 0.0
    %5059 = vmatpush.msra.mxu0 0.0
    %5060 = vmatpush.msra.mxu0 0.0
    %5061 = vmatpush.msra.mxu0 0.0
    %5062 = vmatpush.msra.mxu0 1.0
    %5063 = vmatpush.msra.mxu0 1.0
    %5064 = vmatpush.msra.mxu0 1.0
    %5065 = vmatpush.msra.mxu0 1.0
    %5066 = vmatpush.msra.mxu0 1.0
    %5067 = vmatpush.msra.mxu0 1.0
    %5068 = vmatpush.msra.mxu0 1.0
    %5069 = vmatpush.msra.mxu0 1.0
    %v5070 = vand.u32 %v4490, 4294901760
    %5071 = vmatmul.f32.gmra.mxu0 %v5070
    %v5072 = vpop.f32.mrf.mxu0
    %v5073 = vadd.f32 %v4992, %v5072
    %v5074 = vand.u32 %v4493, 4294901760
    %5075 = vmatmul.f32.gmra.mxu0 %v5074
    %v5076 = vpop.f32.mrf.mxu0
    %v5077 = vadd.f32 %v4996, %v5076
    %v5078 = vand.u32 %v4496, 4294901760
    %5079 = vmatmul.f32.gmra.mxu0 %v5078
    %v5080 = vpop.f32.mrf.mxu0
    %v5081 = vadd.f32 %v5000, %v5080
    %v5082 = vand.u32 %v4499, 4294901760
    %5083 = vmatmul.f32.gmra.mxu0 %v5082
    %v5084 = vpop.f32.mrf.mxu0
    %v5085 = vadd.f32 %v5004, %v5084
    %v5086 = vand.u32 %v4502, 4294901760
    %5087 = vmatmul.f32.gmra.mxu0 %v5086
    %v5088 = vpop.f32.mrf.mxu0
    %v5089 = vadd.f32 %v5008, %v5088
    %v5090 = vand.u32 %v4505, 4294901760
    %5091 = vmatmul.f32.gmra.mxu0 %v5090
    %v5092 = vpop.f32.mrf.mxu0
    %v5093 = vadd.f32 %v5012, %v5092
    %v5094 = vand.u32 %v4508, 4294901760
    %5095 = vmatmul.f32.gmra.mxu0 %v5094
    %v5096 = vpop.f32.mrf.mxu0
    %v5097 = vadd.f32 %v5016, %v5096
    %v5098 = vand.u32 %v4511, 4294901760
    %5099 = vmatmul.f32.gmra.mxu0 %v5098
    %v5100 = vpop.f32.mrf.mxu0
    %v5101 = vadd.f32 %v5020, %v5100
    %v5102 = vand.u32 %v4514, 4294901760
    %5103 = vmatmul.f32.gmra.mxu0 %v5102
    %v5104 = vpop.f32.mrf.mxu0
    %v5105 = vadd.f32 %v5024, %v5104
    %v5106 = vand.u32 %v4517, 4294901760
    %5107 = vmatmul.f32.gmra.mxu0 %v5106
    %v5108 = vpop.f32.mrf.mxu0
    %v5109 = vadd.f32 %v5028, %v5108
    %v5110 = vand.u32 %v4520, 4294901760
    %5111 = vmatmul.f32.gmra.mxu0 %v5110
    %v5112 = vpop.f32.mrf.mxu0
    %v5113 = vadd.f32 %v5032, %v5112
    %v5114 = vand.u32 %v4523, 4294901760
    %5115 = vmatmul.f32.gmra.mxu0 %v5114
    %v5116 = vpop.f32.mrf.mxu0
    %v5117 = vadd.f32 %v5036, %v5116
    %v5118 = vand.u32 %v4526, 4294901760
    %5119 = vmatmul.f32.gmra.mxu0 %v5118
    %v5120 = vpop.f32.mrf.mxu0
    %v5121 = vadd.f32 %v5040, %v5120
    %v5122 = vand.u32 %v4529, 4294901760
    %5123 = vmatmul.f32.gmra.mxu0 %v5122
    %v5124 = vpop.f32.mrf.mxu0
    %v5125 = vadd.f32 %v5044, %v5124
    %v5126 = vand.u32 %v4532, 4294901760
    %5127 = vmatmul.f32.gmra.mxu0 %v5126
    %v5128 = vpop.f32.mrf.mxu0
    %v5129 = vadd.f32 %v5048, %v5128
    %v5130 = vand.u32 %v4535, 4294901760
    %5131 = vmatmul.f32.gmra.mxu0 %v5130
    %v5132 = vpop.f32.mrf.mxu0
    %v5133 = vadd.f32 %v5052, %v5132
    %5134 = vdwg.mxu0
    %v5135 = vmul.f32 %v5073, 0.015625
    %v5136 = vmul.f32 %v5077, 0.015625
    %v5137 = vmul.f32 %v5081, 0.015625
    %v5138 = vmul.f32 %v5085, 0.015625
    %v5139 = vmul.f32 %v5089, 0.015625
    %v5140 = vmul.f32 %v5093, 0.015625
    %v5141 = vmul.f32 %v5097, 0.015625
    %v5142 = vmul.f32 %v5101, 0.015625
    %v5143 = vmul.f32 %v5105, 0.015625
    %v5144 = vmul.f32 %v5109, 0.015625
    %v5145 = vmul.f32 %v5113, 0.015625
    %v5146 = vmul.f32 %v5117, 0.015625
    %v5147 = vmul.f32 %v5121, 0.015625
    %v5148 = vmul.f32 %v5125, 0.015625
    %v5149 = vmul.f32 %v5129, 0.015625
    %v5150 = vmul.f32 %v5133, 0.015625
    %v5151 = vmul.f32 %v4473, %v4473
    %v5152 = vmul.f32 %v4474, %v4474
    %v5153 = vmul.f32 %v4475, %v4475
    %v5154 = vmul.f32 %v4476, %v4476
    %v5155 = vmul.f32 %v4477, %v4477
    %v5156 = vmul.f32 %v4478, %v4478
    %v5157 = vmul.f32 %v4479, %v4479
    %v5158 = vmul.f32 %v4480, %v4480
    %v5159 = vmul.f32 %v4481, %v4481
    %v5160 = vmul.f32 %v4482, %v4482
    %v5161 = vmul.f32 %v4483, %v4483
    %v5162 = vmul.f32 %v4484, %v4484
    %v5163 = vmul.f32 %v4485, %v4485
    %v5164 = vmul.f32 %v4486, %v4486
    %v5165 = vmul.f32 %v4487, %v4487
    %v5166 = vmul.f32 %v4488, %v4488
    %v5168 = vsel %vm302, %v5151, 0
    %v5171 = vsel %vm302, %v5152, 0
    %v5174 = vsel %vm302, %v5153, 0
    %v5177 = vsel %vm302, %v5154, 0
    %v5180 = vsel %vm302, %v5155, 0
    %v5183 = vsel %vm302, %v5156, 0
    %v5186 = vsel %vm302, %v5157, 0
    %v5189 = vsel %vm302, %v5158, 0
    %v5192 = vsel %vm302, %v5159, 0
    %v5195 = vsel %vm302, %v5160, 0
    %v5198 = vsel %vm302, %v5161, 0
    %v5201 = vsel %vm302, %v5162, 0
    %v5204 = vsel %vm302, %v5163, 0
    %v5207 = vsel %vm302, %v5164, 0
    %v5210 = vsel %vm302, %v5165, 0
    %v5213 = vsel %vm302, %v5166, 0
    %5215 = vmatpush.msra.mxu0 0.0
    %5216 = vmatpush.msra.mxu0 0.0
    %5217 = vmatpush.msra.mxu0 0.0
    %5218 = vmatpush.msra.mxu0 0.0
    %5219 = vmatpush.msra.mxu0 0.0
    %5220 = vmatpush.msra.mxu0 0.0
    %5221 = vmatpush.msra.mxu0 0.0
    %5222 = vmatpush.msra.mxu0 0.0
    %5223 = vmatpush.msra.mxu0 1.0
    %5224 = vmatpush.msra.mxu0 1.0
    %5225 = vmatpush.msra.mxu0 1.0
    %5226 = vmatpush.msra.mxu0 1.0
    %5227 = vmatpush.msra.mxu0 1.0
    %5228 = vmatpush.msra.mxu0 1.0
    %5229 = vmatpush.msra.mxu0 1.0
    %5230 = vmatpush.msra.mxu0 1.0
    %v5231 = vand.u32 %v5168, 4294901760
    %v5232 = vsub.f32 %v5168, %v5231
    %v5233 = vand.u32 %v5232, 4294901760
    %v5234 = vsub.f32 %v5232, %v5233
    %v5235 = vand.u32 %v5234, 4294901760
    %5236 = vmatmul.f32.gmra.mxu0 %v5235
    %v5237 = vpop.f32.mrf.mxu0
    %v5238 = vadd.f32 0.0, %v5237
    %v5239 = vand.u32 %v5171, 4294901760
    %v5240 = vsub.f32 %v5171, %v5239
    %v5241 = vand.u32 %v5240, 4294901760
    %v5242 = vsub.f32 %v5240, %v5241
    %v5243 = vand.u32 %v5242, 4294901760
    %5244 = vmatmul.f32.gmra.mxu0 %v5243
    %v5245 = vpop.f32.mrf.mxu0
    %v5246 = vadd.f32 0.0, %v5245
    %v5247 = vand.u32 %v5174, 4294901760
    %v5248 = vsub.f32 %v5174, %v5247
    %v5249 = vand.u32 %v5248, 4294901760
    %v5250 = vsub.f32 %v5248, %v5249
    %v5251 = vand.u32 %v5250, 4294901760
    %5252 = vmatmul.f32.gmra.mxu0 %v5251
    %v5253 = vpop.f32.mrf.mxu0
    %v5254 = vadd.f32 0.0, %v5253
    %v5255 = vand.u32 %v5177, 4294901760
    %v5256 = vsub.f32 %v5177, %v5255
    %v5257 = vand.u32 %v5256, 4294901760
    %v5258 = vsub.f32 %v5256, %v5257
    %v5259 = vand.u32 %v5258, 4294901760
    %5260 = vmatmul.f32.gmra.mxu0 %v5259
    %v5261 = vpop.f32.mrf.mxu0
    %v5262 = vadd.f32 0.0, %v5261
    %v5263 = vand.u32 %v5180, 4294901760
    %v5264 = vsub.f32 %v5180, %v5263
    %v5265 = vand.u32 %v5264, 4294901760
    %v5266 = vsub.f32 %v5264, %v5265
    %v5267 = vand.u32 %v5266, 4294901760
    %5268 = vmatmul.f32.gmra.mxu0 %v5267
    %v5269 = vpop.f32.mrf.mxu0
    %v5270 = vadd.f32 0.0, %v5269
    %v5271 = vand.u32 %v5183, 4294901760
    %v5272 = vsub.f32 %v5183, %v5271
    %v5273 = vand.u32 %v5272, 4294901760
    %v5274 = vsub.f32 %v5272, %v5273
    %v5275 = vand.u32 %v5274, 4294901760
    %5276 = vmatmul.f32.gmra.mxu0 %v5275
    %v5277 = vpop.f32.mrf.mxu0
    %v5278 = vadd.f32 0.0, %v5277
    %v5279 = vand.u32 %v5186, 4294901760
    %v5280 = vsub.f32 %v5186, %v5279
    %v5281 = vand.u32 %v5280, 4294901760
    %v5282 = vsub.f32 %v5280, %v5281
    %v5283 = vand.u32 %v5282, 4294901760
    %5284 = vmatmul.f32.gmra.mxu0 %v5283
    %v5285 = vpop.f32.mrf.mxu0
    %v5286 = vadd.f32 0.0, %v5285
    %v5287 = vand.u32 %v5189, 4294901760
    %v5288 = vsub.f32 %v5189, %v5287
    %v5289 = vand.u32 %v5288, 4294901760
    %v5290 = vsub.f32 %v5288, %v5289
    %v5291 = vand.u32 %v5290, 4294901760
    %5292 = vmatmul.f32.gmra.mxu0 %v5291
    %v5293 = vpop.f32.mrf.mxu0
    %v5294 = vadd.f32 0.0, %v5293
    %v5295 = vand.u32 %v5192, 4294901760
    %v5296 = vsub.f32 %v5192, %v5295
    %v5297 = vand.u32 %v5296, 4294901760
    %v5298 = vsub.f32 %v5296, %v5297
    %v5299 = vand.u32 %v5298, 4294901760
    %5300 = vmatmul.f32.gmra.mxu0 %v5299
    %v5301 = vpop.f32.mrf.mxu0
    %v5302 = vadd.f32 0.0, %v5301
    %v5303 = vand.u32 %v5195, 4294901760
    %v5304 = vsub.f32 %v5195, %v5303
    %v5305 = vand.u32 %v5304, 4294901760
    %v5306 = vsub.f32 %v5304, %v5305
    %v5307 = vand.u32 %v5306, 4294901760
    %5308 = vmatmul.f32.gmra.mxu0 %v5307
    %v5309 = vpop.f32.mrf.mxu0
    %v5310 = vadd.f32 0.0, %v5309
    %v5311 = vand.u32 %v5198, 4294901760
    %v5312 = vsub.f32 %v5198, %v5311
    %v5313 = vand.u32 %v5312, 4294901760
    %v5314 = vsub.f32 %v5312, %v5313
    %v5315 = vand.u32 %v5314, 4294901760
    %5316 = vmatmul.f32.gmra.mxu0 %v5315
    %v5317 = vpop.f32.mrf.mxu0
    %v5318 = vadd.f32 0.0, %v5317
    %v5319 = vand.u32 %v5201, 4294901760
    %v5320 = vsub.f32 %v5201, %v5319
    %v5321 = vand.u32 %v5320, 4294901760
    %v5322 = vsub.f32 %v5320, %v5321
    %v5323 = vand.u32 %v5322, 4294901760
    %5324 = vmatmul.f32.gmra.mxu0 %v5323
    %v5325 = vpop.f32.mrf.mxu0
    %v5326 = vadd.f32 0.0, %v5325
    %v5327 = vand.u32 %v5204, 4294901760
    %v5328 = vsub.f32 %v5204, %v5327
    %v5329 = vand.u32 %v5328, 4294901760
    %v5330 = vsub.f32 %v5328, %v5329
    %v5331 = vand.u32 %v5330, 4294901760
    %5332 = vmatmul.f32.gmra.mxu0 %v5331
    %v5333 = vpop.f32.mrf.mxu0
    %v5334 = vadd.f32 0.0, %v5333
    %v5335 = vand.u32 %v5207, 4294901760
    %v5336 = vsub.f32 %v5207, %v5335
    %v5337 = vand.u32 %v5336, 4294901760
    %v5338 = vsub.f32 %v5336, %v5337
    %v5339 = vand.u32 %v5338, 4294901760
    %5340 = vmatmul.f32.gmra.mxu0 %v5339
    %v5341 = vpop.f32.mrf.mxu0
    %v5342 = vadd.f32 0.0, %v5341
    %v5343 = vand.u32 %v5210, 4294901760
    %v5344 = vsub.f32 %v5210, %v5343
    %v5345 = vand.u32 %v5344, 4294901760
    %v5346 = vsub.f32 %v5344, %v5345
    %v5347 = vand.u32 %v5346, 4294901760
    %5348 = vmatmul.f32.gmra.mxu0 %v5347
    %v5349 = vpop.f32.mrf.mxu0
    %v5350 = vadd.f32 0.0, %v5349
    %v5351 = vand.u32 %v5213, 4294901760
    %v5352 = vsub.f32 %v5213, %v5351
    %v5353 = vand.u32 %v5352, 4294901760
    %v5354 = vsub.f32 %v5352, %v5353
    %v5355 = vand.u32 %v5354, 4294901760
    %5356 = vmatmul.f32.gmra.mxu0 %v5355
    %v5357 = vpop.f32.mrf.mxu0
    %v5358 = vadd.f32 0.0, %v5357
    %5359 = vdwg.mxu0
    %5360 = vmatpush.msra.mxu0 0.0
    %5361 = vmatpush.msra.mxu0 0.0
    %5362 = vmatpush.msra.mxu0 0.0
    %5363 = vmatpush.msra.mxu0 0.0
    %5364 = vmatpush.msra.mxu0 0.0
    %5365 = vmatpush.msra.mxu0 0.0
    %5366 = vmatpush.msra.mxu0 0.0
    %5367 = vmatpush.msra.mxu0 0.0
    %5368 = vmatpush.msra.mxu0 0.0
    %5369 = vmatpush.msra.mxu0 0.0
    %5370 = vmatpush.msra.mxu0 0.0
    %5371 = vmatpush.msra.mxu0 0.0
    %5372 = vmatpush.msra.mxu0 0.0
    %5373 = vmatpush.msra.mxu0 0.0
    %5374 = vmatpush.msra.mxu0 0.0
    %5375 = vmatpush.msra.mxu0 0.0
    %v5376 = vand.u32 %v5168, 4294901760
    %5377 = vmatmul.f32.gmra.mxu0 %v5376
    %v5378 = vpop.f32.mrf.mxu0
    %v5379 = vadd.f32 %v5238, %v5378
    %v5380 = vand.u32 %v5171, 4294901760
    %5381 = vmatmul.f32.gmra.mxu0 %v5380
    %v5382 = vpop.f32.mrf.mxu0
    %v5383 = vadd.f32 %v5246, %v5382
    %v5384 = vand.u32 %v5174, 4294901760
    %5385 = vmatmul.f32.gmra.mxu0 %v5384
    %v5386 = vpop.f32.mrf.mxu0
    %v5387 = vadd.f32 %v5254, %v5386
    %v5388 = vand.u32 %v5177, 4294901760
    %5389 = vmatmul.f32.gmra.mxu0 %v5388
    %v5390 = vpop.f32.mrf.mxu0
    %v5391 = vadd.f32 %v5262, %v5390
    %v5392 = vand.u32 %v5180, 4294901760
    %5393 = vmatmul.f32.gmra.mxu0 %v5392
    %v5394 = vpop.f32.mrf.mxu0
    %v5395 = vadd.f32 %v5270, %v5394
    %v5396 = vand.u32 %v5183, 4294901760
    %5397 = vmatmul.f32.gmra.mxu0 %v5396
    %v5398 = vpop.f32.mrf.mxu0
    %v5399 = vadd.f32 %v5278, %v5398
    %v5400 = vand.u32 %v5186, 4294901760
    %5401 = vmatmul.f32.gmra.mxu0 %v5400
    %v5402 = vpop.f32.mrf.mxu0
    %v5403 = vadd.f32 %v5286, %v5402
    %v5404 = vand.u32 %v5189, 4294901760
    %5405 = vmatmul.f32.gmra.mxu0 %v5404
    %v5406 = vpop.f32.mrf.mxu0
    %v5407 = vadd.f32 %v5294, %v5406
    %v5408 = vand.u32 %v5192, 4294901760
    %5409 = vmatmul.f32.gmra.mxu0 %v5408
    %v5410 = vpop.f32.mrf.mxu0
    %v5411 = vadd.f32 %v5302, %v5410
    %v5412 = vand.u32 %v5195, 4294901760
    %5413 = vmatmul.f32.gmra.mxu0 %v5412
    %v5414 = vpop.f32.mrf.mxu0
    %v5415 = vadd.f32 %v5310, %v5414
    %v5416 = vand.u32 %v5198, 4294901760
    %5417 = vmatmul.f32.gmra.mxu0 %v5416
    %v5418 = vpop.f32.mrf.mxu0
    %v5419 = vadd.f32 %v5318, %v5418
    %v5420 = vand.u32 %v5201, 4294901760
    %5421 = vmatmul.f32.gmra.mxu0 %v5420
    %v5422 = vpop.f32.mrf.mxu0
    %v5423 = vadd.f32 %v5326, %v5422
    %v5424 = vand.u32 %v5204, 4294901760
    %5425 = vmatmul.f32.gmra.mxu0 %v5424
    %v5426 = vpop.f32.mrf.mxu0
    %v5427 = vadd.f32 %v5334, %v5426
    %v5428 = vand.u32 %v5207, 4294901760
    %5429 = vmatmul.f32.gmra.mxu0 %v5428
    %v5430 = vpop.f32.mrf.mxu0
    %v5431 = vadd.f32 %v5342, %v5430
    %v5432 = vand.u32 %v5210, 4294901760
    %5433 = vmatmul.f32.gmra.mxu0 %v5432
    %v5434 = vpop.f32.mrf.mxu0
    %v5435 = vadd.f32 %v5350, %v5434
    %v5436 = vand.u32 %v5213, 4294901760
    %5437 = vmatmul.f32.gmra.mxu0 %v5436
    %v5438 = vpop.f32.mrf.mxu0
    %v5439 = vadd.f32 %v5358, %v5438
    %5440 = vdwg.mxu0
    %5441 = vmatpush.msra.mxu0 0.0
    %5442 = vmatpush.msra.mxu0 0.0
    %5443 = vmatpush.msra.mxu0 0.0
    %5444 = vmatpush.msra.mxu0 0.0
    %5445 = vmatpush.msra.mxu0 0.0
    %5446 = vmatpush.msra.mxu0 0.0
    %5447 = vmatpush.msra.mxu0 0.0
    %5448 = vmatpush.msra.mxu0 0.0
    %5449 = vmatpush.msra.mxu0 0.0
    %5450 = vmatpush.msra.mxu0 0.0
    %5451 = vmatpush.msra.mxu0 0.0
    %5452 = vmatpush.msra.mxu0 0.0
    %5453 = vmatpush.msra.mxu0 0.0
    %5454 = vmatpush.msra.mxu0 0.0
    %5455 = vmatpush.msra.mxu0 0.0
    %5456 = vmatpush.msra.mxu0 0.0
    %v5457 = vand.u32 %v5168, 4294901760
    %v5458 = vsub.f32 %v5168, %v5457
    %5459 = vmatmul.f32.gmra.mxu0 %v5458
    %v5460 = vpop.f32.mrf.mxu0
    %v5461 = vadd.f32 %v5379, %v5460
    %v5462 = vand.u32 %v5171, 4294901760
    %v5463 = vsub.f32 %v5171, %v5462
    %5464 = vmatmul.f32.gmra.mxu0 %v5463
    %v5465 = vpop.f32.mrf.mxu0
    %v5466 = vadd.f32 %v5383, %v5465
    %v5467 = vand.u32 %v5174, 4294901760
    %v5468 = vsub.f32 %v5174, %v5467
    %5469 = vmatmul.f32.gmra.mxu0 %v5468
    %v5470 = vpop.f32.mrf.mxu0
    %v5471 = vadd.f32 %v5387, %v5470
    %v5472 = vand.u32 %v5177, 4294901760
    %v5473 = vsub.f32 %v5177, %v5472
    %5474 = vmatmul.f32.gmra.mxu0 %v5473
    %v5475 = vpop.f32.mrf.mxu0
    %v5476 = vadd.f32 %v5391, %v5475
    %v5477 = vand.u32 %v5180, 4294901760
    %v5478 = vsub.f32 %v5180, %v5477
    %5479 = vmatmul.f32.gmra.mxu0 %v5478
    %v5480 = vpop.f32.mrf.mxu0
    %v5481 = vadd.f32 %v5395, %v5480
    %v5482 = vand.u32 %v5183, 4294901760
    %v5483 = vsub.f32 %v5183, %v5482
    %5484 = vmatmul.f32.gmra.mxu0 %v5483
    %v5485 = vpop.f32.mrf.mxu0
    %v5486 = vadd.f32 %v5399, %v5485
    %v5487 = vand.u32 %v5186, 4294901760
    %v5488 = vsub.f32 %v5186, %v5487
    %5489 = vmatmul.f32.gmra.mxu0 %v5488
    %v5490 = vpop.f32.mrf.mxu0
    %v5491 = vadd.f32 %v5403, %v5490
    %v5492 = vand.u32 %v5189, 4294901760
    %v5493 = vsub.f32 %v5189, %v5492
    %5494 = vmatmul.f32.gmra.mxu0 %v5493
    %v5495 = vpop.f32.mrf.mxu0
    %v5496 = vadd.f32 %v5407, %v5495
    %v5497 = vand.u32 %v5192, 4294901760
    %v5498 = vsub.f32 %v5192, %v5497
    %5499 = vmatmul.f32.gmra.mxu0 %v5498
    %v5500 = vpop.f32.mrf.mxu0
    %v5501 = vadd.f32 %v5411, %v5500
    %v5502 = vand.u32 %v5195, 4294901760
    %v5503 = vsub.f32 %v5195, %v5502
    %5504 = vmatmul.f32.gmra.mxu0 %v5503
    %v5505 = vpop.f32.mrf.mxu0
    %v5506 = vadd.f32 %v5415, %v5505
    %v5507 = vand.u32 %v5198, 4294901760
    %v5508 = vsub.f32 %v5198, %v5507
    %5509 = vmatmul.f32.gmra.mxu0 %v5508
    %v5510 = vpop.f32.mrf.mxu0
    %v5511 = vadd.f32 %v5419, %v5510
    %v5512 = vand.u32 %v5201, 4294901760
    %v5513 = vsub.f32 %v5201, %v5512
    %5514 = vmatmul.f32.gmra.mxu0 %v5513
    %v5515 = vpop.f32.mrf.mxu0
    %v5516 = vadd.f32 %v5423, %v5515
    %v5517 = vand.u32 %v5204, 4294901760
    %v5518 = vsub.f32 %v5204, %v5517
    %5519 = vmatmul.f32.gmra.mxu0 %v5518
    %v5520 = vpop.f32.mrf.mxu0
    %v5521 = vadd.f32 %v5427, %v5520
    %v5522 = vand.u32 %v5207, 4294901760
    %v5523 = vsub.f32 %v5207, %v5522
    %5524 = vmatmul.f32.gmra.mxu0 %v5523
    %v5525 = vpop.f32.mrf.mxu0
    %v5526 = vadd.f32 %v5431, %v5525
    %v5527 = vand.u32 %v5210, 4294901760
    %v5528 = vsub.f32 %v5210, %v5527
    %5529 = vmatmul.f32.gmra.mxu0 %v5528
    %v5530 = vpop.f32.mrf.mxu0
    %v5531 = vadd.f32 %v5435, %v5530
    %v5532 = vand.u32 %v5213, 4294901760
    %v5533 = vsub.f32 %v5213, %v5532
    %5534 = vmatmul.f32.gmra.mxu0 %v5533
    %v5535 = vpop.f32.mrf.mxu0
    %v5536 = vadd.f32 %v5439, %v5535
    %5537 = vdwg.mxu0
    %5538 = vmatpush.msra.mxu0 0.0
    %5539 = vmatpush.msra.mxu0 0.0
    %5540 = vmatpush.msra.mxu0 0.0
    %5541 = vmatpush.msra.mxu0 0.0
    %5542 = vmatpush.msra.mxu0 0.0
    %5543 = vmatpush.msra.mxu0 0.0
    %5544 = vmatpush.msra.mxu0 0.0
    %5545 = vmatpush.msra.mxu0 0.0
    %5546 = vmatpush.msra.mxu0 1.0
    %5547 = vmatpush.msra.mxu0 1.0
    %5548 = vmatpush.msra.mxu0 1.0
    %5549 = vmatpush.msra.mxu0 1.0
    %5550 = vmatpush.msra.mxu0 1.0
    %5551 = vmatpush.msra.mxu0 1.0
    %5552 = vmatpush.msra.mxu0 1.0
    %5553 = vmatpush.msra.mxu0 1.0
    %v5554 = vand.u32 %v5168, 4294901760
    %v5555 = vsub.f32 %v5168, %v5554
    %v5556 = vand.u32 %v5555, 4294901760
    %5557 = vmatmul.f32.gmra.mxu0 %v5556
    %v5558 = vpop.f32.mrf.mxu0
    %v5559 = vadd.f32 %v5461, %v5558
    %v5560 = vand.u32 %v5171, 4294901760
    %v5561 = vsub.f32 %v5171, %v5560
    %v5562 = vand.u32 %v5561, 4294901760
    %5563 = vmatmul.f32.gmra.mxu0 %v5562
    %v5564 = vpop.f32.mrf.mxu0
    %v5565 = vadd.f32 %v5466, %v5564
    %v5566 = vand.u32 %v5174, 4294901760
    %v5567 = vsub.f32 %v5174, %v5566
    %v5568 = vand.u32 %v5567, 4294901760
    %5569 = vmatmul.f32.gmra.mxu0 %v5568
    %v5570 = vpop.f32.mrf.mxu0
    %v5571 = vadd.f32 %v5471, %v5570
    %v5572 = vand.u32 %v5177, 4294901760
    %v5573 = vsub.f32 %v5177, %v5572
    %v5574 = vand.u32 %v5573, 4294901760
    %5575 = vmatmul.f32.gmra.mxu0 %v5574
    %v5576 = vpop.f32.mrf.mxu0
    %v5577 = vadd.f32 %v5476, %v5576
    %v5578 = vand.u32 %v5180, 4294901760
    %v5579 = vsub.f32 %v5180, %v5578
    %v5580 = vand.u32 %v5579, 4294901760
    %5581 = vmatmul.f32.gmra.mxu0 %v5580
    %v5582 = vpop.f32.mrf.mxu0
    %v5583 = vadd.f32 %v5481, %v5582
    %v5584 = vand.u32 %v5183, 4294901760
    %v5585 = vsub.f32 %v5183, %v5584
    %v5586 = vand.u32 %v5585, 4294901760
    %5587 = vmatmul.f32.gmra.mxu0 %v5586
    %v5588 = vpop.f32.mrf.mxu0
    %v5589 = vadd.f32 %v5486, %v5588
    %v5590 = vand.u32 %v5186, 4294901760
    %v5591 = vsub.f32 %v5186, %v5590
    %v5592 = vand.u32 %v5591, 4294901760
    %5593 = vmatmul.f32.gmra.mxu0 %v5592
    %v5594 = vpop.f32.mrf.mxu0
    %v5595 = vadd.f32 %v5491, %v5594
    %v5596 = vand.u32 %v5189, 4294901760
    %v5597 = vsub.f32 %v5189, %v5596
    %v5598 = vand.u32 %v5597, 4294901760
    %5599 = vmatmul.f32.gmra.mxu0 %v5598
    %v5600 = vpop.f32.mrf.mxu0
    %v5601 = vadd.f32 %v5496, %v5600
    %v5602 = vand.u32 %v5192, 4294901760
    %v5603 = vsub.f32 %v5192, %v5602
    %v5604 = vand.u32 %v5603, 4294901760
    %5605 = vmatmul.f32.gmra.mxu0 %v5604
    %v5606 = vpop.f32.mrf.mxu0
    %v5607 = vadd.f32 %v5501, %v5606
    %v5608 = vand.u32 %v5195, 4294901760
    %v5609 = vsub.f32 %v5195, %v5608
    %v5610 = vand.u32 %v5609, 4294901760
    %5611 = vmatmul.f32.gmra.mxu0 %v5610
    %v5612 = vpop.f32.mrf.mxu0
    %v5613 = vadd.f32 %v5506, %v5612
    %v5614 = vand.u32 %v5198, 4294901760
    %v5615 = vsub.f32 %v5198, %v5614
    %v5616 = vand.u32 %v5615, 4294901760
    %5617 = vmatmul.f32.gmra.mxu0 %v5616
    %v5618 = vpop.f32.mrf.mxu0
    %v5619 = vadd.f32 %v5511, %v5618
    %v5620 = vand.u32 %v5201, 4294901760
    %v5621 = vsub.f32 %v5201, %v5620
    %v5622 = vand.u32 %v5621, 4294901760
    %5623 = vmatmul.f32.gmra.mxu0 %v5622
    %v5624 = vpop.f32.mrf.mxu0
    %v5625 = vadd.f32 %v5516, %v5624
    %v5626 = vand.u32 %v5204, 4294901760
    %v5627 = vsub.f32 %v5204, %v5626
    %v5628 = vand.u32 %v5627, 4294901760
    %5629 = vmatmul.f32.gmra.mxu0 %v5628
    %v5630 = vpop.f32.mrf.mxu0
    %v5631 = vadd.f32 %v5521, %v5630
    %v5632 = vand.u32 %v5207, 4294901760
    %v5633 = vsub.f32 %v5207, %v5632
    %v5634 = vand.u32 %v5633, 4294901760
    %5635 = vmatmul.f32.gmra.mxu0 %v5634
    %v5636 = vpop.f32.mrf.mxu0
    %v5637 = vadd.f32 %v5526, %v5636
    %v5638 = vand.u32 %v5210, 4294901760
    %v5639 = vsub.f32 %v5210, %v5638
    %v5640 = vand.u32 %v5639, 4294901760
    %5641 = vmatmul.f32.gmra.mxu0 %v5640
    %v5642 = vpop.f32.mrf.mxu0
    %v5643 = vadd.f32 %v5531, %v5642
    %v5644 = vand.u32 %v5213, 4294901760
    %v5645 = vsub.f32 %v5213, %v5644
    %v5646 = vand.u32 %v5645, 4294901760
    %5647 = vmatmul.f32.gmra.mxu0 %v5646
    %v5648 = vpop.f32.mrf.mxu0
    %v5649 = vadd.f32 %v5536, %v5648
    %5650 = vdwg.mxu0
    %5651 = vmatpush.msra.mxu0 0.0
    %5652 = vmatpush.msra.mxu0 0.0
    %5653 = vmatpush.msra.mxu0 0.0
    %5654 = vmatpush.msra.mxu0 0.0
    %5655 = vmatpush.msra.mxu0 0.0
    %5656 = vmatpush.msra.mxu0 0.0
    %5657 = vmatpush.msra.mxu0 0.0
    %5658 = vmatpush.msra.mxu0 0.0
    %5659 = vmatpush.msra.mxu0 0.0
    %5660 = vmatpush.msra.mxu0 0.0
    %5661 = vmatpush.msra.mxu0 0.0
    %5662 = vmatpush.msra.mxu0 0.0
    %5663 = vmatpush.msra.mxu0 0.0
    %5664 = vmatpush.msra.mxu0 0.0
    %5665 = vmatpush.msra.mxu0 0.0
    %5666 = vmatpush.msra.mxu0 0.0
    %v5667 = vand.u32 %v5168, 4294901760
    %5668 = vmatmul.f32.gmra.mxu0 %v5667
    %v5669 = vpop.f32.mrf.mxu0
    %v5670 = vadd.f32 %v5559, %v5669
    %v5671 = vand.u32 %v5171, 4294901760
    %5672 = vmatmul.f32.gmra.mxu0 %v5671
    %v5673 = vpop.f32.mrf.mxu0
    %v5674 = vadd.f32 %v5565, %v5673
    %v5675 = vand.u32 %v5174, 4294901760
    %5676 = vmatmul.f32.gmra.mxu0 %v5675
    %v5677 = vpop.f32.mrf.mxu0
    %v5678 = vadd.f32 %v5571, %v5677
    %v5679 = vand.u32 %v5177, 4294901760
    %5680 = vmatmul.f32.gmra.mxu0 %v5679
    %v5681 = vpop.f32.mrf.mxu0
    %v5682 = vadd.f32 %v5577, %v5681
    %v5683 = vand.u32 %v5180, 4294901760
    %5684 = vmatmul.f32.gmra.mxu0 %v5683
    %v5685 = vpop.f32.mrf.mxu0
    %v5686 = vadd.f32 %v5583, %v5685
    %v5687 = vand.u32 %v5183, 4294901760
    %5688 = vmatmul.f32.gmra.mxu0 %v5687
    %v5689 = vpop.f32.mrf.mxu0
    %v5690 = vadd.f32 %v5589, %v5689
    %v5691 = vand.u32 %v5186, 4294901760
    %5692 = vmatmul.f32.gmra.mxu0 %v5691
    %v5693 = vpop.f32.mrf.mxu0
    %v5694 = vadd.f32 %v5595, %v5693
    %v5695 = vand.u32 %v5189, 4294901760
    %5696 = vmatmul.f32.gmra.mxu0 %v5695
    %v5697 = vpop.f32.mrf.mxu0
    %v5698 = vadd.f32 %v5601, %v5697
    %v5699 = vand.u32 %v5192, 4294901760
    %5700 = vmatmul.f32.gmra.mxu0 %v5699
    %v5701 = vpop.f32.mrf.mxu0
    %v5702 = vadd.f32 %v5607, %v5701
    %v5703 = vand.u32 %v5195, 4294901760
    %5704 = vmatmul.f32.gmra.mxu0 %v5703
    %v5705 = vpop.f32.mrf.mxu0
    %v5706 = vadd.f32 %v5613, %v5705
    %v5707 = vand.u32 %v5198, 4294901760
    %5708 = vmatmul.f32.gmra.mxu0 %v5707
    %v5709 = vpop.f32.mrf.mxu0
    %v5710 = vadd.f32 %v5619, %v5709
    %v5711 = vand.u32 %v5201, 4294901760
    %5712 = vmatmul.f32.gmra.mxu0 %v5711
    %v5713 = vpop.f32.mrf.mxu0
    %v5714 = vadd.f32 %v5625, %v5713
    %v5715 = vand.u32 %v5204, 4294901760
    %5716 = vmatmul.f32.gmra.mxu0 %v5715
    %v5717 = vpop.f32.mrf.mxu0
    %v5718 = vadd.f32 %v5631, %v5717
    %v5719 = vand.u32 %v5207, 4294901760
    %5720 = vmatmul.f32.gmra.mxu0 %v5719
    %v5721 = vpop.f32.mrf.mxu0
    %v5722 = vadd.f32 %v5637, %v5721
    %v5723 = vand.u32 %v5210, 4294901760
    %5724 = vmatmul.f32.gmra.mxu0 %v5723
    %v5725 = vpop.f32.mrf.mxu0
    %v5726 = vadd.f32 %v5643, %v5725
    %v5727 = vand.u32 %v5213, 4294901760
    %5728 = vmatmul.f32.gmra.mxu0 %v5727
    %v5729 = vpop.f32.mrf.mxu0
    %v5730 = vadd.f32 %v5649, %v5729
    %5731 = vdwg.mxu0
    %5732 = vmatpush.msra.mxu0 0.0
    %5733 = vmatpush.msra.mxu0 0.0
    %5734 = vmatpush.msra.mxu0 0.0
    %5735 = vmatpush.msra.mxu0 0.0
    %5736 = vmatpush.msra.mxu0 0.0
    %5737 = vmatpush.msra.mxu0 0.0
    %5738 = vmatpush.msra.mxu0 0.0
    %5739 = vmatpush.msra.mxu0 0.0
    %5740 = vmatpush.msra.mxu0 1.0
    %5741 = vmatpush.msra.mxu0 1.0
    %5742 = vmatpush.msra.mxu0 1.0
    %5743 = vmatpush.msra.mxu0 1.0
    %5744 = vmatpush.msra.mxu0 1.0
    %5745 = vmatpush.msra.mxu0 1.0
    %5746 = vmatpush.msra.mxu0 1.0
    %5747 = vmatpush.msra.mxu0 1.0
    %v5748 = vand.u32 %v5168, 4294901760
    %5749 = vmatmul.f32.gmra.mxu0 %v5748
    %v5750 = vpop.f32.mrf.mxu0
    %v5751 = vadd.f32 %v5670, %v5750
    %v5752 = vand.u32 %v5171, 4294901760
    %5753 = vmatmul.f32.gmra.mxu0 %v5752
    %v5754 = vpop.f32.mrf.mxu0
    %v5755 = vadd.f32 %v5674, %v5754
    %v5756 = vand.u32 %v5174, 4294901760
    %5757 = vmatmul.f32.gmra.mxu0 %v5756
    %v5758 = vpop.f32.mrf.mxu0
    %v5759 = vadd.f32 %v5678, %v5758
    %v5760 = vand.u32 %v5177, 4294901760
    %5761 = vmatmul.f32.gmra.mxu0 %v5760
    %v5762 = vpop.f32.mrf.mxu0
    %v5763 = vadd.f32 %v5682, %v5762
    %v5764 = vand.u32 %v5180, 4294901760
    %5765 = vmatmul.f32.gmra.mxu0 %v5764
    %v5766 = vpop.f32.mrf.mxu0
    %v5767 = vadd.f32 %v5686, %v5766
    %v5768 = vand.u32 %v5183, 4294901760
    %5769 = vmatmul.f32.gmra.mxu0 %v5768
    %v5770 = vpop.f32.mrf.mxu0
    %v5771 = vadd.f32 %v5690, %v5770
    %v5772 = vand.u32 %v5186, 4294901760
    %5773 = vmatmul.f32.gmra.mxu0 %v5772
    %v5774 = vpop.f32.mrf.mxu0
    %v5775 = vadd.f32 %v5694, %v5774
    %v5776 = vand.u32 %v5189, 4294901760
    %5777 = vmatmul.f32.gmra.mxu0 %v5776
    %v5778 = vpop.f32.mrf.mxu0
    %v5779 = vadd.f32 %v5698, %v5778
    %v5780 = vand.u32 %v5192, 4294901760
    %5781 = vmatmul.f32.gmra.mxu0 %v5780
    %v5782 = vpop.f32.mrf.mxu0
    %v5783 = vadd.f32 %v5702, %v5782
    %v5784 = vand.u32 %v5195, 4294901760
    %5785 = vmatmul.f32.gmra.mxu0 %v5784
    %v5786 = vpop.f32.mrf.mxu0
    %v5787 = vadd.f32 %v5706, %v5786
    %v5788 = vand.u32 %v5198, 4294901760
    %5789 = vmatmul.f32.gmra.mxu0 %v5788
    %v5790 = vpop.f32.mrf.mxu0
    %v5791 = vadd.f32 %v5710, %v5790
    %v5792 = vand.u32 %v5201, 4294901760
    %5793 = vmatmul.f32.gmra.mxu0 %v5792
    %v5794 = vpop.f32.mrf.mxu0
    %v5795 = vadd.f32 %v5714, %v5794
    %v5796 = vand.u32 %v5204, 4294901760
    %5797 = vmatmul.f32.gmra.mxu0 %v5796
    %v5798 = vpop.f32.mrf.mxu0
    %v5799 = vadd.f32 %v5718, %v5798
    %v5800 = vand.u32 %v5207, 4294901760
    %5801 = vmatmul.f32.gmra.mxu0 %v5800
    %v5802 = vpop.f32.mrf.mxu0
    %v5803 = vadd.f32 %v5722, %v5802
    %v5804 = vand.u32 %v5210, 4294901760
    %5805 = vmatmul.f32.gmra.mxu0 %v5804
    %v5806 = vpop.f32.mrf.mxu0
    %v5807 = vadd.f32 %v5726, %v5806
    %v5808 = vand.u32 %v5213, 4294901760
    %5809 = vmatmul.f32.gmra.mxu0 %v5808
    %v5810 = vpop.f32.mrf.mxu0
    %v5811 = vadd.f32 %v5730, %v5810
    %5812 = vdwg.mxu0
    %v5813 = vmul.f32 %v5751, 0.015625
    %v5814 = vmul.f32 %v5755, 0.015625
    %v5815 = vmul.f32 %v5759, 0.015625
    %v5816 = vmul.f32 %v5763, 0.015625
    %v5817 = vmul.f32 %v5767, 0.015625
    %v5818 = vmul.f32 %v5771, 0.015625
    %v5819 = vmul.f32 %v5775, 0.015625
    %v5820 = vmul.f32 %v5779, 0.015625
    %v5821 = vmul.f32 %v5783, 0.015625
    %v5822 = vmul.f32 %v5787, 0.015625
    %v5823 = vmul.f32 %v5791, 0.015625
    %v5824 = vmul.f32 %v5795, 0.015625
    %v5825 = vmul.f32 %v5799, 0.015625
    %v5826 = vmul.f32 %v5803, 0.015625
    %v5827 = vmul.f32 %v5807, 0.015625
    %v5828 = vmul.f32 %v5811, 0.015625
    %v5829 = vmul.f32 %v5135, %v5135
    %v5830 = vmul.f32 %v5136, %v5136
    %v5831 = vmul.f32 %v5137, %v5137
    %v5832 = vmul.f32 %v5138, %v5138
    %v5833 = vmul.f32 %v5139, %v5139
    %v5834 = vmul.f32 %v5140, %v5140
    %v5835 = vmul.f32 %v5141, %v5141
    %v5836 = vmul.f32 %v5142, %v5142
    %v5837 = vmul.f32 %v5143, %v5143
    %v5838 = vmul.f32 %v5144, %v5144
    %v5839 = vmul.f32 %v5145, %v5145
    %v5840 = vmul.f32 %v5146, %v5146
    %v5841 = vmul.f32 %v5147, %v5147
    %v5842 = vmul.f32 %v5148, %v5148
    %v5843 = vmul.f32 %v5149, %v5149
    %v5844 = vmul.f32 %v5150, %v5150
    %v5845 = vsub.f32 %v5813, %v5829
    %v5846 = vsub.f32 %v5814, %v5830
    %v5847 = vsub.f32 %v5815, %v5831
    %v5848 = vsub.f32 %v5816, %v5832
    %v5849 = vsub.f32 %v5817, %v5833
    %v5850 = vsub.f32 %v5818, %v5834
    %v5851 = vsub.f32 %v5819, %v5835
    %v5852 = vsub.f32 %v5820, %v5836
    %v5853 = vsub.f32 %v5821, %v5837
    %v5854 = vsub.f32 %v5822, %v5838
    %v5855 = vsub.f32 %v5823, %v5839
    %v5856 = vsub.f32 %v5824, %v5840
    %v5857 = vsub.f32 %v5825, %v5841
    %v5858 = vsub.f32 %v5826, %v5842
    %v5859 = vsub.f32 %v5827, %v5843
    %v5860 = vsub.f32 %v5828, %v5844
    %v5861 = vadd.f32 %v5845, 1e-05
    %v5862 = vadd.f32 %v5846, 1e-05
    %v5863 = vadd.f32 %v5847, 1e-05
    %v5864 = vadd.f32 %v5848, 1e-05
    %v5865 = vadd.f32 %v5849, 1e-05
    %v5866 = vadd.f32 %v5850, 1e-05
    %v5867 = vadd.f32 %v5851, 1e-05
    %v5868 = vadd.f32 %v5852, 1e-05
    %v5869 = vadd.f32 %v5853, 1e-05
    %v5870 = vadd.f32 %v5854, 1e-05
    %v5871 = vadd.f32 %v5855, 1e-05
    %v5872 = vadd.f32 %v5856, 1e-05
    %v5873 = vadd.f32 %v5857, 1e-05
    %v5874 = vadd.f32 %v5858, 1e-05
    %v5875 = vadd.f32 %v5859, 1e-05
    %v5876 = vadd.f32 %v5860, 1e-05
    %v5877 = vrsqrt.pop %v5861
    %v5878 = vmul.f32 %v5877, %v5861
    %v5879 = vmul.f32 %v5878, %v5877
    %v5880 = vmul.f32 0.5, %v5879
    %v5881 = vsub.f32 1.5, %v5880
    %v5882 = vmul.f32 %v5877, %v5881
    %vm5883 = vweird.f32 %v5861
    %vm5884 = vweird.f32 %v5877
    %vm5885 = vmor %vm5883, %vm5884
    %v5886 = vsel %vm5885, %v5877, %v5882
    %v5887 = vrsqrt.pop %v5862
    %v5888 = vmul.f32 %v5887, %v5862
    %v5889 = vmul.f32 %v5888, %v5887
    %v5890 = vmul.f32 0.5, %v5889
    %v5891 = vsub.f32 1.5, %v5890
    %v5892 = vmul.f32 %v5887, %v5891
    %vm5893 = vweird.f32 %v5862
    %vm5894 = vweird.f32 %v5887
    %vm5895 = vmor %vm5893, %vm5894
    %v5896 = vsel %vm5895, %v5887, %v5892
    %v5897 = vrsqrt.pop %v5863
    %v5898 = vmul.f32 %v5897, %v5863
    %v5899 = vmul.f32 %v5898, %v5897
    %v5900 = vmul.f32 0.5, %v5899
    %v5901 = vsub.f32 1.5, %v5900
    %v5902 = vmul.f32 %v5897, %v5901
    %vm5903 = vweird.f32 %v5863
    %vm5904 = vweird.f32 %v5897
    %vm5905 = vmor %vm5903, %vm5904
    %v5906 = vsel %vm5905, %v5897, %v5902
    %v5907 = vrsqrt.pop %v5864
    %v5908 = vmul.f32 %v5907, %v5864
    %v5909 = vmul.f32 %v5908, %v5907
    %v5910 = vmul.f32 0.5, %v5909
    %v5911 = vsub.f32 1.5, %v5910
    %v5912 = vmul.f32 %v5907, %v5911
    %vm5913 = vweird.f32 %v5864
    %vm5914 = vweird.f32 %v5907
    %vm5915 = vmor %vm5913, %vm5914
    %v5916 = vsel %vm5915, %v5907, %v5912
    %v5917 = vrsqrt.pop %v5865
    %v5918 = vmul.f32 %v5917, %v5865
    %v5919 = vmul.f32 %v5918, %v5917
    %v5920 = vmul.f32 0.5, %v5919
    %v5921 = vsub.f32 1.5, %v5920
    %v5922 = vmul.f32 %v5917, %v5921
    %vm5923 = vweird.f32 %v5865
    %vm5924 = vweird.f32 %v5917
    %vm5925 = vmor %vm5923, %vm5924
    %v5926 = vsel %vm5925, %v5917, %v5922
    %v5927 = vrsqrt.pop %v5866
    %v5928 = vmul.f32 %v5927, %v5866
    %v5929 = vmul.f32 %v5928, %v5927
    %v5930 = vmul.f32 0.5, %v5929
    %v5931 = vsub.f32 1.5, %v5930
    %v5932 = vmul.f32 %v5927, %v5931
    %vm5933 = vweird.f32 %v5866
    %vm5934 = vweird.f32 %v5927
    %vm5935 = vmor %vm5933, %vm5934
    %v5936 = vsel %vm5935, %v5927, %v5932
    %v5937 = vrsqrt.pop %v5867
    %v5938 = vmul.f32 %v5937, %v5867
    %v5939 = vmul.f32 %v5938, %v5937
    %v5940 = vmul.f32 0.5, %v5939
    %v5941 = vsub.f32 1.5, %v5940
    %v5942 = vmul.f32 %v5937, %v5941
    %vm5943 = vweird.f32 %v5867
    %vm5944 = vweird.f32 %v5937
    %vm5945 = vmor %vm5943, %vm5944
    %v5946 = vsel %vm5945, %v5937, %v5942
    %v5947 = vrsqrt.pop %v5868
    %v5948 = vmul.f32 %v5947, %v5868
    %v5949 = vmul.f32 %v5948, %v5947
    %v5950 = vmul.f32 0.5, %v5949
    %v5951 = vsub.f32 1.5, %v5950
    %v5952 = vmul.f32 %v5947, %v5951
    %vm5953 = vweird.f32 %v5868
    %vm5954 = vweird.f32 %v5947
    %vm5955 = vmor %vm5953, %vm5954
    %v5956 = vsel %vm5955, %v5947, %v5952
    %v5957 = vrsqrt.pop %v5869
    %v5958 = vmul.f32 %v5957, %v5869
    %v5959 = vmul.f32 %v5958, %v5957
    %v5960 = vmul.f32 0.5, %v5959
    %v5961 = vsub.f32 1.5, %v5960
    %v5962 = vmul.f32 %v5957, %v5961
    %vm5963 = vweird.f32 %v5869
    %vm5964 = vweird.f32 %v5957
    %vm5965 = vmor %vm5963, %vm5964
    %v5966 = vsel %vm5965, %v5957, %v5962
    %v5967 = vrsqrt.pop %v5870
    %v5968 = vmul.f32 %v5967, %v5870
    %v5969 = vmul.f32 %v5968, %v5967
    %v5970 = vmul.f32 0.5, %v5969
    %v5971 = vsub.f32 1.5, %v5970
    %v5972 = vmul.f32 %v5967, %v5971
    %vm5973 = vweird.f32 %v5870
    %vm5974 = vweird.f32 %v5967
    %vm5975 = vmor %vm5973, %vm5974
    %v5976 = vsel %vm5975, %v5967, %v5972
    %v5977 = vrsqrt.pop %v5871
    %v5978 = vmul.f32 %v5977, %v5871
    %v5979 = vmul.f32 %v5978, %v5977
    %v5980 = vmul.f32 0.5, %v5979
    %v5981 = vsub.f32 1.5, %v5980
    %v5982 = vmul.f32 %v5977, %v5981
    %vm5983 = vweird.f32 %v5871
    %vm5984 = vweird.f32 %v5977
    %vm5985 = vmor %vm5983, %vm5984
    %v5986 = vsel %vm5985, %v5977, %v5982
    %v5987 = vrsqrt.pop %v5872
    %v5988 = vmul.f32 %v5987, %v5872
    %v5989 = vmul.f32 %v5988, %v5987
    %v5990 = vmul.f32 0.5, %v5989
    %v5991 = vsub.f32 1.5, %v5990
    %v5992 = vmul.f32 %v5987, %v5991
    %vm5993 = vweird.f32 %v5872
    %vm5994 = vweird.f32 %v5987
    %vm5995 = vmor %vm5993, %vm5994
    %v5996 = vsel %vm5995, %v5987, %v5992
    %v5997 = vrsqrt.pop %v5873
    %v5998 = vmul.f32 %v5997, %v5873
    %v5999 = vmul.f32 %v5998, %v5997
    %v6000 = vmul.f32 0.5, %v5999
    %v6001 = vsub.f32 1.5, %v6000
    %v6002 = vmul.f32 %v5997, %v6001
    %vm6003 = vweird.f32 %v5873
    %vm6004 = vweird.f32 %v5997
    %vm6005 = vmor %vm6003, %vm6004
    %v6006 = vsel %vm6005, %v5997, %v6002
    %v6007 = vrsqrt.pop %v5874
    %v6008 = vmul.f32 %v6007, %v5874
    %v6009 = vmul.f32 %v6008, %v6007
    %v6010 = vmul.f32 0.5, %v6009
    %v6011 = vsub.f32 1.5, %v6010
    %v6012 = vmul.f32 %v6007, %v6011
    %vm6013 = vweird.f32 %v5874
    %vm6014 = vweird.f32 %v6007
    %vm6015 = vmor %vm6013, %vm6014
    %v6016 = vsel %vm6015, %v6007, %v6012
    %v6017 = vrsqrt.pop %v5875
    %v6018 = vmul.f32 %v6017, %v5875
    %v6019 = vmul.f32 %v6018, %v6017
    %v6020 = vmul.f32 0.5, %v6019
    %v6021 = vsub.f32 1.5, %v6020
    %v6022 = vmul.f32 %v6017, %v6021
    %vm6023 = vweird.f32 %v5875
    %vm6024 = vweird.f32 %v6017
    %vm6025 = vmor %vm6023, %vm6024
    %v6026 = vsel %vm6025, %v6017, %v6022
    %v6027 = vrsqrt.pop %v5876
    %v6028 = vmul.f32 %v6027, %v5876
    %v6029 = vmul.f32 %v6028, %v6027
    %v6030 = vmul.f32 0.5, %v6029
    %v6031 = vsub.f32 1.5, %v6030
    %v6032 = vmul.f32 %v6027, %v6031
    %vm6033 = vweird.f32 %v5876
    %vm6034 = vweird.f32 %v6027
    %vm6035 = vmor %vm6033, %vm6034
    %v6036 = vsel %vm6035, %v6027, %v6032
    %v6037 = vmul.f32 %v5886, %v1852
    %v6038 = vmul.f32 %v5896, %v1854
    %v6039 = vmul.f32 %v5906, %v1856
    %v6040 = vmul.f32 %v5916, %v1858
    %v6041 = vmul.f32 %v5926, %v1860
    %v6042 = vmul.f32 %v5936, %v1862
    %v6043 = vmul.f32 %v5946, %v1864
    %v6044 = vmul.f32 %v5956, %v1866
    %v6045 = vmul.f32 %v5966, %v1868
    %v6046 = vmul.f32 %v5976, %v1870
    %v6047 = vmul.f32 %v5986, %v1872
    %v6048 = vmul.f32 %v5996, %v1874
    %v6049 = vmul.f32 %v6006, %v1876
    %v6050 = vmul.f32 %v6016, %v1878
    %v6051 = vmul.f32 %v6026, %v1880
    %v6052 = vmul.f32 %v6036, %v1882
    %v6053 = vmul.f32 %v5135, %v6037
    %v6054 = vmul.f32 %v5136, %v6038
    %v6055 = vmul.f32 %v5137, %v6039
    %v6056 = vmul.f32 %v5138, %v6040
    %v6057 = vmul.f32 %v5139, %v6041
    %v6058 = vmul.f32 %v5140, %v6042
    %v6059 = vmul.f32 %v5141, %v6043
    %v6060 = vmul.f32 %v5142, %v6044
    %v6061 = vmul.f32 %v5143, %v6045
    %v6062 = vmul.f32 %v5144, %v6046
    %v6063 = vmul.f32 %v5145, %v6047
    %v6064 = vmul.f32 %v5146, %v6048
    %v6065 = vmul.f32 %v5147, %v6049
    %v6066 = vmul.f32 %v5148, %v6050
    %v6067 = vmul.f32 %v5149, %v6051
    %v6068 = vmul.f32 %v5150, %v6052
    %6085 = vrot.lane.b32.xlu0 %v6053, 5
    %v6086 = vpop.permute.xlu0 %6085
    %6087 = vrot.lane.b32.xlu0 %v6054, 5
    %v6088 = vpop.permute.xlu0 %6087
    %6089 = vrot.lane.b32.xlu0 %v6055, 5
    %v6090 = vpop.permute.xlu0 %6089
    %6091 = vrot.lane.b32.xlu0 %v6056, 5
    %v6092 = vpop.permute.xlu0 %6091
    %6093 = vrot.lane.b32.xlu0 %v6057, 5
    %v6094 = vpop.permute.xlu0 %6093
    %6095 = vrot.lane.b32.xlu0 %v6058, 5
    %v6096 = vpop.permute.xlu0 %6095
    %6097 = vrot.lane.b32.xlu0 %v6059, 5
    %v6098 = vpop.permute.xlu0 %6097
    %6099 = vrot.lane.b32.xlu0 %v6060, 5
    %v6100 = vpop.permute.xlu0 %6099
    %6101 = vrot.lane.b32.xlu0 %v6061, 5
    %v6102 = vpop.permute.xlu0 %6101
    %6103 = vrot.lane.b32.xlu0 %v6062, 5
    %v6104 = vpop.permute.xlu0 %6103
    %6105 = vrot.lane.b32.xlu0 %v6063, 5
    %v6106 = vpop.permute.xlu0 %6105
    %6107 = vrot.lane.b32.xlu0 %v6064, 5
    %v6108 = vpop.permute.xlu0 %6107
    %6109 = vrot.lane.b32.xlu0 %v6065, 5
    %v6110 = vpop.permute.xlu0 %6109
    %6111 = vrot.lane.b32.xlu0 %v6066, 5
    %v6112 = vpop.permute.xlu0 %6111
    %6113 = vrot.lane.b32.xlu0 %v6067, 5
    %v6114 = vpop.permute.xlu0 %6113
    %6115 = vrot.lane.b32.xlu0 %v6068, 5
    %v6116 = vpop.permute.xlu0 %6115
    %v6133 = vsub.f32 %v39, %v6086
    %v6134 = vsub.f32 %v40, %v6088
    %v6135 = vsub.f32 %v41, %v6090
    %v6136 = vsub.f32 %v42, %v6092
    %v6137 = vsub.f32 %v43, %v6094
    %v6138 = vsub.f32 %v44, %v6096
    %v6139 = vsub.f32 %v45, %v6098
    %v6140 = vsub.f32 %v46, %v6100
    %v6141 = vsub.f32 %v47, %v6102
    %v6142 = vsub.f32 %v48, %v6104
    %v6143 = vsub.f32 %v49, %v6106
    %v6144 = vsub.f32 %v50, %v6108
    %v6145 = vsub.f32 %v51, %v6110
    %v6146 = vsub.f32 %v52, %v6112
    %v6147 = vsub.f32 %v53, %v6114
    %v6148 = vsub.f32 %v54, %v6116
    %6150 = vset.pattern.permute.xlu0 0
    %6151 = vperm.xlu0 %6150, %v6037
    %v6152 = vpop.permute.xlu0 %6151
    %6155 = vset.pattern.permute.xlu0 0
    %6156 = vperm.xlu0 %6155, %v6038
    %v6157 = vpop.permute.xlu0 %6156
    %6160 = vset.pattern.permute.xlu0 0
    %6161 = vperm.xlu0 %6160, %v6039
    %v6162 = vpop.permute.xlu0 %6161
    %6165 = vset.pattern.permute.xlu0 0
    %6166 = vperm.xlu0 %6165, %v6040
    %v6167 = vpop.permute.xlu0 %6166
    %6170 = vset.pattern.permute.xlu0 0
    %6171 = vperm.xlu0 %6170, %v6041
    %v6172 = vpop.permute.xlu0 %6171
    %6175 = vset.pattern.permute.xlu0 0
    %6176 = vperm.xlu0 %6175, %v6042
    %v6177 = vpop.permute.xlu0 %6176
    %6180 = vset.pattern.permute.xlu0 0
    %6181 = vperm.xlu0 %6180, %v6043
    %v6182 = vpop.permute.xlu0 %6181
    %6185 = vset.pattern.permute.xlu0 0
    %6186 = vperm.xlu0 %6185, %v6044
    %v6187 = vpop.permute.xlu0 %6186
    %6190 = vset.pattern.permute.xlu0 0
    %6191 = vperm.xlu0 %6190, %v6045
    %v6192 = vpop.permute.xlu0 %6191
    %6195 = vset.pattern.permute.xlu0 0
    %6196 = vperm.xlu0 %6195, %v6046
    %v6197 = vpop.permute.xlu0 %6196
    %6200 = vset.pattern.permute.xlu0 0
    %6201 = vperm.xlu0 %6200, %v6047
    %v6202 = vpop.permute.xlu0 %6201
    %6205 = vset.pattern.permute.xlu0 0
    %6206 = vperm.xlu0 %6205, %v6048
    %v6207 = vpop.permute.xlu0 %6206
    %6210 = vset.pattern.permute.xlu0 0
    %6211 = vperm.xlu0 %6210, %v6049
    %v6212 = vpop.permute.xlu0 %6211
    %6215 = vset.pattern.permute.xlu0 0
    %6216 = vperm.xlu0 %6215, %v6050
    %v6217 = vpop.permute.xlu0 %6216
    %6220 = vset.pattern.permute.xlu0 0
    %6221 = vperm.xlu0 %6220, %v6051
    %v6222 = vpop.permute.xlu0 %6221
    %6225 = vset.pattern.permute.xlu0 0
    %6226 = vperm.xlu0 %6225, %v6052
    %v6227 = vpop.permute.xlu0 %6226
    %v6229 = vmul.f32 %v4473, %v6152
    %v6230 = vmul.f32 %v4474, %v6157
    %v6231 = vmul.f32 %v4475, %v6162
    %v6232 = vmul.f32 %v4476, %v6167
    %v6233 = vmul.f32 %v4477, %v6172
    %v6234 = vmul.f32 %v4478, %v6177
    %v6235 = vmul.f32 %v4479, %v6182
    %v6236 = vmul.f32 %v4480, %v6187
    %v6237 = vmul.f32 %v4481, %v6192
    %v6238 = vmul.f32 %v4482, %v6197
    %v6239 = vmul.f32 %v4483, %v6202
    %v6240 = vmul.f32 %v4484, %v6207
    %v6241 = vmul.f32 %v4485, %v6212
    %v6242 = vmul.f32 %v4486, %v6217
    %v6243 = vmul.f32 %v4487, %v6222
    %v6244 = vmul.f32 %v4488, %v6227
    %6246 = vset.pattern.permute.xlu0 5
    %6247 = vperm.xlu0 %6246, %v6133
    %v6248 = vpop.permute.xlu0 %6247
    %6251 = vset.pattern.permute.xlu0 5
    %6252 = vperm.xlu0 %6251, %v6134
    %v6253 = vpop.permute.xlu0 %6252
    %6256 = vset.pattern.permute.xlu0 5
    %6257 = vperm.xlu0 %6256, %v6135
    %v6258 = vpop.permute.xlu0 %6257
    %6261 = vset.pattern.permute.xlu0 5
    %6262 = vperm.xlu0 %6261, %v6136
    %v6263 = vpop.permute.xlu0 %6262
    %6266 = vset.pattern.permute.xlu0 5
    %6267 = vperm.xlu0 %6266, %v6137
    %v6268 = vpop.permute.xlu0 %6267
    %6271 = vset.pattern.permute.xlu0 5
    %6272 = vperm.xlu0 %6271, %v6138
    %v6273 = vpop.permute.xlu0 %6272
    %6276 = vset.pattern.permute.xlu0 5
    %6277 = vperm.xlu0 %6276, %v6139
    %v6278 = vpop.permute.xlu0 %6277
    %6281 = vset.pattern.permute.xlu0 5
    %6282 = vperm.xlu0 %6281, %v6140
    %v6283 = vpop.permute.xlu0 %6282
    %6286 = vset.pattern.permute.xlu0 5
    %6287 = vperm.xlu0 %6286, %v6141
    %v6288 = vpop.permute.xlu0 %6287
    %6291 = vset.pattern.permute.xlu0 5
    %6292 = vperm.xlu0 %6291, %v6142
    %v6293 = vpop.permute.xlu0 %6292
    %6296 = vset.pattern.permute.xlu0 5
    %6297 = vperm.xlu0 %6296, %v6143
    %v6298 = vpop.permute.xlu0 %6297
    %6301 = vset.pattern.permute.xlu0 5
    %6302 = vperm.xlu0 %6301, %v6144
    %v6303 = vpop.permute.xlu0 %6302
    %6306 = vset.pattern.permute.xlu0 5
    %6307 = vperm.xlu0 %6306, %v6145
    %v6308 = vpop.permute.xlu0 %6307
    %6311 = vset.pattern.permute.xlu0 5
    %6312 = vperm.xlu0 %6311, %v6146
    %v6313 = vpop.permute.xlu0 %6312
    %6316 = vset.pattern.permute.xlu0 5
    %6317 = vperm.xlu0 %6316, %v6147
    %v6318 = vpop.permute.xlu0 %6317
    %6321 = vset.pattern.permute.xlu0 5
    %6322 = vperm.xlu0 %6321, %v6148
    %v6323 = vpop.permute.xlu0 %6322
    %v6325 = vadd.f32 %v6229, %v6248
    %v6326 = vadd.f32 %v6230, %v6253
    %v6327 = vadd.f32 %v6231, %v6258
    %v6328 = vadd.f32 %v6232, %v6263
    %v6329 = vadd.f32 %v6233, %v6268
    %v6330 = vadd.f32 %v6234, %v6273
    %v6331 = vadd.f32 %v6235, %v6278
    %v6332 = vadd.f32 %v6236, %v6283
    %v6333 = vadd.f32 %v6237, %v6288
    %v6334 = vadd.f32 %v6238, %v6293
    %v6335 = vadd.f32 %v6239, %v6298
    %v6336 = vadd.f32 %v6240, %v6303
    %v6337 = vadd.f32 %v6241, %v6308
    %v6338 = vadd.f32 %v6242, %v6313
    %v6339 = vadd.f32 %v6243, %v6318
    %v6340 = vadd.f32 %v6244, %v6323
    %v6341 = vlaneseq
    %v6342 = vshrl.u32 %v6341, 7
    %v6343 = vadd.s32 %v6342, 8
    %v6344 = vadd.s32 %v6342, 16
    %v6345 = vadd.s32 %v6342, 24
    %v6346 = vadd.s32 %v6342, 32
    %v6347 = vadd.s32 %v6342, 40
    %v6348 = vadd.s32 %v6342, 48
    %v6349 = vadd.s32 %v6342, 56
    %v6350 = vadd.s32 %v6342, 64
    %v6351 = vadd.s32 %v6342, 72
    %v6352 = vadd.s32 %v6342, 80
    %v6353 = vadd.s32 %v6342, 88
    %v6354 = vadd.s32 %v6342, 96
    %v6355 = vadd.s32 %v6342, 104
    %v6356 = vadd.s32 %v6342, 112
    %v6357 = vadd.s32 %v6342, 120
    %v6358 = vlaneseq
    %v6359 = vand.u32 %v6358, 127
    %v6360 = vmul.u32 %v6342, 2654435761
    %v6361 = vmul.u32 %v6343, 2654435761
    %v6362 = vmul.u32 %v6344, 2654435761
    %v6363 = vmul.u32 %v6345, 2654435761
    %v6364 = vmul.u32 %v6346, 2654435761
    %v6365 = vmul.u32 %v6347, 2654435761
    %v6366 = vmul.u32 %v6348, 2654435761
    %v6367 = vmul.u32 %v6349, 2654435761
    %v6368 = vmul.u32 %v6350, 2654435761
    %v6369 = vmul.u32 %v6351, 2654435761
    %v6370 = vmul.u32 %v6352, 2654435761
    %v6371 = vmul.u32 %v6353, 2654435761
    %v6372 = vmul.u32 %v6354, 2654435761
    %v6373 = vmul.u32 %v6355, 2654435761
    %v6374 = vmul.u32 %v6356, 2654435761
    %v6375 = vmul.u32 %v6357, 2654435761
    %v6376 = vmul.u32 %v6359, 2246822519
    %v6377 = vxor.u32 %v6360, %v6376
    %v6378 = vxor.u32 %v6361, %v6376
    %v6379 = vxor.u32 %v6362, %v6376
    %v6380 = vxor.u32 %v6363, %v6376
    %v6381 = vxor.u32 %v6364, %v6376
    %v6382 = vxor.u32 %v6365, %v6376
    %v6383 = vxor.u32 %v6366, %v6376
    %v6384 = vxor.u32 %v6367, %v6376
    %v6385 = vxor.u32 %v6368, %v6376
    %v6386 = vxor.u32 %v6369, %v6376
    %v6387 = vxor.u32 %v6370, %v6376
    %v6388 = vxor.u32 %v6371, %v6376
    %v6389 = vxor.u32 %v6372, %v6376
    %v6390 = vxor.u32 %v6373, %v6376
    %v6391 = vxor.u32 %v6374, %v6376
    %v6392 = vxor.u32 %v6375, %v6376
    %s6393 = smul.u32 %s38, 668265263
    %v6394 = vstv %s6393
    %v6395 = vadd.s32 %v6377, %v6394
    %v6396 = vadd.s32 %v6378, %v6394
    %v6397 = vadd.s32 %v6379, %v6394
    %v6398 = vadd.s32 %v6380, %v6394
    %v6399 = vadd.s32 %v6381, %v6394
    %v6400 = vadd.s32 %v6382, %v6394
    %v6401 = vadd.s32 %v6383, %v6394
    %v6402 = vadd.s32 %v6384, %v6394
    %v6403 = vadd.s32 %v6385, %v6394
    %v6404 = vadd.s32 %v6386, %v6394
    %v6405 = vadd.s32 %v6387, %v6394
    %v6406 = vadd.s32 %v6388, %v6394
    %v6407 = vadd.s32 %v6389, %v6394
    %v6408 = vadd.s32 %v6390, %v6394
    %v6409 = vadd.s32 %v6391, %v6394
    %v6410 = vadd.s32 %v6392, %v6394
    %v6411 = vshrl.u32 %v6395, 16
    %v6412 = vshrl.u32 %v6396, 16
    %v6413 = vshrl.u32 %v6397, 16
    %v6414 = vshrl.u32 %v6398, 16
    %v6415 = vshrl.u32 %v6399, 16
    %v6416 = vshrl.u32 %v6400, 16
    %v6417 = vshrl.u32 %v6401, 16
    %v6418 = vshrl.u32 %v6402, 16
    %v6419 = vshrl.u32 %v6403, 16
    %v6420 = vshrl.u32 %v6404, 16
    %v6421 = vshrl.u32 %v6405, 16
    %v6422 = vshrl.u32 %v6406, 16
    %v6423 = vshrl.u32 %v6407, 16
    %v6424 = vshrl.u32 %v6408, 16
    %v6425 = vshrl.u32 %v6409, 16
    %v6426 = vshrl.u32 %v6410, 16
    %v6427 = vxor.u32 %v6395, %v6411
    %v6428 = vxor.u32 %v6396, %v6412
    %v6429 = vxor.u32 %v6397, %v6413
    %v6430 = vxor.u32 %v6398, %v6414
    %v6431 = vxor.u32 %v6399, %v6415
    %v6432 = vxor.u32 %v6400, %v6416
    %v6433 = vxor.u32 %v6401, %v6417
    %v6434 = vxor.u32 %v6402, %v6418
    %v6435 = vxor.u32 %v6403, %v6419
    %v6436 = vxor.u32 %v6404, %v6420
    %v6437 = vxor.u32 %v6405, %v6421
    %v6438 = vxor.u32 %v6406, %v6422
    %v6439 = vxor.u32 %v6407, %v6423
    %v6440 = vxor.u32 %v6408, %v6424
    %v6441 = vxor.u32 %v6409, %v6425
    %v6442 = vxor.u32 %v6410, %v6426
    %v6443 = vmul.u32 %v6427, 2146121005
    %v6444 = vmul.u32 %v6428, 2146121005
    %v6445 = vmul.u32 %v6429, 2146121005
    %v6446 = vmul.u32 %v6430, 2146121005
    %v6447 = vmul.u32 %v6431, 2146121005
    %v6448 = vmul.u32 %v6432, 2146121005
    %v6449 = vmul.u32 %v6433, 2146121005
    %v6450 = vmul.u32 %v6434, 2146121005
    %v6451 = vmul.u32 %v6435, 2146121005
    %v6452 = vmul.u32 %v6436, 2146121005
    %v6453 = vmul.u32 %v6437, 2146121005
    %v6454 = vmul.u32 %v6438, 2146121005
    %v6455 = vmul.u32 %v6439, 2146121005
    %v6456 = vmul.u32 %v6440, 2146121005
    %v6457 = vmul.u32 %v6441, 2146121005
    %v6458 = vmul.u32 %v6442, 2146121005
    %v6459 = vshrl.u32 %v6443, 15
    %v6460 = vshrl.u32 %v6444, 15
    %v6461 = vshrl.u32 %v6445, 15
    %v6462 = vshrl.u32 %v6446, 15
    %v6463 = vshrl.u32 %v6447, 15
    %v6464 = vshrl.u32 %v6448, 15
    %v6465 = vshrl.u32 %v6449, 15
    %v6466 = vshrl.u32 %v6450, 15
    %v6467 = vshrl.u32 %v6451, 15
    %v6468 = vshrl.u32 %v6452, 15
    %v6469 = vshrl.u32 %v6453, 15
    %v6470 = vshrl.u32 %v6454, 15
    %v6471 = vshrl.u32 %v6455, 15
    %v6472 = vshrl.u32 %v6456, 15
    %v6473 = vshrl.u32 %v6457, 15
    %v6474 = vshrl.u32 %v6458, 15
    %v6475 = vxor.u32 %v6443, %v6459
    %v6476 = vxor.u32 %v6444, %v6460
    %v6477 = vxor.u32 %v6445, %v6461
    %v6478 = vxor.u32 %v6446, %v6462
    %v6479 = vxor.u32 %v6447, %v6463
    %v6480 = vxor.u32 %v6448, %v6464
    %v6481 = vxor.u32 %v6449, %v6465
    %v6482 = vxor.u32 %v6450, %v6466
    %v6483 = vxor.u32 %v6451, %v6467
    %v6484 = vxor.u32 %v6452, %v6468
    %v6485 = vxor.u32 %v6453, %v6469
    %v6486 = vxor.u32 %v6454, %v6470
    %v6487 = vxor.u32 %v6455, %v6471
    %v6488 = vxor.u32 %v6456, %v6472
    %v6489 = vxor.u32 %v6457, %v6473
    %v6490 = vxor.u32 %v6458, %v6474
    %v6491 = vmul.u32 %v6475, 2221713035
    %v6492 = vmul.u32 %v6476, 2221713035
    %v6493 = vmul.u32 %v6477, 2221713035
    %v6494 = vmul.u32 %v6478, 2221713035
    %v6495 = vmul.u32 %v6479, 2221713035
    %v6496 = vmul.u32 %v6480, 2221713035
    %v6497 = vmul.u32 %v6481, 2221713035
    %v6498 = vmul.u32 %v6482, 2221713035
    %v6499 = vmul.u32 %v6483, 2221713035
    %v6500 = vmul.u32 %v6484, 2221713035
    %v6501 = vmul.u32 %v6485, 2221713035
    %v6502 = vmul.u32 %v6486, 2221713035
    %v6503 = vmul.u32 %v6487, 2221713035
    %v6504 = vmul.u32 %v6488, 2221713035
    %v6505 = vmul.u32 %v6489, 2221713035
    %v6506 = vmul.u32 %v6490, 2221713035
    %v6507 = vshrl.u32 %v6491, 16
    %v6508 = vshrl.u32 %v6492, 16
    %v6509 = vshrl.u32 %v6493, 16
    %v6510 = vshrl.u32 %v6494, 16
    %v6511 = vshrl.u32 %v6495, 16
    %v6512 = vshrl.u32 %v6496, 16
    %v6513 = vshrl.u32 %v6497, 16
    %v6514 = vshrl.u32 %v6498, 16
    %v6515 = vshrl.u32 %v6499, 16
    %v6516 = vshrl.u32 %v6500, 16
    %v6517 = vshrl.u32 %v6501, 16
    %v6518 = vshrl.u32 %v6502, 16
    %v6519 = vshrl.u32 %v6503, 16
    %v6520 = vshrl.u32 %v6504, 16
    %v6521 = vshrl.u32 %v6505, 16
    %v6522 = vshrl.u32 %v6506, 16
    %v6523 = vxor.u32 %v6491, %v6507
    %v6524 = vxor.u32 %v6492, %v6508
    %v6525 = vxor.u32 %v6493, %v6509
    %v6526 = vxor.u32 %v6494, %v6510
    %v6527 = vxor.u32 %v6495, %v6511
    %v6528 = vxor.u32 %v6496, %v6512
    %v6529 = vxor.u32 %v6497, %v6513
    %v6530 = vxor.u32 %v6498, %v6514
    %v6531 = vxor.u32 %v6499, %v6515
    %v6532 = vxor.u32 %v6500, %v6516
    %v6533 = vxor.u32 %v6501, %v6517
    %v6534 = vxor.u32 %v6502, %v6518
    %v6535 = vxor.u32 %v6503, %v6519
    %v6536 = vxor.u32 %v6504, %v6520
    %v6537 = vxor.u32 %v6505, %v6521
    %v6538 = vxor.u32 %v6506, %v6522
    %v6539 = vand.u32 %v6523, 65535
    %v6540 = vand.u32 %v6524, 65535
    %v6541 = vand.u32 %v6525, 65535
    %v6542 = vand.u32 %v6526, 65535
    %v6543 = vand.u32 %v6527, 65535
    %v6544 = vand.u32 %v6528, 65535
    %v6545 = vand.u32 %v6529, 65535
    %v6546 = vand.u32 %v6530, 65535
    %v6547 = vand.u32 %v6531, 65535
    %v6548 = vand.u32 %v6532, 65535
    %v6549 = vand.u32 %v6533, 65535
    %v6550 = vand.u32 %v6534, 65535
    %v6551 = vand.u32 %v6535, 65535
    %v6552 = vand.u32 %v6536, 65535
    %v6553 = vand.u32 %v6537, 65535
    %v6554 = vand.u32 %v6538, 65535
    %vm6555 = vcmp.ge.s32.totalorder %v6539, 6554
    %vm6556 = vcmp.ge.s32.totalorder %v6540, 6554
    %vm6557 = vcmp.ge.s32.totalorder %v6541, 6554
    %vm6558 = vcmp.ge.s32.totalorder %v6542, 6554
    %vm6559 = vcmp.ge.s32.totalorder %v6543, 6554
    %vm6560 = vcmp.ge.s32.totalorder %v6544, 6554
    %vm6561 = vcmp.ge.s32.totalorder %v6545, 6554
    %vm6562 = vcmp.ge.s32.totalorder %v6546, 6554
    %vm6563 = vcmp.ge.s32.totalorder %v6547, 6554
    %vm6564 = vcmp.ge.s32.totalorder %v6548, 6554
    %vm6565 = vcmp.ge.s32.totalorder %v6549, 6554
    %vm6566 = vcmp.ge.s32.totalorder %v6550, 6554
    %vm6567 = vcmp.ge.s32.totalorder %v6551, 6554
    %vm6568 = vcmp.ge.s32.totalorder %v6552, 6554
    %vm6569 = vcmp.ge.s32.totalorder %v6553, 6554
    %vm6570 = vcmp.ge.s32.totalorder %v6554, 6554
    %v6571 = vshrl.u32 %v6523, 16
    %v6572 = vshrl.u32 %v6524, 16
    %v6573 = vshrl.u32 %v6525, 16
    %v6574 = vshrl.u32 %v6526, 16
    %v6575 = vshrl.u32 %v6527, 16
    %v6576 = vshrl.u32 %v6528, 16
    %v6577 = vshrl.u32 %v6529, 16
    %v6578 = vshrl.u32 %v6530, 16
    %v6579 = vshrl.u32 %v6531, 16
    %v6580 = vshrl.u32 %v6532, 16
    %v6581 = vshrl.u32 %v6533, 16
    %v6582 = vshrl.u32 %v6534, 16
    %v6583 = vshrl.u32 %v6535, 16
    %v6584 = vshrl.u32 %v6536, 16
    %v6585 = vshrl.u32 %v6537, 16
    %v6586 = vshrl.u32 %v6538, 16
    %vm6587 = vcmp.ge.s32.totalorder %v6571, 26214
    %vm6588 = vcmp.ge.s32.totalorder %v6572, 26214
    %vm6589 = vcmp.ge.s32.totalorder %v6573, 26214
    %vm6590 = vcmp.ge.s32.totalorder %v6574, 26214
    %vm6591 = vcmp.ge.s32.totalorder %v6575, 26214
    %vm6592 = vcmp.ge.s32.totalorder %v6576, 26214
    %vm6593 = vcmp.ge.s32.totalorder %v6577, 26214
    %vm6594 = vcmp.ge.s32.totalorder %v6578, 26214
    %vm6595 = vcmp.ge.s32.totalorder %v6579, 26214
    %vm6596 = vcmp.ge.s32.totalorder %v6580, 26214
    %vm6597 = vcmp.ge.s32.totalorder %v6581, 26214
    %vm6598 = vcmp.ge.s32.totalorder %v6582, 26214
    %vm6599 = vcmp.ge.s32.totalorder %v6583, 26214
    %vm6600 = vcmp.ge.s32.totalorder %v6584, 26214
    %vm6601 = vcmp.ge.s32.totalorder %v6585, 26214
    %vm6602 = vcmp.ge.s32.totalorder %v6586, 26214
    %v6603 = vsel %vm6555, %v6325, 0.0
    %v6604 = vsel %vm6556, %v6326, 0.0
    %v6605 = vsel %vm6557, %v6327, 0.0
    %v6606 = vsel %vm6558, %v6328, 0.0
    %v6607 = vsel %vm6559, %v6329, 0.0
    %v6608 = vsel %vm6560, %v6330, 0.0
    %v6609 = vsel %vm6561, %v6331, 0.0
    %v6610 = vsel %vm6562, %v6332, 0.0
    %v6611 = vsel %vm6563, %v6333, 0.0
    %v6612 = vsel %vm6564, %v6334, 0.0
    %v6613 = vsel %vm6565, %v6335, 0.0
    %v6614 = vsel %vm6566, %v6336, 0.0
    %v6615 = vsel %vm6567, %v6337, 0.0
    %v6616 = vsel %vm6568, %v6338, 0.0
    %v6617 = vsel %vm6569, %v6339, 0.0
    %v6618 = vsel %vm6570, %v6340, 0.0
    %v6619 = vld [vmem:[%s5] sm:$0xf]
    %v6620 = vld [vmem:[%s5 + $0x4] sm:$0xf]
    %v6621 = vld [vmem:[%s5 + $0x8] sm:$0xf]
    %v6622 = vld [vmem:[%s5 + $0xc] sm:$0xf]
    %v6623 = vld [vmem:[%s5 + $0x10] sm:$0xf]
    %v6624 = vld [vmem:[%s5 + $0x14] sm:$0xf]
    %v6625 = vld [vmem:[%s5 + $0x18] sm:$0xf]
    %v6626 = vld [vmem:[%s5 + $0x1c] sm:$0xf]
    %v6627 = vld [vmem:[%s5 + $0x20] sm:$0xf]
    %v6628 = vld [vmem:[%s5 + $0x24] sm:$0xf]
    %v6629 = vld [vmem:[%s5 + $0x28] sm:$0xf]
    %v6630 = vld [vmem:[%s5 + $0x2c] sm:$0xf]
    %v6631 = vld [vmem:[%s5 + $0x30] sm:$0xf]
    %v6632 = vld [vmem:[%s5 + $0x34] sm:$0xf]
    %v6633 = vld [vmem:[%s5 + $0x38] sm:$0xf]
    %v6634 = vld [vmem:[%s5 + $0x3c] sm:$0xf]
    %v6635 = vpack.c.bf16 %v6604, %v6603
    %v6636 = vpack.c.bf16 %v6606, %v6605
    %v6637 = vpack.c.bf16 %v6608, %v6607
    %v6638 = vpack.c.bf16 %v6610, %v6609
    %v6639 = vpack.c.bf16 %v6612, %v6611
    %v6640 = vpack.c.bf16 %v6614, %v6613
    %v6641 = vpack.c.bf16 %v6616, %v6615
    %v6642 = vpack.c.bf16 %v6618, %v6617
    %6643 = vset.pattern.permute.xlu0 3
    %6644 = vperm.xlu0 %6643, %v39
    %v6645 = vpop.permute.xlu0 %6644
    %6647 = vset.pattern.permute.xlu0 3
    %6648 = vperm.xlu0 %6647, %v40
    %v6649 = vpop.permute.xlu0 %6648
    %6651 = vset.pattern.permute.xlu0 3
    %6652 = vperm.xlu0 %6651, %v41
    %v6653 = vpop.permute.xlu0 %6652
    %6655 = vset.pattern.permute.xlu0 3
    %6656 = vperm.xlu0 %6655, %v42
    %v6657 = vpop.permute.xlu0 %6656
    %6659 = vset.pattern.permute.xlu0 3
    %6660 = vperm.xlu0 %6659, %v43
    %v6661 = vpop.permute.xlu0 %6660
    %6663 = vset.pattern.permute.xlu0 3
    %6664 = vperm.xlu0 %6663, %v44
    %v6665 = vpop.permute.xlu0 %6664
    %6667 = vset.pattern.permute.xlu0 3
    %6668 = vperm.xlu0 %6667, %v45
    %v6669 = vpop.permute.xlu0 %6668
    %6671 = vset.pattern.permute.xlu0 3
    %6672 = vperm.xlu0 %6671, %v46
    %v6673 = vpop.permute.xlu0 %6672
    %6675 = vset.pattern.permute.xlu0 3
    %6676 = vperm.xlu0 %6675, %v47
    %v6677 = vpop.permute.xlu0 %6676
    %6679 = vset.pattern.permute.xlu0 3
    %6680 = vperm.xlu0 %6679, %v48
    %v6681 = vpop.permute.xlu0 %6680
    %6683 = vset.pattern.permute.xlu0 3
    %6684 = vperm.xlu0 %6683, %v49
    %v6685 = vpop.permute.xlu0 %6684
    %6687 = vset.pattern.permute.xlu0 3
    %6688 = vperm.xlu0 %6687, %v50
    %v6689 = vpop.permute.xlu0 %6688
    %6691 = vset.pattern.permute.xlu0 3
    %6692 = vperm.xlu0 %6691, %v51
    %v6693 = vpop.permute.xlu0 %6692
    %6695 = vset.pattern.permute.xlu0 3
    %6696 = vperm.xlu0 %6695, %v52
    %v6697 = vpop.permute.xlu0 %6696
    %6699 = vset.pattern.permute.xlu0 3
    %6700 = vperm.xlu0 %6699, %v53
    %v6701 = vpop.permute.xlu0 %6700
    %6703 = vset.pattern.permute.xlu0 3
    %6704 = vperm.xlu0 %6703, %v54
    %v6705 = vpop.permute.xlu0 %6704
    %v6723 = vunpack.c.l.b16 %v6619
    %v6724 = vunpack.c.l.b16 %v6620
    %v6725 = vunpack.c.l.b16 %v6621
    %v6726 = vunpack.c.l.b16 %v6622
    %v6727 = vunpack.c.l.b16 %v6623
    %v6728 = vunpack.c.l.b16 %v6624
    %v6729 = vunpack.c.l.b16 %v6625
    %v6730 = vunpack.c.l.b16 %v6626
    %v6731 = vunpack.c.l.b16 %v6627
    %v6732 = vunpack.c.l.b16 %v6628
    %v6733 = vunpack.c.l.b16 %v6629
    %v6734 = vunpack.c.l.b16 %v6630
    %v6735 = vunpack.c.l.b16 %v6631
    %v6736 = vunpack.c.l.b16 %v6632
    %v6737 = vunpack.c.l.b16 %v6633
    %v6738 = vunpack.c.l.b16 %v6634
    %v6739 = vpack.c.b16 %v6724, %v6723
    %v6740 = vpack.c.b16 %v6726, %v6725
    %v6741 = vpack.c.b16 %v6728, %v6727
    %v6742 = vpack.c.b16 %v6730, %v6729
    %v6743 = vpack.c.b16 %v6732, %v6731
    %v6744 = vpack.c.b16 %v6734, %v6733
    %v6745 = vpack.c.b16 %v6736, %v6735
    %v6746 = vpack.c.b16 %v6738, %v6737
    %6755 = vmatpush.bf16.msra.mxu0 %v6642
    %6756 = vmatpush.bf16.msra.mxu0 %v6641
    %6757 = vmatpush.bf16.msra.mxu0 %v6640
    %6758 = vmatpush.bf16.msra.mxu0 %v6639
    %6759 = vmatpush.bf16.msra.mxu0 %v6638
    %6760 = vmatpush.bf16.msra.mxu0 %v6637
    %6761 = vmatpush.bf16.msra.mxu0 %v6636
    %6762 = vmatpush.bf16.msra.mxu0 %v6635
    %6763 = vmatmul.bf16.gmra.mxu0 %v6739
    %v6764 = vpop.f32.mrf.mxu0
    %v6765 = vadd.f32 %v6645, %v6764
    %v6766 = vpop.f32.mrf.mxu0
    %v6767 = vadd.f32 %v6649, %v6766
    %6768 = vmatmul.bf16.gmra.mxu0 %v6740
    %v6769 = vpop.f32.mrf.mxu0
    %v6770 = vadd.f32 %v6653, %v6769
    %v6771 = vpop.f32.mrf.mxu0
    %v6772 = vadd.f32 %v6657, %v6771
    %6773 = vmatmul.bf16.gmra.mxu0 %v6741
    %v6774 = vpop.f32.mrf.mxu0
    %v6775 = vadd.f32 %v6661, %v6774
    %v6776 = vpop.f32.mrf.mxu0
    %v6777 = vadd.f32 %v6665, %v6776
    %6778 = vmatmul.bf16.gmra.mxu0 %v6742
    %v6779 = vpop.f32.mrf.mxu0
    %v6780 = vadd.f32 %v6669, %v6779
    %v6781 = vpop.f32.mrf.mxu0
    %v6782 = vadd.f32 %v6673, %v6781
    %6783 = vmatmul.bf16.gmra.mxu0 %v6743
    %v6784 = vpop.f32.mrf.mxu0
    %v6785 = vadd.f32 %v6677, %v6784
    %v6786 = vpop.f32.mrf.mxu0
    %v6787 = vadd.f32 %v6681, %v6786
    %6788 = vmatmul.bf16.gmra.mxu0 %v6744
    %v6789 = vpop.f32.mrf.mxu0
    %v6790 = vadd.f32 %v6685, %v6789
    %v6791 = vpop.f32.mrf.mxu0
    %v6792 = vadd.f32 %v6689, %v6791
    %6793 = vmatmul.bf16.gmra.mxu0 %v6745
    %v6794 = vpop.f32.mrf.mxu0
    %v6795 = vadd.f32 %v6693, %v6794
    %v6796 = vpop.f32.mrf.mxu0
    %v6797 = vadd.f32 %v6697, %v6796
    %6798 = vmatmul.bf16.gmra.mxu0 %v6746
    %v6799 = vpop.f32.mrf.mxu0
    %v6800 = vadd.f32 %v6701, %v6799
    %v6801 = vpop.f32.mrf.mxu0
    %v6802 = vadd.f32 %v6705, %v6801
    %6803 = vdwg.mxu0
    %v6804 = vmul.f32 %v6765, 0.01
    %v6805 = vmul.f32 %v6767, 0.01
    %v6806 = vmul.f32 %v6770, 0.01
    %v6807 = vmul.f32 %v6772, 0.01
    %v6808 = vmul.f32 %v6775, 0.01
    %v6809 = vmul.f32 %v6777, 0.01
    %v6810 = vmul.f32 %v6780, 0.01
    %v6811 = vmul.f32 %v6782, 0.01
    %v6812 = vmul.f32 %v6785, 0.01
    %v6813 = vmul.f32 %v6787, 0.01
    %v6814 = vmul.f32 %v6790, 0.01
    %v6815 = vmul.f32 %v6792, 0.01
    %v6816 = vmul.f32 %v6795, 0.01
    %v6817 = vmul.f32 %v6797, 0.01
    %v6818 = vmul.f32 %v6800, 0.01
    %v6819 = vmul.f32 %v6802, 0.01
    %v6820 = vmax.f32 %v6765, %v6804
    %v6821 = vmax.f32 %v6767, %v6805
    %v6822 = vmax.f32 %v6770, %v6806
    %v6823 = vmax.f32 %v6772, %v6807
    %v6824 = vmax.f32 %v6775, %v6808
    %v6825 = vmax.f32 %v6777, %v6809
    %v6826 = vmax.f32 %v6780, %v6810
    %v6827 = vmax.f32 %v6782, %v6811
    %v6828 = vmax.f32 %v6785, %v6812
    %v6829 = vmax.f32 %v6787, %v6813
    %v6830 = vmax.f32 %v6790, %v6814
    %v6831 = vmax.f32 %v6792, %v6815
    %v6832 = vmax.f32 %v6795, %v6816
    %v6833 = vmax.f32 %v6797, %v6817
    %v6834 = vmax.f32 %v6800, %v6818
    %v6835 = vmax.f32 %v6802, %v6819
    %v6837 = vsel %vm302, %v6820, 0
    %v6840 = vsel %vm302, %v6821, 0
    %v6843 = vsel %vm302, %v6822, 0
    %v6846 = vsel %vm302, %v6823, 0
    %v6849 = vsel %vm302, %v6824, 0
    %v6852 = vsel %vm302, %v6825, 0
    %v6855 = vsel %vm302, %v6826, 0
    %v6858 = vsel %vm302, %v6827, 0
    %v6861 = vsel %vm302, %v6828, 0
    %v6864 = vsel %vm302, %v6829, 0
    %v6867 = vsel %vm302, %v6830, 0
    %v6870 = vsel %vm302, %v6831, 0
    %v6873 = vsel %vm302, %v6832, 0
    %v6876 = vsel %vm302, %v6833, 0
    %v6879 = vsel %vm302, %v6834, 0
    %v6882 = vsel %vm302, %v6835, 0
    %6884 = vmatpush.msra.mxu0 0.0
    %6885 = vmatpush.msra.mxu0 0.0
    %6886 = vmatpush.msra.mxu0 0.0
    %6887 = vmatpush.msra.mxu0 0.0
    %6888 = vmatpush.msra.mxu0 0.0
    %6889 = vmatpush.msra.mxu0 0.0
    %6890 = vmatpush.msra.mxu0 0.0
    %6891 = vmatpush.msra.mxu0 0.0
    %6892 = vmatpush.msra.mxu0 1.0
    %6893 = vmatpush.msra.mxu0 1.0
    %6894 = vmatpush.msra.mxu0 1.0
    %6895 = vmatpush.msra.mxu0 1.0
    %6896 = vmatpush.msra.mxu0 1.0
    %6897 = vmatpush.msra.mxu0 1.0
    %6898 = vmatpush.msra.mxu0 1.0
    %6899 = vmatpush.msra.mxu0 1.0
    %v6900 = vand.u32 %v6837, 4294901760
    %v6901 = vsub.f32 %v6837, %v6900
    %v6902 = vand.u32 %v6901, 4294901760
    %v6903 = vsub.f32 %v6901, %v6902
    %v6904 = vand.u32 %v6903, 4294901760
    %6905 = vmatmul.f32.gmra.mxu0 %v6904
    %v6906 = vpop.f32.mrf.mxu0
    %v6907 = vadd.f32 0.0, %v6906
    %v6908 = vand.u32 %v6840, 4294901760
    %v6909 = vsub.f32 %v6840, %v6908
    %v6910 = vand.u32 %v6909, 4294901760
    %v6911 = vsub.f32 %v6909, %v6910
    %v6912 = vand.u32 %v6911, 4294901760
    %6913 = vmatmul.f32.gmra.mxu0 %v6912
    %v6914 = vpop.f32.mrf.mxu0
    %v6915 = vadd.f32 0.0, %v6914
    %v6916 = vand.u32 %v6843, 4294901760
    %v6917 = vsub.f32 %v6843, %v6916
    %v6918 = vand.u32 %v6917, 4294901760
    %v6919 = vsub.f32 %v6917, %v6918
    %v6920 = vand.u32 %v6919, 4294901760
    %6921 = vmatmul.f32.gmra.mxu0 %v6920
    %v6922 = vpop.f32.mrf.mxu0
    %v6923 = vadd.f32 0.0, %v6922
    %v6924 = vand.u32 %v6846, 4294901760
    %v6925 = vsub.f32 %v6846, %v6924
    %v6926 = vand.u32 %v6925, 4294901760
    %v6927 = vsub.f32 %v6925, %v6926
    %v6928 = vand.u32 %v6927, 4294901760
    %6929 = vmatmul.f32.gmra.mxu0 %v6928
    %v6930 = vpop.f32.mrf.mxu0
    %v6931 = vadd.f32 0.0, %v6930
    %v6932 = vand.u32 %v6849, 4294901760
    %v6933 = vsub.f32 %v6849, %v6932
    %v6934 = vand.u32 %v6933, 4294901760
    %v6935 = vsub.f32 %v6933, %v6934
    %v6936 = vand.u32 %v6935, 4294901760
    %6937 = vmatmul.f32.gmra.mxu0 %v6936
    %v6938 = vpop.f32.mrf.mxu0
    %v6939 = vadd.f32 0.0, %v6938
    %v6940 = vand.u32 %v6852, 4294901760
    %v6941 = vsub.f32 %v6852, %v6940
    %v6942 = vand.u32 %v6941, 4294901760
    %v6943 = vsub.f32 %v6941, %v6942
    %v6944 = vand.u32 %v6943, 4294901760
    %6945 = vmatmul.f32.gmra.mxu0 %v6944
    %v6946 = vpop.f32.mrf.mxu0
    %v6947 = vadd.f32 0.0, %v6946
    %v6948 = vand.u32 %v6855, 4294901760
    %v6949 = vsub.f32 %v6855, %v6948
    %v6950 = vand.u32 %v6949, 4294901760
    %v6951 = vsub.f32 %v6949, %v6950
    %v6952 = vand.u32 %v6951, 4294901760
    %6953 = vmatmul.f32.gmra.mxu0 %v6952
    %v6954 = vpop.f32.mrf.mxu0
    %v6955 = vadd.f32 0.0, %v6954
    %v6956 = vand.u32 %v6858, 4294901760
    %v6957 = vsub.f32 %v6858, %v6956
    %v6958 = vand.u32 %v6957, 4294901760
    %v6959 = vsub.f32 %v6957, %v6958
    %v6960 = vand.u32 %v6959, 4294901760
    %6961 = vmatmul.f32.gmra.mxu0 %v6960
    %v6962 = vpop.f32.mrf.mxu0
    %v6963 = vadd.f32 0.0, %v6962
    %v6964 = vand.u32 %v6861, 4294901760
    %v6965 = vsub.f32 %v6861, %v6964
    %v6966 = vand.u32 %v6965, 4294901760
    %v6967 = vsub.f32 %v6965, %v6966
    %v6968 = vand.u32 %v6967, 4294901760
    %6969 = vmatmul.f32.gmra.mxu0 %v6968
    %v6970 = vpop.f32.mrf.mxu0
    %v6971 = vadd.f32 0.0, %v6970
    %v6972 = vand.u32 %v6864, 4294901760
    %v6973 = vsub.f32 %v6864, %v6972
    %v6974 = vand.u32 %v6973, 4294901760
    %v6975 = vsub.f32 %v6973, %v6974
    %v6976 = vand.u32 %v6975, 4294901760
    %6977 = vmatmul.f32.gmra.mxu0 %v6976
    %v6978 = vpop.f32.mrf.mxu0
    %v6979 = vadd.f32 0.0, %v6978
    %v6980 = vand.u32 %v6867, 4294901760
    %v6981 = vsub.f32 %v6867, %v6980
    %v6982 = vand.u32 %v6981, 4294901760
    %v6983 = vsub.f32 %v6981, %v6982
    %v6984 = vand.u32 %v6983, 4294901760
    %6985 = vmatmul.f32.gmra.mxu0 %v6984
    %v6986 = vpop.f32.mrf.mxu0
    %v6987 = vadd.f32 0.0, %v6986
    %v6988 = vand.u32 %v6870, 4294901760
    %v6989 = vsub.f32 %v6870, %v6988
    %v6990 = vand.u32 %v6989, 4294901760
    %v6991 = vsub.f32 %v6989, %v6990
    %v6992 = vand.u32 %v6991, 4294901760
    %6993 = vmatmul.f32.gmra.mxu0 %v6992
    %v6994 = vpop.f32.mrf.mxu0
    %v6995 = vadd.f32 0.0, %v6994
    %v6996 = vand.u32 %v6873, 4294901760
    %v6997 = vsub.f32 %v6873, %v6996
    %v6998 = vand.u32 %v6997, 4294901760
    %v6999 = vsub.f32 %v6997, %v6998
    %v7000 = vand.u32 %v6999, 4294901760
    %7001 = vmatmul.f32.gmra.mxu0 %v7000
    %v7002 = vpop.f32.mrf.mxu0
    %v7003 = vadd.f32 0.0, %v7002
    %v7004 = vand.u32 %v6876, 4294901760
    %v7005 = vsub.f32 %v6876, %v7004
    %v7006 = vand.u32 %v7005, 4294901760
    %v7007 = vsub.f32 %v7005, %v7006
    %v7008 = vand.u32 %v7007, 4294901760
    %7009 = vmatmul.f32.gmra.mxu0 %v7008
    %v7010 = vpop.f32.mrf.mxu0
    %v7011 = vadd.f32 0.0, %v7010
    %v7012 = vand.u32 %v6879, 4294901760
    %v7013 = vsub.f32 %v6879, %v7012
    %v7014 = vand.u32 %v7013, 4294901760
    %v7015 = vsub.f32 %v7013, %v7014
    %v7016 = vand.u32 %v7015, 4294901760
    %7017 = vmatmul.f32.gmra.mxu0 %v7016
    %v7018 = vpop.f32.mrf.mxu0
    %v7019 = vadd.f32 0.0, %v7018
    %v7020 = vand.u32 %v6882, 4294901760
    %v7021 = vsub.f32 %v6882, %v7020
    %v7022 = vand.u32 %v7021, 4294901760
    %v7023 = vsub.f32 %v7021, %v7022
    %v7024 = vand.u32 %v7023, 4294901760
    %7025 = vmatmul.f32.gmra.mxu0 %v7024
    %v7026 = vpop.f32.mrf.mxu0
    %v7027 = vadd.f32 0.0, %v7026
    %7028 = vdwg.mxu0
    %7029 = vmatpush.msra.mxu0 0.0
    %7030 = vmatpush.msra.mxu0 0.0
    %7031 = vmatpush.msra.mxu0 0.0
    %7032 = vmatpush.msra.mxu0 0.0
    %7033 = vmatpush.msra.mxu0 0.0
    %7034 = vmatpush.msra.mxu0 0.0
    %7035 = vmatpush.msra.mxu0 0.0
    %7036 = vmatpush.msra.mxu0 0.0
    %7037 = vmatpush.msra.mxu0 0.0
    %7038 = vmatpush.msra.mxu0 0.0
    %7039 = vmatpush.msra.mxu0 0.0
    %7040 = vmatpush.msra.mxu0 0.0
    %7041 = vmatpush.msra.mxu0 0.0
    %7042 = vmatpush.msra.mxu0 0.0
    %7043 = vmatpush.msra.mxu0 0.0
    %7044 = vmatpush.msra.mxu0 0.0
    %v7045 = vand.u32 %v6837, 4294901760
    %7046 = vmatmul.f32.gmra.mxu0 %v7045
    %v7047 = vpop.f32.mrf.mxu0
    %v7048 = vadd.f32 %v6907, %v7047
    %v7049 = vand.u32 %v6840, 4294901760
    %7050 = vmatmul.f32.gmra.mxu0 %v7049
    %v7051 = vpop.f32.mrf.mxu0
    %v7052 = vadd.f32 %v6915, %v7051
    %v7053 = vand.u32 %v6843, 4294901760
    %7054 = vmatmul.f32.gmra.mxu0 %v7053
    %v7055 = vpop.f32.mrf.mxu0
    %v7056 = vadd.f32 %v6923, %v7055
    %v7057 = vand.u32 %v6846, 4294901760
    %7058 = vmatmul.f32.gmra.mxu0 %v7057
    %v7059 = vpop.f32.mrf.mxu0
    %v7060 = vadd.f32 %v6931, %v7059
    %v7061 = vand.u32 %v6849, 4294901760
    %7062 = vmatmul.f32.gmra.mxu0 %v7061
    %v7063 = vpop.f32.mrf.mxu0
    %v7064 = vadd.f32 %v6939, %v7063
    %v7065 = vand.u32 %v6852, 4294901760
    %7066 = vmatmul.f32.gmra.mxu0 %v7065
    %v7067 = vpop.f32.mrf.mxu0
    %v7068 = vadd.f32 %v6947, %v7067
    %v7069 = vand.u32 %v6855, 4294901760
    %7070 = vmatmul.f32.gmra.mxu0 %v7069
    %v7071 = vpop.f32.mrf.mxu0
    %v7072 = vadd.f32 %v6955, %v7071
    %v7073 = vand.u32 %v6858, 4294901760
    %7074 = vmatmul.f32.gmra.mxu0 %v7073
    %v7075 = vpop.f32.mrf.mxu0
    %v7076 = vadd.f32 %v6963, %v7075
    %v7077 = vand.u32 %v6861, 4294901760
    %7078 = vmatmul.f32.gmra.mxu0 %v7077
    %v7079 = vpop.f32.mrf.mxu0
    %v7080 = vadd.f32 %v6971, %v7079
    %v7081 = vand.u32 %v6864, 4294901760
    %7082 = vmatmul.f32.gmra.mxu0 %v7081
    %v7083 = vpop.f32.mrf.mxu0
    %v7084 = vadd.f32 %v6979, %v7083
    %v7085 = vand.u32 %v6867, 4294901760
    %7086 = vmatmul.f32.gmra.mxu0 %v7085
    %v7087 = vpop.f32.mrf.mxu0
    %v7088 = vadd.f32 %v6987, %v7087
    %v7089 = vand.u32 %v6870, 4294901760
    %7090 = vmatmul.f32.gmra.mxu0 %v7089
    %v7091 = vpop.f32.mrf.mxu0
    %v7092 = vadd.f32 %v6995, %v7091
    %v7093 = vand.u32 %v6873, 4294901760
    %7094 = vmatmul.f32.gmra.mxu0 %v7093
    %v7095 = vpop.f32.mrf.mxu0
    %v7096 = vadd.f32 %v7003, %v7095
    %v7097 = vand.u32 %v6876, 4294901760
    %7098 = vmatmul.f32.gmra.mxu0 %v7097
    %v7099 = vpop.f32.mrf.mxu0
    %v7100 = vadd.f32 %v7011, %v7099
    %v7101 = vand.u32 %v6879, 4294901760
    %7102 = vmatmul.f32.gmra.mxu0 %v7101
    %v7103 = vpop.f32.mrf.mxu0
    %v7104 = vadd.f32 %v7019, %v7103
    %v7105 = vand.u32 %v6882, 4294901760
    %7106 = vmatmul.f32.gmra.mxu0 %v7105
    %v7107 = vpop.f32.mrf.mxu0
    %v7108 = vadd.f32 %v7027, %v7107
    %7109 = vdwg.mxu0
    %7110 = vmatpush.msra.mxu0 0.0
    %7111 = vmatpush.msra.mxu0 0.0
    %7112 = vmatpush.msra.mxu0 0.0
    %7113 = vmatpush.msra.mxu0 0.0
    %7114 = vmatpush.msra.mxu0 0.0
    %7115 = vmatpush.msra.mxu0 0.0
    %7116 = vmatpush.msra.mxu0 0.0
    %7117 = vmatpush.msra.mxu0 0.0
    %7118 = vmatpush.msra.mxu0 0.0
    %7119 = vmatpush.msra.mxu0 0.0
    %7120 = vmatpush.msra.mxu0 0.0
    %7121 = vmatpush.msra.mxu0 0.0
    %7122 = vmatpush.msra.mxu0 0.0
    %7123 = vmatpush.msra.mxu0 0.0
    %7124 = vmatpush.msra.mxu0 0.0
    %7125 = vmatpush.msra.mxu0 0.0
    %v7126 = vand.u32 %v6837, 4294901760
    %v7127 = vsub.f32 %v6837, %v7126
    %7128 = vmatmul.f32.gmra.mxu0 %v7127
    %v7129 = vpop.f32.mrf.mxu0
    %v7130 = vadd.f32 %v7048, %v7129
    %v7131 = vand.u32 %v6840, 4294901760
    %v7132 = vsub.f32 %v6840, %v7131
    %7133 = vmatmul.f32.gmra.mxu0 %v7132
    %v7134 = vpop.f32.mrf.mxu0
    %v7135 = vadd.f32 %v7052, %v7134
    %v7136 = vand.u32 %v6843, 4294901760
    %v7137 = vsub.f32 %v6843, %v7136
    %7138 = vmatmul.f32.gmra.mxu0 %v7137
    %v7139 = vpop.f32.mrf.mxu0
    %v7140 = vadd.f32 %v7056, %v7139
    %v7141 = vand.u32 %v6846, 4294901760
    %v7142 = vsub.f32 %v6846, %v7141
    %7143 = vmatmul.f32.gmra.mxu0 %v7142
    %v7144 = vpop.f32.mrf.mxu0
    %v7145 = vadd.f32 %v7060, %v7144
    %v7146 = vand.u32 %v6849, 4294901760
    %v7147 = vsub.f32 %v6849, %v7146
    %7148 = vmatmul.f32.gmra.mxu0 %v7147
    %v7149 = vpop.f32.mrf.mxu0
    %v7150 = vadd.f32 %v7064, %v7149
    %v7151 = vand.u32 %v6852, 4294901760
    %v7152 = vsub.f32 %v6852, %v7151
    %7153 = vmatmul.f32.gmra.mxu0 %v7152
    %v7154 = vpop.f32.mrf.mxu0
    %v7155 = vadd.f32 %v7068, %v7154
    %v7156 = vand.u32 %v6855, 4294901760
    %v7157 = vsub.f32 %v6855, %v7156
    %7158 = vmatmul.f32.gmra.mxu0 %v7157
    %v7159 = vpop.f32.mrf.mxu0
    %v7160 = vadd.f32 %v7072, %v7159
    %v7161 = vand.u32 %v6858, 4294901760
    %v7162 = vsub.f32 %v6858, %v7161
    %7163 = vmatmul.f32.gmra.mxu0 %v7162
    %v7164 = vpop.f32.mrf.mxu0
    %v7165 = vadd.f32 %v7076, %v7164
    %v7166 = vand.u32 %v6861, 4294901760
    %v7167 = vsub.f32 %v6861, %v7166
    %7168 = vmatmul.f32.gmra.mxu0 %v7167
    %v7169 = vpop.f32.mrf.mxu0
    %v7170 = vadd.f32 %v7080, %v7169
    %v7171 = vand.u32 %v6864, 4294901760
    %v7172 = vsub.f32 %v6864, %v7171
    %7173 = vmatmul.f32.gmra.mxu0 %v7172
    %v7174 = vpop.f32.mrf.mxu0
    %v7175 = vadd.f32 %v7084, %v7174
    %v7176 = vand.u32 %v6867, 4294901760
    %v7177 = vsub.f32 %v6867, %v7176
    %7178 = vmatmul.f32.gmra.mxu0 %v7177
    %v7179 = vpop.f32.mrf.mxu0
    %v7180 = vadd.f32 %v7088, %v7179
    %v7181 = vand.u32 %v6870, 4294901760
    %v7182 = vsub.f32 %v6870, %v7181
    %7183 = vmatmul.f32.gmra.mxu0 %v7182
    %v7184 = vpop.f32.mrf.mxu0
    %v7185 = vadd.f32 %v7092, %v7184
    %v7186 = vand.u32 %v6873, 4294901760
    %v7187 = vsub.f32 %v6873, %v7186
    %7188 = vmatmul.f32.gmra.mxu0 %v7187
    %v7189 = vpop.f32.mrf.mxu0
    %v7190 = vadd.f32 %v7096, %v7189
    %v7191 = vand.u32 %v6876, 4294901760
    %v7192 = vsub.f32 %v6876, %v7191
    %7193 = vmatmul.f32.gmra.mxu0 %v7192
    %v7194 = vpop.f32.mrf.mxu0
    %v7195 = vadd.f32 %v7100, %v7194
    %v7196 = vand.u32 %v6879, 4294901760
    %v7197 = vsub.f32 %v6879, %v7196
    %7198 = vmatmul.f32.gmra.mxu0 %v7197
    %v7199 = vpop.f32.mrf.mxu0
    %v7200 = vadd.f32 %v7104, %v7199
    %v7201 = vand.u32 %v6882, 4294901760
    %v7202 = vsub.f32 %v6882, %v7201
    %7203 = vmatmul.f32.gmra.mxu0 %v7202
    %v7204 = vpop.f32.mrf.mxu0
    %v7205 = vadd.f32 %v7108, %v7204
    %7206 = vdwg.mxu0
    %7207 = vmatpush.msra.mxu0 0.0
    %7208 = vmatpush.msra.mxu0 0.0
    %7209 = vmatpush.msra.mxu0 0.0
    %7210 = vmatpush.msra.mxu0 0.0
    %7211 = vmatpush.msra.mxu0 0.0
    %7212 = vmatpush.msra.mxu0 0.0
    %7213 = vmatpush.msra.mxu0 0.0
    %7214 = vmatpush.msra.mxu0 0.0
    %7215 = vmatpush.msra.mxu0 1.0
    %7216 = vmatpush.msra.mxu0 1.0
    %7217 = vmatpush.msra.mxu0 1.0
    %7218 = vmatpush.msra.mxu0 1.0
    %7219 = vmatpush.msra.mxu0 1.0
    %7220 = vmatpush.msra.mxu0 1.0
    %7221 = vmatpush.msra.mxu0 1.0
    %7222 = vmatpush.msra.mxu0 1.0
    %v7223 = vand.u32 %v6837, 4294901760
    %v7224 = vsub.f32 %v6837, %v7223
    %v7225 = vand.u32 %v7224, 4294901760
    %7226 = vmatmul.f32.gmra.mxu0 %v7225
    %v7227 = vpop.f32.mrf.mxu0
    %v7228 = vadd.f32 %v7130, %v7227
    %v7229 = vand.u32 %v6840, 4294901760
    %v7230 = vsub.f32 %v6840, %v7229
    %v7231 = vand.u32 %v7230, 4294901760
    %7232 = vmatmul.f32.gmra.mxu0 %v7231
    %v7233 = vpop.f32.mrf.mxu0
    %v7234 = vadd.f32 %v7135, %v7233
    %v7235 = vand.u32 %v6843, 4294901760
    %v7236 = vsub.f32 %v6843, %v7235
    %v7237 = vand.u32 %v7236, 4294901760
    %7238 = vmatmul.f32.gmra.mxu0 %v7237
    %v7239 = vpop.f32.mrf.mxu0
    %v7240 = vadd.f32 %v7140, %v7239
    %v7241 = vand.u32 %v6846, 4294901760
    %v7242 = vsub.f32 %v6846, %v7241
    %v7243 = vand.u32 %v7242, 4294901760
    %7244 = vmatmul.f32.gmra.mxu0 %v7243
    %v7245 = vpop.f32.mrf.mxu0
    %v7246 = vadd.f32 %v7145, %v7245
    %v7247 = vand.u32 %v6849, 4294901760
    %v7248 = vsub.f32 %v6849, %v7247
    %v7249 = vand.u32 %v7248, 4294901760
    %7250 = vmatmul.f32.gmra.mxu0 %v7249
    %v7251 = vpop.f32.mrf.mxu0
    %v7252 = vadd.f32 %v7150, %v7251
    %v7253 = vand.u32 %v6852, 4294901760
    %v7254 = vsub.f32 %v6852, %v7253
    %v7255 = vand.u32 %v7254, 4294901760
    %7256 = vmatmul.f32.gmra.mxu0 %v7255
    %v7257 = vpop.f32.mrf.mxu0
    %v7258 = vadd.f32 %v7155, %v7257
    %v7259 = vand.u32 %v6855, 4294901760
    %v7260 = vsub.f32 %v6855, %v7259
    %v7261 = vand.u32 %v7260, 4294901760
    %7262 = vmatmul.f32.gmra.mxu0 %v7261
    %v7263 = vpop.f32.mrf.mxu0
    %v7264 = vadd.f32 %v7160, %v7263
    %v7265 = vand.u32 %v6858, 4294901760
    %v7266 = vsub.f32 %v6858, %v7265
    %v7267 = vand.u32 %v7266, 4294901760
    %7268 = vmatmul.f32.gmra.mxu0 %v7267
    %v7269 = vpop.f32.mrf.mxu0
    %v7270 = vadd.f32 %v7165, %v7269
    %v7271 = vand.u32 %v6861, 4294901760
    %v7272 = vsub.f32 %v6861, %v7271
    %v7273 = vand.u32 %v7272, 4294901760
    %7274 = vmatmul.f32.gmra.mxu0 %v7273
    %v7275 = vpop.f32.mrf.mxu0
    %v7276 = vadd.f32 %v7170, %v7275
    %v7277 = vand.u32 %v6864, 4294901760
    %v7278 = vsub.f32 %v6864, %v7277
    %v7279 = vand.u32 %v7278, 4294901760
    %7280 = vmatmul.f32.gmra.mxu0 %v7279
    %v7281 = vpop.f32.mrf.mxu0
    %v7282 = vadd.f32 %v7175, %v7281
    %v7283 = vand.u32 %v6867, 4294901760
    %v7284 = vsub.f32 %v6867, %v7283
    %v7285 = vand.u32 %v7284, 4294901760
    %7286 = vmatmul.f32.gmra.mxu0 %v7285
    %v7287 = vpop.f32.mrf.mxu0
    %v7288 = vadd.f32 %v7180, %v7287
    %v7289 = vand.u32 %v6870, 4294901760
    %v7290 = vsub.f32 %v6870, %v7289
    %v7291 = vand.u32 %v7290, 4294901760
    %7292 = vmatmul.f32.gmra.mxu0 %v7291
    %v7293 = vpop.f32.mrf.mxu0
    %v7294 = vadd.f32 %v7185, %v7293
    %v7295 = vand.u32 %v6873, 4294901760
    %v7296 = vsub.f32 %v6873, %v7295
    %v7297 = vand.u32 %v7296, 4294901760
    %7298 = vmatmul.f32.gmra.mxu0 %v7297
    %v7299 = vpop.f32.mrf.mxu0
    %v7300 = vadd.f32 %v7190, %v7299
    %v7301 = vand.u32 %v6876, 4294901760
    %v7302 = vsub.f32 %v6876, %v7301
    %v7303 = vand.u32 %v7302, 4294901760
    %7304 = vmatmul.f32.gmra.mxu0 %v7303
    %v7305 = vpop.f32.mrf.mxu0
    %v7306 = vadd.f32 %v7195, %v7305
    %v7307 = vand.u32 %v6879, 4294901760
    %v7308 = vsub.f32 %v6879, %v7307
    %v7309 = vand.u32 %v7308, 4294901760
    %7310 = vmatmul.f32.gmra.mxu0 %v7309
    %v7311 = vpop.f32.mrf.mxu0
    %v7312 = vadd.f32 %v7200, %v7311
    %v7313 = vand.u32 %v6882, 4294901760
    %v7314 = vsub.f32 %v6882, %v7313
    %v7315 = vand.u32 %v7314, 4294901760
    %7316 = vmatmul.f32.gmra.mxu0 %v7315
    %v7317 = vpop.f32.mrf.mxu0
    %v7318 = vadd.f32 %v7205, %v7317
    %7319 = vdwg.mxu0
    %7320 = vmatpush.msra.mxu0 0.0
    %7321 = vmatpush.msra.mxu0 0.0
    %7322 = vmatpush.msra.mxu0 0.0
    %7323 = vmatpush.msra.mxu0 0.0
    %7324 = vmatpush.msra.mxu0 0.0
    %7325 = vmatpush.msra.mxu0 0.0
    %7326 = vmatpush.msra.mxu0 0.0
    %7327 = vmatpush.msra.mxu0 0.0
    %7328 = vmatpush.msra.mxu0 0.0
    %7329 = vmatpush.msra.mxu0 0.0
    %7330 = vmatpush.msra.mxu0 0.0
    %7331 = vmatpush.msra.mxu0 0.0
    %7332 = vmatpush.msra.mxu0 0.0
    %7333 = vmatpush.msra.mxu0 0.0
    %7334 = vmatpush.msra.mxu0 0.0
    %7335 = vmatpush.msra.mxu0 0.0
    %v7336 = vand.u32 %v6837, 4294901760
    %7337 = vmatmul.f32.gmra.mxu0 %v7336
    %v7338 = vpop.f32.mrf.mxu0
    %v7339 = vadd.f32 %v7228, %v7338
    %v7340 = vand.u32 %v6840, 4294901760
    %7341 = vmatmul.f32.gmra.mxu0 %v7340
    %v7342 = vpop.f32.mrf.mxu0
    %v7343 = vadd.f32 %v7234, %v7342
    %v7344 = vand.u32 %v6843, 4294901760
    %7345 = vmatmul.f32.gmra.mxu0 %v7344
    %v7346 = vpop.f32.mrf.mxu0
    %v7347 = vadd.f32 %v7240, %v7346
    %v7348 = vand.u32 %v6846, 4294901760
    %7349 = vmatmul.f32.gmra.mxu0 %v7348
    %v7350 = vpop.f32.mrf.mxu0
    %v7351 = vadd.f32 %v7246, %v7350
    %v7352 = vand.u32 %v6849, 4294901760
    %7353 = vmatmul.f32.gmra.mxu0 %v7352
    %v7354 = vpop.f32.mrf.mxu0
    %v7355 = vadd.f32 %v7252, %v7354
    %v7356 = vand.u32 %v6852, 4294901760
    %7357 = vmatmul.f32.gmra.mxu0 %v7356
    %v7358 = vpop.f32.mrf.mxu0
    %v7359 = vadd.f32 %v7258, %v7358
    %v7360 = vand.u32 %v6855, 4294901760
    %7361 = vmatmul.f32.gmra.mxu0 %v7360
    %v7362 = vpop.f32.mrf.mxu0
    %v7363 = vadd.f32 %v7264, %v7362
    %v7364 = vand.u32 %v6858, 4294901760
    %7365 = vmatmul.f32.gmra.mxu0 %v7364
    %v7366 = vpop.f32.mrf.mxu0
    %v7367 = vadd.f32 %v7270, %v7366
    %v7368 = vand.u32 %v6861, 4294901760
    %7369 = vmatmul.f32.gmra.mxu0 %v7368
    %v7370 = vpop.f32.mrf.mxu0
    %v7371 = vadd.f32 %v7276, %v7370
    %v7372 = vand.u32 %v6864, 4294901760
    %7373 = vmatmul.f32.gmra.mxu0 %v7372
    %v7374 = vpop.f32.mrf.mxu0
    %v7375 = vadd.f32 %v7282, %v7374
    %v7376 = vand.u32 %v6867, 4294901760
    %7377 = vmatmul.f32.gmra.mxu0 %v7376
    %v7378 = vpop.f32.mrf.mxu0
    %v7379 = vadd.f32 %v7288, %v7378
    %v7380 = vand.u32 %v6870, 4294901760
    %7381 = vmatmul.f32.gmra.mxu0 %v7380
    %v7382 = vpop.f32.mrf.mxu0
    %v7383 = vadd.f32 %v7294, %v7382
    %v7384 = vand.u32 %v6873, 4294901760
    %7385 = vmatmul.f32.gmra.mxu0 %v7384
    %v7386 = vpop.f32.mrf.mxu0
    %v7387 = vadd.f32 %v7300, %v7386
    %v7388 = vand.u32 %v6876, 4294901760
    %7389 = vmatmul.f32.gmra.mxu0 %v7388
    %v7390 = vpop.f32.mrf.mxu0
    %v7391 = vadd.f32 %v7306, %v7390
    %v7392 = vand.u32 %v6879, 4294901760
    %7393 = vmatmul.f32.gmra.mxu0 %v7392
    %v7394 = vpop.f32.mrf.mxu0
    %v7395 = vadd.f32 %v7312, %v7394
    %v7396 = vand.u32 %v6882, 4294901760
    %7397 = vmatmul.f32.gmra.mxu0 %v7396
    %v7398 = vpop.f32.mrf.mxu0
    %v7399 = vadd.f32 %v7318, %v7398
    %7400 = vdwg.mxu0
    %7401 = vmatpush.msra.mxu0 0.0
    %7402 = vmatpush.msra.mxu0 0.0
    %7403 = vmatpush.msra.mxu0 0.0
    %7404 = vmatpush.msra.mxu0 0.0
    %7405 = vmatpush.msra.mxu0 0.0
    %7406 = vmatpush.msra.mxu0 0.0
    %7407 = vmatpush.msra.mxu0 0.0
    %7408 = vmatpush.msra.mxu0 0.0
    %7409 = vmatpush.msra.mxu0 1.0
    %7410 = vmatpush.msra.mxu0 1.0
    %7411 = vmatpush.msra.mxu0 1.0
    %7412 = vmatpush.msra.mxu0 1.0
    %7413 = vmatpush.msra.mxu0 1.0
    %7414 = vmatpush.msra.mxu0 1.0
    %7415 = vmatpush.msra.mxu0 1.0
    %7416 = vmatpush.msra.mxu0 1.0
    %v7417 = vand.u32 %v6837, 4294901760
    %7418 = vmatmul.f32.gmra.mxu0 %v7417
    %v7419 = vpop.f32.mrf.mxu0
    %v7420 = vadd.f32 %v7339, %v7419
    %v7421 = vand.u32 %v6840, 4294901760
    %7422 = vmatmul.f32.gmra.mxu0 %v7421
    %v7423 = vpop.f32.mrf.mxu0
    %v7424 = vadd.f32 %v7343, %v7423
    %v7425 = vand.u32 %v6843, 4294901760
    %7426 = vmatmul.f32.gmra.mxu0 %v7425
    %v7427 = vpop.f32.mrf.mxu0
    %v7428 = vadd.f32 %v7347, %v7427
    %v7429 = vand.u32 %v6846, 4294901760
    %7430 = vmatmul.f32.gmra.mxu0 %v7429
    %v7431 = vpop.f32.mrf.mxu0
    %v7432 = vadd.f32 %v7351, %v7431
    %v7433 = vand.u32 %v6849, 4294901760
    %7434 = vmatmul.f32.gmra.mxu0 %v7433
    %v7435 = vpop.f32.mrf.mxu0
    %v7436 = vadd.f32 %v7355, %v7435
    %v7437 = vand.u32 %v6852, 4294901760
    %7438 = vmatmul.f32.gmra.mxu0 %v7437
    %v7439 = vpop.f32.mrf.mxu0
    %v7440 = vadd.f32 %v7359, %v7439
    %v7441 = vand.u32 %v6855, 4294901760
    %7442 = vmatmul.f32.gmra.mxu0 %v7441
    %v7443 = vpop.f32.mrf.mxu0
    %v7444 = vadd.f32 %v7363, %v7443
    %v7445 = vand.u32 %v6858, 4294901760
    %7446 = vmatmul.f32.gmra.mxu0 %v7445
    %v7447 = vpop.f32.mrf.mxu0
    %v7448 = vadd.f32 %v7367, %v7447
    %v7449 = vand.u32 %v6861, 4294901760
    %7450 = vmatmul.f32.gmra.mxu0 %v7449
    %v7451 = vpop.f32.mrf.mxu0
    %v7452 = vadd.f32 %v7371, %v7451
    %v7453 = vand.u32 %v6864, 4294901760
    %7454 = vmatmul.f32.gmra.mxu0 %v7453
    %v7455 = vpop.f32.mrf.mxu0
    %v7456 = vadd.f32 %v7375, %v7455
    %v7457 = vand.u32 %v6867, 4294901760
    %7458 = vmatmul.f32.gmra.mxu0 %v7457
    %v7459 = vpop.f32.mrf.mxu0
    %v7460 = vadd.f32 %v7379, %v7459
    %v7461 = vand.u32 %v6870, 4294901760
    %7462 = vmatmul.f32.gmra.mxu0 %v7461
    %v7463 = vpop.f32.mrf.mxu0
    %v7464 = vadd.f32 %v7383, %v7463
    %v7465 = vand.u32 %v6873, 4294901760
    %7466 = vmatmul.f32.gmra.mxu0 %v7465
    %v7467 = vpop.f32.mrf.mxu0
    %v7468 = vadd.f32 %v7387, %v7467
    %v7469 = vand.u32 %v6876, 4294901760
    %7470 = vmatmul.f32.gmra.mxu0 %v7469
    %v7471 = vpop.f32.mrf.mxu0
    %v7472 = vadd.f32 %v7391, %v7471
    %v7473 = vand.u32 %v6879, 4294901760
    %7474 = vmatmul.f32.gmra.mxu0 %v7473
    %v7475 = vpop.f32.mrf.mxu0
    %v7476 = vadd.f32 %v7395, %v7475
    %v7477 = vand.u32 %v6882, 4294901760
    %7478 = vmatmul.f32.gmra.mxu0 %v7477
    %v7479 = vpop.f32.mrf.mxu0
    %v7480 = vadd.f32 %v7399, %v7479
    %7481 = vdwg.mxu0
    %v7482 = vmul.f32 %v7420, 0.015625
    %v7483 = vmul.f32 %v7424, 0.015625
    %v7484 = vmul.f32 %v7428, 0.015625
    %v7485 = vmul.f32 %v7432, 0.015625
    %v7486 = vmul.f32 %v7436, 0.015625
    %v7487 = vmul.f32 %v7440, 0.015625
    %v7488 = vmul.f32 %v7444, 0.015625
    %v7489 = vmul.f32 %v7448, 0.015625
    %v7490 = vmul.f32 %v7452, 0.015625
    %v7491 = vmul.f32 %v7456, 0.015625
    %v7492 = vmul.f32 %v7460, 0.015625
    %v7493 = vmul.f32 %v7464, 0.015625
    %v7494 = vmul.f32 %v7468, 0.015625
    %v7495 = vmul.f32 %v7472, 0.015625
    %v7496 = vmul.f32 %v7476, 0.015625
    %v7497 = vmul.f32 %v7480, 0.015625
    %v7498 = vmul.f32 %v6820, %v6820
    %v7499 = vmul.f32 %v6821, %v6821
    %v7500 = vmul.f32 %v6822, %v6822
    %v7501 = vmul.f32 %v6823, %v6823
    %v7502 = vmul.f32 %v6824, %v6824
    %v7503 = vmul.f32 %v6825, %v6825
    %v7504 = vmul.f32 %v6826, %v6826
    %v7505 = vmul.f32 %v6827, %v6827
    %v7506 = vmul.f32 %v6828, %v6828
    %v7507 = vmul.f32 %v6829, %v6829
    %v7508 = vmul.f32 %v6830, %v6830
    %v7509 = vmul.f32 %v6831, %v6831
    %v7510 = vmul.f32 %v6832, %v6832
    %v7511 = vmul.f32 %v6833, %v6833
    %v7512 = vmul.f32 %v6834, %v6834
    %v7513 = vmul.f32 %v6835, %v6835
    %v7515 = vsel %vm302, %v7498, 0
    %v7518 = vsel %vm302, %v7499, 0
    %v7521 = vsel %vm302, %v7500, 0
    %v7524 = vsel %vm302, %v7501, 0
    %v7527 = vsel %vm302, %v7502, 0
    %v7530 = vsel %vm302, %v7503, 0
    %v7533 = vsel %vm302, %v7504, 0
    %v7536 = vsel %vm302, %v7505, 0
    %v7539 = vsel %vm302, %v7506, 0
    %v7542 = vsel %vm302, %v7507, 0
    %v7545 = vsel %vm302, %v7508, 0
    %v7548 = vsel %vm302, %v7509, 0
    %v7551 = vsel %vm302, %v7510, 0
    %v7554 = vsel %vm302, %v7511, 0
    %v7557 = vsel %vm302, %v7512, 0
    %v7560 = vsel %vm302, %v7513, 0
    %7562 = vmatpush.msra.mxu0 0.0
    %7563 = vmatpush.msra.mxu0 0.0
    %7564 = vmatpush.msra.mxu0 0.0
    %7565 = vmatpush.msra.mxu0 0.0
    %7566 = vmatpush.msra.mxu0 0.0
    %7567 = vmatpush.msra.mxu0 0.0
    %7568 = vmatpush.msra.mxu0 0.0
    %7569 = vmatpush.msra.mxu0 0.0
    %7570 = vmatpush.msra.mxu0 1.0
    %7571 = vmatpush.msra.mxu0 1.0
    %7572 = vmatpush.msra.mxu0 1.0
    %7573 = vmatpush.msra.mxu0 1.0
    %7574 = vmatpush.msra.mxu0 1.0
    %7575 = vmatpush.msra.mxu0 1.0
    %7576 = vmatpush.msra.mxu0 1.0
    %7577 = vmatpush.msra.mxu0 1.0
    %v7578 = vand.u32 %v7515, 4294901760
    %v7579 = vsub.f32 %v7515, %v7578
    %v7580 = vand.u32 %v7579, 4294901760
    %v7581 = vsub.f32 %v7579, %v7580
    %v7582 = vand.u32 %v7581, 4294901760
    %7583 = vmatmul.f32.gmra.mxu0 %v7582
    %v7584 = vpop.f32.mrf.mxu0
    %v7585 = vadd.f32 0.0, %v7584
    %v7586 = vand.u32 %v7518, 4294901760
    %v7587 = vsub.f32 %v7518, %v7586
    %v7588 = vand.u32 %v7587, 4294901760
    %v7589 = vsub.f32 %v7587, %v7588
    %v7590 = vand.u32 %v7589, 4294901760
    %7591 = vmatmul.f32.gmra.mxu0 %v7590
    %v7592 = vpop.f32.mrf.mxu0
    %v7593 = vadd.f32 0.0, %v7592
    %v7594 = vand.u32 %v7521, 4294901760
    %v7595 = vsub.f32 %v7521, %v7594
    %v7596 = vand.u32 %v7595, 4294901760
    %v7597 = vsub.f32 %v7595, %v7596
    %v7598 = vand.u32 %v7597, 4294901760
    %7599 = vmatmul.f32.gmra.mxu0 %v7598
    %v7600 = vpop.f32.mrf.mxu0
    %v7601 = vadd.f32 0.0, %v7600
    %v7602 = vand.u32 %v7524, 4294901760
    %v7603 = vsub.f32 %v7524, %v7602
    %v7604 = vand.u32 %v7603, 4294901760
    %v7605 = vsub.f32 %v7603, %v7604
    %v7606 = vand.u32 %v7605, 4294901760
    %7607 = vmatmul.f32.gmra.mxu0 %v7606
    %v7608 = vpop.f32.mrf.mxu0
    %v7609 = vadd.f32 0.0, %v7608
    %v7610 = vand.u32 %v7527, 4294901760
    %v7611 = vsub.f32 %v7527, %v7610
    %v7612 = vand.u32 %v7611, 4294901760
    %v7613 = vsub.f32 %v7611, %v7612
    %v7614 = vand.u32 %v7613, 4294901760
    %7615 = vmatmul.f32.gmra.mxu0 %v7614
    %v7616 = vpop.f32.mrf.mxu0
    %v7617 = vadd.f32 0.0, %v7616
    %v7618 = vand.u32 %v7530, 4294901760
    %v7619 = vsub.f32 %v7530, %v7618
    %v7620 = vand.u32 %v7619, 4294901760
    %v7621 = vsub.f32 %v7619, %v7620
    %v7622 = vand.u32 %v7621, 4294901760
    %7623 = vmatmul.f32.gmra.mxu0 %v7622
    %v7624 = vpop.f32.mrf.mxu0
    %v7625 = vadd.f32 0.0, %v7624
    %v7626 = vand.u32 %v7533, 4294901760
    %v7627 = vsub.f32 %v7533, %v7626
    %v7628 = vand.u32 %v7627, 4294901760
    %v7629 = vsub.f32 %v7627, %v7628
    %v7630 = vand.u32 %v7629, 4294901760
    %7631 = vmatmul.f32.gmra.mxu0 %v7630
    %v7632 = vpop.f32.mrf.mxu0
    %v7633 = vadd.f32 0.0, %v7632
    %v7634 = vand.u32 %v7536, 4294901760
    %v7635 = vsub.f32 %v7536, %v7634
    %v7636 = vand.u32 %v7635, 4294901760
    %v7637 = vsub.f32 %v7635, %v7636
    %v7638 = vand.u32 %v7637, 4294901760
    %7639 = vmatmul.f32.gmra.mxu0 %v7638
    %v7640 = vpop.f32.mrf.mxu0
    %v7641 = vadd.f32 0.0, %v7640
    %v7642 = vand.u32 %v7539, 4294901760
    %v7643 = vsub.f32 %v7539, %v7642
    %v7644 = vand.u32 %v7643, 4294901760
    %v7645 = vsub.f32 %v7643, %v7644
    %v7646 = vand.u32 %v7645, 4294901760
    %7647 = vmatmul.f32.gmra.mxu0 %v7646
    %v7648 = vpop.f32.mrf.mxu0
    %v7649 = vadd.f32 0.0, %v7648
    %v7650 = vand.u32 %v7542, 4294901760
    %v7651 = vsub.f32 %v7542, %v7650
    %v7652 = vand.u32 %v7651, 4294901760
    %v7653 = vsub.f32 %v7651, %v7652
    %v7654 = vand.u32 %v7653, 4294901760
    %7655 = vmatmul.f32.gmra.mxu0 %v7654
    %v7656 = vpop.f32.mrf.mxu0
    %v7657 = vadd.f32 0.0, %v7656
    %v7658 = vand.u32 %v7545, 4294901760
    %v7659 = vsub.f32 %v7545, %v7658
    %v7660 = vand.u32 %v7659, 4294901760
    %v7661 = vsub.f32 %v7659, %v7660
    %v7662 = vand.u32 %v7661, 4294901760
    %7663 = vmatmul.f32.gmra.mxu0 %v7662
    %v7664 = vpop.f32.mrf.mxu0
    %v7665 = vadd.f32 0.0, %v7664
    %v7666 = vand.u32 %v7548, 4294901760
    %v7667 = vsub.f32 %v7548, %v7666
    %v7668 = vand.u32 %v7667, 4294901760
    %v7669 = vsub.f32 %v7667, %v7668
    %v7670 = vand.u32 %v7669, 4294901760
    %7671 = vmatmul.f32.gmra.mxu0 %v7670
    %v7672 = vpop.f32.mrf.mxu0
    %v7673 = vadd.f32 0.0, %v7672
    %v7674 = vand.u32 %v7551, 4294901760
    %v7675 = vsub.f32 %v7551, %v7674
    %v7676 = vand.u32 %v7675, 4294901760
    %v7677 = vsub.f32 %v7675, %v7676
    %v7678 = vand.u32 %v7677, 4294901760
    %7679 = vmatmul.f32.gmra.mxu0 %v7678
    %v7680 = vpop.f32.mrf.mxu0
    %v7681 = vadd.f32 0.0, %v7680
    %v7682 = vand.u32 %v7554, 4294901760
    %v7683 = vsub.f32 %v7554, %v7682
    %v7684 = vand.u32 %v7683, 4294901760
    %v7685 = vsub.f32 %v7683, %v7684
    %v7686 = vand.u32 %v7685, 4294901760
    %7687 = vmatmul.f32.gmra.mxu0 %v7686
    %v7688 = vpop.f32.mrf.mxu0
    %v7689 = vadd.f32 0.0, %v7688
    %v7690 = vand.u32 %v7557, 4294901760
    %v7691 = vsub.f32 %v7557, %v7690
    %v7692 = vand.u32 %v7691, 4294901760
    %v7693 = vsub.f32 %v7691, %v7692
    %v7694 = vand.u32 %v7693, 4294901760
    %7695 = vmatmul.f32.gmra.mxu0 %v7694
    %v7696 = vpop.f32.mrf.mxu0
    %v7697 = vadd.f32 0.0, %v7696
    %v7698 = vand.u32 %v7560, 4294901760
    %v7699 = vsub.f32 %v7560, %v7698
    %v7700 = vand.u32 %v7699, 4294901760
    %v7701 = vsub.f32 %v7699, %v7700
    %v7702 = vand.u32 %v7701, 4294901760
    %7703 = vmatmul.f32.gmra.mxu0 %v7702
    %v7704 = vpop.f32.mrf.mxu0
    %v7705 = vadd.f32 0.0, %v7704
    %7706 = vdwg.mxu0
    %7707 = vmatpush.msra.mxu0 0.0
    %7708 = vmatpush.msra.mxu0 0.0
    %7709 = vmatpush.msra.mxu0 0.0
    %7710 = vmatpush.msra.mxu0 0.0
    %7711 = vmatpush.msra.mxu0 0.0
    %7712 = vmatpush.msra.mxu0 0.0
    %7713 = vmatpush.msra.mxu0 0.0
    %7714 = vmatpush.msra.mxu0 0.0
    %7715 = vmatpush.msra.mxu0 0.0
    %7716 = vmatpush.msra.mxu0 0.0
    %7717 = vmatpush.msra.mxu0 0.0
    %7718 = vmatpush.msra.mxu0 0.0
    %7719 = vmatpush.msra.mxu0 0.0
    %7720 = vmatpush.msra.mxu0 0.0
    %7721 = vmatpush.msra.mxu0 0.0
    %7722 = vmatpush.msra.mxu0 0.0
    %v7723 = vand.u32 %v7515, 4294901760
    %7724 = vmatmul.f32.gmra.mxu0 %v7723
    %v7725 = vpop.f32.mrf.mxu0
    %v7726 = vadd.f32 %v7585, %v7725
    %v7727 = vand.u32 %v7518, 4294901760
    %7728 = vmatmul.f32.gmra.mxu0 %v7727
    %v7729 = vpop.f32.mrf.mxu0
    %v7730 = vadd.f32 %v7593, %v7729
    %v7731 = vand.u32 %v7521, 4294901760
    %7732 = vmatmul.f32.gmra.mxu0 %v7731
    %v7733 = vpop.f32.mrf.mxu0
    %v7734 = vadd.f32 %v7601, %v7733
    %v7735 = vand.u32 %v7524, 4294901760
    %7736 = vmatmul.f32.gmra.mxu0 %v7735
    %v7737 = vpop.f32.mrf.mxu0
    %v7738 = vadd.f32 %v7609, %v7737
    %v7739 = vand.u32 %v7527, 4294901760
    %7740 = vmatmul.f32.gmra.mxu0 %v7739
    %v7741 = vpop.f32.mrf.mxu0
    %v7742 = vadd.f32 %v7617, %v7741
    %v7743 = vand.u32 %v7530, 4294901760
    %7744 = vmatmul.f32.gmra.mxu0 %v7743
    %v7745 = vpop.f32.mrf.mxu0
    %v7746 = vadd.f32 %v7625, %v7745
    %v7747 = vand.u32 %v7533, 4294901760
    %7748 = vmatmul.f32.gmra.mxu0 %v7747
    %v7749 = vpop.f32.mrf.mxu0
    %v7750 = vadd.f32 %v7633, %v7749
    %v7751 = vand.u32 %v7536, 4294901760
    %7752 = vmatmul.f32.gmra.mxu0 %v7751
    %v7753 = vpop.f32.mrf.mxu0
    %v7754 = vadd.f32 %v7641, %v7753
    %v7755 = vand.u32 %v7539, 4294901760
    %7756 = vmatmul.f32.gmra.mxu0 %v7755
    %v7757 = vpop.f32.mrf.mxu0
    %v7758 = vadd.f32 %v7649, %v7757
    %v7759 = vand.u32 %v7542, 4294901760
    %7760 = vmatmul.f32.gmra.mxu0 %v7759
    %v7761 = vpop.f32.mrf.mxu0
    %v7762 = vadd.f32 %v7657, %v7761
    %v7763 = vand.u32 %v7545, 4294901760
    %7764 = vmatmul.f32.gmra.mxu0 %v7763
    %v7765 = vpop.f32.mrf.mxu0
    %v7766 = vadd.f32 %v7665, %v7765
    %v7767 = vand.u32 %v7548, 4294901760
    %7768 = vmatmul.f32.gmra.mxu0 %v7767
    %v7769 = vpop.f32.mrf.mxu0
    %v7770 = vadd.f32 %v7673, %v7769
    %v7771 = vand.u32 %v7551, 4294901760
    %7772 = vmatmul.f32.gmra.mxu0 %v7771
    %v7773 = vpop.f32.mrf.mxu0
    %v7774 = vadd.f32 %v7681, %v7773
    %v7775 = vand.u32 %v7554, 4294901760
    %7776 = vmatmul.f32.gmra.mxu0 %v7775
    %v7777 = vpop.f32.mrf.mxu0
    %v7778 = vadd.f32 %v7689, %v7777
    %v7779 = vand.u32 %v7557, 4294901760
    %7780 = vmatmul.f32.gmra.mxu0 %v7779
    %v7781 = vpop.f32.mrf.mxu0
    %v7782 = vadd.f32 %v7697, %v7781
    %v7783 = vand.u32 %v7560, 4294901760
    %7784 = vmatmul.f32.gmra.mxu0 %v7783
    %v7785 = vpop.f32.mrf.mxu0
    %v7786 = vadd.f32 %v7705, %v7785
    %7787 = vdwg.mxu0
    %7788 = vmatpush.msra.mxu0 0.0
    %7789 = vmatpush.msra.mxu0 0.0
    %7790 = vmatpush.msra.mxu0 0.0
    %7791 = vmatpush.msra.mxu0 0.0
    %7792 = vmatpush.msra.mxu0 0.0
    %7793 = vmatpush.msra.mxu0 0.0
    %7794 = vmatpush.msra.mxu0 0.0
    %7795 = vmatpush.msra.mxu0 0.0
    %7796 = vmatpush.msra.mxu0 0.0
    %7797 = vmatpush.msra.mxu0 0.0
    %7798 = vmatpush.msra.mxu0 0.0
    %7799 = vmatpush.msra.mxu0 0.0
    %7800 = vmatpush.msra.mxu0 0.0
    %7801 = vmatpush.msra.mxu0 0.0
    %7802 = vmatpush.msra.mxu0 0.0
    %7803 = vmatpush.msra.mxu0 0.0
    %v7804 = vand.u32 %v7515, 4294901760
    %v7805 = vsub.f32 %v7515, %v7804
    %7806 = vmatmul.f32.gmra.mxu0 %v7805
    %v7807 = vpop.f32.mrf.mxu0
    %v7808 = vadd.f32 %v7726, %v7807
    %v7809 = vand.u32 %v7518, 4294901760
    %v7810 = vsub.f32 %v7518, %v7809
    %7811 = vmatmul.f32.gmra.mxu0 %v7810
    %v7812 = vpop.f32.mrf.mxu0
    %v7813 = vadd.f32 %v7730, %v7812
    %v7814 = vand.u32 %v7521, 4294901760
    %v7815 = vsub.f32 %v7521, %v7814
    %7816 = vmatmul.f32.gmra.mxu0 %v7815
    %v7817 = vpop.f32.mrf.mxu0
    %v7818 = vadd.f32 %v7734, %v7817
    %v7819 = vand.u32 %v7524, 4294901760
    %v7820 = vsub.f32 %v7524, %v7819
    %7821 = vmatmul.f32.gmra.mxu0 %v7820
    %v7822 = vpop.f32.mrf.mxu0
    %v7823 = vadd.f32 %v7738, %v7822
    %v7824 = vand.u32 %v7527, 4294901760
    %v7825 = vsub.f32 %v7527, %v7824
    %7826 = vmatmul.f32.gmra.mxu0 %v7825
    %v7827 = vpop.f32.mrf.mxu0
    %v7828 = vadd.f32 %v7742, %v7827
    %v7829 = vand.u32 %v7530, 4294901760
    %v7830 = vsub.f32 %v7530, %v7829
    %7831 = vmatmul.f32.gmra.mxu0 %v7830
    %v7832 = vpop.f32.mrf.mxu0
    %v7833 = vadd.f32 %v7746, %v7832
    %v7834 = vand.u32 %v7533, 4294901760
    %v7835 = vsub.f32 %v7533, %v7834
    %7836 = vmatmul.f32.gmra.mxu0 %v7835
    %v7837 = vpop.f32.mrf.mxu0
    %v7838 = vadd.f32 %v7750, %v7837
    %v7839 = vand.u32 %v7536, 4294901760
    %v7840 = vsub.f32 %v7536, %v7839
    %7841 = vmatmul.f32.gmra.mxu0 %v7840
    %v7842 = vpop.f32.mrf.mxu0
    %v7843 = vadd.f32 %v7754, %v7842
    %v7844 = vand.u32 %v7539, 4294901760
    %v7845 = vsub.f32 %v7539, %v7844
    %7846 = vmatmul.f32.gmra.mxu0 %v7845
    %v7847 = vpop.f32.mrf.mxu0
    %v7848 = vadd.f32 %v7758, %v7847
    %v7849 = vand.u32 %v7542, 4294901760
    %v7850 = vsub.f32 %v7542, %v7849
    %7851 = vmatmul.f32.gmra.mxu0 %v7850
    %v7852 = vpop.f32.mrf.mxu0
    %v7853 = vadd.f32 %v7762, %v7852
    %v7854 = vand.u32 %v7545, 4294901760
    %v7855 = vsub.f32 %v7545, %v7854
    %7856 = vmatmul.f32.gmra.mxu0 %v7855
    %v7857 = vpop.f32.mrf.mxu0
    %v7858 = vadd.f32 %v7766, %v7857
    %v7859 = vand.u32 %v7548, 4294901760
    %v7860 = vsub.f32 %v7548, %v7859
    %7861 = vmatmul.f32.gmra.mxu0 %v7860
    %v7862 = vpop.f32.mrf.mxu0
    %v7863 = vadd.f32 %v7770, %v7862
    %v7864 = vand.u32 %v7551, 4294901760
    %v7865 = vsub.f32 %v7551, %v7864
    %7866 = vmatmul.f32.gmra.mxu0 %v7865
    %v7867 = vpop.f32.mrf.mxu0
    %v7868 = vadd.f32 %v7774, %v7867
    %v7869 = vand.u32 %v7554, 4294901760
    %v7870 = vsub.f32 %v7554, %v7869
    %7871 = vmatmul.f32.gmra.mxu0 %v7870
    %v7872 = vpop.f32.mrf.mxu0
    %v7873 = vadd.f32 %v7778, %v7872
    %v7874 = vand.u32 %v7557, 4294901760
    %v7875 = vsub.f32 %v7557, %v7874
    %7876 = vmatmul.f32.gmra.mxu0 %v7875
    %v7877 = vpop.f32.mrf.mxu0
    %v7878 = vadd.f32 %v7782, %v7877
    %v7879 = vand.u32 %v7560, 4294901760
    %v7880 = vsub.f32 %v7560, %v7879
    %7881 = vmatmul.f32.gmra.mxu0 %v7880
    %v7882 = vpop.f32.mrf.mxu0
    %v7883 = vadd.f32 %v7786, %v7882
    %7884 = vdwg.mxu0
    %7885 = vmatpush.msra.mxu0 0.0
    %7886 = vmatpush.msra.mxu0 0.0
    %7887 = vmatpush.msra.mxu0 0.0
    %7888 = vmatpush.msra.mxu0 0.0
    %7889 = vmatpush.msra.mxu0 0.0
    %7890 = vmatpush.msra.mxu0 0.0
    %7891 = vmatpush.msra.mxu0 0.0
    %7892 = vmatpush.msra.mxu0 0.0
    %7893 = vmatpush.msra.mxu0 1.0
    %7894 = vmatpush.msra.mxu0 1.0
    %7895 = vmatpush.msra.mxu0 1.0
    %7896 = vmatpush.msra.mxu0 1.0
    %7897 = vmatpush.msra.mxu0 1.0
    %7898 = vmatpush.msra.mxu0 1.0
    %7899 = vmatpush.msra.mxu0 1.0
    %7900 = vmatpush.msra.mxu0 1.0
    %v7901 = vand.u32 %v7515, 4294901760
    %v7902 = vsub.f32 %v7515, %v7901
    %v7903 = vand.u32 %v7902, 4294901760
    %7904 = vmatmul.f32.gmra.mxu0 %v7903
    %v7905 = vpop.f32.mrf.mxu0
    %v7906 = vadd.f32 %v7808, %v7905
    %v7907 = vand.u32 %v7518, 4294901760
    %v7908 = vsub.f32 %v7518, %v7907
    %v7909 = vand.u32 %v7908, 4294901760
    %7910 = vmatmul.f32.gmra.mxu0 %v7909
    %v7911 = vpop.f32.mrf.mxu0
    %v7912 = vadd.f32 %v7813, %v7911
    %v7913 = vand.u32 %v7521, 4294901760
    %v7914 = vsub.f32 %v7521, %v7913
    %v7915 = vand.u32 %v7914, 4294901760
    %7916 = vmatmul.f32.gmra.mxu0 %v7915
    %v7917 = vpop.f32.mrf.mxu0
    %v7918 = vadd.f32 %v7818, %v7917
    %v7919 = vand.u32 %v7524, 4294901760
    %v7920 = vsub.f32 %v7524, %v7919
    %v7921 = vand.u32 %v7920, 4294901760
    %7922 = vmatmul.f32.gmra.mxu0 %v7921
    %v7923 = vpop.f32.mrf.mxu0
    %v7924 = vadd.f32 %v7823, %v7923
    %v7925 = vand.u32 %v7527, 4294901760
    %v7926 = vsub.f32 %v7527, %v7925
    %v7927 = vand.u32 %v7926, 4294901760
    %7928 = vmatmul.f32.gmra.mxu0 %v7927
    %v7929 = vpop.f32.mrf.mxu0
    %v7930 = vadd.f32 %v7828, %v7929
    %v7931 = vand.u32 %v7530, 4294901760
    %v7932 = vsub.f32 %v7530, %v7931
    %v7933 = vand.u32 %v7932, 4294901760
    %7934 = vmatmul.f32.gmra.mxu0 %v7933
    %v7935 = vpop.f32.mrf.mxu0
    %v7936 = vadd.f32 %v7833, %v7935
    %v7937 = vand.u32 %v7533, 4294901760
    %v7938 = vsub.f32 %v7533, %v7937
    %v7939 = vand.u32 %v7938, 4294901760
    %7940 = vmatmul.f32.gmra.mxu0 %v7939
    %v7941 = vpop.f32.mrf.mxu0
    %v7942 = vadd.f32 %v7838, %v7941
    %v7943 = vand.u32 %v7536, 4294901760
    %v7944 = vsub.f32 %v7536, %v7943
    %v7945 = vand.u32 %v7944, 4294901760
    %7946 = vmatmul.f32.gmra.mxu0 %v7945
    %v7947 = vpop.f32.mrf.mxu0
    %v7948 = vadd.f32 %v7843, %v7947
    %v7949 = vand.u32 %v7539, 4294901760
    %v7950 = vsub.f32 %v7539, %v7949
    %v7951 = vand.u32 %v7950, 4294901760
    %7952 = vmatmul.f32.gmra.mxu0 %v7951
    %v7953 = vpop.f32.mrf.mxu0
    %v7954 = vadd.f32 %v7848, %v7953
    %v7955 = vand.u32 %v7542, 4294901760
    %v7956 = vsub.f32 %v7542, %v7955
    %v7957 = vand.u32 %v7956, 4294901760
    %7958 = vmatmul.f32.gmra.mxu0 %v7957
    %v7959 = vpop.f32.mrf.mxu0
    %v7960 = vadd.f32 %v7853, %v7959
    %v7961 = vand.u32 %v7545, 4294901760
    %v7962 = vsub.f32 %v7545, %v7961
    %v7963 = vand.u32 %v7962, 4294901760
    %7964 = vmatmul.f32.gmra.mxu0 %v7963
    %v7965 = vpop.f32.mrf.mxu0
    %v7966 = vadd.f32 %v7858, %v7965
    %v7967 = vand.u32 %v7548, 4294901760
    %v7968 = vsub.f32 %v7548, %v7967
    %v7969 = vand.u32 %v7968, 4294901760
    %7970 = vmatmul.f32.gmra.mxu0 %v7969
    %v7971 = vpop.f32.mrf.mxu0
    %v7972 = vadd.f32 %v7863, %v7971
    %v7973 = vand.u32 %v7551, 4294901760
    %v7974 = vsub.f32 %v7551, %v7973
    %v7975 = vand.u32 %v7974, 4294901760
    %7976 = vmatmul.f32.gmra.mxu0 %v7975
    %v7977 = vpop.f32.mrf.mxu0
    %v7978 = vadd.f32 %v7868, %v7977
    %v7979 = vand.u32 %v7554, 4294901760
    %v7980 = vsub.f32 %v7554, %v7979
    %v7981 = vand.u32 %v7980, 4294901760
    %7982 = vmatmul.f32.gmra.mxu0 %v7981
    %v7983 = vpop.f32.mrf.mxu0
    %v7984 = vadd.f32 %v7873, %v7983
    %v7985 = vand.u32 %v7557, 4294901760
    %v7986 = vsub.f32 %v7557, %v7985
    %v7987 = vand.u32 %v7986, 4294901760
    %7988 = vmatmul.f32.gmra.mxu0 %v7987
    %v7989 = vpop.f32.mrf.mxu0
    %v7990 = vadd.f32 %v7878, %v7989
    %v7991 = vand.u32 %v7560, 4294901760
    %v7992 = vsub.f32 %v7560, %v7991
    %v7993 = vand.u32 %v7992, 4294901760
    %7994 = vmatmul.f32.gmra.mxu0 %v7993
    %v7995 = vpop.f32.mrf.mxu0
    %v7996 = vadd.f32 %v7883, %v7995
    %7997 = vdwg.mxu0
    %7998 = vmatpush.msra.mxu0 0.0
    %7999 = vmatpush.msra.mxu0 0.0
    %8000 = vmatpush.msra.mxu0 0.0
    %8001 = vmatpush.msra.mxu0 0.0
    %8002 = vmatpush.msra.mxu0 0.0
    %8003 = vmatpush.msra.mxu0 0.0
    %8004 = vmatpush.msra.mxu0 0.0
    %8005 = vmatpush.msra.mxu0 0.0
    %8006 = vmatpush.msra.mxu0 0.0
    %8007 = vmatpush.msra.mxu0 0.0
    %8008 = vmatpush.msra.mxu0 0.0
    %8009 = vmatpush.msra.mxu0 0.0
    %8010 = vmatpush.msra.mxu0 0.0
    %8011 = vmatpush.msra.mxu0 0.0
    %8012 = vmatpush.msra.mxu0 0.0
    %8013 = vmatpush.msra.mxu0 0.0
    %v8014 = vand.u32 %v7515, 4294901760
    %8015 = vmatmul.f32.gmra.mxu0 %v8014
    %v8016 = vpop.f32.mrf.mxu0
    %v8017 = vadd.f32 %v7906, %v8016
    %v8018 = vand.u32 %v7518, 4294901760
    %8019 = vmatmul.f32.gmra.mxu0 %v8018
    %v8020 = vpop.f32.mrf.mxu0
    %v8021 = vadd.f32 %v7912, %v8020
    %v8022 = vand.u32 %v7521, 4294901760
    %8023 = vmatmul.f32.gmra.mxu0 %v8022
    %v8024 = vpop.f32.mrf.mxu0
    %v8025 = vadd.f32 %v7918, %v8024
    %v8026 = vand.u32 %v7524, 4294901760
    %8027 = vmatmul.f32.gmra.mxu0 %v8026
    %v8028 = vpop.f32.mrf.mxu0
    %v8029 = vadd.f32 %v7924, %v8028
    %v8030 = vand.u32 %v7527, 4294901760
    %8031 = vmatmul.f32.gmra.mxu0 %v8030
    %v8032 = vpop.f32.mrf.mxu0
    %v8033 = vadd.f32 %v7930, %v8032
    %v8034 = vand.u32 %v7530, 4294901760
    %8035 = vmatmul.f32.gmra.mxu0 %v8034
    %v8036 = vpop.f32.mrf.mxu0
    %v8037 = vadd.f32 %v7936, %v8036
    %v8038 = vand.u32 %v7533, 4294901760
    %8039 = vmatmul.f32.gmra.mxu0 %v8038
    %v8040 = vpop.f32.mrf.mxu0
    %v8041 = vadd.f32 %v7942, %v8040
    %v8042 = vand.u32 %v7536, 4294901760
    %8043 = vmatmul.f32.gmra.mxu0 %v8042
    %v8044 = vpop.f32.mrf.mxu0
    %v8045 = vadd.f32 %v7948, %v8044
    %v8046 = vand.u32 %v7539, 4294901760
    %8047 = vmatmul.f32.gmra.mxu0 %v8046
    %v8048 = vpop.f32.mrf.mxu0
    %v8049 = vadd.f32 %v7954, %v8048
    %v8050 = vand.u32 %v7542, 4294901760
    %8051 = vmatmul.f32.gmra.mxu0 %v8050
    %v8052 = vpop.f32.mrf.mxu0
    %v8053 = vadd.f32 %v7960, %v8052
    %v8054 = vand.u32 %v7545, 4294901760
    %8055 = vmatmul.f32.gmra.mxu0 %v8054
    %v8056 = vpop.f32.mrf.mxu0
    %v8057 = vadd.f32 %v7966, %v8056
    %v8058 = vand.u32 %v7548, 4294901760
    %8059 = vmatmul.f32.gmra.mxu0 %v8058
    %v8060 = vpop.f32.mrf.mxu0
    %v8061 = vadd.f32 %v7972, %v8060
    %v8062 = vand.u32 %v7551, 4294901760
    %8063 = vmatmul.f32.gmra.mxu0 %v8062
    %v8064 = vpop.f32.mrf.mxu0
    %v8065 = vadd.f32 %v7978, %v8064
    %v8066 = vand.u32 %v7554, 4294901760
    %8067 = vmatmul.f32.gmra.mxu0 %v8066
    %v8068 = vpop.f32.mrf.mxu0
    %v8069 = vadd.f32 %v7984, %v8068
    %v8070 = vand.u32 %v7557, 4294901760
    %8071 = vmatmul.f32.gmra.mxu0 %v8070
    %v8072 = vpop.f32.mrf.mxu0
    %v8073 = vadd.f32 %v7990, %v8072
    %v8074 = vand.u32 %v7560, 4294901760
    %8075 = vmatmul.f32.gmra.mxu0 %v8074
    %v8076 = vpop.f32.mrf.mxu0
    %v8077 = vadd.f32 %v7996, %v8076
    %8078 = vdwg.mxu0
    %8079 = vmatpush.msra.mxu0 0.0
    %8080 = vmatpush.msra.mxu0 0.0
    %8081 = vmatpush.msra.mxu0 0.0
    %8082 = vmatpush.msra.mxu0 0.0
    %8083 = vmatpush.msra.mxu0 0.0
    %8084 = vmatpush.msra.mxu0 0.0
    %8085 = vmatpush.msra.mxu0 0.0
    %8086 = vmatpush.msra.mxu0 0.0
    %8087 = vmatpush.msra.mxu0 1.0
    %8088 = vmatpush.msra.mxu0 1.0
    %8089 = vmatpush.msra.mxu0 1.0
    %8090 = vmatpush.msra.mxu0 1.0
    %8091 = vmatpush.msra.mxu0 1.0
    %8092 = vmatpush.msra.mxu0 1.0
    %8093 = vmatpush.msra.mxu0 1.0
    %8094 = vmatpush.msra.mxu0 1.0
    %v8095 = vand.u32 %v7515, 4294901760
    %8096 = vmatmul.f32.gmra.mxu0 %v8095
    %v8097 = vpop.f32.mrf.mxu0
    %v8098 = vadd.f32 %v8017, %v8097
    %v8099 = vand.u32 %v7518, 4294901760
    %8100 = vmatmul.f32.gmra.mxu0 %v8099
    %v8101 = vpop.f32.mrf.mxu0
    %v8102 = vadd.f32 %v8021, %v8101
    %v8103 = vand.u32 %v7521, 4294901760
    %8104 = vmatmul.f32.gmra.mxu0 %v8103
    %v8105 = vpop.f32.mrf.mxu0
    %v8106 = vadd.f32 %v8025, %v8105
    %v8107 = vand.u32 %v7524, 4294901760
    %8108 = vmatmul.f32.gmra.mxu0 %v8107
    %v8109 = vpop.f32.mrf.mxu0
    %v8110 = vadd.f32 %v8029, %v8109
    %v8111 = vand.u32 %v7527, 4294901760
    %8112 = vmatmul.f32.gmra.mxu0 %v8111
    %v8113 = vpop.f32.mrf.mxu0
    %v8114 = vadd.f32 %v8033, %v8113
    %v8115 = vand.u32 %v7530, 4294901760
    %8116 = vmatmul.f32.gmra.mxu0 %v8115
    %v8117 = vpop.f32.mrf.mxu0
    %v8118 = vadd.f32 %v8037, %v8117
    %v8119 = vand.u32 %v7533, 4294901760
    %8120 = vmatmul.f32.gmra.mxu0 %v8119
    %v8121 = vpop.f32.mrf.mxu0
    %v8122 = vadd.f32 %v8041, %v8121
    %v8123 = vand.u32 %v7536, 4294901760
    %8124 = vmatmul.f32.gmra.mxu0 %v8123
    %v8125 = vpop.f32.mrf.mxu0
    %v8126 = vadd.f32 %v8045, %v8125
    %v8127 = vand.u32 %v7539, 4294901760
    %8128 = vmatmul.f32.gmra.mxu0 %v8127
    %v8129 = vpop.f32.mrf.mxu0
    %v8130 = vadd.f32 %v8049, %v8129
    %v8131 = vand.u32 %v7542, 4294901760
    %8132 = vmatmul.f32.gmra.mxu0 %v8131
    %v8133 = vpop.f32.mrf.mxu0
    %v8134 = vadd.f32 %v8053, %v8133
    %v8135 = vand.u32 %v7545, 4294901760
    %8136 = vmatmul.f32.gmra.mxu0 %v8135
    %v8137 = vpop.f32.mrf.mxu0
    %v8138 = vadd.f32 %v8057, %v8137
    %v8139 = vand.u32 %v7548, 4294901760
    %8140 = vmatmul.f32.gmra.mxu0 %v8139
    %v8141 = vpop.f32.mrf.mxu0
    %v8142 = vadd.f32 %v8061, %v8141
    %v8143 = vand.u32 %v7551, 4294901760
    %8144 = vmatmul.f32.gmra.mxu0 %v8143
    %v8145 = vpop.f32.mrf.mxu0
    %v8146 = vadd.f32 %v8065, %v8145
    %v8147 = vand.u32 %v7554, 4294901760
    %8148 = vmatmul.f32.gmra.mxu0 %v8147
    %v8149 = vpop.f32.mrf.mxu0
    %v8150 = vadd.f32 %v8069, %v8149
    %v8151 = vand.u32 %v7557, 4294901760
    %8152 = vmatmul.f32.gmra.mxu0 %v8151
    %v8153 = vpop.f32.mrf.mxu0
    %v8154 = vadd.f32 %v8073, %v8153
    %v8155 = vand.u32 %v7560, 4294901760
    %8156 = vmatmul.f32.gmra.mxu0 %v8155
    %v8157 = vpop.f32.mrf.mxu0
    %v8158 = vadd.f32 %v8077, %v8157
    %8159 = vdwg.mxu0
    %v8160 = vmul.f32 %v8098, 0.015625
    %v8161 = vmul.f32 %v8102, 0.015625
    %v8162 = vmul.f32 %v8106, 0.015625
    %v8163 = vmul.f32 %v8110, 0.015625
    %v8164 = vmul.f32 %v8114, 0.015625
    %v8165 = vmul.f32 %v8118, 0.015625
    %v8166 = vmul.f32 %v8122, 0.015625
    %v8167 = vmul.f32 %v8126, 0.015625
    %v8168 = vmul.f32 %v8130, 0.015625
    %v8169 = vmul.f32 %v8134, 0.015625
    %v8170 = vmul.f32 %v8138, 0.015625
    %v8171 = vmul.f32 %v8142, 0.015625
    %v8172 = vmul.f32 %v8146, 0.015625
    %v8173 = vmul.f32 %v8150, 0.015625
    %v8174 = vmul.f32 %v8154, 0.015625
    %v8175 = vmul.f32 %v8158, 0.015625
    %v8176 = vmul.f32 %v7482, %v7482
    %v8177 = vmul.f32 %v7483, %v7483
    %v8178 = vmul.f32 %v7484, %v7484
    %v8179 = vmul.f32 %v7485, %v7485
    %v8180 = vmul.f32 %v7486, %v7486
    %v8181 = vmul.f32 %v7487, %v7487
    %v8182 = vmul.f32 %v7488, %v7488
    %v8183 = vmul.f32 %v7489, %v7489
    %v8184 = vmul.f32 %v7490, %v7490
    %v8185 = vmul.f32 %v7491, %v7491
    %v8186 = vmul.f32 %v7492, %v7492
    %v8187 = vmul.f32 %v7493, %v7493
    %v8188 = vmul.f32 %v7494, %v7494
    %v8189 = vmul.f32 %v7495, %v7495
    %v8190 = vmul.f32 %v7496, %v7496
    %v8191 = vmul.f32 %v7497, %v7497
    %v8192 = vsub.f32 %v8160, %v8176
    %v8193 = vsub.f32 %v8161, %v8177
    %v8194 = vsub.f32 %v8162, %v8178
    %v8195 = vsub.f32 %v8163, %v8179
    %v8196 = vsub.f32 %v8164, %v8180
    %v8197 = vsub.f32 %v8165, %v8181
    %v8198 = vsub.f32 %v8166, %v8182
    %v8199 = vsub.f32 %v8167, %v8183
    %v8200 = vsub.f32 %v8168, %v8184
    %v8201 = vsub.f32 %v8169, %v8185
    %v8202 = vsub.f32 %v8170, %v8186
    %v8203 = vsub.f32 %v8171, %v8187
    %v8204 = vsub.f32 %v8172, %v8188
    %v8205 = vsub.f32 %v8173, %v8189
    %v8206 = vsub.f32 %v8174, %v8190
    %v8207 = vsub.f32 %v8175, %v8191
    %v8208 = vadd.f32 %v8192, 1e-05
    %v8209 = vadd.f32 %v8193, 1e-05
    %v8210 = vadd.f32 %v8194, 1e-05
    %v8211 = vadd.f32 %v8195, 1e-05
    %v8212 = vadd.f32 %v8196, 1e-05
    %v8213 = vadd.f32 %v8197, 1e-05
    %v8214 = vadd.f32 %v8198, 1e-05
    %v8215 = vadd.f32 %v8199, 1e-05
    %v8216 = vadd.f32 %v8200, 1e-05
    %v8217 = vadd.f32 %v8201, 1e-05
    %v8218 = vadd.f32 %v8202, 1e-05
    %v8219 = vadd.f32 %v8203, 1e-05
    %v8220 = vadd.f32 %v8204, 1e-05
    %v8221 = vadd.f32 %v8205, 1e-05
    %v8222 = vadd.f32 %v8206, 1e-05
    %v8223 = vadd.f32 %v8207, 1e-05
    %v8224 = vrsqrt.pop %v8208
    %v8225 = vmul.f32 %v8224, %v8208
    %v8226 = vmul.f32 %v8225, %v8224
    %v8227 = vmul.f32 0.5, %v8226
    %v8228 = vsub.f32 1.5, %v8227
    %v8229 = vmul.f32 %v8224, %v8228
    %vm8230 = vweird.f32 %v8208
    %vm8231 = vweird.f32 %v8224
    %vm8232 = vmor %vm8230, %vm8231
    %v8233 = vsel %vm8232, %v8224, %v8229
    %v8234 = vrsqrt.pop %v8209
    %v8235 = vmul.f32 %v8234, %v8209
    %v8236 = vmul.f32 %v8235, %v8234
    %v8237 = vmul.f32 0.5, %v8236
    %v8238 = vsub.f32 1.5, %v8237
    %v8239 = vmul.f32 %v8234, %v8238
    %vm8240 = vweird.f32 %v8209
    %vm8241 = vweird.f32 %v8234
    %vm8242 = vmor %vm8240, %vm8241
    %v8243 = vsel %vm8242, %v8234, %v8239
    %v8244 = vrsqrt.pop %v8210
    %v8245 = vmul.f32 %v8244, %v8210
    %v8246 = vmul.f32 %v8245, %v8244
    %v8247 = vmul.f32 0.5, %v8246
    %v8248 = vsub.f32 1.5, %v8247
    %v8249 = vmul.f32 %v8244, %v8248
    %vm8250 = vweird.f32 %v8210
    %vm8251 = vweird.f32 %v8244
    %vm8252 = vmor %vm8250, %vm8251
    %v8253 = vsel %vm8252, %v8244, %v8249
    %v8254 = vrsqrt.pop %v8211
    %v8255 = vmul.f32 %v8254, %v8211
    %v8256 = vmul.f32 %v8255, %v8254
    %v8257 = vmul.f32 0.5, %v8256
    %v8258 = vsub.f32 1.5, %v8257
    %v8259 = vmul.f32 %v8254, %v8258
    %vm8260 = vweird.f32 %v8211
    %vm8261 = vweird.f32 %v8254
    %vm8262 = vmor %vm8260, %vm8261
    %v8263 = vsel %vm8262, %v8254, %v8259
    %v8264 = vrsqrt.pop %v8212
    %v8265 = vmul.f32 %v8264, %v8212
    %v8266 = vmul.f32 %v8265, %v8264
    %v8267 = vmul.f32 0.5, %v8266
    %v8268 = vsub.f32 1.5, %v8267
    %v8269 = vmul.f32 %v8264, %v8268
    %vm8270 = vweird.f32 %v8212
    %vm8271 = vweird.f32 %v8264
    %vm8272 = vmor %vm8270, %vm8271
    %v8273 = vsel %vm8272, %v8264, %v8269
    %v8274 = vrsqrt.pop %v8213
    %v8275 = vmul.f32 %v8274, %v8213
    %v8276 = vmul.f32 %v8275, %v8274
    %v8277 = vmul.f32 0.5, %v8276
    %v8278 = vsub.f32 1.5, %v8277
    %v8279 = vmul.f32 %v8274, %v8278
    %vm8280 = vweird.f32 %v8213
    %vm8281 = vweird.f32 %v8274
    %vm8282 = vmor %vm8280, %vm8281
    %v8283 = vsel %vm8282, %v8274, %v8279
    %v8284 = vrsqrt.pop %v8214
    %v8285 = vmul.f32 %v8284, %v8214
    %v8286 = vmul.f32 %v8285, %v8284
    %v8287 = vmul.f32 0.5, %v8286
    %v8288 = vsub.f32 1.5, %v8287
    %v8289 = vmul.f32 %v8284, %v8288
    %vm8290 = vweird.f32 %v8214
    %vm8291 = vweird.f32 %v8284
    %vm8292 = vmor %vm8290, %vm8291
    %v8293 = vsel %vm8292, %v8284, %v8289
    %v8294 = vrsqrt.pop %v8215
    %v8295 = vmul.f32 %v8294, %v8215
    %v8296 = vmul.f32 %v8295, %v8294
    %v8297 = vmul.f32 0.5, %v8296
    %v8298 = vsub.f32 1.5, %v8297
    %v8299 = vmul.f32 %v8294, %v8298
    %vm8300 = vweird.f32 %v8215
    %vm8301 = vweird.f32 %v8294
    %vm8302 = vmor %vm8300, %vm8301
    %v8303 = vsel %vm8302, %v8294, %v8299
    %v8304 = vrsqrt.pop %v8216
    %v8305 = vmul.f32 %v8304, %v8216
    %v8306 = vmul.f32 %v8305, %v8304
    %v8307 = vmul.f32 0.5, %v8306
    %v8308 = vsub.f32 1.5, %v8307
    %v8309 = vmul.f32 %v8304, %v8308
    %vm8310 = vweird.f32 %v8216
    %vm8311 = vweird.f32 %v8304
    %vm8312 = vmor %vm8310, %vm8311
    %v8313 = vsel %vm8312, %v8304, %v8309
    %v8314 = vrsqrt.pop %v8217
    %v8315 = vmul.f32 %v8314, %v8217
    %v8316 = vmul.f32 %v8315, %v8314
    %v8317 = vmul.f32 0.5, %v8316
    %v8318 = vsub.f32 1.5, %v8317
    %v8319 = vmul.f32 %v8314, %v8318
    %vm8320 = vweird.f32 %v8217
    %vm8321 = vweird.f32 %v8314
    %vm8322 = vmor %vm8320, %vm8321
    %v8323 = vsel %vm8322, %v8314, %v8319
    %v8324 = vrsqrt.pop %v8218
    %v8325 = vmul.f32 %v8324, %v8218
    %v8326 = vmul.f32 %v8325, %v8324
    %v8327 = vmul.f32 0.5, %v8326
    %v8328 = vsub.f32 1.5, %v8327
    %v8329 = vmul.f32 %v8324, %v8328
    %vm8330 = vweird.f32 %v8218
    %vm8331 = vweird.f32 %v8324
    %vm8332 = vmor %vm8330, %vm8331
    %v8333 = vsel %vm8332, %v8324, %v8329
    %v8334 = vrsqrt.pop %v8219
    %v8335 = vmul.f32 %v8334, %v8219
    %v8336 = vmul.f32 %v8335, %v8334
    %v8337 = vmul.f32 0.5, %v8336
    %v8338 = vsub.f32 1.5, %v8337
    %v8339 = vmul.f32 %v8334, %v8338
    %vm8340 = vweird.f32 %v8219
    %vm8341 = vweird.f32 %v8334
    %vm8342 = vmor %vm8340, %vm8341
    %v8343 = vsel %vm8342, %v8334, %v8339
    %v8344 = vrsqrt.pop %v8220
    %v8345 = vmul.f32 %v8344, %v8220
    %v8346 = vmul.f32 %v8345, %v8344
    %v8347 = vmul.f32 0.5, %v8346
    %v8348 = vsub.f32 1.5, %v8347
    %v8349 = vmul.f32 %v8344, %v8348
    %vm8350 = vweird.f32 %v8220
    %vm8351 = vweird.f32 %v8344
    %vm8352 = vmor %vm8350, %vm8351
    %v8353 = vsel %vm8352, %v8344, %v8349
    %v8354 = vrsqrt.pop %v8221
    %v8355 = vmul.f32 %v8354, %v8221
    %v8356 = vmul.f32 %v8355, %v8354
    %v8357 = vmul.f32 0.5, %v8356
    %v8358 = vsub.f32 1.5, %v8357
    %v8359 = vmul.f32 %v8354, %v8358
    %vm8360 = vweird.f32 %v8221
    %vm8361 = vweird.f32 %v8354
    %vm8362 = vmor %vm8360, %vm8361
    %v8363 = vsel %vm8362, %v8354, %v8359
    %v8364 = vrsqrt.pop %v8222
    %v8365 = vmul.f32 %v8364, %v8222
    %v8366 = vmul.f32 %v8365, %v8364
    %v8367 = vmul.f32 0.5, %v8366
    %v8368 = vsub.f32 1.5, %v8367
    %v8369 = vmul.f32 %v8364, %v8368
    %vm8370 = vweird.f32 %v8222
    %vm8371 = vweird.f32 %v8364
    %vm8372 = vmor %vm8370, %vm8371
    %v8373 = vsel %vm8372, %v8364, %v8369
    %v8374 = vrsqrt.pop %v8223
    %v8375 = vmul.f32 %v8374, %v8223
    %v8376 = vmul.f32 %v8375, %v8374
    %v8377 = vmul.f32 0.5, %v8376
    %v8378 = vsub.f32 1.5, %v8377
    %v8379 = vmul.f32 %v8374, %v8378
    %vm8380 = vweird.f32 %v8223
    %vm8381 = vweird.f32 %v8374
    %vm8382 = vmor %vm8380, %vm8381
    %v8383 = vsel %vm8382, %v8374, %v8379
    %v8384 = vmul.f32 %v8233, %v1852
    %v8385 = vmul.f32 %v8243, %v1854
    %v8386 = vmul.f32 %v8253, %v1856
    %v8387 = vmul.f32 %v8263, %v1858
    %v8388 = vmul.f32 %v8273, %v1860
    %v8389 = vmul.f32 %v8283, %v1862
    %v8390 = vmul.f32 %v8293, %v1864
    %v8391 = vmul.f32 %v8303, %v1866
    %v8392 = vmul.f32 %v8313, %v1868
    %v8393 = vmul.f32 %v8323, %v1870
    %v8394 = vmul.f32 %v8333, %v1872
    %v8395 = vmul.f32 %v8343, %v1874
    %v8396 = vmul.f32 %v8353, %v1876
    %v8397 = vmul.f32 %v8363, %v1878
    %v8398 = vmul.f32 %v8373, %v1880
    %v8399 = vmul.f32 %v8383, %v1882
    %v8400 = vmul.f32 %v7482, %v8384
    %v8401 = vmul.f32 %v7483, %v8385
    %v8402 = vmul.f32 %v7484, %v8386
    %v8403 = vmul.f32 %v7485, %v8387
    %v8404 = vmul.f32 %v7486, %v8388
    %v8405 = vmul.f32 %v7487, %v8389
    %v8406 = vmul.f32 %v7488, %v8390
    %v8407 = vmul.f32 %v7489, %v8391
    %v8408 = vmul.f32 %v7490, %v8392
    %v8409 = vmul.f32 %v7491, %v8393
    %v8410 = vmul.f32 %v7492, %v8394
    %v8411 = vmul.f32 %v7493, %v8395
    %v8412 = vmul.f32 %v7494, %v8396
    %v8413 = vmul.f32 %v7495, %v8397
    %v8414 = vmul.f32 %v7496, %v8398
    %v8415 = vmul.f32 %v7497, %v8399
    %8432 = vrot.lane.b32.xlu0 %v8400, 5
    %v8433 = vpop.permute.xlu0 %8432
    %8434 = vrot.lane.b32.xlu0 %v8401, 5
    %v8435 = vpop.permute.xlu0 %8434
    %8436 = vrot.lane.b32.xlu0 %v8402, 5
    %v8437 = vpop.permute.xlu0 %8436
    %8438 = vrot.lane.b32.xlu0 %v8403, 5
    %v8439 = vpop.permute.xlu0 %8438
    %8440 = vrot.lane.b32.xlu0 %v8404, 5
    %v8441 = vpop.permute.xlu0 %8440
    %8442 = vrot.lane.b32.xlu0 %v8405, 5
    %v8443 = vpop.permute.xlu0 %8442
    %8444 = vrot.lane.b32.xlu0 %v8406, 5
    %v8445 = vpop.permute.xlu0 %8444
    %8446 = vrot.lane.b32.xlu0 %v8407, 5
    %v8447 = vpop.permute.xlu0 %8446
    %8448 = vrot.lane.b32.xlu0 %v8408, 5
    %v8449 = vpop.permute.xlu0 %8448
    %8450 = vrot.lane.b32.xlu0 %v8409, 5
    %v8451 = vpop.permute.xlu0 %8450
    %8452 = vrot.lane.b32.xlu0 %v8410, 5
    %v8453 = vpop.permute.xlu0 %8452
    %8454 = vrot.lane.b32.xlu0 %v8411, 5
    %v8455 = vpop.permute.xlu0 %8454
    %8456 = vrot.lane.b32.xlu0 %v8412, 5
    %v8457 = vpop.permute.xlu0 %8456
    %8458 = vrot.lane.b32.xlu0 %v8413, 5
    %v8459 = vpop.permute.xlu0 %8458
    %8460 = vrot.lane.b32.xlu0 %v8414, 5
    %v8461 = vpop.permute.xlu0 %8460
    %8462 = vrot.lane.b32.xlu0 %v8415, 5
    %v8463 = vpop.permute.xlu0 %8462
    %v8480 = vsub.f32 %v39, %v8433
    %v8481 = vsub.f32 %v40, %v8435
    %v8482 = vsub.f32 %v41, %v8437
    %v8483 = vsub.f32 %v42, %v8439
    %v8484 = vsub.f32 %v43, %v8441
    %v8485 = vsub.f32 %v44, %v8443
    %v8486 = vsub.f32 %v45, %v8445
    %v8487 = vsub.f32 %v46, %v8447
    %v8488 = vsub.f32 %v47, %v8449
    %v8489 = vsub.f32 %v48, %v8451
    %v8490 = vsub.f32 %v49, %v8453
    %v8491 = vsub.f32 %v50, %v8455
    %v8492 = vsub.f32 %v51, %v8457
    %v8493 = vsub.f32 %v52, %v8459
    %v8494 = vsub.f32 %v53, %v8461
    %v8495 = vsub.f32 %v54, %v8463
    %8497 = vset.pattern.permute.xlu0 0
    %8498 = vperm.xlu0 %8497, %v8384
    %v8499 = vpop.permute.xlu0 %8498
    %8502 = vset.pattern.permute.xlu0 0
    %8503 = vperm.xlu0 %8502, %v8385
    %v8504 = vpop.permute.xlu0 %8503
    %8507 = vset.pattern.permute.xlu0 0
    %8508 = vperm.xlu0 %8507, %v8386
    %v8509 = vpop.permute.xlu0 %8508
    %8512 = vset.pattern.permute.xlu0 0
    %8513 = vperm.xlu0 %8512, %v8387
    %v8514 = vpop.permute.xlu0 %8513
    %8517 = vset.pattern.permute.xlu0 0
    %8518 = vperm.xlu0 %8517, %v8388
    %v8519 = vpop.permute.xlu0 %8518
    %8522 = vset.pattern.permute.xlu0 0
    %8523 = vperm.xlu0 %8522, %v8389
    %v8524 = vpop.permute.xlu0 %8523
    %8527 = vset.pattern.permute.xlu0 0
    %8528 = vperm.xlu0 %8527, %v8390
    %v8529 = vpop.permute.xlu0 %8528
    %8532 = vset.pattern.permute.xlu0 0
    %8533 = vperm.xlu0 %8532, %v8391
    %v8534 = vpop.permute.xlu0 %8533
    %8537 = vset.pattern.permute.xlu0 0
    %8538 = vperm.xlu0 %8537, %v8392
    %v8539 = vpop.permute.xlu0 %8538
    %8542 = vset.pattern.permute.xlu0 0
    %8543 = vperm.xlu0 %8542, %v8393
    %v8544 = vpop.permute.xlu0 %8543
    %8547 = vset.pattern.permute.xlu0 0
    %8548 = vperm.xlu0 %8547, %v8394
    %v8549 = vpop.permute.xlu0 %8548
    %8552 = vset.pattern.permute.xlu0 0
    %8553 = vperm.xlu0 %8552, %v8395
    %v8554 = vpop.permute.xlu0 %8553
    %8557 = vset.pattern.permute.xlu0 0
    %8558 = vperm.xlu0 %8557, %v8396
    %v8559 = vpop.permute.xlu0 %8558
    %8562 = vset.pattern.permute.xlu0 0
    %8563 = vperm.xlu0 %8562, %v8397
    %v8564 = vpop.permute.xlu0 %8563
    %8567 = vset.pattern.permute.xlu0 0
    %8568 = vperm.xlu0 %8567, %v8398
    %v8569 = vpop.permute.xlu0 %8568
    %8572 = vset.pattern.permute.xlu0 0
    %8573 = vperm.xlu0 %8572, %v8399
    %v8574 = vpop.permute.xlu0 %8573
    %v8576 = vmul.f32 %v6820, %v8499
    %v8577 = vmul.f32 %v6821, %v8504
    %v8578 = vmul.f32 %v6822, %v8509
    %v8579 = vmul.f32 %v6823, %v8514
    %v8580 = vmul.f32 %v6824, %v8519
    %v8581 = vmul.f32 %v6825, %v8524
    %v8582 = vmul.f32 %v6826, %v8529
    %v8583 = vmul.f32 %v6827, %v8534
    %v8584 = vmul.f32 %v6828, %v8539
    %v8585 = vmul.f32 %v6829, %v8544
    %v8586 = vmul.f32 %v6830, %v8549
    %v8587 = vmul.f32 %v6831, %v8554
    %v8588 = vmul.f32 %v6832, %v8559
    %v8589 = vmul.f32 %v6833, %v8564
    %v8590 = vmul.f32 %v6834, %v8569
    %v8591 = vmul.f32 %v6835, %v8574
    %8593 = vset.pattern.permute.xlu0 5
    %8594 = vperm.xlu0 %8593, %v8480
    %v8595 = vpop.permute.xlu0 %8594
    %8598 = vset.pattern.permute.xlu0 5
    %8599 = vperm.xlu0 %8598, %v8481
    %v8600 = vpop.permute.xlu0 %8599
    %8603 = vset.pattern.permute.xlu0 5
    %8604 = vperm.xlu0 %8603, %v8482
    %v8605 = vpop.permute.xlu0 %8604
    %8608 = vset.pattern.permute.xlu0 5
    %8609 = vperm.xlu0 %8608, %v8483
    %v8610 = vpop.permute.xlu0 %8609
    %8613 = vset.pattern.permute.xlu0 5
    %8614 = vperm.xlu0 %8613, %v8484
    %v8615 = vpop.permute.xlu0 %8614
    %8618 = vset.pattern.permute.xlu0 5
    %8619 = vperm.xlu0 %8618, %v8485
    %v8620 = vpop.permute.xlu0 %8619
    %8623 = vset.pattern.permute.xlu0 5
    %8624 = vperm.xlu0 %8623, %v8486
    %v8625 = vpop.permute.xlu0 %8624
    %8628 = vset.pattern.permute.xlu0 5
    %8629 = vperm.xlu0 %8628, %v8487
    %v8630 = vpop.permute.xlu0 %8629
    %8633 = vset.pattern.permute.xlu0 5
    %8634 = vperm.xlu0 %8633, %v8488
    %v8635 = vpop.permute.xlu0 %8634
    %8638 = vset.pattern.permute.xlu0 5
    %8639 = vperm.xlu0 %8638, %v8489
    %v8640 = vpop.permute.xlu0 %8639
    %8643 = vset.pattern.permute.xlu0 5
    %8644 = vperm.xlu0 %8643, %v8490
    %v8645 = vpop.permute.xlu0 %8644
    %8648 = vset.pattern.permute.xlu0 5
    %8649 = vperm.xlu0 %8648, %v8491
    %v8650 = vpop.permute.xlu0 %8649
    %8653 = vset.pattern.permute.xlu0 5
    %8654 = vperm.xlu0 %8653, %v8492
    %v8655 = vpop.permute.xlu0 %8654
    %8658 = vset.pattern.permute.xlu0 5
    %8659 = vperm.xlu0 %8658, %v8493
    %v8660 = vpop.permute.xlu0 %8659
    %8663 = vset.pattern.permute.xlu0 5
    %8664 = vperm.xlu0 %8663, %v8494
    %v8665 = vpop.permute.xlu0 %8664
    %8668 = vset.pattern.permute.xlu0 5
    %8669 = vperm.xlu0 %8668, %v8495
    %v8670 = vpop.permute.xlu0 %8669
    %v8672 = vadd.f32 %v8576, %v8595
    %v8673 = vadd.f32 %v8577, %v8600
    %v8674 = vadd.f32 %v8578, %v8605
    %v8675 = vadd.f32 %v8579, %v8610
    %v8676 = vadd.f32 %v8580, %v8615
    %v8677 = vadd.f32 %v8581, %v8620
    %v8678 = vadd.f32 %v8582, %v8625
    %v8679 = vadd.f32 %v8583, %v8630
    %v8680 = vadd.f32 %v8584, %v8635
    %v8681 = vadd.f32 %v8585, %v8640
    %v8682 = vadd.f32 %v8586, %v8645
    %v8683 = vadd.f32 %v8587, %v8650
    %v8684 = vadd.f32 %v8588, %v8655
    %v8685 = vadd.f32 %v8589, %v8660
    %v8686 = vadd.f32 %v8590, %v8665
    %v8687 = vadd.f32 %v8591, %v8670
    %v8688 = vsel %vm6587, %v8672, 0.0
    %v8689 = vsel %vm6588, %v8673, 0.0
    %v8690 = vsel %vm6589, %v8674, 0.0
    %v8691 = vsel %vm6590, %v8675, 0.0
    %v8692 = vsel %vm6591, %v8676, 0.0
    %v8693 = vsel %vm6592, %v8677, 0.0
    %v8694 = vsel %vm6593, %v8678, 0.0
    %v8695 = vsel %vm6594, %v8679, 0.0
    %v8696 = vsel %vm6595, %v8680, 0.0
    %v8697 = vsel %vm6596, %v8681, 0.0
    %v8698 = vsel %vm6597, %v8682, 0.0
    %v8699 = vsel %vm6598, %v8683, 0.0
    %v8700 = vsel %vm6599, %v8684, 0.0
    %v8701 = vsel %vm6600, %v8685, 0.0
    %v8702 = vsel %vm6601, %v8686, 0.0
    %v8703 = vsel %vm6602, %v8687, 0.0
    %v8704 = vld [vmem:[%s6] sm:$0xf]
    %v8705 = vpack.c.bf16 %v8689, %v8688
    %v8706 = vpack.c.bf16 %v8691, %v8690
    %v8707 = vpack.c.bf16 %v8693, %v8692
    %v8708 = vpack.c.bf16 %v8695, %v8694
    %v8709 = vpack.c.bf16 %v8697, %v8696
    %v8710 = vpack.c.bf16 %v8699, %v8698
    %v8711 = vpack.c.bf16 %v8701, %v8700
    %v8712 = vpack.c.bf16 %v8703, %v8702
    %8713 = vmatpush.bf16.msra.mxu0 %v8712
    %8714 = vmatpush.bf16.msra.mxu0 %v8711
    %8715 = vmatpush.bf16.msra.mxu0 %v8710
    %8716 = vmatpush.bf16.msra.mxu0 %v8709
    %8717 = vmatpush.bf16.msra.mxu0 %v8708
    %8718 = vmatpush.bf16.msra.mxu0 %v8707
    %8719 = vmatpush.bf16.msra.mxu0 %v8706
    %8720 = vmatpush.bf16.msra.mxu0 %v8705
    %8721 = vmatmul.bf16.gmra.mxu0 %v8704
    %v8722 = vpop.f32.mrf.mxu0
    %v8723 = vadd.f32 0.0, %v8722
    %v8724 = vpop.f32.mrf.mxu0
    %8725 = vdwg.mxu0
    %8726 = vset.pattern.permute.xlu0 6
    %8727 = vperm.xlu0 %8726, %v39
    %v8728 = vpop.permute.xlu0 %8727
    %v8730 = vadd.f32 %v8723, %v8728
    %vm8731 = vcmask 516096
    %8732 = vst.msk [vmem:[#allocation4] sm:$0x1] %vm8731, %v8730
    // Predicated region
    $region30: #{multivariate_linear_regression.1} parent=1 // pred_check
      _
    $region31: #{multivariate_linear_regression.1} parent=1 // pred_check_branch
      %8734 = sbr.rel (0) target = $region33
    $region32: #{multivariate_linear_regression.1} parent=1 // pred_region
      %8736 = vsyncadd [#allocation5], 0
      %s8738 = sshll.u32 [#allocation4], 4
      %s8739 = int_to_ptr.vmem [resolvable:$true] %s8738
      %s8740 = sshll.u32 %s8, 4
      %s8741 = int_to_ptr.hbm [resolvable:$true] %s8740
      %8743 = dma.vmem_to_hbm [thread:$0]  %s8739, 16, %s8741, [#allocation5]
    $region33: #{multivariate_linear_regression.1} parent=1 // pred_fallthru
      _
    // Predicated region
    $region34: #{multivariate_linear_regression.1} parent=1 // pred_check
      _
    $region35: #{multivariate_linear_regression.1} parent=1 // pred_check_branch
      %8745 = sbr.rel (0) target = $region37
    $region36: #{multivariate_linear_regression.1} parent=1 // pred_region
      %8747 = dma.done [#allocation5], 16
    $region37: #{multivariate_linear_regression.1} parent=1 // pred_fallthru
      _
    %8748 = vsyncpa [#allocation5], 1

</llo_original>
